<compile_context>
chip_gen: v7x
topology: tpu7x:2x2x1
jax: 0.10.0
libtpu: 0.0.40
codegen_flags: <defaults>
</compile_context>

<pallas_src>
import jax
import jax.numpy as jnp
from jax.experimental import pallas as pl
from jax.experimental.pallas import tpu as pltpu


def _round_up(x, m):
    return ((x + m - 1) // m) * m


# ---------------------------------------------------------------------------
# Fused 3x3 conv (+bias) + per-image BatchNorm partial-sum Pallas kernel
# ---------------------------------------------------------------------------
def conv3x3_bias_stats(x_flat, w9, bias, mask, H, W, row0):
    """x_flat: (N, Rows, Cin_p) bf16 padded image in kernel layout; the padded image's
    flat row 0 lives at buffer row `row0` (static).  w9: (9, Cin_p, Coutp) bf16 taps in
    kh*3+kw order.  bias: (1, Coutp) f32.  mask: (Mv, 1) f32, 1.0 on real output
    columns (w < W).  Returns y (N, Mv, Coutp) f32 plus per-image masked sum / sum-sq
    (N, 1, Coutp) f32 where Mv = H*(W+2); columns w >= W of y are wrap garbage."""
    N, Rows, Cin = x_flat.shape
    Coutp = w9.shape[2]
    Wp = W + 2
    Mv = H * Wp

    TCout = Coutp if Coutp <= 256 else 256       # lane tile (MXU width on v6e/v7x)
    n_j = Coutp // TCout

    def kernel(x_ref, w_ref, b_ref, m_ref, y_ref, s_ref, q_ref):
        acc = jnp.zeros((Mv, TCout), jnp.float32)
        for t in range(9):                       # unrolled tap loop (kh, kw)
            base = row0 + (t // 3) * Wp + (t % 3)   # static shift into padded rows
            a = x_ref[0, pl.ds(base, Mv), :]        # (Mv, Cin) bf16 in-VMEM im2col slice
            acc = acc + jnp.dot(a, w_ref[t], preferred_element_type=jnp.float32)
        acc = acc + b_ref[...]                   # fused bias epilogue
        y_ref[0, :, :] = acc
        ym = acc * m_ref[...]                    # mask wrap-around columns
        s_ref[0, :, :] = jnp.sum(ym, axis=0, keepdims=True)         # sum(y)
        q_ref[0, :, :] = jnp.sum(ym * acc, axis=0, keepdims=True)   # sum(y^2)

    return pl.pallas_call(
        kernel,
        out_shape=(jax.ShapeDtypeStruct((N, Mv, Coutp), jnp.float32),
                   jax.ShapeDtypeStruct((N, 1, Coutp), jnp.float32),
                   jax.ShapeDtypeStruct((N, 1, Coutp), jnp.float32)),
        grid=(N, n_j),
        in_specs=[pl.BlockSpec((1, Rows, Cin), lambda n, j: (n, 0, 0)),
                  pl.BlockSpec((9, Cin, TCout), lambda n, j: (0, 0, j)),
                  pl.BlockSpec((1, TCout), lambda n, j: (0, j)),
                  pl.BlockSpec((Mv, 1), lambda n, j: (0, 0))],
        out_specs=(pl.BlockSpec((1, Mv, TCout), lambda n, j: (n, 0, j)),
                   pl.BlockSpec((1, 1, TCout), lambda n, j: (n, 0, j)),
                   pl.BlockSpec((1, 1, TCout), lambda n, j: (n, 0, j))),
        compiler_params=pltpu.CompilerParams(
            dimension_semantics=("parallel", "parallel")),
    )(x_flat, w9, bias, mask)


# ---------------------------------------------------------------------------
# Fused BatchNorm-apply + ReLU Pallas kernel (plain layout, final stage)
# ---------------------------------------------------------------------------
def bn_relu(y, scale, shift, out_dtype):
    N, Mv, C = y.shape

    def kernel(y_ref, sc_ref, sh_ref, o_ref):
        o_ref[...] = jnp.maximum(
            y_ref[...] * sc_ref[...] + sh_ref[...], 0.0).astype(o_ref.dtype)

    return pl.pallas_call(
        kernel,
        out_shape=jax.ShapeDtypeStruct((N, Mv, C), out_dtype),
        grid=(N,),
        in_specs=[pl.BlockSpec((1, Mv, C), lambda n: (n, 0, 0)),
                  pl.BlockSpec((1, C), lambda n: (0, 0)),
                  pl.BlockSpec((1, C), lambda n: (0, 0))],
        out_specs=pl.BlockSpec((1, Mv, C), lambda n: (n, 0, 0)),
        compiler_params=pltpu.CompilerParams(dimension_semantics=("parallel",)),
    )(y, scale.reshape(1, C), shift.reshape(1, C))


# ---------------------------------------------------------------------------
# Fused BatchNorm-apply + ReLU + "repack into next conv's padded layout" kernel.
# Writes bf16 directly into the (N, rows_out, C) padded flattened buffer the next
# conv consumes, so no XLA reshape/slice/pad pass over the intermediate activation.
# ---------------------------------------------------------------------------
def bn_relu_repack(y, scale, shift, mask, rows_out, row_start):
    N, Mv, C = y.shape

    def kernel(y_ref, sc_ref, sh_ref, m_ref, o_ref):
        o_ref[...] = jnp.zeros(o_ref.shape, o_ref.dtype)   # zero borders + slack rows
        v = jnp.maximum(y_ref[0, :, :] * sc_ref[...] + sh_ref[...], 0.0) * m_ref[...]
        # 8-aligned static sublane offset (row_start % 8 == 0, Mv % 8 == 0).
        o_ref[0, pl.ds(row_start, Mv), :] = v.astype(o_ref.dtype)

    return pl.pallas_call(
        kernel,
        out_shape=jax.ShapeDtypeStruct((N, rows_out, C), jnp.bfloat16),
        grid=(N,),
        in_specs=[pl.BlockSpec((1, Mv, C), lambda n: (n, 0, 0)),
                  pl.BlockSpec((1, C), lambda n: (0, 0)),
                  pl.BlockSpec((1, C), lambda n: (0, 0)),
                  pl.BlockSpec((Mv, 1), lambda n: (0, 0))],
        out_specs=pl.BlockSpec((1, rows_out, C), lambda n: (n, 0, 0)),
        compiler_params=pltpu.CompilerParams(dimension_semantics=("parallel",)),
    )(y, scale.reshape(1, C), shift.reshape(1, C), mask)


# ---------------------------------------------------------------------------
# One Conv2d(3x3, pad=1) -> BatchNorm2d(training stats) -> ReLU stage
# ---------------------------------------------------------------------------
def conv_bn_relu_stage(xf, row0, w, b, gamma, beta, H, W, *, eps=1e-5,
                       repack_for_next=False):
    """xf: (N, Rows, Cin_p) bf16 kernel-layout padded input (image starts at row0)."""
    N, Rows, Cin_p = xf.shape
    Cout, Cin = w.shape[0], w.shape[1]
    Wp, Hp = W + 2, H + 2
    Mv = H * Wp
    Coutp = Cout if Cout <= 256 else _round_up(Cout, 256)

    # Weights: PyTorch (Cout, Cin, 3, 3) -> (9, Cin_p, Coutp), taps in kh*3+kw order.
    w9 = jnp.transpose(w, (2, 3, 1, 0)).reshape(9, Cin, Cout)
    w9 = jnp.pad(w9, ((0, 0), (0, Cin_p - Cin), (0, Coutp - Cout))).astype(jnp.bfloat16)
    b2 = jnp.pad(b, (0, Coutp - Cout)).reshape(1, Coutp).astype(jnp.float32)

    # Valid-column mask for the flattened H x (W+2) output rows.
    col = jnp.arange(Mv, dtype=jnp.int32) % Wp
    mask = (col < W).astype(jnp.float32).reshape(Mv, 1)

    y, psum, pssq = conv3x3_bias_stats(xf, w9, b2, mask, H, W, row0)
    y = y[..., :Cout]

    # Training-mode BatchNorm statistics over (N, H, W) from the fused partial sums
    # (tiny (N, Cout) reductions; no extra HBM pass over the conv output).
    cnt = float(N * H * W)
    tot = jnp.sum(psum[..., :Cout], axis=(0, 1))
    tot2 = jnp.sum(pssq[..., :Cout], axis=(0, 1))
    mean = tot / cnt
    var = jnp.maximum(tot2 / cnt - mean * mean, 0.0)   # biased var, as in F.batch_norm
    scale = (gamma / jnp.sqrt(var + eps)).astype(jnp.float32)
    shift = (beta - mean * scale).astype(jnp.float32)

    if repack_for_next:
        # Place the valid rows at an 8-aligned buffer offset; the next conv starts its
        # tap slices at `next_row0` (where the padded image's flat row 0 lives).
        row_start = _round_up(Wp + 1, 8)
        next_row0 = row_start - (Wp + 1)
        rows_out = _round_up(next_row0 + Hp * Wp + 2, 8)   # +2 slack rows for taps
        out = bn_relu_repack(y, scale, shift, mask, rows_out, row_start)
        Cp = _round_up(Cout, 8)
        if Cp != Cout:   # keep the next contraction dim sublane-friendly (usually no-op)
            out = jnp.pad(out, ((0, 0), (0, 0), (0, Cp - Cout)))
        return out, next_row0
    else:
        out = bn_relu(y, scale, shift, jnp.float32)            # (N, Mv, Cout)
        out = out.reshape(N, H, Wp, Cout)[:, :, :W, :]         # drop wrap columns
        return out, None


def conv_unit_forward(params, x_nchw):
    """ConvUnit.forward: NCHW in, NCHW out."""
    x = jnp.transpose(x_nchw, (0, 2, 3, 1))                    # NCHW -> NHWC
    N, H, W, Cin = x.shape
    Hp, Wp = H + 2, W + 2
    Cin_p = _round_up(Cin, 8)
    Rows = _round_up(Hp * Wp + 2, 8)

    # Single spatially padded copy for the first conv (bf16 MXU operand).
    xp = jnp.pad(x, ((0, 0), (1, 1), (1, 1), (0, Cin_p - Cin)))
    xf = jnp.pad(xp.reshape(N, Hp * Wp, Cin_p),
                 ((0, 0), (0, Rows - Hp * Wp), (0, 0))).astype(jnp.bfloat16)

    h, row0 = conv_bn_relu_stage(xf, 0,
                                 params['conv1_w'], params['conv1_b'],
                                 params['bn1_g'], params['bn1_b'], H, W,
                                 repack_for_next=True)          # bf16, already padded
    out, _ = conv_bn_relu_stage(h, row0,
                                params['conv2_w'], params['conv2_b'],
                                params['bn2_g'], params['bn2_b'], H, W,
                                repack_for_next=False)
    return jnp.transpose(out, (0, 3, 1, 2))                     # back to NCHW


# ---------------------------------------------------------------------------
# Pure-JAX reference (f32) for a correctness check
# ---------------------------------------------------------------------------
def conv_unit_reference(params, x_nchw, eps=1e-5):
    x = jnp.transpose(x_nchw, (0, 2, 3, 1)).astype(jnp.float32)

    def layer(h, w, b, g, beta):
        y = jax.lax.conv_general_dilated(
            h, jnp.transpose(w, (2, 3, 1, 0)),                  # HWIO
            window_strides=(1, 1), padding='SAME',
            dimension_numbers=('NHWC', 'HWIO', 'NHWC'),
            precision=jax.lax.Precision.HIGHEST) + b
        mean = jnp.mean(y, axis=(0, 1, 2))
        var = jnp.mean((y - mean) ** 2, axis=(0, 1, 2))
        return jnp.maximum((y - mean) / jnp.sqrt(var + eps) * g + beta, 0.0)

    h = layer(x, params['conv1_w'], params['conv1_b'], params['bn1_g'], params['bn1_b'])
    h = layer(h, params['conv2_w'], params['conv2_b'], params['bn2_g'], params['bn2_b'])
    return jnp.transpose(h, (0, 3, 1, 2))


# ---------------------------------------------------------------------------
# Deterministic parameter init (shapes per ConvUnit.__init__; BN gamma=1, beta=0)
# ---------------------------------------------------------------------------
def init_params(key, in_channels, out_channels):
    ks = jax.random.split(key, 4)
    return {
        'conv1_w': jax.random.normal(ks[0], (out_channels, in_channels, 3, 3),
                                     jnp.float32) / jnp.sqrt(9.0 * in_channels),
        'conv1_b': 0.01 * jax.random.normal(ks[1], (out_channels,), jnp.float32),
        'bn1_g': jnp.ones((out_channels,), jnp.float32),
        'bn1_b': jnp.zeros((out_channels,), jnp.float32),
        'conv2_w': jax.random.normal(ks[2], (out_channels, out_channels, 3, 3),
                                     jnp.float32) / jnp.sqrt(9.0 * out_channels),
        'conv2_b': 0.01 * jax.random.normal(ks[3], (out_channels,), jnp.float32),
        'bn2_g': jnp.ones((out_channels,), jnp.float32),
        'bn2_b': jnp.zeros((out_channels,), jnp.float32),
    }


if __name__ == "__main__":
    key = jax.random.PRNGKey(0)
    pkey, xkey = jax.random.split(key)
    in_channels, out_channels = 4, 32
    N, H, W = 2, 16, 16

    params = init_params(pkey, in_channels, out_channels)
    x = jax.random.normal(xkey, (N, in_channels, H, W), jnp.float32)

    fwd = jax.jit(conv_unit_forward)
    y = jax.block_until_ready(fwd(params, x))

    assert y.shape == (N, out_channels, H, W), y.shape
    assert bool(jnp.all(jnp.isfinite(y)))
    assert bool(jnp.all(y >= 0.0))                     # ReLU output range

    # Numerical check against the f32 reference (bf16 MXU operands -> loose tolerance).
    y_ref = jax.block_until_ready(jax.jit(conv_unit_reference)(params, x))
    max_err = float(jnp.max(jnp.abs(y - y_ref)))
    assert max_err < 0.25, f"max |pallas - reference| = {max_err}"

    print("KERNEL_OK")
</pallas_src>

<mosaic_0001>
module attributes {stable_mosaic.version = 11 : i64} {
  func.func @kernel(%arg0: i32, %arg1: i32, %arg2: memref<1x328x8xbf16, #tpu.memory_space<vmem>>, %arg3: memref<9x8x32xbf16, #tpu.memory_space<vmem>>, %arg4: memref<1x32xf32, #tpu.memory_space<vmem>>, %arg5: memref<288x1xf32, #tpu.memory_space<vmem>>, %arg6: memref<1x288x32xf32, #tpu.memory_space<vmem>>, %arg7: memref<1x1x32xf32, #tpu.memory_space<vmem>>, %arg8: memref<1x1x32xf32, #tpu.memory_space<vmem>>) attributes {dimension_semantics = [#tpu.dimension_semantics<parallel>, #tpu.dimension_semantics<parallel>], iteration_bounds = array<i64: 2, 1>, scalar_prefetch = 0 : i64, scratch_operands = 0 : i64, tpu.core_type = #tpu.core_type<tc>, window_params = [{transform_indices = @transform_0, window_bounds = array<i64: 1, 328, 8>}, {transform_indices = @transform_1, window_bounds = array<i64: 9, 8, 32>}, {transform_indices = @transform_2, window_bounds = array<i64: 1, 32>}, {pipeline_mode = #tpu.pipeline_mode<synchronous>, transform_indices = @transform_3, window_bounds = array<i64: 288, 1>}, {transform_indices = @transform_4, window_bounds = array<i64: 1, 288, 32>}, {transform_indices = @transform_5, window_bounds = array<i64: 1, 1, 32>}, {transform_indices = @transform_6, window_bounds = array<i64: 1, 1, 32>}]} {
    %cst = arith.constant 0.000000e+00 : f32
    %0 = vector.broadcast %cst : f32 to vector<288x32xf32>
    %c0 = arith.constant 0 : index
    %c0_0 = arith.constant 0 : index
    %c0_1 = arith.constant 0 : index
    %1 = vector.load %arg2[%c0, %c0_0, %c0_1] : memref<1x328x8xbf16, #tpu.memory_space<vmem>>, vector<1x288x8xbf16>
    %2 = vector.shape_cast %1 : vector<1x288x8xbf16> to vector<288x8xbf16>
    %c0_2 = arith.constant 0 : index
    %c0_3 = arith.constant 0 : index
    %c0_4 = arith.constant 0 : index
    %3 = vector.load %arg3[%c0_2, %c0_3, %c0_4] : memref<9x8x32xbf16, #tpu.memory_space<vmem>>, vector<1x8x32xbf16>
    %4 = vector.shape_cast %3 : vector<1x8x32xbf16> to vector<8x32xbf16>
    %cst_5 = arith.constant dense<0.000000e+00> : vector<288x32xf32>
    %5 = tpu.matmul %2, %4, %cst_5 {dimension_numbers = #tpu.dot_dimension_numbers<[1], [0], [0], [1], [0, 0, 1, 1], [], []>} : vector<288x8xbf16>, vector<8x32xbf16>, vector<288x32xf32> -> vector<288x32xf32>
    %6 = arith.addf %0, %5 : vector<288x32xf32>
    %c0_6 = arith.constant 0 : index
    %c1 = arith.constant 1 : index
    %c0_7 = arith.constant 0 : index
    %7 = vector.load %arg2[%c0_6, %c1, %c0_7] : memref<1x328x8xbf16, #tpu.memory_space<vmem>>, vector<1x288x8xbf16>
    %8 = vector.shape_cast %7 : vector<1x288x8xbf16> to vector<288x8xbf16>
    %c1_8 = arith.constant 1 : index
    %c0_9 = arith.constant 0 : index
    %c0_10 = arith.constant 0 : index
    %9 = vector.load %arg3[%c1_8, %c0_9, %c0_10] : memref<9x8x32xbf16, #tpu.memory_space<vmem>>, vector<1x8x32xbf16>
    %10 = vector.shape_cast %9 : vector<1x8x32xbf16> to vector<8x32xbf16>
    %cst_11 = arith.constant dense<0.000000e+00> : vector<288x32xf32>
    %11 = tpu.matmul %8, %10, %cst_11 {dimension_numbers = #tpu.dot_dimension_numbers<[1], [0], [0], [1], [0, 0, 1, 1], [], []>} : vector<288x8xbf16>, vector<8x32xbf16>, vector<288x32xf32> -> vector<288x32xf32>
    %12 = arith.addf %6, %11 : vector<288x32xf32>
    %c0_12 = arith.constant 0 : index
    %c2 = arith.constant 2 : index
    %c0_13 = arith.constant 0 : index
    %13 = vector.load %arg2[%c0_12, %c2, %c0_13] : memref<1x328x8xbf16, #tpu.memory_space<vmem>>, vector<1x288x8xbf16>
    %14 = vector.shape_cast %13 : vector<1x288x8xbf16> to vector<288x8xbf16>
    %c2_14 = arith.constant 2 : index
    %c0_15 = arith.constant 0 : index
    %c0_16 = arith.constant 0 : index
    %15 = vector.load %arg3[%c2_14, %c0_15, %c0_16] : memref<9x8x32xbf16, #tpu.memory_space<vmem>>, vector<1x8x32xbf16>
    %16 = vector.shape_cast %15 : vector<1x8x32xbf16> to vector<8x32xbf16>
    %cst_17 = arith.constant dense<0.000000e+00> : vector<288x32xf32>
    %17 = tpu.matmul %14, %16, %cst_17 {dimension_numbers = #tpu.dot_dimension_numbers<[1], [0], [0], [1], [0, 0, 1, 1], [], []>} : vector<288x8xbf16>, vector<8x32xbf16>, vector<288x32xf32> -> vector<288x32xf32>
    %18 = arith.addf %12, %17 : vector<288x32xf32>
    %c0_18 = arith.constant 0 : index
    %c18 = arith.constant 18 : index
    %c0_19 = arith.constant 0 : index
    %19 = vector.load %arg2[%c0_18, %c18, %c0_19] : memref<1x328x8xbf16, #tpu.memory_space<vmem>>, vector<1x288x8xbf16>
    %20 = vector.shape_cast %19 : vector<1x288x8xbf16> to vector<288x8xbf16>
    %c3 = arith.constant 3 : index
    %c0_20 = arith.constant 0 : index
    %c0_21 = arith.constant 0 : index
    %21 = vector.load %arg3[%c3, %c0_20, %c0_21] : memref<9x8x32xbf16, #tpu.memory_space<vmem>>, vector<1x8x32xbf16>
    %22 = vector.shape_cast %21 : vector<1x8x32xbf16> to vector<8x32xbf16>
    %cst_22 = arith.constant dense<0.000000e+00> : vector<288x32xf32>
    %23 = tpu.matmul %20, %22, %cst_22 {dimension_numbers = #tpu.dot_dimension_numbers<[1], [0], [0], [1], [0, 0, 1, 1], [], []>} : vector<288x8xbf16>, vector<8x32xbf16>, vector<288x32xf32> -> vector<288x32xf32>
    %24 = arith.addf %18, %23 : vector<288x32xf32>
    %c0_23 = arith.constant 0 : index
    %c19 = arith.constant 19 : index
    %c0_24 = arith.constant 0 : index
    %25 = vector.load %arg2[%c0_23, %c19, %c0_24] : memref<1x328x8xbf16, #tpu.memory_space<vmem>>, vector<1x288x8xbf16>
    %26 = vector.shape_cast %25 : vector<1x288x8xbf16> to vector<288x8xbf16>
    %c4 = arith.constant 4 : index
    %c0_25 = arith.constant 0 : index
    %c0_26 = arith.constant 0 : index
    %27 = vector.load %arg3[%c4, %c0_25, %c0_26] : memref<9x8x32xbf16, #tpu.memory_space<vmem>>, vector<1x8x32xbf16>
    %28 = vector.shape_cast %27 : vector<1x8x32xbf16> to vector<8x32xbf16>
    %cst_27 = arith.constant dense<0.000000e+00> : vector<288x32xf32>
    %29 = tpu.matmul %26, %28, %cst_27 {dimension_numbers = #tpu.dot_dimension_numbers<[1], [0], [0], [1], [0, 0, 1, 1], [], []>} : vector<288x8xbf16>, vector<8x32xbf16>, vector<288x32xf32> -> vector<288x32xf32>
    %30 = arith.addf %24, %29 : vector<288x32xf32>
    %c0_28 = arith.constant 0 : index
    %c20 = arith.constant 20 : index
    %c0_29 = arith.constant 0 : index
    %31 = vector.load %arg2[%c0_28, %c20, %c0_29] : memref<1x328x8xbf16, #tpu.memory_space<vmem>>, vector<1x288x8xbf16>
    %32 = vector.shape_cast %31 : vector<1x288x8xbf16> to vector<288x8xbf16>
    %c5 = arith.constant 5 : index
    %c0_30 = arith.constant 0 : index
    %c0_31 = arith.constant 0 : index
    %33 = vector.load %arg3[%c5, %c0_30, %c0_31] : memref<9x8x32xbf16, #tpu.memory_space<vmem>>, vector<1x8x32xbf16>
    %34 = vector.shape_cast %33 : vector<1x8x32xbf16> to vector<8x32xbf16>
    %cst_32 = arith.constant dense<0.000000e+00> : vector<288x32xf32>
    %35 = tpu.matmul %32, %34, %cst_32 {dimension_numbers = #tpu.dot_dimension_numbers<[1], [0], [0], [1], [0, 0, 1, 1], [], []>} : vector<288x8xbf16>, vector<8x32xbf16>, vector<288x32xf32> -> vector<288x32xf32>
    %36 = arith.addf %30, %35 : vector<288x32xf32>
    %c0_33 = arith.constant 0 : index
    %c36 = arith.constant 36 : index
    %c0_34 = arith.constant 0 : index
    %37 = vector.load %arg2[%c0_33, %c36, %c0_34] : memref<1x328x8xbf16, #tpu.memory_space<vmem>>, vector<1x288x8xbf16>
    %38 = vector.shape_cast %37 : vector<1x288x8xbf16> to vector<288x8xbf16>
    %c6 = arith.constant 6 : index
    %c0_35 = arith.constant 0 : index
    %c0_36 = arith.constant 0 : index
    %39 = vector.load %arg3[%c6, %c0_35, %c0_36] : memref<9x8x32xbf16, #tpu.memory_space<vmem>>, vector<1x8x32xbf16>
    %40 = vector.shape_cast %39 : vector<1x8x32xbf16> to vector<8x32xbf16>
    %cst_37 = arith.constant dense<0.000000e+00> : vector<288x32xf32>
    %41 = tpu.matmul %38, %40, %cst_37 {dimension_numbers = #tpu.dot_dimension_numbers<[1], [0], [0], [1], [0, 0, 1, 1], [], []>} : vector<288x8xbf16>, vector<8x32xbf16>, vector<288x32xf32> -> vector<288x32xf32>
    %42 = arith.addf %36, %41 : vector<288x32xf32>
    %c0_38 = arith.constant 0 : index
    %c37 = arith.constant 37 : index
    %c0_39 = arith.constant 0 : index
    %43 = vector.load %arg2[%c0_38, %c37, %c0_39] : memref<1x328x8xbf16, #tpu.memory_space<vmem>>, vector<1x288x8xbf16>
    %44 = vector.shape_cast %43 : vector<1x288x8xbf16> to vector<288x8xbf16>
    %c7 = arith.constant 7 : index
    %c0_40 = arith.constant 0 : index
    %c0_41 = arith.constant 0 : index
    %45 = vector.load %arg3[%c7, %c0_40, %c0_41] : memref<9x8x32xbf16, #tpu.memory_space<vmem>>, vector<1x8x32xbf16>
    %46 = vector.shape_cast %45 : vector<1x8x32xbf16> to vector<8x32xbf16>
    %cst_42 = arith.constant dense<0.000000e+00> : vector<288x32xf32>
    %47 = tpu.matmul %44, %46, %cst_42 {dimension_numbers = #tpu.dot_dimension_numbers<[1], [0], [0], [1], [0, 0, 1, 1], [], []>} : vector<288x8xbf16>, vector<8x32xbf16>, vector<288x32xf32> -> vector<288x32xf32>
    %48 = arith.addf %42, %47 : vector<288x32xf32>
    %c0_43 = arith.constant 0 : index
    %c38 = arith.constant 38 : index
    %c0_44 = arith.constant 0 : index
    %49 = vector.load %arg2[%c0_43, %c38, %c0_44] : memref<1x328x8xbf16, #tpu.memory_space<vmem>>, vector<1x288x8xbf16>
    %50 = vector.shape_cast %49 : vector<1x288x8xbf16> to vector<288x8xbf16>
    %c8 = arith.constant 8 : index
    %c0_45 = arith.constant 0 : index
    %c0_46 = arith.constant 0 : index
    %51 = vector.load %arg3[%c8, %c0_45, %c0_46] : memref<9x8x32xbf16, #tpu.memory_space<vmem>>, vector<1x8x32xbf16>
    %52 = vector.shape_cast %51 : vector<1x8x32xbf16> to vector<8x32xbf16>
    %cst_47 = arith.constant dense<0.000000e+00> : vector<288x32xf32>
    %53 = tpu.matmul %50, %52, %cst_47 {dimension_numbers = #tpu.dot_dimension_numbers<[1], [0], [0], [1], [0, 0, 1, 1], [], []>} : vector<288x8xbf16>, vector<8x32xbf16>, vector<288x32xf32> -> vector<288x32xf32>
    %54 = arith.addf %48, %53 : vector<288x32xf32>
    %c0_48 = arith.constant 0 : index
    %c0_49 = arith.constant 0 : index
    %55 = vector.load %arg4[%c0_48, %c0_49] : memref<1x32xf32, #tpu.memory_space<vmem>>, vector<1x32xf32>
    %56 = vector.broadcast %55 : vector<1x32xf32> to vector<288x32xf32>
    %57 = arith.addf %54, %56 : vector<288x32xf32>
    %c0_50 = arith.constant 0 : index
    %c0_51 = arith.constant 0 : index
    %c0_52 = arith.constant 0 : index
    %58 = vector.load %arg6[%c0_50, %c0_51, %c0_52] : memref<1x288x32xf32, #tpu.memory_space<vmem>>, vector<1x288x32xf32>
    %59 = vector.shape_cast %58 : vector<1x288x32xf32> to vector<288x32xf32>
    %60 = vector.shape_cast %57 : vector<288x32xf32> to vector<1x288x32xf32>
    tpu.vector_store %arg6[%c0_50, %c0_51, %c0_52], %60 {strides = array<i32>} : memref<1x288x32xf32, #tpu.memory_space<vmem>>, vector<1x288x32xf32>,
    %c0_53 = arith.constant 0 : index
    %c0_54 = arith.constant 0 : index
    %61 = vector.load %arg5[%c0_53, %c0_54] : memref<288x1xf32, #tpu.memory_space<vmem>>, vector<288x1xf32>
    %62 = vector.broadcast %61 : vector<288x1xf32> to vector<288x32xf32>
    %63 = arith.mulf %57, %62 : vector<288x32xf32>
    %cst_55 = arith.constant dense<0.000000e+00> : vector<32xf32>
    %64 = vector.multi_reduction <add>, %63, %cst_55 [0] : vector<288x32xf32> to vector<32xf32>
    %65 = vector.shape_cast %64 : vector<32xf32> to vector<1x32xf32>
    %c0_56 = arith.constant 0 : index
    %c0_57 = arith.constant 0 : index
    %c0_58 = arith.constant 0 : index
    %66 = vector.load %arg7[%c0_56, %c0_57, %c0_58] : memref<1x1x32xf32, #tpu.memory_space<vmem>>, vector<1x1x32xf32>
    %67 = vector.shape_cast %66 : vector<1x1x32xf32> to vector<1x32xf32>
    %68 = vector.shape_cast %65 : vector<1x32xf32> to vector<1x1x32xf32>
    tpu.vector_store %arg7[%c0_56, %c0_57, %c0_58], %68 {strides = array<i32>} : memref<1x1x32xf32, #tpu.memory_space<vmem>>, vector<1x1x32xf32>,
    %69 = arith.mulf %63, %57 : vector<288x32xf32>
    %cst_59 = arith.constant dense<0.000000e+00> : vector<32xf32>
    %70 = vector.multi_reduction <add>, %69, %cst_59 [0] : vector<288x32xf32> to vector<32xf32>
    %71 = vector.shape_cast %70 : vector<32xf32> to vector<1x32xf32>
    %c0_60 = arith.constant 0 : index
    %c0_61 = arith.constant 0 : index
    %c0_62 = arith.constant 0 : index
    %72 = vector.load %arg8[%c0_60, %c0_61, %c0_62] : memref<1x1x32xf32, #tpu.memory_space<vmem>>, vector<1x1x32xf32>
    %73 = vector.shape_cast %72 : vector<1x1x32xf32> to vector<1x32xf32>
    %74 = vector.shape_cast %71 : vector<1x32xf32> to vector<1x1x32xf32>
    tpu.vector_store %arg8[%c0_60, %c0_61, %c0_62], %74 {strides = array<i32>} : memref<1x1x32xf32, #tpu.memory_space<vmem>>, vector<1x1x32xf32>,
    return
  }
  func.func @transform_0(%arg0: i32, %arg1: i32) -> (i32, i32, i32) {
    %c0_i32 = arith.constant 0 : i32
    %c0_i32_0 = arith.constant 0 : i32
    %c0_i32_1 = arith.constant 0 : i32
    return %arg0, %c0_i32, %c0_i32_0 : i32, i32, i32
  }
  func.func @transform_1(%arg0: i32, %arg1: i32) -> (i32, i32, i32) {
    %c0_i32 = arith.constant 0 : i32
    %c0_i32_0 = arith.constant 0 : i32
    %c0_i32_1 = arith.constant 0 : i32
    return %c0_i32, %c0_i32_0, %arg1 : i32, i32, i32
  }
  func.func @transform_2(%arg0: i32, %arg1: i32) -> (i32, i32) {
    %c0_i32 = arith.constant 0 : i32
    %c0_i32_0 = arith.constant 0 : i32
    return %c0_i32, %arg1 : i32, i32
  }
  func.func @transform_3(%arg0: i32, %arg1: i32) -> (i32, i32) {
    %c0_i32 = arith.constant 0 : i32
    %c0_i32_0 = arith.constant 0 : i32
    %c0_i32_1 = arith.constant 0 : i32
    return %c0_i32, %c0_i32_0 : i32, i32
  }
  func.func @transform_4(%arg0: i32, %arg1: i32) -> (i32, i32, i32) {
    %c0_i32 = arith.constant 0 : i32
    %c0_i32_0 = arith.constant 0 : i32
    return %arg0, %c0_i32, %arg1 : i32, i32, i32
  }
  func.func @transform_5(%arg0: i32, %arg1: i32) -> (i32, i32, i32) {
    %c0_i32 = arith.constant 0 : i32
    %c0_i32_0 = arith.constant 0 : i32
    return %arg0, %c0_i32, %arg1 : i32, i32, i32
  }
  func.func @transform_6(%arg0: i32, %arg1: i32) -> (i32, i32, i32) {
    %c0_i32 = arith.constant 0 : i32
    %c0_i32_0 = arith.constant 0 : i32
    return %arg0, %c0_i32, %arg1 : i32, i32, i32
  }
}

module attributes {stable_mosaic.version = 11 : i64} {
  func.func @kernel(%arg0: i32, %arg1: memref<1x288x32xf32, #tpu.memory_space<vmem>>, %arg2: memref<1x32xf32, #tpu.memory_space<vmem>>, %arg3: memref<1x32xf32, #tpu.memory_space<vmem>>, %arg4: memref<288x1xf32, #tpu.memory_space<vmem>>, %arg5: memref<1x336x32xbf16, #tpu.memory_space<vmem>>) attributes {dimension_semantics = [#tpu.dimension_semantics<parallel>], iteration_bounds = array<i64: 2>, scalar_prefetch = 0 : i64, scratch_operands = 0 : i64, tpu.core_type = #tpu.core_type<tc>, window_params = [{transform_indices = @transform_0, window_bounds = array<i64: 1, 288, 32>}, {pipeline_mode = #tpu.pipeline_mode<synchronous>, transform_indices = @transform_1, window_bounds = array<i64: 1, 32>}, {pipeline_mode = #tpu.pipeline_mode<synchronous>, transform_indices = @transform_2, window_bounds = array<i64: 1, 32>}, {pipeline_mode = #tpu.pipeline_mode<synchronous>, transform_indices = @transform_3, window_bounds = array<i64: 288, 1>}, {transform_indices = @transform_4, window_bounds = array<i64: 1, 336, 32>}]} {
    %cst = arith.constant 0.000000e+00 : bf16
    %0 = vector.broadcast %cst : bf16 to vector<1x336x32xbf16>
    %c0 = arith.constant 0 : index
    %c0_0 = arith.constant 0 : index
    %c0_1 = arith.constant 0 : index
    %1 = vector.load %arg5[%c0, %c0_0, %c0_1] : memref<1x336x32xbf16, #tpu.memory_space<vmem>>, vector<1x336x32xbf16>
    tpu.vector_store %arg5[%c0, %c0_0, %c0_1], %0 {strides = array<i32>} : memref<1x336x32xbf16, #tpu.memory_space<vmem>>, vector<1x336x32xbf16>,
    %c0_2 = arith.constant 0 : index
    %c0_3 = arith.constant 0 : index
    %c0_4 = arith.constant 0 : index
    %2 = vector.load %arg1[%c0_2, %c0_3, %c0_4] : memref<1x288x32xf32, #tpu.memory_space<vmem>>, vector<1x288x32xf32>
    %3 = vector.shape_cast %2 : vector<1x288x32xf32> to vector<288x32xf32>
    %c0_5 = arith.constant 0 : index
    %c0_6 = arith.constant 0 : index
    %4 = vector.load %arg2[%c0_5, %c0_6] : memref<1x32xf32, #tpu.memory_space<vmem>>, vector<1x32xf32>
    %5 = vector.broadcast %4 : vector<1x32xf32> to vector<288x32xf32>
    %6 = arith.mulf %3, %5 : vector<288x32xf32>
    %c0_7 = arith.constant 0 : index
    %c0_8 = arith.constant 0 : index
    %7 = vector.load %arg3[%c0_7, %c0_8] : memref<1x32xf32, #tpu.memory_space<vmem>>, vector<1x32xf32>
    %8 = vector.broadcast %7 : vector<1x32xf32> to vector<288x32xf32>
    %9 = arith.addf %6, %8 : vector<288x32xf32>
    %cst_9 = arith.constant 0.000000e+00 : f32
    %10 = vector.broadcast %cst_9 : f32 to vector<288x32xf32>
    %11 = arith.maximumf %9, %10 : vector<288x32xf32>
    %c0_10 = arith.constant 0 : index
    %c0_11 = arith.constant 0 : index
    %12 = vector.load %arg4[%c0_10, %c0_11] : memref<288x1xf32, #tpu.memory_space<vmem>>, vector<288x1xf32>
    %13 = vector.broadcast %12 : vector<288x1xf32> to vector<288x32xf32>
    %14 = arith.mulf %11, %13 : vector<288x32xf32>
    %15 = arith.truncf %14 : vector<288x32xf32> to vector<288x32xbf16>
    %c0_12 = arith.constant 0 : index
    %c24 = arith.constant 24 : index
    %c0_13 = arith.constant 0 : index
    %16 = vector.load %arg5[%c0_12, %c24, %c0_13] : memref<1x336x32xbf16, #tpu.memory_space<vmem>>, vector<1x288x32xbf16>
    %17 = vector.shape_cast %16 : vector<1x288x32xbf16> to vector<288x32xbf16>
    %18 = vector.shape_cast %15 : vector<288x32xbf16> to vector<1x288x32xbf16>
    tpu.vector_store %arg5[%c0_12, %c24, %c0_13], %18 {strides = array<i32>} : memref<1x336x32xbf16, #tpu.memory_space<vmem>>, vector<1x288x32xbf16>,
    return
  }
  func.func @transform_0(%arg0: i32) -> (i32, i32, i32) {
    %c0_i32 = arith.constant 0 : i32
    %c0_i32_0 = arith.constant 0 : i32
    %c0_i32_1 = arith.constant 0 : i32
    return %arg0, %c0_i32, %c0_i32_0 : i32, i32, i32
  }
  func.func @transform_1(%arg0: i32) -> (i32, i32) {
    %c0_i32 = arith.constant 0 : i32
    %c0_i32_0 = arith.constant 0 : i32
    %c0_i32_1 = arith.constant 0 : i32
    return %c0_i32, %c0_i32_0 : i32, i32
  }
  func.func @transform_2(%arg0: i32) -> (i32, i32) {
    %c0_i32 = arith.constant 0 : i32
    %c0_i32_0 = arith.constant 0 : i32
    %c0_i32_1 = arith.constant 0 : i32
    return %c0_i32, %c0_i32_0 : i32, i32
  }
  func.func @transform_3(%arg0: i32) -> (i32, i32) {
    %c0_i32 = arith.constant 0 : i32
    %c0_i32_0 = arith.constant 0 : i32
    %c0_i32_1 = arith.constant 0 : i32
    return %c0_i32, %c0_i32_0 : i32, i32
  }
  func.func @transform_4(%arg0: i32) -> (i32, i32, i32) {
    %c0_i32 = arith.constant 0 : i32
    %c0_i32_0 = arith.constant 0 : i32
    %c0_i32_1 = arith.constant 0 : i32
    return %arg0, %c0_i32, %c0_i32_0 : i32, i32, i32
  }
}

module attributes {stable_mosaic.version = 11 : i64} {
  func.func @kernel(%arg0: i32, %arg1: i32, %arg2: memref<1x336x32xbf16, #tpu.memory_space<vmem>>, %arg3: memref<9x32x32xbf16, #tpu.memory_space<vmem>>, %arg4: memref<1x32xf32, #tpu.memory_space<vmem>>, %arg5: memref<288x1xf32, #tpu.memory_space<vmem>>, %arg6: memref<1x288x32xf32, #tpu.memory_space<vmem>>, %arg7: memref<1x1x32xf32, #tpu.memory_space<vmem>>, %arg8: memref<1x1x32xf32, #tpu.memory_space<vmem>>) attributes {dimension_semantics = [#tpu.dimension_semantics<parallel>, #tpu.dimension_semantics<parallel>], iteration_bounds = array<i64: 2, 1>, scalar_prefetch = 0 : i64, scratch_operands = 0 : i64, tpu.core_type = #tpu.core_type<tc>, window_params = [{transform_indices = @transform_0, window_bounds = array<i64: 1, 336, 32>}, {transform_indices = @transform_1, window_bounds = array<i64: 9, 32, 32>}, {transform_indices = @transform_2, window_bounds = array<i64: 1, 32>}, {pipeline_mode = #tpu.pipeline_mode<synchronous>, transform_indices = @transform_3, window_bounds = array<i64: 288, 1>}, {transform_indices = @transform_4, window_bounds = array<i64: 1, 288, 32>}, {transform_indices = @transform_5, window_bounds = array<i64: 1, 1, 32>}, {transform_indices = @transform_6, window_bounds = array<i64: 1, 1, 32>}]} {
    %cst = arith.constant 0.000000e+00 : f32
    %0 = vector.broadcast %cst : f32 to vector<288x32xf32>
    %c0 = arith.constant 0 : index
    %c5 = arith.constant 5 : index
    %c0_0 = arith.constant 0 : index
    %1 = vector.load %arg2[%c0, %c5, %c0_0] : memref<1x336x32xbf16, #tpu.memory_space<vmem>>, vector<1x288x32xbf16>
    %2 = vector.shape_cast %1 : vector<1x288x32xbf16> to vector<288x32xbf16>
    %c0_1 = arith.constant 0 : index
    %c0_2 = arith.constant 0 : index
    %c0_3 = arith.constant 0 : index
    %3 = vector.load %arg3[%c0_1, %c0_2, %c0_3] : memref<9x32x32xbf16, #tpu.memory_space<vmem>>, vector<1x32x32xbf16>
    %4 = vector.shape_cast %3 : vector<1x32x32xbf16> to vector<32x32xbf16>
    %cst_4 = arith.constant dense<0.000000e+00> : vector<288x32xf32>
    %5 = tpu.matmul %2, %4, %cst_4 {dimension_numbers = #tpu.dot_dimension_numbers<[1], [0], [0], [1], [0, 0, 1, 1], [], []>} : vector<288x32xbf16>, vector<32x32xbf16>, vector<288x32xf32> -> vector<288x32xf32>
    %6 = arith.addf %0, %5 : vector<288x32xf32>
    %c0_5 = arith.constant 0 : index
    %c6 = arith.constant 6 : index
    %c0_6 = arith.constant 0 : index
    %7 = vector.load %arg2[%c0_5, %c6, %c0_6] : memref<1x336x32xbf16, #tpu.memory_space<vmem>>, vector<1x288x32xbf16>
    %8 = vector.shape_cast %7 : vector<1x288x32xbf16> to vector<288x32xbf16>
    %c1 = arith.constant 1 : index
    %c0_7 = arith.constant 0 : index
    %c0_8 = arith.constant 0 : index
    %9 = vector.load %arg3[%c1, %c0_7, %c0_8] : memref<9x32x32xbf16, #tpu.memory_space<vmem>>, vector<1x32x32xbf16>
    %10 = vector.shape_cast %9 : vector<1x32x32xbf16> to vector<32x32xbf16>
    %cst_9 = arith.constant dense<0.000000e+00> : vector<288x32xf32>
    %11 = tpu.matmul %8, %10, %cst_9 {dimension_numbers = #tpu.dot_dimension_numbers<[1], [0], [0], [1], [0, 0, 1, 1], [], []>} : vector<288x32xbf16>, vector<32x32xbf16>, vector<288x32xf32> -> vector<288x32xf32>
    %12 = arith.addf %6, %11 : vector<288x32xf32>
    %c0_10 = arith.constant 0 : index
    %c7 = arith.constant 7 : index
    %c0_11 = arith.constant 0 : index
    %13 = vector.load %arg2[%c0_10, %c7, %c0_11] : memref<1x336x32xbf16, #tpu.memory_space<vmem>>, vector<1x288x32xbf16>
    %14 = vector.shape_cast %13 : vector<1x288x32xbf16> to vector<288x32xbf16>
    %c2 = arith.constant 2 : index
    %c0_12 = arith.constant 0 : index
    %c0_13 = arith.constant 0 : index
    %15 = vector.load %arg3[%c2, %c0_12, %c0_13] : memref<9x32x32xbf16, #tpu.memory_space<vmem>>, vector<1x32x32xbf16>
    %16 = vector.shape_cast %15 : vector<1x32x32xbf16> to vector<32x32xbf16>
    %cst_14 = arith.constant dense<0.000000e+00> : vector<288x32xf32>
    %17 = tpu.matmul %14, %16, %cst_14 {dimension_numbers = #tpu.dot_dimension_numbers<[1], [0], [0], [1], [0, 0, 1, 1], [], []>} : vector<288x32xbf16>, vector<32x32xbf16>, vector<288x32xf32> -> vector<288x32xf32>
    %18 = arith.addf %12, %17 : vector<288x32xf32>
    %c0_15 = arith.constant 0 : index
    %c23 = arith.constant 23 : index
    %c0_16 = arith.constant 0 : index
    %19 = vector.load %arg2[%c0_15, %c23, %c0_16] : memref<1x336x32xbf16, #tpu.memory_space<vmem>>, vector<1x288x32xbf16>
    %20 = vector.shape_cast %19 : vector<1x288x32xbf16> to vector<288x32xbf16>
    %c3 = arith.constant 3 : index
    %c0_17 = arith.constant 0 : index
    %c0_18 = arith.constant 0 : index
    %21 = vector.load %arg3[%c3, %c0_17, %c0_18] : memref<9x32x32xbf16, #tpu.memory_space<vmem>>, vector<1x32x32xbf16>
    %22 = vector.shape_cast %21 : vector<1x32x32xbf16> to vector<32x32xbf16>
    %cst_19 = arith.constant dense<0.000000e+00> : vector<288x32xf32>
    %23 = tpu.matmul %20, %22, %cst_19 {dimension_numbers = #tpu.dot_dimension_numbers<[1], [0], [0], [1], [0, 0, 1, 1], [], []>} : vector<288x32xbf16>, vector<32x32xbf16>, vector<288x32xf32> -> vector<288x32xf32>
    %24 = arith.addf %18, %23 : vector<288x32xf32>
    %c0_20 = arith.constant 0 : index
    %c24 = arith.constant 24 : index
    %c0_21 = arith.constant 0 : index
    %25 = vector.load %arg2[%c0_20, %c24, %c0_21] : memref<1x336x32xbf16, #tpu.memory_space<vmem>>, vector<1x288x32xbf16>
    %26 = vector.shape_cast %25 : vector<1x288x32xbf16> to vector<288x32xbf16>
    %c4 = arith.constant 4 : index
    %c0_22 = arith.constant 0 : index
    %c0_23 = arith.constant 0 : index
    %27 = vector.load %arg3[%c4, %c0_22, %c0_23] : memref<9x32x32xbf16, #tpu.memory_space<vmem>>, vector<1x32x32xbf16>
    %28 = vector.shape_cast %27 : vector<1x32x32xbf16> to vector<32x32xbf16>
    %cst_24 = arith.constant dense<0.000000e+00> : vector<288x32xf32>
    %29 = tpu.matmul %26, %28, %cst_24 {dimension_numbers = #tpu.dot_dimension_numbers<[1], [0], [0], [1], [0, 0, 1, 1], [], []>} : vector<288x32xbf16>, vector<32x32xbf16>, vector<288x32xf32> -> vector<288x32xf32>
    %30 = arith.addf %24, %29 : vector<288x32xf32>
    %c0_25 = arith.constant 0 : index
    %c25 = arith.constant 25 : index
    %c0_26 = arith.constant 0 : index
    %31 = vector.load %arg2[%c0_25, %c25, %c0_26] : memref<1x336x32xbf16, #tpu.memory_space<vmem>>, vector<1x288x32xbf16>
    %32 = vector.shape_cast %31 : vector<1x288x32xbf16> to vector<288x32xbf16>
    %c5_27 = arith.constant 5 : index
    %c0_28 = arith.constant 0 : index
    %c0_29 = arith.constant 0 : index
    %33 = vector.load %arg3[%c5_27, %c0_28, %c0_29] : memref<9x32x32xbf16, #tpu.memory_space<vmem>>, vector<1x32x32xbf16>
    %34 = vector.shape_cast %33 : vector<1x32x32xbf16> to vector<32x32xbf16>
    %cst_30 = arith.constant dense<0.000000e+00> : vector<288x32xf32>
    %35 = tpu.matmul %32, %34, %cst_30 {dimension_numbers = #tpu.dot_dimension_numbers<[1], [0], [0], [1], [0, 0, 1, 1], [], []>} : vector<288x32xbf16>, vector<32x32xbf16>, vector<288x32xf32> -> vector<288x32xf32>
    %36 = arith.addf %30, %35 : vector<288x32xf32>
    %c0_31 = arith.constant 0 : index
    %c41 = arith.constant 41 : index
    %c0_32 = arith.constant 0 : index
    %37 = vector.load %arg2[%c0_31, %c41, %c0_32] : memref<1x336x32xbf16, #tpu.memory_space<vmem>>, vector<1x288x32xbf16>
    %38 = vector.shape_cast %37 : vector<1x288x32xbf16> to vector<288x32xbf16>
    %c6_33 = arith.constant 6 : index
    %c0_34 = arith.constant 0 : index
    %c0_35 = arith.constant 0 : index
    %39 = vector.load %arg3[%c6_33, %c0_34, %c0_35] : memref<9x32x32xbf16, #tpu.memory_space<vmem>>, vector<1x32x32xbf16>
    %40 = vector.shape_cast %39 : vector<1x32x32xbf16> to vector<32x32xbf16>
    %cst_36 = arith.constant dense<0.000000e+00> : vector<288x32xf32>
    %41 = tpu.matmul %38, %40, %cst_36 {dimension_numbers = #tpu.dot_dimension_numbers<[1], [0], [0], [1], [0, 0, 1, 1], [], []>} : vector<288x32xbf16>, vector<32x32xbf16>, vector<288x32xf32> -> vector<288x32xf32>
    %42 = arith.addf %36, %41 : vector<288x32xf32>
    %c0_37 = arith.constant 0 : index
    %c42 = arith.constant 42 : index
    %c0_38 = arith.constant 0 : index
    %43 = vector.load %arg2[%c0_37, %c42, %c0_38] : memref<1x336x32xbf16, #tpu.memory_space<vmem>>, vector<1x288x32xbf16>
    %44 = vector.shape_cast %43 : vector<1x288x32xbf16> to vector<288x32xbf16>
    %c7_39 = arith.constant 7 : index
    %c0_40 = arith.constant 0 : index
    %c0_41 = arith.constant 0 : index
    %45 = vector.load %arg3[%c7_39, %c0_40, %c0_41] : memref<9x32x32xbf16, #tpu.memory_space<vmem>>, vector<1x32x32xbf16>
    %46 = vector.shape_cast %45 : vector<1x32x32xbf16> to vector<32x32xbf16>
    %cst_42 = arith.constant dense<0.000000e+00> : vector<288x32xf32>
    %47 = tpu.matmul %44, %46, %cst_42 {dimension_numbers = #tpu.dot_dimension_numbers<[1], [0], [0], [1], [0, 0, 1, 1], [], []>} : vector<288x32xbf16>, vector<32x32xbf16>, vector<288x32xf32> -> vector<288x32xf32>
    %48 = arith.addf %42, %47 : vector<288x32xf32>
    %c0_43 = arith.constant 0 : index
    %c43 = arith.constant 43 : index
    %c0_44 = arith.constant 0 : index
    %49 = vector.load %arg2[%c0_43, %c43, %c0_44] : memref<1x336x32xbf16, #tpu.memory_space<vmem>>, vector<1x288x32xbf16>
    %50 = vector.shape_cast %49 : vector<1x288x32xbf16> to vector<288x32xbf16>
    %c8 = arith.constant 8 : index
    %c0_45 = arith.constant 0 : index
    %c0_46 = arith.constant 0 : index
    %51 = vector.load %arg3[%c8, %c0_45, %c0_46] : memref<9x32x32xbf16, #tpu.memory_space<vmem>>, vector<1x32x32xbf16>
    %52 = vector.shape_cast %51 : vector<1x32x32xbf16> to vector<32x32xbf16>
    %cst_47 = arith.constant dense<0.000000e+00> : vector<288x32xf32>
    %53 = tpu.matmul %50, %52, %cst_47 {dimension_numbers = #tpu.dot_dimension_numbers<[1], [0], [0], [1], [0, 0, 1, 1], [], []>} : vector<288x32xbf16>, vector<32x32xbf16>, vector<288x32xf32> -> vector<288x32xf32>
    %54 = arith.addf %48, %53 : vector<288x32xf32>
    %c0_48 = arith.constant 0 : index
    %c0_49 = arith.constant 0 : index
    %55 = vector.load %arg4[%c0_48, %c0_49] : memref<1x32xf32, #tpu.memory_space<vmem>>, vector<1x32xf32>
    %56 = vector.broadcast %55 : vector<1x32xf32> to vector<288x32xf32>
    %57 = arith.addf %54, %56 : vector<288x32xf32>
    %c0_50 = arith.constant 0 : index
    %c0_51 = arith.constant 0 : index
    %c0_52 = arith.constant 0 : index
    %58 = vector.load %arg6[%c0_50, %c0_51, %c0_52] : memref<1x288x32xf32, #tpu.memory_space<vmem>>, vector<1x288x32xf32>
    %59 = vector.shape_cast %58 : vector<1x288x32xf32> to vector<288x32xf32>
    %60 = vector.shape_cast %57 : vector<288x32xf32> to vector<1x288x32xf32>
    tpu.vector_store %arg6[%c0_50, %c0_51, %c0_52], %60 {strides = array<i32>} : memref<1x288x32xf32, #tpu.memory_space<vmem>>, vector<1x288x32xf32>,
    %c0_53 = arith.constant 0 : index
    %c0_54 = arith.constant 0 : index
    %61 = vector.load %arg5[%c0_53, %c0_54] : memref<288x1xf32, #tpu.memory_space<vmem>>, vector<288x1xf32>
    %62 = vector.broadcast %61 : vector<288x1xf32> to vector<288x32xf32>
    %63 = arith.mulf %57, %62 : vector<288x32xf32>
    %cst_55 = arith.constant dense<0.000000e+00> : vector<32xf32>
    %64 = vector.multi_reduction <add>, %63, %cst_55 [0] : vector<288x32xf32> to vector<32xf32>
    %65 = vector.shape_cast %64 : vector<32xf32> to vector<1x32xf32>
    %c0_56 = arith.constant 0 : index
    %c0_57 = arith.constant 0 : index
    %c0_58 = arith.constant 0 : index
    %66 = vector.load %arg7[%c0_56, %c0_57, %c0_58] : memref<1x1x32xf32, #tpu.memory_space<vmem>>, vector<1x1x32xf32>
    %67 = vector.shape_cast %66 : vector<1x1x32xf32> to vector<1x32xf32>
    %68 = vector.shape_cast %65 : vector<1x32xf32> to vector<1x1x32xf32>
    tpu.vector_store %arg7[%c0_56, %c0_57, %c0_58], %68 {strides = array<i32>} : memref<1x1x32xf32, #tpu.memory_space<vmem>>, vector<1x1x32xf32>,
    %69 = arith.mulf %63, %57 : vector<288x32xf32>
    %cst_59 = arith.constant dense<0.000000e+00> : vector<32xf32>
    %70 = vector.multi_reduction <add>, %69, %cst_59 [0] : vector<288x32xf32> to vector<32xf32>
    %71 = vector.shape_cast %70 : vector<32xf32> to vector<1x32xf32>
    %c0_60 = arith.constant 0 : index
    %c0_61 = arith.constant 0 : index
    %c0_62 = arith.constant 0 : index
    %72 = vector.load %arg8[%c0_60, %c0_61, %c0_62] : memref<1x1x32xf32, #tpu.memory_space<vmem>>, vector<1x1x32xf32>
    %73 = vector.shape_cast %72 : vector<1x1x32xf32> to vector<1x32xf32>
    %74 = vector.shape_cast %71 : vector<1x32xf32> to vector<1x1x32xf32>
    tpu.vector_store %arg8[%c0_60, %c0_61, %c0_62], %74 {strides = array<i32>} : memref<1x1x32xf32, #tpu.memory_space<vmem>>, vector<1x1x32xf32>,
    return
  }
  func.func @transform_0(%arg0: i32, %arg1: i32) -> (i32, i32, i32) {
    %c0_i32 = arith.constant 0 : i32
    %c0_i32_0 = arith.constant 0 : i32
    %c0_i32_1 = arith.constant 0 : i32
    return %arg0, %c0_i32, %c0_i32_0 : i32, i32, i32
  }
  func.func @transform_1(%arg0: i32, %arg1: i32) -> (i32, i32, i32) {
    %c0_i32 = arith.constant 0 : i32
    %c0_i32_0 = arith.constant 0 : i32
    %c0_i32_1 = arith.constant 0 : i32
    return %c0_i32, %c0_i32_0, %arg1 : i32, i32, i32
  }
  func.func @transform_2(%arg0: i32, %arg1: i32) -> (i32, i32) {
    %c0_i32 = arith.constant 0 : i32
    %c0_i32_0 = arith.constant 0 : i32
    return %c0_i32, %arg1 : i32, i32
  }
  func.func @transform_3(%arg0: i32, %arg1: i32) -> (i32, i32) {
    %c0_i32 = arith.constant 0 : i32
    %c0_i32_0 = arith.constant 0 : i32
    %c0_i32_1 = arith.constant 0 : i32
    return %c0_i32, %c0_i32_0 : i32, i32
  }
  func.func @transform_4(%arg0: i32, %arg1: i32) -> (i32, i32, i32) {
    %c0_i32 = arith.constant 0 : i32
    %c0_i32_0 = arith.constant 0 : i32
    return %arg0, %c0_i32, %arg1 : i32, i32, i32
  }
  func.func @transform_5(%arg0: i32, %arg1: i32) -> (i32, i32, i32) {
    %c0_i32 = arith.constant 0 : i32
    %c0_i32_0 = arith.constant 0 : i32
    return %arg0, %c0_i32, %arg1 : i32, i32, i32
  }
  func.func @transform_6(%arg0: i32, %arg1: i32) -> (i32, i32, i32) {
    %c0_i32 = arith.constant 0 : i32
    %c0_i32_0 = arith.constant 0 : i32
    return %arg0, %c0_i32, %arg1 : i32, i32, i32
  }
}

module attributes {stable_mosaic.version = 11 : i64} {
  func.func @kernel(%arg0: i32, %arg1: memref<1x288x32xf32, #tpu.memory_space<vmem>>, %arg2: memref<1x32xf32, #tpu.memory_space<vmem>>, %arg3: memref<1x32xf32, #tpu.memory_space<vmem>>, %arg4: memref<1x288x32xf32, #tpu.memory_space<vmem>>) attributes {dimension_semantics = [#tpu.dimension_semantics<parallel>], iteration_bounds = array<i64: 2>, scalar_prefetch = 0 : i64, scratch_operands = 0 : i64, tpu.core_type = #tpu.core_type<tc>, window_params = [{transform_indices = @transform_0, window_bounds = array<i64: 1, 288, 32>}, {pipeline_mode = #tpu.pipeline_mode<synchronous>, transform_indices = @transform_1, window_bounds = array<i64: 1, 32>}, {pipeline_mode = #tpu.pipeline_mode<synchronous>, transform_indices = @transform_2, window_bounds = array<i64: 1, 32>}, {transform_indices = @transform_3, window_bounds = array<i64: 1, 288, 32>}]} {
    %c0 = arith.constant 0 : index
    %c0_0 = arith.constant 0 : index
    %c0_1 = arith.constant 0 : index
    %0 = vector.load %arg1[%c0, %c0_0, %c0_1] : memref<1x288x32xf32, #tpu.memory_space<vmem>>, vector<1x288x32xf32>
    %c0_2 = arith.constant 0 : index
    %c0_3 = arith.constant 0 : index
    %1 = vector.load %arg2[%c0_2, %c0_3] : memref<1x32xf32, #tpu.memory_space<vmem>>, vector<1x32xf32>
    %2 = vector.shape_cast %1 : vector<1x32xf32> to vector<1x1x32xf32>
    %3 = vector.broadcast %2 : vector<1x1x32xf32> to vector<1x288x32xf32>
    %4 = arith.mulf %0, %3 : vector<1x288x32xf32>
    %c0_4 = arith.constant 0 : index
    %c0_5 = arith.constant 0 : index
    %5 = vector.load %arg3[%c0_4, %c0_5] : memref<1x32xf32, #tpu.memory_space<vmem>>, vector<1x32xf32>
    %6 = vector.shape_cast %5 : vector<1x32xf32> to vector<1x1x32xf32>
    %7 = vector.broadcast %6 : vector<1x1x32xf32> to vector<1x288x32xf32>
    %8 = arith.addf %4, %7 : vector<1x288x32xf32>
    %cst = arith.constant 0.000000e+00 : f32
    %9 = vector.broadcast %cst : f32 to vector<1x288x32xf32>
    %10 = arith.maximumf %8, %9 : vector<1x288x32xf32>
    %c0_6 = arith.constant 0 : index
    %c0_7 = arith.constant 0 : index
    %c0_8 = arith.constant 0 : index
    %11 = vector.load %arg4[%c0_6, %c0_7, %c0_8] : memref<1x288x32xf32, #tpu.memory_space<vmem>>, vector<1x288x32xf32>
    tpu.vector_store %arg4[%c0_6, %c0_7, %c0_8], %10 {strides = array<i32>} : memref<1x288x32xf32, #tpu.memory_space<vmem>>, vector<1x288x32xf32>,
    return
  }
  func.func @transform_0(%arg0: i32) -> (i32, i32, i32) {
    %c0_i32 = arith.constant 0 : i32
    %c0_i32_0 = arith.constant 0 : i32
    %c0_i32_1 = arith.constant 0 : i32
    return %arg0, %c0_i32, %c0_i32_0 : i32, i32, i32
  }
  func.func @transform_1(%arg0: i32) -> (i32, i32) {
    %c0_i32 = arith.constant 0 : i32
    %c0_i32_0 = arith.constant 0 : i32
    %c0_i32_1 = arith.constant 0 : i32
    return %c0_i32, %c0_i32_0 : i32, i32
  }
  func.func @transform_2(%arg0: i32) -> (i32, i32) {
    %c0_i32 = arith.constant 0 : i32
    %c0_i32_0 = arith.constant 0 : i32
    %c0_i32_1 = arith.constant 0 : i32
    return %c0_i32, %c0_i32_0 : i32, i32
  }
  func.func @transform_3(%arg0: i32) -> (i32, i32, i32) {
    %c0_i32 = arith.constant 0 : i32
    %c0_i32_0 = arith.constant 0 : i32
    %c0_i32_1 = arith.constant 0 : i32
    return %arg0, %c0_i32, %c0_i32_0 : i32, i32, i32
  }
}

</mosaic_0001>

<llo_original>
// kernel: conv_unit_forward.5
$region0: #{conv_unit_forward.5}
  #allocation0 [shape = 'u32[]', space=smem, size = 0x4, offset = 0x4, fixed_abs, tag = 'smem constant byte address 0x4 - core index']
  #allocation1 [shape = 'u32[144,128]{1,0:T(1,128)}', space=vmem, size = 0x12000, scoped, tag = 'internal scratch']
  %s0 = inlined_call_operand.vmem [shape: f32[2,288,32], index: 0, kind: input, shape index: {}]
  %s1 = inlined_call_operand.vmem [shape: f32[1,32], index: 1, kind: input, shape index: {}]
  %s2 = inlined_call_operand.vmem [shape: f32[1,32], index: 2, kind: input, shape index: {}]
  %s3 = inlined_call_operand.vmem [shape: f32[288,1], index: 3, kind: input, shape index: {}]
  %s4 = inlined_call_operand.vmem [shape: bf16[2,336,32], index: 4, kind: output, shape index: {}]
  %s5 = sld [smem:[#allocation0]]
  $region49: #{conv_unit_forward.5} parent=0
    _
  %s7 = ssub.s32 1, %s5
  %s8 = scalar_select 0, %s7, %s5
  loop: start=0, step=1, limit=4
  $region2: #{conv_unit_forward.5} parent=0 // loop_pre_header
    _
  $region3: #{conv_unit_forward.5} parent=0 // loop_header
    %s10 = sphi 0, %s14
    %p11 = scmp.ge.s32.totalorder %s10, 4
    %s20 = sphi 0, %s22
    %s23 = sphi 0, %s20
    %s24 = sphi 0, %s23
    %s40 = sphi 0, %s24
    %s44 = sphi 0, %s44
    %s46 = sphi 0, %s44
    %s47 = sphi 0, %s46
    %s61 = sphi 0, %s47
    %s65 = sphi 0, %s65
    %s67 = sphi 0, %s65
    %s68 = sphi 0, %s67
    %s82 = sphi 0, %s68
    %s86 = sphi 0, %s86
    %s88 = sphi 0, %s86
    %s89 = sphi 0, %s88
    %s103 = sphi 0, %s89
    %s109 = sphi 0, %s111
    %s112 = sphi 0, %s109
    %s113 = sphi 0, %s112
    %s129 = sphi 0, %s113
  $region4: #{conv_unit_forward.5} parent=0 // loop_header_branch
    %13 = sbr.rel (%p11) target = $region8
  $region5: #{conv_unit_forward.5} parent=0 // loop_body
    %s15 = ssub.s32 %s10, 1
    %s16 = ssub.s32 %s10, 2
    %s17 = sadd.s32 %s10, 1
    %s18 = ssub.s32 %s10, %s17
    %p19 = scmp.eq.s32.totalorder %s18, 0
    %s21 = sadd.s32 %s20, 1
    %s22 = scalar_select %p19, %s20, %s21
    %p25 = pneg %p19
    %p26 = scmp.eq.s32.totalorder %s10, 1
    %p27 = por %p25, %p26
    %p28 = scmp.ne.s32.totalorder %s20, %s23
    %p29 = scmp.eq.s32.totalorder %s10, 0
    %p30 = por %p28, %p29
    %p31 = scmp.ne.s32.totalorder %s20, %s23
    %p32 = scmp.eq.s32.totalorder %s15, 1
    %p33 = por %p31, %p32
    %p34 = scmp.ne.s32.totalorder %s23, %s24
    %p35 = scmp.eq.s32.totalorder %s15, 0
    %p36 = por %p34, %p35
    %p37 = scmp.ne.s32.totalorder %s23, %s24
    %p38 = scmp.eq.s32.totalorder %s16, 1
    %p39 = por %p37, %p38
    %p41 = scmp.ne.s32.totalorder %s24, %s40
    %p42 = scmp.eq.s32.totalorder %s16, 0
    %p43 = por %p41, %p42
    %s45 = sadd.s32 %s44, 1
    %p48 = scmp.eq.s32.totalorder %s10, 1
    %p49 = scmp.ne.s32.totalorder %s44, %s46
    %p50 = scmp.eq.s32.totalorder %s10, 0
    %p51 = por %p49, %p50
    %p52 = scmp.ne.s32.totalorder %s44, %s46
    %p53 = scmp.eq.s32.totalorder %s15, 1
    %p54 = por %p52, %p53
    %p55 = scmp.ne.s32.totalorder %s46, %s47
    %p56 = scmp.eq.s32.totalorder %s15, 0
    %p57 = por %p55, %p56
    %p58 = scmp.ne.s32.totalorder %s46, %s47
    %p59 = scmp.eq.s32.totalorder %s16, 1
    %p60 = por %p58, %p59
    %p62 = scmp.ne.s32.totalorder %s47, %s61
    %p63 = scmp.eq.s32.totalorder %s16, 0
    %p64 = por %p62, %p63
    %s66 = sadd.s32 %s65, 1
    %p69 = scmp.eq.s32.totalorder %s10, 1
    %p70 = scmp.ne.s32.totalorder %s65, %s67
    %p71 = scmp.eq.s32.totalorder %s10, 0
    %p72 = por %p70, %p71
    %p73 = scmp.ne.s32.totalorder %s65, %s67
    %p74 = scmp.eq.s32.totalorder %s15, 1
    %p75 = por %p73, %p74
    %p76 = scmp.ne.s32.totalorder %s67, %s68
    %p77 = scmp.eq.s32.totalorder %s15, 0
    %p78 = por %p76, %p77
    %p79 = scmp.ne.s32.totalorder %s67, %s68
    %p80 = scmp.eq.s32.totalorder %s16, 1
    %p81 = por %p79, %p80
    %p83 = scmp.ne.s32.totalorder %s68, %s82
    %p84 = scmp.eq.s32.totalorder %s16, 0
    %p85 = por %p83, %p84
    %s87 = sadd.s32 %s86, 1
    %p90 = scmp.eq.s32.totalorder %s10, 1
    %p91 = scmp.ne.s32.totalorder %s86, %s88
    %p92 = scmp.eq.s32.totalorder %s10, 0
    %p93 = por %p91, %p92
    %p94 = scmp.ne.s32.totalorder %s86, %s88
    %p95 = scmp.eq.s32.totalorder %s15, 1
    %p96 = por %p94, %p95
    %p97 = scmp.ne.s32.totalorder %s88, %s89
    %p98 = scmp.eq.s32.totalorder %s15, 0
    %p99 = por %p97, %p98
    %p100 = scmp.ne.s32.totalorder %s88, %s89
    %p101 = scmp.eq.s32.totalorder %s16, 1
    %p102 = por %p100, %p101
    %p104 = scmp.ne.s32.totalorder %s89, %s103
    %p105 = scmp.eq.s32.totalorder %s16, 0
    %p106 = por %p104, %p105
    %s107 = ssub.s32 %s10, %s17
    %p108 = scmp.eq.s32.totalorder %s107, 0
    %s110 = sadd.s32 %s109, 1
    %s111 = scalar_select %p108, %s109, %s110
    %p114 = pneg %p108
    %p115 = scmp.eq.s32.totalorder %s10, 1
    %p116 = por %p114, %p115
    %p117 = scmp.ne.s32.totalorder %s109, %s112
    %p118 = scmp.eq.s32.totalorder %s10, 0
    %p119 = por %p117, %p118
    %p120 = scmp.ne.s32.totalorder %s109, %s112
    %p121 = scmp.eq.s32.totalorder %s15, 1
    %p122 = por %p120, %p121
    %p123 = scmp.ne.s32.totalorder %s112, %s113
    %p124 = scmp.eq.s32.totalorder %s15, 0
    %p125 = por %p123, %p124
    %p126 = scmp.ne.s32.totalorder %s112, %s113
    %p127 = scmp.eq.s32.totalorder %s16, 1
    %p128 = por %p126, %p127
    %p130 = scmp.ne.s32.totalorder %s113, %s129
    %p131 = scmp.eq.s32.totalorder %s16, 0
    %p132 = por %p130, %p131
    %p133 = scmp.le.s32.totalorder 1, %s10
    %p134 = scmp.lt.s32.totalorder %s10, 3
    %p135 = pnand %p133, %p134
    %p136 = pneg %p135
    // Predicated region
    $region9: #{conv_unit_forward.5} parent=5 // pred_check
      _
    $region10: #{conv_unit_forward.5} parent=5 // pred_check_branch
      %138 = sbr.rel (%p135) target = $region12
    $region11: #{conv_unit_forward.5} parent=5 // pred_region
      %s139 = ssub.s32 %s10, 1
      // Predicated region
      $region13: #{conv_unit_forward.5} parent=11 // pred_check
        %p140 = pneg %p57
      $region14: #{conv_unit_forward.5} parent=11 // pred_check_branch
        %142 = sbr.rel (%p140) target = $region16
      $region15: #{conv_unit_forward.5} parent=11 // pred_region
        _
      $region16: #{conv_unit_forward.5} parent=11 // pred_fallthru
        _
      // Predicated region
      $region17: #{conv_unit_forward.5} parent=11 // pred_check
        %p143 = pneg %p78
      $region18: #{conv_unit_forward.5} parent=11 // pred_check_branch
        %145 = sbr.rel (%p143) target = $region20
      $region19: #{conv_unit_forward.5} parent=11 // pred_region
        _
      $region20: #{conv_unit_forward.5} parent=11 // pred_fallthru
        _
      // Predicated region
      $region21: #{conv_unit_forward.5} parent=11 // pred_check
        %p146 = pneg %p99
      $region22: #{conv_unit_forward.5} parent=11 // pred_check_branch
        %148 = sbr.rel (%p146) target = $region24
      $region23: #{conv_unit_forward.5} parent=11 // pred_region
        _
      $region24: #{conv_unit_forward.5} parent=11 // pred_fallthru
        _
    $region12: #{conv_unit_forward.5} parent=5 // pred_fallthru
      _
    %p149 = scmp.lt.s32.totalorder %s10, 2
    // Predicated region
    $region25: #{conv_unit_forward.5} parent=5 // pred_check
      %p150 = pneg %p149
    $region26: #{conv_unit_forward.5} parent=5 // pred_check_branch
      %152 = sbr.rel (%p150) target = $region28
    $region27: #{conv_unit_forward.5} parent=5 // pred_region
      // Predicated region
      $region29: #{conv_unit_forward.5} parent=27 // pred_check
        %p153 = pneg %p30
      $region30: #{conv_unit_forward.5} parent=27 // pred_check_branch
        %155 = sbr.rel (%p153) target = $region32
      $region31: #{conv_unit_forward.5} parent=27 // pred_region
        %p156 = scmp.lt.s32.totalorder %s10, 1
        %s157 = scalar_select %p156, %s10, 1
        %s158 = smul.addr %s157, 36
        %s159 = smul.addr %s158, 8
        %s160 = scalar_lea.vmem %s0, %s159
      $region32: #{conv_unit_forward.5} parent=27 // pred_fallthru
        _
    $region28: #{conv_unit_forward.5} parent=5 // pred_fallthru
      _
    %p161 = scmp.le.s32.totalorder 1, %s10
    %p162 = scmp.lt.s32.totalorder %s10, 3
    %p163 = pnand %p161, %p162
    %p164 = pneg %p163
    // Predicated region
    $region33: #{conv_unit_forward.5} parent=5 // pred_check
      _
    $region34: #{conv_unit_forward.5} parent=5 // pred_check_branch
      %166 = sbr.rel (%p163) target = $region36
    $region35: #{conv_unit_forward.5} parent=5 // pred_region
      %s167 = ssub.s32 %s10, 1
      %p168 = scmp.lt.s32.totalorder %s15, 1
      %s169 = scalar_select %p168, %s15, 1
      %s170 = smul.addr %s169, 36
      %s171 = smul.addr %s170, 8
      %s172 = scalar_lea.vmem %s0, %s171
      %p173 = pneg %p36
      %p174 = pneg %p33
      %p175 = pneg %p57
      %p176 = pneg %p54
      %p177 = pneg %p78
      %p178 = pneg %p75
      %p179 = pneg %p99
      %p180 = pneg %p96
      %p181 = pneg %p125
      %p182 = pneg %p122
      %p183 = scmp.lt.s32.totalorder %s15, 1
      %s184 = scalar_select %p183, %s15, 1
      %s185 = smul.addr %s184, 42
      %s186 = smul.addr %s185, 4
      %s187 = scalar_lea.vmem %s4, %s186
      %p188 = scmp.lt.s32.totalorder %s15, 1
      %s189 = scalar_select %p188, %s15, 1
      %s190 = smul.addr %s189, 36
      %s191 = smul.addr %s190, 8
      %s192 = scalar_lea.vmem %s0, %s191
      %p193 = scmp.lt.s32.totalorder %s15, 1
      %s194 = scalar_select %p193, %s15, 1
      %s195 = smul.addr %s194, 42
      %s196 = smul.addr %s195, 4
      %s197 = scalar_lea.vmem %s4, %s196
      %vm199 = vcmask 257024
      %200 = vst.msk [vmem:[%s197] sm:$0xf] %vm199, 0
      %201 = vst.msk [vmem:[%s197 + $0x4] sm:$0xf] %vm199, 0
      %202 = vst.msk [vmem:[%s197 + $0x8] sm:$0xf] %vm199, 0
      %203 = vst.msk [vmem:[%s197 + $0xc] sm:$0xf] %vm199, 0
      %204 = vst.msk [vmem:[%s197 + $0x10] sm:$0xf] %vm199, 0
      %205 = vst.msk [vmem:[%s197 + $0x14] sm:$0xf] %vm199, 0
      %206 = vst.msk [vmem:[%s197 + $0x18] sm:$0xf] %vm199, 0
      %207 = vst.msk [vmem:[%s197 + $0x1c] sm:$0xf] %vm199, 0
      %208 = vst.msk [vmem:[%s197 + $0x20] sm:$0xf] %vm199, 0
      %209 = vst.msk [vmem:[%s197 + $0x24] sm:$0xf] %vm199, 0
      %210 = vst.msk [vmem:[%s197 + $0x28] sm:$0xf] %vm199, 0
      %211 = vst.msk [vmem:[%s197 + $0x2c] sm:$0xf] %vm199, 0
      %212 = vst.msk [vmem:[%s197 + $0x30] sm:$0xf] %vm199, 0
      %213 = vst.msk [vmem:[%s197 + $0x34] sm:$0xf] %vm199, 0
      %214 = vst.msk [vmem:[%s197 + $0x38] sm:$0xf] %vm199, 0
      %215 = vst.msk [vmem:[%s197 + $0x3c] sm:$0xf] %vm199, 0
      %216 = vst.msk [vmem:[%s197 + $0x40] sm:$0xf] %vm199, 0
      %217 = vst.msk [vmem:[%s197 + $0x44] sm:$0xf] %vm199, 0
      %218 = vst.msk [vmem:[%s197 + $0x48] sm:$0xf] %vm199, 0
      %219 = vst.msk [vmem:[%s197 + $0x4c] sm:$0xf] %vm199, 0
      %220 = vst.msk [vmem:[%s197 + $0x50] sm:$0xf] %vm199, 0
      %221 = vst.msk [vmem:[%s197 + $0x54] sm:$0xf] %vm199, 0
      %222 = vst.msk [vmem:[%s197 + $0x58] sm:$0xf] %vm199, 0
      %223 = vst.msk [vmem:[%s197 + $0x5c] sm:$0xf] %vm199, 0
      %224 = vst.msk [vmem:[%s197 + $0x60] sm:$0xf] %vm199, 0
      %225 = vst.msk [vmem:[%s197 + $0x64] sm:$0xf] %vm199, 0
      %226 = vst.msk [vmem:[%s197 + $0x68] sm:$0xf] %vm199, 0
      %227 = vst.msk [vmem:[%s197 + $0x6c] sm:$0xf] %vm199, 0
      %228 = vst.msk [vmem:[%s197 + $0x70] sm:$0xf] %vm199, 0
      %229 = vst.msk [vmem:[%s197 + $0x74] sm:$0xf] %vm199, 0
      %230 = vst.msk [vmem:[%s197 + $0x78] sm:$0xf] %vm199, 0
      %231 = vst.msk [vmem:[%s197 + $0x7c] sm:$0xf] %vm199, 0
      %232 = vst.msk [vmem:[%s197 + $0x80] sm:$0xf] %vm199, 0
      %233 = vst.msk [vmem:[%s197 + $0x84] sm:$0xf] %vm199, 0
      %234 = vst.msk [vmem:[%s197 + $0x88] sm:$0xf] %vm199, 0
      %235 = vst.msk [vmem:[%s197 + $0x8c] sm:$0xf] %vm199, 0
      %236 = vst.msk [vmem:[%s197 + $0x90] sm:$0xf] %vm199, 0
      %237 = vst.msk [vmem:[%s197 + $0x94] sm:$0xf] %vm199, 0
      %238 = vst.msk [vmem:[%s197 + $0x98] sm:$0xf] %vm199, 0
      %239 = vst.msk [vmem:[%s197 + $0x9c] sm:$0xf] %vm199, 0
      %240 = vst.msk [vmem:[%s197 + $0xa0] sm:$0xf] %vm199, 0
      %241 = vst.msk [vmem:[%s197 + $0xa4] sm:$0xf] %vm199, 0
      %v242 = vld [vmem:[%s192] sm:$0xff]
      %v243 = vld [vmem:[%s192 + $0x8] sm:$0xff]
      %v244 = vld [vmem:[%s192 + $0x10] sm:$0xff]
      %v245 = vld [vmem:[%s192 + $0x18] sm:$0xff]
      %v246 = vld [vmem:[%s192 + $0x20] sm:$0xff]
      %v247 = vld [vmem:[%s192 + $0x28] sm:$0xff]
      %v248 = vld [vmem:[%s192 + $0x30] sm:$0xff]
      %v249 = vld [vmem:[%s192 + $0x38] sm:$0xff]
      %v250 = vld [vmem:[%s192 + $0x40] sm:$0xff]
      %v251 = vld [vmem:[%s192 + $0x48] sm:$0xff]
      %v252 = vld [vmem:[%s192 + $0x50] sm:$0xff]
      %v253 = vld [vmem:[%s192 + $0x58] sm:$0xff]
      %v254 = vld [vmem:[%s192 + $0x60] sm:$0xff]
      %v255 = vld [vmem:[%s192 + $0x68] sm:$0xff]
      %v256 = vld [vmem:[%s192 + $0x70] sm:$0xff]
      %v257 = vld [vmem:[%s192 + $0x78] sm:$0xff]
      %v258 = vld [vmem:[%s192 + $0x80] sm:$0xff]
      %v259 = vld [vmem:[%s192 + $0x88] sm:$0xff]
      %v260 = vld [vmem:[%s192 + $0x90] sm:$0xff]
      %v261 = vld [vmem:[%s192 + $0x98] sm:$0xff]
      %v262 = vld [vmem:[%s192 + $0xa0] sm:$0xff]
      %v263 = vld [vmem:[%s192 + $0xa8] sm:$0xff]
      %v264 = vld [vmem:[%s192 + $0xb0] sm:$0xff]
      %v265 = vld [vmem:[%s192 + $0xb8] sm:$0xff]
      %v266 = vld [vmem:[%s192 + $0xc0] sm:$0xff]
      %v267 = vld [vmem:[%s192 + $0xc8] sm:$0xff]
      %v268 = vld [vmem:[%s192 + $0xd0] sm:$0xff]
      %v269 = vld [vmem:[%s192 + $0xd8] sm:$0xff]
      %v270 = vld [vmem:[%s192 + $0xe0] sm:$0xff]
      %v271 = vld [vmem:[%s192 + $0xe8] sm:$0xff]
      %v272 = vld [vmem:[%s192 + $0xf0] sm:$0xff]
      %v273 = vld [vmem:[%s192 + $0xf8] sm:$0xff]
      %v274 = vld [vmem:[%s192 + $0x100] sm:$0xff]
      %v275 = vld [vmem:[%s192 + $0x108] sm:$0xff]
      %v276 = vld [vmem:[%s192 + $0x110] sm:$0xff]
      %v277 = vld [vmem:[%s192 + $0x118] sm:$0xff]
      %v278 = vld [vmem:[%s1] sm:$0x1]
      %v280 = vlaneseq
      %v281 = vshrl.u32 %v280, 7
      %v282 = vsub.s32 0, %v281
      %v283 = vrot.slane %v278, %v282
      %v285 = vmul.f32 %v242, %v283
      %v286 = vmul.f32 %v243, %v283
      %v287 = vmul.f32 %v244, %v283
      %v288 = vmul.f32 %v245, %v283
      %v289 = vmul.f32 %v246, %v283
      %v290 = vmul.f32 %v247, %v283
      %v291 = vmul.f32 %v248, %v283
      %v292 = vmul.f32 %v249, %v283
      %v293 = vmul.f32 %v250, %v283
      %v294 = vmul.f32 %v251, %v283
      %v295 = vmul.f32 %v252, %v283
      %v296 = vmul.f32 %v253, %v283
      %v297 = vmul.f32 %v254, %v283
      %v298 = vmul.f32 %v255, %v283
      %v299 = vmul.f32 %v256, %v283
      %v300 = vmul.f32 %v257, %v283
      %v301 = vmul.f32 %v258, %v283
      %v302 = vmul.f32 %v259, %v283
      %v303 = vmul.f32 %v260, %v283
      %v304 = vmul.f32 %v261, %v283
      %v305 = vmul.f32 %v262, %v283
      %v306 = vmul.f32 %v263, %v283
      %v307 = vmul.f32 %v264, %v283
      %v308 = vmul.f32 %v265, %v283
      %v309 = vmul.f32 %v266, %v283
      %v310 = vmul.f32 %v267, %v283
      %v311 = vmul.f32 %v268, %v283
      %v312 = vmul.f32 %v269, %v283
      %v313 = vmul.f32 %v270, %v283
      %v314 = vmul.f32 %v271, %v283
      %v315 = vmul.f32 %v272, %v283
      %v316 = vmul.f32 %v273, %v283
      %v317 = vmul.f32 %v274, %v283
      %v318 = vmul.f32 %v275, %v283
      %v319 = vmul.f32 %v276, %v283
      %v320 = vmul.f32 %v277, %v283
      %v321 = vld [vmem:[%s2] sm:$0x1]
      %v323 = vlaneseq
      %v324 = vshrl.u32 %v323, 7
      %v325 = vsub.s32 0, %v324
      %v326 = vrot.slane %v321, %v325
      %v328 = vadd.f32 %v285, %v326
      %v329 = vadd.f32 %v286, %v326
      %v330 = vadd.f32 %v287, %v326
      %v331 = vadd.f32 %v288, %v326
      %v332 = vadd.f32 %v289, %v326
      %v333 = vadd.f32 %v290, %v326
      %v334 = vadd.f32 %v291, %v326
      %v335 = vadd.f32 %v292, %v326
      %v336 = vadd.f32 %v293, %v326
      %v337 = vadd.f32 %v294, %v326
      %v338 = vadd.f32 %v295, %v326
      %v339 = vadd.f32 %v296, %v326
      %v340 = vadd.f32 %v297, %v326
      %v341 = vadd.f32 %v298, %v326
      %v342 = vadd.f32 %v299, %v326
      %v343 = vadd.f32 %v300, %v326
      %v344 = vadd.f32 %v301, %v326
      %v345 = vadd.f32 %v302, %v326
      %v346 = vadd.f32 %v303, %v326
      %v347 = vadd.f32 %v304, %v326
      %v348 = vadd.f32 %v305, %v326
      %v349 = vadd.f32 %v306, %v326
      %v350 = vadd.f32 %v307, %v326
      %v351 = vadd.f32 %v308, %v326
      %v352 = vadd.f32 %v309, %v326
      %v353 = vadd.f32 %v310, %v326
      %v354 = vadd.f32 %v311, %v326
      %v355 = vadd.f32 %v312, %v326
      %v356 = vadd.f32 %v313, %v326
      %v357 = vadd.f32 %v314, %v326
      %v358 = vadd.f32 %v315, %v326
      %v359 = vadd.f32 %v316, %v326
      %v360 = vadd.f32 %v317, %v326
      %v361 = vadd.f32 %v318, %v326
      %v362 = vadd.f32 %v319, %v326
      %v363 = vadd.f32 %v320, %v326
      %v364 = vmax.f32 %v328, 0.0
      %v365 = vmax.f32 %v329, 0.0
      %v366 = vmax.f32 %v330, 0.0
      %v367 = vmax.f32 %v331, 0.0
      %v368 = vmax.f32 %v332, 0.0
      %v369 = vmax.f32 %v333, 0.0
      %v370 = vmax.f32 %v334, 0.0
      %v371 = vmax.f32 %v335, 0.0
      %v372 = vmax.f32 %v336, 0.0
      %v373 = vmax.f32 %v337, 0.0
      %v374 = vmax.f32 %v338, 0.0
      %v375 = vmax.f32 %v339, 0.0
      %v376 = vmax.f32 %v340, 0.0
      %v377 = vmax.f32 %v341, 0.0
      %v378 = vmax.f32 %v342, 0.0
      %v379 = vmax.f32 %v343, 0.0
      %v380 = vmax.f32 %v344, 0.0
      %v381 = vmax.f32 %v345, 0.0
      %v382 = vmax.f32 %v346, 0.0
      %v383 = vmax.f32 %v347, 0.0
      %v384 = vmax.f32 %v348, 0.0
      %v385 = vmax.f32 %v349, 0.0
      %v386 = vmax.f32 %v350, 0.0
      %v387 = vmax.f32 %v351, 0.0
      %v388 = vmax.f32 %v352, 0.0
      %v389 = vmax.f32 %v353, 0.0
      %v390 = vmax.f32 %v354, 0.0
      %v391 = vmax.f32 %v355, 0.0
      %v392 = vmax.f32 %v356, 0.0
      %v393 = vmax.f32 %v357, 0.0
      %v394 = vmax.f32 %v358, 0.0
      %v395 = vmax.f32 %v359, 0.0
      %v396 = vmax.f32 %v360, 0.0
      %v397 = vmax.f32 %v361, 0.0
      %v398 = vmax.f32 %v362, 0.0
      %v399 = vmax.f32 %v363, 0.0
      %v400 = vld [vmem:[%s3] sm:$0xff]
      %v401 = vld [vmem:[%s3 + $0x8] sm:$0xff]
      %v402 = vld [vmem:[%s3 + $0x10] sm:$0xff]
      %v403 = vld [vmem:[%s3 + $0x18] sm:$0xff]
      %v404 = vld [vmem:[%s3 + $0x20] sm:$0xff]
      %v405 = vld [vmem:[%s3 + $0x28] sm:$0xff]
      %v406 = vld [vmem:[%s3 + $0x30] sm:$0xff]
      %v407 = vld [vmem:[%s3 + $0x38] sm:$0xff]
      %v408 = vld [vmem:[%s3 + $0x40] sm:$0xff]
      %v409 = vld [vmem:[%s3 + $0x48] sm:$0xff]
      %v410 = vld [vmem:[%s3 + $0x50] sm:$0xff]
      %v411 = vld [vmem:[%s3 + $0x58] sm:$0xff]
      %v412 = vld [vmem:[%s3 + $0x60] sm:$0xff]
      %v413 = vld [vmem:[%s3 + $0x68] sm:$0xff]
      %v414 = vld [vmem:[%s3 + $0x70] sm:$0xff]
      %v415 = vld [vmem:[%s3 + $0x78] sm:$0xff]
      %v416 = vld [vmem:[%s3 + $0x80] sm:$0xff]
      %v417 = vld [vmem:[%s3 + $0x88] sm:$0xff]
      %v418 = vld [vmem:[%s3 + $0x90] sm:$0xff]
      %v419 = vld [vmem:[%s3 + $0x98] sm:$0xff]
      %v420 = vld [vmem:[%s3 + $0xa0] sm:$0xff]
      %v421 = vld [vmem:[%s3 + $0xa8] sm:$0xff]
      %v422 = vld [vmem:[%s3 + $0xb0] sm:$0xff]
      %v423 = vld [vmem:[%s3 + $0xb8] sm:$0xff]
      %v424 = vld [vmem:[%s3 + $0xc0] sm:$0xff]
      %v425 = vld [vmem:[%s3 + $0xc8] sm:$0xff]
      %v426 = vld [vmem:[%s3 + $0xd0] sm:$0xff]
      %v427 = vld [vmem:[%s3 + $0xd8] sm:$0xff]
      %v428 = vld [vmem:[%s3 + $0xe0] sm:$0xff]
      %v429 = vld [vmem:[%s3 + $0xe8] sm:$0xff]
      %v430 = vld [vmem:[%s3 + $0xf0] sm:$0xff]
      %v431 = vld [vmem:[%s3 + $0xf8] sm:$0xff]
      %v432 = vld [vmem:[%s3 + $0x100] sm:$0xff]
      %v433 = vld [vmem:[%s3 + $0x108] sm:$0xff]
      %v434 = vld [vmem:[%s3 + $0x110] sm:$0xff]
      %v435 = vld [vmem:[%s3 + $0x118] sm:$0xff]
      %437 = vset.pattern.permute.xlu0 0
      %438 = vperm.xlu0 %437, %v400
      %v439 = vpop.permute.xlu0 %438
      %442 = vset.pattern.permute.xlu0 0
      %443 = vperm.xlu0 %442, %v401
      %v444 = vpop.permute.xlu0 %443
      %447 = vset.pattern.permute.xlu0 0
      %448 = vperm.xlu0 %447, %v402
      %v449 = vpop.permute.xlu0 %448
      %452 = vset.pattern.permute.xlu0 0
      %453 = vperm.xlu0 %452, %v403
      %v454 = vpop.permute.xlu0 %453
      %457 = vset.pattern.permute.xlu0 0
      %458 = vperm.xlu0 %457, %v404
      %v459 = vpop.permute.xlu0 %458
      %462 = vset.pattern.permute.xlu0 0
      %463 = vperm.xlu0 %462, %v405
      %v464 = vpop.permute.xlu0 %463
      %467 = vset.pattern.permute.xlu0 0
      %468 = vperm.xlu0 %467, %v406
      %v469 = vpop.permute.xlu0 %468
      %472 = vset.pattern.permute.xlu0 0
      %473 = vperm.xlu0 %472, %v407
      %v474 = vpop.permute.xlu0 %473
      %477 = vset.pattern.permute.xlu0 0
      %478 = vperm.xlu0 %477, %v408
      %v479 = vpop.permute.xlu0 %478
      %482 = vset.pattern.permute.xlu0 0
      %483 = vperm.xlu0 %482, %v409
      %v484 = vpop.permute.xlu0 %483
      %487 = vset.pattern.permute.xlu0 0
      %488 = vperm.xlu0 %487, %v410
      %v489 = vpop.permute.xlu0 %488
      %492 = vset.pattern.permute.xlu0 0
      %493 = vperm.xlu0 %492, %v411
      %v494 = vpop.permute.xlu0 %493
      %497 = vset.pattern.permute.xlu0 0
      %498 = vperm.xlu0 %497, %v412
      %v499 = vpop.permute.xlu0 %498
      %502 = vset.pattern.permute.xlu0 0
      %503 = vperm.xlu0 %502, %v413
      %v504 = vpop.permute.xlu0 %503
      %507 = vset.pattern.permute.xlu0 0
      %508 = vperm.xlu0 %507, %v414
      %v509 = vpop.permute.xlu0 %508
      %512 = vset.pattern.permute.xlu0 0
      %513 = vperm.xlu0 %512, %v415
      %v514 = vpop.permute.xlu0 %513
      %517 = vset.pattern.permute.xlu0 0
      %518 = vperm.xlu0 %517, %v416
      %v519 = vpop.permute.xlu0 %518
      %522 = vset.pattern.permute.xlu0 0
      %523 = vperm.xlu0 %522, %v417
      %v524 = vpop.permute.xlu0 %523
      %527 = vset.pattern.permute.xlu0 0
      %528 = vperm.xlu0 %527, %v418
      %v529 = vpop.permute.xlu0 %528
      %532 = vset.pattern.permute.xlu0 0
      %533 = vperm.xlu0 %532, %v419
      %v534 = vpop.permute.xlu0 %533
      %537 = vset.pattern.permute.xlu0 0
      %538 = vperm.xlu0 %537, %v420
      %v539 = vpop.permute.xlu0 %538
      %542 = vset.pattern.permute.xlu0 0
      %543 = vperm.xlu0 %542, %v421
      %v544 = vpop.permute.xlu0 %543
      %547 = vset.pattern.permute.xlu0 0
      %548 = vperm.xlu0 %547, %v422
      %v549 = vpop.permute.xlu0 %548
      %552 = vset.pattern.permute.xlu0 0
      %553 = vperm.xlu0 %552, %v423
      %v554 = vpop.permute.xlu0 %553
      %557 = vset.pattern.permute.xlu0 0
      %558 = vperm.xlu0 %557, %v424
      %v559 = vpop.permute.xlu0 %558
      %562 = vset.pattern.permute.xlu0 0
      %563 = vperm.xlu0 %562, %v425
      %v564 = vpop.permute.xlu0 %563
      %567 = vset.pattern.permute.xlu0 0
      %568 = vperm.xlu0 %567, %v426
      %v569 = vpop.permute.xlu0 %568
      %572 = vset.pattern.permute.xlu0 0
      %573 = vperm.xlu0 %572, %v427
      %v574 = vpop.permute.xlu0 %573
      %577 = vset.pattern.permute.xlu0 0
      %578 = vperm.xlu0 %577, %v428
      %v579 = vpop.permute.xlu0 %578
      %582 = vset.pattern.permute.xlu0 0
      %583 = vperm.xlu0 %582, %v429
      %v584 = vpop.permute.xlu0 %583
      %587 = vset.pattern.permute.xlu0 0
      %588 = vperm.xlu0 %587, %v430
      %v589 = vpop.permute.xlu0 %588
      %592 = vset.pattern.permute.xlu0 0
      %593 = vperm.xlu0 %592, %v431
      %v594 = vpop.permute.xlu0 %593
      %597 = vset.pattern.permute.xlu0 0
      %598 = vperm.xlu0 %597, %v432
      %v599 = vpop.permute.xlu0 %598
      %602 = vset.pattern.permute.xlu0 0
      %603 = vperm.xlu0 %602, %v433
      %v604 = vpop.permute.xlu0 %603
      %607 = vset.pattern.permute.xlu0 0
      %608 = vperm.xlu0 %607, %v434
      %v609 = vpop.permute.xlu0 %608
      %612 = vset.pattern.permute.xlu0 0
      %613 = vperm.xlu0 %612, %v435
      %v614 = vpop.permute.xlu0 %613
      %v616 = vmul.f32 %v364, %v439
      %v617 = vmul.f32 %v365, %v444
      %v618 = vmul.f32 %v366, %v449
      %v619 = vmul.f32 %v367, %v454
      %v620 = vmul.f32 %v368, %v459
      %v621 = vmul.f32 %v369, %v464
      %v622 = vmul.f32 %v370, %v469
      %v623 = vmul.f32 %v371, %v474
      %v624 = vmul.f32 %v372, %v479
      %v625 = vmul.f32 %v373, %v484
      %v626 = vmul.f32 %v374, %v489
      %v627 = vmul.f32 %v375, %v494
      %v628 = vmul.f32 %v376, %v499
      %v629 = vmul.f32 %v377, %v504
      %v630 = vmul.f32 %v378, %v509
      %v631 = vmul.f32 %v379, %v514
      %v632 = vmul.f32 %v380, %v519
      %v633 = vmul.f32 %v381, %v524
      %v634 = vmul.f32 %v382, %v529
      %v635 = vmul.f32 %v383, %v534
      %v636 = vmul.f32 %v384, %v539
      %v637 = vmul.f32 %v385, %v544
      %v638 = vmul.f32 %v386, %v549
      %v639 = vmul.f32 %v387, %v554
      %v640 = vmul.f32 %v388, %v559
      %v641 = vmul.f32 %v389, %v564
      %v642 = vmul.f32 %v390, %v569
      %v643 = vmul.f32 %v391, %v574
      %v644 = vmul.f32 %v392, %v579
      %v645 = vmul.f32 %v393, %v584
      %v646 = vmul.f32 %v394, %v589
      %v647 = vmul.f32 %v395, %v594
      %v648 = vmul.f32 %v396, %v599
      %v649 = vmul.f32 %v397, %v604
      %v650 = vmul.f32 %v398, %v609
      %v651 = vmul.f32 %v399, %v614
      %v652 = vpack.c.bf16 %v617, %v616
      %v653 = vpack.c.bf16 %v619, %v618
      %v654 = vpack.c.bf16 %v621, %v620
      %v655 = vpack.c.bf16 %v623, %v622
      %v656 = vpack.c.bf16 %v625, %v624
      %v657 = vpack.c.bf16 %v627, %v626
      %v658 = vpack.c.bf16 %v629, %v628
      %v659 = vpack.c.bf16 %v631, %v630
      %v660 = vpack.c.bf16 %v633, %v632
      %v661 = vpack.c.bf16 %v635, %v634
      %v662 = vpack.c.bf16 %v637, %v636
      %v663 = vpack.c.bf16 %v639, %v638
      %v664 = vpack.c.bf16 %v641, %v640
      %v665 = vpack.c.bf16 %v643, %v642
      %v666 = vpack.c.bf16 %v645, %v644
      %v667 = vpack.c.bf16 %v647, %v646
      %v668 = vpack.c.bf16 %v649, %v648
      %v669 = vpack.c.bf16 %v651, %v650
      %v688 = vunpack.c.l.b16 %v652
      %v689 = vunpack.c.h.b16 %v652
      %v690 = vunpack.c.l.b16 %v653
      %v691 = vunpack.c.h.b16 %v653
      %v692 = vunpack.c.l.b16 %v654
      %v693 = vunpack.c.h.b16 %v654
      %v694 = vunpack.c.l.b16 %v655
      %v695 = vunpack.c.h.b16 %v655
      %v696 = vunpack.c.l.b16 %v656
      %v697 = vunpack.c.h.b16 %v656
      %v698 = vunpack.c.l.b16 %v657
      %v699 = vunpack.c.h.b16 %v657
      %v700 = vunpack.c.l.b16 %v658
      %v701 = vunpack.c.h.b16 %v658
      %v702 = vunpack.c.l.b16 %v659
      %v703 = vunpack.c.h.b16 %v659
      %v704 = vunpack.c.l.b16 %v660
      %v705 = vunpack.c.h.b16 %v660
      %v706 = vunpack.c.l.b16 %v661
      %v707 = vunpack.c.h.b16 %v661
      %v708 = vunpack.c.l.b16 %v662
      %v709 = vunpack.c.h.b16 %v662
      %v710 = vunpack.c.l.b16 %v663
      %v711 = vunpack.c.h.b16 %v663
      %v712 = vunpack.c.l.b16 %v664
      %v713 = vunpack.c.h.b16 %v664
      %v714 = vunpack.c.l.b16 %v665
      %v715 = vunpack.c.h.b16 %v665
      %v716 = vunpack.c.l.b16 %v666
      %v717 = vunpack.c.h.b16 %v666
      %v718 = vunpack.c.l.b16 %v667
      %v719 = vunpack.c.h.b16 %v667
      %v720 = vunpack.c.l.b16 %v668
      %v721 = vunpack.c.h.b16 %v668
      %v722 = vunpack.c.l.b16 %v669
      %v723 = vunpack.c.h.b16 %v669
      %v724 = vpack.c.b16 %v688, %v688
      %v725 = vpack.c.b16 %v689, %v689
      %v726 = vpack.c.b16 %v690, %v690
      %v727 = vpack.c.b16 %v691, %v691
      %v728 = vpack.c.b16 %v692, %v692
      %v729 = vpack.c.b16 %v693, %v693
      %v730 = vpack.c.b16 %v694, %v694
      %v731 = vpack.c.b16 %v695, %v695
      %v732 = vpack.c.b16 %v696, %v696
      %v733 = vpack.c.b16 %v697, %v697
      %v734 = vpack.c.b16 %v698, %v698
      %v735 = vpack.c.b16 %v699, %v699
      %v736 = vpack.c.b16 %v700, %v700
      %v737 = vpack.c.b16 %v701, %v701
      %v738 = vpack.c.b16 %v702, %v702
      %v739 = vpack.c.b16 %v703, %v703
      %v740 = vpack.c.b16 %v704, %v704
      %v741 = vpack.c.b16 %v705, %v705
      %v742 = vpack.c.b16 %v706, %v706
      %v743 = vpack.c.b16 %v707, %v707
      %v744 = vpack.c.b16 %v708, %v708
      %v745 = vpack.c.b16 %v709, %v709
      %v746 = vpack.c.b16 %v710, %v710
      %v747 = vpack.c.b16 %v711, %v711
      %v748 = vpack.c.b16 %v712, %v712
      %v749 = vpack.c.b16 %v713, %v713
      %v750 = vpack.c.b16 %v714, %v714
      %v751 = vpack.c.b16 %v715, %v715
      %v752 = vpack.c.b16 %v716, %v716
      %v753 = vpack.c.b16 %v717, %v717
      %v754 = vpack.c.b16 %v718, %v718
      %v755 = vpack.c.b16 %v719, %v719
      %v756 = vpack.c.b16 %v720, %v720
      %v757 = vpack.c.b16 %v721, %v721
      %v758 = vpack.c.b16 %v722, %v722
      %v759 = vpack.c.b16 %v723, %v723
      %796 = vst.msk [vmem:[%s197 + $0xc] sm:$0xf] %vm199, %v724
      %797 = vst.msk [vmem:[%s197 + $0x10] sm:$0xf] %vm199, %v725
      %798 = vst.msk [vmem:[%s197 + $0x14] sm:$0xf] %vm199, %v726
      %799 = vst.msk [vmem:[%s197 + $0x18] sm:$0xf] %vm199, %v727
      %800 = vst.msk [vmem:[%s197 + $0x1c] sm:$0xf] %vm199, %v728
      %801 = vst.msk [vmem:[%s197 + $0x20] sm:$0xf] %vm199, %v729
      %802 = vst.msk [vmem:[%s197 + $0x24] sm:$0xf] %vm199, %v730
      %803 = vst.msk [vmem:[%s197 + $0x28] sm:$0xf] %vm199, %v731
      %804 = vst.msk [vmem:[%s197 + $0x2c] sm:$0xf] %vm199, %v732
      %805 = vst.msk [vmem:[%s197 + $0x30] sm:$0xf] %vm199, %v733
      %806 = vst.msk [vmem:[%s197 + $0x34] sm:$0xf] %vm199, %v734
      %807 = vst.msk [vmem:[%s197 + $0x38] sm:$0xf] %vm199, %v735
      %808 = vst.msk [vmem:[%s197 + $0x3c] sm:$0xf] %vm199, %v736
      %809 = vst.msk [vmem:[%s197 + $0x40] sm:$0xf] %vm199, %v737
      %810 = vst.msk [vmem:[%s197 + $0x44] sm:$0xf] %vm199, %v738
      %811 = vst.msk [vmem:[%s197 + $0x48] sm:$0xf] %vm199, %v739
      %812 = vst.msk [vmem:[%s197 + $0x4c] sm:$0xf] %vm199, %v740
      %813 = vst.msk [vmem:[%s197 + $0x50] sm:$0xf] %vm199, %v741
      %814 = vst.msk [vmem:[%s197 + $0x54] sm:$0xf] %vm199, %v742
      %815 = vst.msk [vmem:[%s197 + $0x58] sm:$0xf] %vm199, %v743
      %816 = vst.msk [vmem:[%s197 + $0x5c] sm:$0xf] %vm199, %v744
      %817 = vst.msk [vmem:[%s197 + $0x60] sm:$0xf] %vm199, %v745
      %818 = vst.msk [vmem:[%s197 + $0x64] sm:$0xf] %vm199, %v746
      %819 = vst.msk [vmem:[%s197 + $0x68] sm:$0xf] %vm199, %v747
      %820 = vst.msk [vmem:[%s197 + $0x6c] sm:$0xf] %vm199, %v748
      %821 = vst.msk [vmem:[%s197 + $0x70] sm:$0xf] %vm199, %v749
      %822 = vst.msk [vmem:[%s197 + $0x74] sm:$0xf] %vm199, %v750
      %823 = vst.msk [vmem:[%s197 + $0x78] sm:$0xf] %vm199, %v751
      %824 = vst.msk [vmem:[%s197 + $0x7c] sm:$0xf] %vm199, %v752
      %825 = vst.msk [vmem:[%s197 + $0x80] sm:$0xf] %vm199, %v753
      %826 = vst.msk [vmem:[%s197 + $0x84] sm:$0xf] %vm199, %v754
      %827 = vst.msk [vmem:[%s197 + $0x88] sm:$0xf] %vm199, %v755
      %828 = vst.msk [vmem:[%s197 + $0x8c] sm:$0xf] %vm199, %v756
      %829 = vst.msk [vmem:[%s197 + $0x90] sm:$0xf] %vm199, %v757
      %830 = vst.msk [vmem:[%s197 + $0x94] sm:$0xf] %vm199, %v758
      %831 = vst.msk [vmem:[%s197 + $0x98] sm:$0xf] %vm199, %v759
      %p832 = scmp.lt.s32.totalorder %s15, 1
      %s833 = scalar_select %p832, %s15, 1
      %s834 = smul.addr %s833, 42
      %s835 = smul.addr %s834, 4
      %s836 = scalar_lea.vmem %s4, %s835
      // Predicated region
      $region37: #{conv_unit_forward.5} parent=35 // pred_check
        %p837 = pneg %p122
      $region38: #{conv_unit_forward.5} parent=35 // pred_check_branch
        %839 = sbr.rel (%p837) target = $region40
      $region39: #{conv_unit_forward.5} parent=35 // pred_region
        _
      $region40: #{conv_unit_forward.5} parent=35 // pred_fallthru
        _
    $region36: #{conv_unit_forward.5} parent=5 // pred_fallthru
      _
    %p840 = scmp.le.s32.totalorder 2, %s10
    // Predicated region
    $region41: #{conv_unit_forward.5} parent=5 // pred_check
      %p841 = pneg %p840
    $region42: #{conv_unit_forward.5} parent=5 // pred_check_branch
      %843 = sbr.rel (%p841) target = $region44
    $region43: #{conv_unit_forward.5} parent=5 // pred_region
      %s844 = ssub.s32 %s10, 2
      // Predicated region
      $region45: #{conv_unit_forward.5} parent=43 // pred_check
        %p845 = pneg %p128
      $region46: #{conv_unit_forward.5} parent=43 // pred_check_branch
        %847 = sbr.rel (%p845) target = $region48
      $region47: #{conv_unit_forward.5} parent=43 // pred_region
        %p848 = scmp.lt.s32.totalorder %s16, 1
        %s849 = scalar_select %p848, %s16, 1
        %s850 = smul.addr %s849, 42
        %s851 = smul.addr %s850, 4
        %s852 = scalar_lea.vmem %s4, %s851
      $region48: #{conv_unit_forward.5} parent=43 // pred_fallthru
        _
    $region44: #{conv_unit_forward.5} parent=5 // pred_fallthru
      _
  $region6: #{conv_unit_forward.5} parent=0 // loop_footer
    %s14 = sadd.s32 1, %s10
  $region7: #{conv_unit_forward.5} parent=0 // loop_footer_branch
    %9 = sbr.rel target = $region3
  $region8: #{conv_unit_forward.5} parent=0 // loop_exit
    _

// kernel: conv_unit_forward.7
$region0: #{conv_unit_forward.7}
  #allocation0 [shape = 'u32[]', space=smem, size = 0x4, offset = 0x4, fixed_abs, tag = 'smem constant byte address 0x4 - core index']
  #allocation1 [shape = 'u32[144,128]{1,0:T(1,128)}', space=vmem, size = 0x12000, scoped, tag = 'internal scratch']
  %s0 = inlined_call_operand.vmem [shape: f32[2,288,32], index: 0, kind: input, shape index: {}]
  %s1 = inlined_call_operand.vmem [shape: f32[1,32], index: 1, kind: input, shape index: {}]
  %s2 = inlined_call_operand.vmem [shape: f32[1,32], index: 2, kind: input, shape index: {}]
  %s3 = inlined_call_operand.vmem [shape: f32[2,288,32], index: 3, kind: output, shape index: {}]
  %s4 = sld [smem:[#allocation0]]
  $region45: #{conv_unit_forward.7} parent=0
    _
  %s6 = ssub.s32 1, %s4
  %s7 = scalar_select 0, %s6, %s4
  loop: start=0, step=1, limit=4
  $region2: #{conv_unit_forward.7} parent=0 // loop_pre_header
    _
  $region3: #{conv_unit_forward.7} parent=0 // loop_header
    %s9 = sphi 0, %s13
    %p10 = scmp.ge.s32.totalorder %s9, 4
    %s19 = sphi 0, %s21
    %s22 = sphi 0, %s19
    %s23 = sphi 0, %s22
    %s39 = sphi 0, %s23
    %s43 = sphi 0, %s43
    %s45 = sphi 0, %s43
    %s46 = sphi 0, %s45
    %s60 = sphi 0, %s46
    %s64 = sphi 0, %s64
    %s66 = sphi 0, %s64
    %s67 = sphi 0, %s66
    %s81 = sphi 0, %s67
    %s87 = sphi 0, %s89
    %s90 = sphi 0, %s87
    %s91 = sphi 0, %s90
    %s107 = sphi 0, %s91
  $region4: #{conv_unit_forward.7} parent=0 // loop_header_branch
    %12 = sbr.rel (%p10) target = $region8
  $region5: #{conv_unit_forward.7} parent=0 // loop_body
    %s14 = ssub.s32 %s9, 1
    %s15 = ssub.s32 %s9, 2
    %s16 = sadd.s32 %s9, 1
    %s17 = ssub.s32 %s9, %s16
    %p18 = scmp.eq.s32.totalorder %s17, 0
    %s20 = sadd.s32 %s19, 1
    %s21 = scalar_select %p18, %s19, %s20
    %p24 = pneg %p18
    %p25 = scmp.eq.s32.totalorder %s9, 1
    %p26 = por %p24, %p25
    %p27 = scmp.ne.s32.totalorder %s19, %s22
    %p28 = scmp.eq.s32.totalorder %s9, 0
    %p29 = por %p27, %p28
    %p30 = scmp.ne.s32.totalorder %s19, %s22
    %p31 = scmp.eq.s32.totalorder %s14, 1
    %p32 = por %p30, %p31
    %p33 = scmp.ne.s32.totalorder %s22, %s23
    %p34 = scmp.eq.s32.totalorder %s14, 0
    %p35 = por %p33, %p34
    %p36 = scmp.ne.s32.totalorder %s22, %s23
    %p37 = scmp.eq.s32.totalorder %s15, 1
    %p38 = por %p36, %p37
    %p40 = scmp.ne.s32.totalorder %s23, %s39
    %p41 = scmp.eq.s32.totalorder %s15, 0
    %p42 = por %p40, %p41
    %s44 = sadd.s32 %s43, 1
    %p47 = scmp.eq.s32.totalorder %s9, 1
    %p48 = scmp.ne.s32.totalorder %s43, %s45
    %p49 = scmp.eq.s32.totalorder %s9, 0
    %p50 = por %p48, %p49
    %p51 = scmp.ne.s32.totalorder %s43, %s45
    %p52 = scmp.eq.s32.totalorder %s14, 1
    %p53 = por %p51, %p52
    %p54 = scmp.ne.s32.totalorder %s45, %s46
    %p55 = scmp.eq.s32.totalorder %s14, 0
    %p56 = por %p54, %p55
    %p57 = scmp.ne.s32.totalorder %s45, %s46
    %p58 = scmp.eq.s32.totalorder %s15, 1
    %p59 = por %p57, %p58
    %p61 = scmp.ne.s32.totalorder %s46, %s60
    %p62 = scmp.eq.s32.totalorder %s15, 0
    %p63 = por %p61, %p62
    %s65 = sadd.s32 %s64, 1
    %p68 = scmp.eq.s32.totalorder %s9, 1
    %p69 = scmp.ne.s32.totalorder %s64, %s66
    %p70 = scmp.eq.s32.totalorder %s9, 0
    %p71 = por %p69, %p70
    %p72 = scmp.ne.s32.totalorder %s64, %s66
    %p73 = scmp.eq.s32.totalorder %s14, 1
    %p74 = por %p72, %p73
    %p75 = scmp.ne.s32.totalorder %s66, %s67
    %p76 = scmp.eq.s32.totalorder %s14, 0
    %p77 = por %p75, %p76
    %p78 = scmp.ne.s32.totalorder %s66, %s67
    %p79 = scmp.eq.s32.totalorder %s15, 1
    %p80 = por %p78, %p79
    %p82 = scmp.ne.s32.totalorder %s67, %s81
    %p83 = scmp.eq.s32.totalorder %s15, 0
    %p84 = por %p82, %p83
    %s85 = ssub.s32 %s9, %s16
    %p86 = scmp.eq.s32.totalorder %s85, 0
    %s88 = sadd.s32 %s87, 1
    %s89 = scalar_select %p86, %s87, %s88
    %p92 = pneg %p86
    %p93 = scmp.eq.s32.totalorder %s9, 1
    %p94 = por %p92, %p93
    %p95 = scmp.ne.s32.totalorder %s87, %s90
    %p96 = scmp.eq.s32.totalorder %s9, 0
    %p97 = por %p95, %p96
    %p98 = scmp.ne.s32.totalorder %s87, %s90
    %p99 = scmp.eq.s32.totalorder %s14, 1
    %p100 = por %p98, %p99
    %p101 = scmp.ne.s32.totalorder %s90, %s91
    %p102 = scmp.eq.s32.totalorder %s14, 0
    %p103 = por %p101, %p102
    %p104 = scmp.ne.s32.totalorder %s90, %s91
    %p105 = scmp.eq.s32.totalorder %s15, 1
    %p106 = por %p104, %p105
    %p108 = scmp.ne.s32.totalorder %s91, %s107
    %p109 = scmp.eq.s32.totalorder %s15, 0
    %p110 = por %p108, %p109
    %p111 = scmp.le.s32.totalorder 1, %s9
    %p112 = scmp.lt.s32.totalorder %s9, 3
    %p113 = pnand %p111, %p112
    %p114 = pneg %p113
    // Predicated region
    $region9: #{conv_unit_forward.7} parent=5 // pred_check
      _
    $region10: #{conv_unit_forward.7} parent=5 // pred_check_branch
      %116 = sbr.rel (%p113) target = $region12
    $region11: #{conv_unit_forward.7} parent=5 // pred_region
      %s117 = ssub.s32 %s9, 1
      // Predicated region
      $region13: #{conv_unit_forward.7} parent=11 // pred_check
        %p118 = pneg %p56
      $region14: #{conv_unit_forward.7} parent=11 // pred_check_branch
        %120 = sbr.rel (%p118) target = $region16
      $region15: #{conv_unit_forward.7} parent=11 // pred_region
        _
      $region16: #{conv_unit_forward.7} parent=11 // pred_fallthru
        _
      // Predicated region
      $region17: #{conv_unit_forward.7} parent=11 // pred_check
        %p121 = pneg %p77
      $region18: #{conv_unit_forward.7} parent=11 // pred_check_branch
        %123 = sbr.rel (%p121) target = $region20
      $region19: #{conv_unit_forward.7} parent=11 // pred_region
        _
      $region20: #{conv_unit_forward.7} parent=11 // pred_fallthru
        _
    $region12: #{conv_unit_forward.7} parent=5 // pred_fallthru
      _
    %p124 = scmp.lt.s32.totalorder %s9, 2
    // Predicated region
    $region21: #{conv_unit_forward.7} parent=5 // pred_check
      %p125 = pneg %p124
    $region22: #{conv_unit_forward.7} parent=5 // pred_check_branch
      %127 = sbr.rel (%p125) target = $region24
    $region23: #{conv_unit_forward.7} parent=5 // pred_region
      // Predicated region
      $region25: #{conv_unit_forward.7} parent=23 // pred_check
        %p128 = pneg %p29
      $region26: #{conv_unit_forward.7} parent=23 // pred_check_branch
        %130 = sbr.rel (%p128) target = $region28
      $region27: #{conv_unit_forward.7} parent=23 // pred_region
        %p131 = scmp.lt.s32.totalorder %s9, 1
        %s132 = scalar_select %p131, %s9, 1
        %s133 = smul.addr %s132, 36
        %s134 = smul.addr %s133, 8
        %s135 = scalar_lea.vmem %s0, %s134
      $region28: #{conv_unit_forward.7} parent=23 // pred_fallthru
        _
    $region24: #{conv_unit_forward.7} parent=5 // pred_fallthru
      _
    %p136 = scmp.le.s32.totalorder 1, %s9
    %p137 = scmp.lt.s32.totalorder %s9, 3
    %p138 = pnand %p136, %p137
    %p139 = pneg %p138
    // Predicated region
    $region29: #{conv_unit_forward.7} parent=5 // pred_check
      _
    $region30: #{conv_unit_forward.7} parent=5 // pred_check_branch
      %141 = sbr.rel (%p138) target = $region32
    $region31: #{conv_unit_forward.7} parent=5 // pred_region
      %s142 = ssub.s32 %s9, 1
      %p143 = scmp.lt.s32.totalorder %s14, 1
      %s144 = scalar_select %p143, %s14, 1
      %s145 = smul.addr %s144, 36
      %s146 = smul.addr %s145, 8
      %s147 = scalar_lea.vmem %s0, %s146
      %p148 = pneg %p35
      %p149 = pneg %p32
      %p150 = pneg %p56
      %p151 = pneg %p53
      %p152 = pneg %p77
      %p153 = pneg %p74
      %p154 = pneg %p103
      %p155 = pneg %p100
      %p156 = scmp.lt.s32.totalorder %s14, 1
      %s157 = scalar_select %p156, %s14, 1
      %s158 = smul.addr %s157, 36
      %s159 = smul.addr %s158, 8
      %s160 = scalar_lea.vmem %s3, %s159
      %p161 = scmp.lt.s32.totalorder %s14, 1
      %s162 = scalar_select %p161, %s14, 1
      %s163 = smul.addr %s162, 36
      %s164 = smul.addr %s163, 8
      %s165 = scalar_lea.vmem %s0, %s164
      %p166 = scmp.lt.s32.totalorder %s14, 1
      %s167 = scalar_select %p166, %s14, 1
      %s168 = smul.addr %s167, 36
      %s169 = smul.addr %s168, 8
      %s170 = scalar_lea.vmem %s3, %s169
      %v171 = vld [vmem:[%s165] sm:$0xff]
      %v172 = vld [vmem:[%s165 + $0x8] sm:$0xff]
      %v173 = vld [vmem:[%s165 + $0x10] sm:$0xff]
      %v174 = vld [vmem:[%s165 + $0x18] sm:$0xff]
      %v175 = vld [vmem:[%s165 + $0x20] sm:$0xff]
      %v176 = vld [vmem:[%s165 + $0x28] sm:$0xff]
      %v177 = vld [vmem:[%s165 + $0x30] sm:$0xff]
      %v178 = vld [vmem:[%s165 + $0x38] sm:$0xff]
      %v179 = vld [vmem:[%s165 + $0x40] sm:$0xff]
      %v180 = vld [vmem:[%s165 + $0x48] sm:$0xff]
      %v181 = vld [vmem:[%s165 + $0x50] sm:$0xff]
      %v182 = vld [vmem:[%s165 + $0x58] sm:$0xff]
      %v183 = vld [vmem:[%s165 + $0x60] sm:$0xff]
      %v184 = vld [vmem:[%s165 + $0x68] sm:$0xff]
      %v185 = vld [vmem:[%s165 + $0x70] sm:$0xff]
      %v186 = vld [vmem:[%s165 + $0x78] sm:$0xff]
      %v187 = vld [vmem:[%s165 + $0x80] sm:$0xff]
      %v188 = vld [vmem:[%s165 + $0x88] sm:$0xff]
      %v189 = vld [vmem:[%s165 + $0x90] sm:$0xff]
      %v190 = vld [vmem:[%s165 + $0x98] sm:$0xff]
      %v191 = vld [vmem:[%s165 + $0xa0] sm:$0xff]
      %v192 = vld [vmem:[%s165 + $0xa8] sm:$0xff]
      %v193 = vld [vmem:[%s165 + $0xb0] sm:$0xff]
      %v194 = vld [vmem:[%s165 + $0xb8] sm:$0xff]
      %v195 = vld [vmem:[%s165 + $0xc0] sm:$0xff]
      %v196 = vld [vmem:[%s165 + $0xc8] sm:$0xff]
      %v197 = vld [vmem:[%s165 + $0xd0] sm:$0xff]
      %v198 = vld [vmem:[%s165 + $0xd8] sm:$0xff]
      %v199 = vld [vmem:[%s165 + $0xe0] sm:$0xff]
      %v200 = vld [vmem:[%s165 + $0xe8] sm:$0xff]
      %v201 = vld [vmem:[%s165 + $0xf0] sm:$0xff]
      %v202 = vld [vmem:[%s165 + $0xf8] sm:$0xff]
      %v203 = vld [vmem:[%s165 + $0x100] sm:$0xff]
      %v204 = vld [vmem:[%s165 + $0x108] sm:$0xff]
      %v205 = vld [vmem:[%s165 + $0x110] sm:$0xff]
      %v206 = vld [vmem:[%s165 + $0x118] sm:$0xff]
      %v207 = vld [vmem:[%s1] sm:$0x1]
      %v209 = vlaneseq
      %v210 = vshrl.u32 %v209, 7
      %v211 = vsub.s32 0, %v210
      %v212 = vrot.slane %v207, %v211
      %v214 = vmul.f32 %v171, %v212
      %v215 = vmul.f32 %v172, %v212
      %v216 = vmul.f32 %v173, %v212
      %v217 = vmul.f32 %v174, %v212
      %v218 = vmul.f32 %v175, %v212
      %v219 = vmul.f32 %v176, %v212
      %v220 = vmul.f32 %v177, %v212
      %v221 = vmul.f32 %v178, %v212
      %v222 = vmul.f32 %v179, %v212
      %v223 = vmul.f32 %v180, %v212
      %v224 = vmul.f32 %v181, %v212
      %v225 = vmul.f32 %v182, %v212
      %v226 = vmul.f32 %v183, %v212
      %v227 = vmul.f32 %v184, %v212
      %v228 = vmul.f32 %v185, %v212
      %v229 = vmul.f32 %v186, %v212
      %v230 = vmul.f32 %v187, %v212
      %v231 = vmul.f32 %v188, %v212
      %v232 = vmul.f32 %v189, %v212
      %v233 = vmul.f32 %v190, %v212
      %v234 = vmul.f32 %v191, %v212
      %v235 = vmul.f32 %v192, %v212
      %v236 = vmul.f32 %v193, %v212
      %v237 = vmul.f32 %v194, %v212
      %v238 = vmul.f32 %v195, %v212
      %v239 = vmul.f32 %v196, %v212
      %v240 = vmul.f32 %v197, %v212
      %v241 = vmul.f32 %v198, %v212
      %v242 = vmul.f32 %v199, %v212
      %v243 = vmul.f32 %v200, %v212
      %v244 = vmul.f32 %v201, %v212
      %v245 = vmul.f32 %v202, %v212
      %v246 = vmul.f32 %v203, %v212
      %v247 = vmul.f32 %v204, %v212
      %v248 = vmul.f32 %v205, %v212
      %v249 = vmul.f32 %v206, %v212
      %v250 = vld [vmem:[%s2] sm:$0x1]
      %v252 = vlaneseq
      %v253 = vshrl.u32 %v252, 7
      %v254 = vsub.s32 0, %v253
      %v255 = vrot.slane %v250, %v254
      %v257 = vadd.f32 %v214, %v255
      %v258 = vadd.f32 %v215, %v255
      %v259 = vadd.f32 %v216, %v255
      %v260 = vadd.f32 %v217, %v255
      %v261 = vadd.f32 %v218, %v255
      %v262 = vadd.f32 %v219, %v255
      %v263 = vadd.f32 %v220, %v255
      %v264 = vadd.f32 %v221, %v255
      %v265 = vadd.f32 %v222, %v255
      %v266 = vadd.f32 %v223, %v255
      %v267 = vadd.f32 %v224, %v255
      %v268 = vadd.f32 %v225, %v255
      %v269 = vadd.f32 %v226, %v255
      %v270 = vadd.f32 %v227, %v255
      %v271 = vadd.f32 %v228, %v255
      %v272 = vadd.f32 %v229, %v255
      %v273 = vadd.f32 %v230, %v255
      %v274 = vadd.f32 %v231, %v255
      %v275 = vadd.f32 %v232, %v255
      %v276 = vadd.f32 %v233, %v255
      %v277 = vadd.f32 %v234, %v255
      %v278 = vadd.f32 %v235, %v255
      %v279 = vadd.f32 %v236, %v255
      %v280 = vadd.f32 %v237, %v255
      %v281 = vadd.f32 %v238, %v255
      %v282 = vadd.f32 %v239, %v255
      %v283 = vadd.f32 %v240, %v255
      %v284 = vadd.f32 %v241, %v255
      %v285 = vadd.f32 %v242, %v255
      %v286 = vadd.f32 %v243, %v255
      %v287 = vadd.f32 %v244, %v255
      %v288 = vadd.f32 %v245, %v255
      %v289 = vadd.f32 %v246, %v255
      %v290 = vadd.f32 %v247, %v255
      %v291 = vadd.f32 %v248, %v255
      %v292 = vadd.f32 %v249, %v255
      %v293 = vmax.f32 %v257, 0.0
      %v294 = vmax.f32 %v258, 0.0
      %v295 = vmax.f32 %v259, 0.0
      %v296 = vmax.f32 %v260, 0.0
      %v297 = vmax.f32 %v261, 0.0
      %v298 = vmax.f32 %v262, 0.0
      %v299 = vmax.f32 %v263, 0.0
      %v300 = vmax.f32 %v264, 0.0
      %v301 = vmax.f32 %v265, 0.0
      %v302 = vmax.f32 %v266, 0.0
      %v303 = vmax.f32 %v267, 0.0
      %v304 = vmax.f32 %v268, 0.0
      %v305 = vmax.f32 %v269, 0.0
      %v306 = vmax.f32 %v270, 0.0
      %v307 = vmax.f32 %v271, 0.0
      %v308 = vmax.f32 %v272, 0.0
      %v309 = vmax.f32 %v273, 0.0
      %v310 = vmax.f32 %v274, 0.0
      %v311 = vmax.f32 %v275, 0.0
      %v312 = vmax.f32 %v276, 0.0
      %v313 = vmax.f32 %v277, 0.0
      %v314 = vmax.f32 %v278, 0.0
      %v315 = vmax.f32 %v279, 0.0
      %v316 = vmax.f32 %v280, 0.0
      %v317 = vmax.f32 %v281, 0.0
      %v318 = vmax.f32 %v282, 0.0
      %v319 = vmax.f32 %v283, 0.0
      %v320 = vmax.f32 %v284, 0.0
      %v321 = vmax.f32 %v285, 0.0
      %v322 = vmax.f32 %v286, 0.0
      %v323 = vmax.f32 %v287, 0.0
      %v324 = vmax.f32 %v288, 0.0
      %v325 = vmax.f32 %v289, 0.0
      %v326 = vmax.f32 %v290, 0.0
      %v327 = vmax.f32 %v291, 0.0
      %v328 = vmax.f32 %v292, 0.0
      %vm329 = vcmask 261120
      %330 = vst.msk [vmem:[%s170] sm:$0xff] %vm329, %v293
      %331 = vst.msk [vmem:[%s170 + $0x8] sm:$0xff] %vm329, %v294
      %332 = vst.msk [vmem:[%s170 + $0x10] sm:$0xff] %vm329, %v295
      %333 = vst.msk [vmem:[%s170 + $0x18] sm:$0xff] %vm329, %v296
      %334 = vst.msk [vmem:[%s170 + $0x20] sm:$0xff] %vm329, %v297
      %335 = vst.msk [vmem:[%s170 + $0x28] sm:$0xff] %vm329, %v298
      %336 = vst.msk [vmem:[%s170 + $0x30] sm:$0xff] %vm329, %v299
      %337 = vst.msk [vmem:[%s170 + $0x38] sm:$0xff] %vm329, %v300
      %338 = vst.msk [vmem:[%s170 + $0x40] sm:$0xff] %vm329, %v301
      %339 = vst.msk [vmem:[%s170 + $0x48] sm:$0xff] %vm329, %v302
      %340 = vst.msk [vmem:[%s170 + $0x50] sm:$0xff] %vm329, %v303
      %341 = vst.msk [vmem:[%s170 + $0x58] sm:$0xff] %vm329, %v304
      %342 = vst.msk [vmem:[%s170 + $0x60] sm:$0xff] %vm329, %v305
      %343 = vst.msk [vmem:[%s170 + $0x68] sm:$0xff] %vm329, %v306
      %344 = vst.msk [vmem:[%s170 + $0x70] sm:$0xff] %vm329, %v307
      %345 = vst.msk [vmem:[%s170 + $0x78] sm:$0xff] %vm329, %v308
      %346 = vst.msk [vmem:[%s170 + $0x80] sm:$0xff] %vm329, %v309
      %347 = vst.msk [vmem:[%s170 + $0x88] sm:$0xff] %vm329, %v310
      %348 = vst.msk [vmem:[%s170 + $0x90] sm:$0xff] %vm329, %v311
      %349 = vst.msk [vmem:[%s170 + $0x98] sm:$0xff] %vm329, %v312
      %350 = vst.msk [vmem:[%s170 + $0xa0] sm:$0xff] %vm329, %v313
      %351 = vst.msk [vmem:[%s170 + $0xa8] sm:$0xff] %vm329, %v314
      %352 = vst.msk [vmem:[%s170 + $0xb0] sm:$0xff] %vm329, %v315
      %353 = vst.msk [vmem:[%s170 + $0xb8] sm:$0xff] %vm329, %v316
      %354 = vst.msk [vmem:[%s170 + $0xc0] sm:$0xff] %vm329, %v317
      %355 = vst.msk [vmem:[%s170 + $0xc8] sm:$0xff] %vm329, %v318
      %356 = vst.msk [vmem:[%s170 + $0xd0] sm:$0xff] %vm329, %v319
      %357 = vst.msk [vmem:[%s170 + $0xd8] sm:$0xff] %vm329, %v320
      %358 = vst.msk [vmem:[%s170 + $0xe0] sm:$0xff] %vm329, %v321
      %359 = vst.msk [vmem:[%s170 + $0xe8] sm:$0xff] %vm329, %v322
      %360 = vst.msk [vmem:[%s170 + $0xf0] sm:$0xff] %vm329, %v323
      %361 = vst.msk [vmem:[%s170 + $0xf8] sm:$0xff] %vm329, %v324
      %362 = vst.msk [vmem:[%s170 + $0x100] sm:$0xff] %vm329, %v325
      %363 = vst.msk [vmem:[%s170 + $0x108] sm:$0xff] %vm329, %v326
      %364 = vst.msk [vmem:[%s170 + $0x110] sm:$0xff] %vm329, %v327
      %365 = vst.msk [vmem:[%s170 + $0x118] sm:$0xff] %vm329, %v328
      %p366 = scmp.lt.s32.totalorder %s14, 1
      %s367 = scalar_select %p366, %s14, 1
      %s368 = smul.addr %s367, 36
      %s369 = smul.addr %s368, 8
      %s370 = scalar_lea.vmem %s3, %s369
      // Predicated region
      $region33: #{conv_unit_forward.7} parent=31 // pred_check
        %p371 = pneg %p100
      $region34: #{conv_unit_forward.7} parent=31 // pred_check_branch
        %373 = sbr.rel (%p371) target = $region36
      $region35: #{conv_unit_forward.7} parent=31 // pred_region
        _
      $region36: #{conv_unit_forward.7} parent=31 // pred_fallthru
        _
    $region32: #{conv_unit_forward.7} parent=5 // pred_fallthru
      _
    %p374 = scmp.le.s32.totalorder 2, %s9
    // Predicated region
    $region37: #{conv_unit_forward.7} parent=5 // pred_check
      %p375 = pneg %p374
    $region38: #{conv_unit_forward.7} parent=5 // pred_check_branch
      %377 = sbr.rel (%p375) target = $region40
    $region39: #{conv_unit_forward.7} parent=5 // pred_region
      %s378 = ssub.s32 %s9, 2
      // Predicated region
      $region41: #{conv_unit_forward.7} parent=39 // pred_check
        %p379 = pneg %p106
      $region42: #{conv_unit_forward.7} parent=39 // pred_check_branch
        %381 = sbr.rel (%p379) target = $region44
      $region43: #{conv_unit_forward.7} parent=39 // pred_region
        %p382 = scmp.lt.s32.totalorder %s15, 1
        %s383 = scalar_select %p382, %s15, 1
        %s384 = smul.addr %s383, 36
        %s385 = smul.addr %s384, 8
        %s386 = scalar_lea.vmem %s3, %s385
      $region44: #{conv_unit_forward.7} parent=39 // pred_fallthru
        _
    $region40: #{conv_unit_forward.7} parent=5 // pred_fallthru
      _
  $region6: #{conv_unit_forward.7} parent=0 // loop_footer
    %s13 = sadd.s32 1, %s9
  $region7: #{conv_unit_forward.7} parent=0 // loop_footer_branch
    %8 = sbr.rel target = $region3
  $region8: #{conv_unit_forward.7} parent=0 // loop_exit
    _

// kernel: conv_unit_forward.4
$region0: #{conv_unit_forward.4}
  #allocation0 [shape = 'u32[]', space=smem, size = 0x4, offset = 0x4, fixed_abs, tag = 'smem constant byte address 0x4 - core index']
  #allocation1 [shape = 'u32[144,128]{1,0:T(1,128)}', space=vmem, size = 0x12000, scoped, tag = 'internal scratch']
  %s0 = inlined_call_operand.vmem [shape: bf16[2,328,8], index: 0, kind: input, shape index: {}]
  %s1 = inlined_call_operand.vmem [shape: bf16[9,8,32], index: 1, kind: input, shape index: {}]
  %s2 = inlined_call_operand.vmem [shape: f32[1,32], index: 2, kind: input, shape index: {}]
  %s3 = inlined_call_operand.vmem [shape: f32[288,1], index: 3, kind: input, shape index: {}]
  %s4 = inlined_call_operand.vmem [shape: f32[2,288,32], index: 4, kind: output, shape index: {0}]
  %s5 = inlined_call_operand.vmem [shape: f32[2,1,32], index: 5, kind: output, shape index: {1}]
  %s6 = inlined_call_operand.vmem [shape: f32[2,1,32], index: 6, kind: output, shape index: {2}]
  %7 = xla_tuple %s4, %s5, %s6
  %s8 = sld [smem:[#allocation0]]
  $region65: #{conv_unit_forward.4} parent=0
    _
  %s10 = ssub.s32 1, %s8
  %s11 = scalar_select 0, %s10, %s8
  loop: start=0, step=1, limit=4
  $region2: #{conv_unit_forward.4} parent=0 // loop_pre_header
    _
  $region3: #{conv_unit_forward.4} parent=0 // loop_header
    %s13 = sphi 0, %s17
    %p14 = scmp.ge.s32.totalorder %s13, 4
    %s20 = sphi 0, %s32
    %s21 = sphi 0, %s28
    %s22 = sphi 0, %s20
    %s23 = sphi 0, %s21
    %s24 = sphi 0, %s22
    %s25 = sphi 0, %s23
    %s35 = sphi 0, %s37
    %s38 = sphi 0, %s35
    %s39 = sphi 0, %s38
    %s55 = sphi 0, %s39
    %s61 = sphi 0, %s63
    %s64 = sphi 0, %s61
    %s65 = sphi 0, %s64
    %s81 = sphi 0, %s65
    %s87 = sphi 0, %s89
    %s90 = sphi 0, %s87
    %s91 = sphi 0, %s90
    %s107 = sphi 0, %s91
    %s111 = sphi 0, %s111
    %s113 = sphi 0, %s111
    %s114 = sphi 0, %s113
    %s128 = sphi 0, %s114
    %s136 = sphi 0, %s138
    %s139 = sphi 0, %s136
    %s140 = sphi 0, %s139
    %s156 = sphi 0, %s140
    %s164 = sphi 0, %s166
    %s167 = sphi 0, %s164
    %s168 = sphi 0, %s167
    %s184 = sphi 0, %s168
    %s192 = sphi 0, %s194
    %s195 = sphi 0, %s192
    %s196 = sphi 0, %s195
    %s212 = sphi 0, %s196
  $region4: #{conv_unit_forward.4} parent=0 // loop_header_branch
    %16 = sbr.rel (%p14) target = $region8
  $region5: #{conv_unit_forward.4} parent=0 // loop_body
    %s18 = ssub.s32 %s13, 1
    %s19 = ssub.s32 %s13, 2
    %s26 = sadd.s32 1, %s21
    %p27 = scmp.ge.s32.totalorder %s26, 1
    %s28 = scalar_select %p27, 0, %s26
    %s29 = sadd.s32 1, %s20
    %s30 = scalar_select %p27, %s29, %s20
    %p31 = scmp.ge.s32.totalorder %s30, 2
    %s32 = scalar_select %p31, 0, %s30
    %s33 = ssub.s32 %s20, %s32
    %p34 = scmp.eq.s32.totalorder %s33, 0
    %s36 = sadd.s32 %s35, 1
    %s37 = scalar_select %p34, %s35, %s36
    %p40 = pneg %p34
    %p41 = scmp.eq.s32.totalorder %s13, 1
    %p42 = por %p40, %p41
    %p43 = scmp.ne.s32.totalorder %s35, %s38
    %p44 = scmp.eq.s32.totalorder %s13, 0
    %p45 = por %p43, %p44
    %p46 = scmp.ne.s32.totalorder %s35, %s38
    %p47 = scmp.eq.s32.totalorder %s18, 1
    %p48 = por %p46, %p47
    %p49 = scmp.ne.s32.totalorder %s38, %s39
    %p50 = scmp.eq.s32.totalorder %s18, 0
    %p51 = por %p49, %p50
    %p52 = scmp.ne.s32.totalorder %s38, %s39
    %p53 = scmp.eq.s32.totalorder %s19, 1
    %p54 = por %p52, %p53
    %p56 = scmp.ne.s32.totalorder %s39, %s55
    %p57 = scmp.eq.s32.totalorder %s19, 0
    %p58 = por %p56, %p57
    %s59 = ssub.s32 %s21, %s28
    %p60 = scmp.eq.s32.totalorder %s59, 0
    %s62 = sadd.s32 %s61, 1
    %s63 = scalar_select %p60, %s61, %s62
    %p66 = pneg %p60
    %p67 = scmp.eq.s32.totalorder %s13, 1
    %p68 = por %p66, %p67
    %p69 = scmp.ne.s32.totalorder %s61, %s64
    %p70 = scmp.eq.s32.totalorder %s13, 0
    %p71 = por %p69, %p70
    %p72 = scmp.ne.s32.totalorder %s61, %s64
    %p73 = scmp.eq.s32.totalorder %s18, 1
    %p74 = por %p72, %p73
    %p75 = scmp.ne.s32.totalorder %s64, %s65
    %p76 = scmp.eq.s32.totalorder %s18, 0
    %p77 = por %p75, %p76
    %p78 = scmp.ne.s32.totalorder %s64, %s65
    %p79 = scmp.eq.s32.totalorder %s19, 1
    %p80 = por %p78, %p79
    %p82 = scmp.ne.s32.totalorder %s65, %s81
    %p83 = scmp.eq.s32.totalorder %s19, 0
    %p84 = por %p82, %p83
    %s85 = ssub.s32 %s21, %s28
    %p86 = scmp.eq.s32.totalorder %s85, 0
    %s88 = sadd.s32 %s87, 1
    %s89 = scalar_select %p86, %s87, %s88
    %p92 = pneg %p86
    %p93 = scmp.eq.s32.totalorder %s13, 1
    %p94 = por %p92, %p93
    %p95 = scmp.ne.s32.totalorder %s87, %s90
    %p96 = scmp.eq.s32.totalorder %s13, 0
    %p97 = por %p95, %p96
    %p98 = scmp.ne.s32.totalorder %s87, %s90
    %p99 = scmp.eq.s32.totalorder %s18, 1
    %p100 = por %p98, %p99
    %p101 = scmp.ne.s32.totalorder %s90, %s91
    %p102 = scmp.eq.s32.totalorder %s18, 0
    %p103 = por %p101, %p102
    %p104 = scmp.ne.s32.totalorder %s90, %s91
    %p105 = scmp.eq.s32.totalorder %s19, 1
    %p106 = por %p104, %p105
    %p108 = scmp.ne.s32.totalorder %s91, %s107
    %p109 = scmp.eq.s32.totalorder %s19, 0
    %p110 = por %p108, %p109
    %s112 = sadd.s32 %s111, 1
    %p115 = scmp.eq.s32.totalorder %s13, 1
    %p116 = scmp.ne.s32.totalorder %s111, %s113
    %p117 = scmp.eq.s32.totalorder %s13, 0
    %p118 = por %p116, %p117
    %p119 = scmp.ne.s32.totalorder %s111, %s113
    %p120 = scmp.eq.s32.totalorder %s18, 1
    %p121 = por %p119, %p120
    %p122 = scmp.ne.s32.totalorder %s113, %s114
    %p123 = scmp.eq.s32.totalorder %s18, 0
    %p124 = por %p122, %p123
    %p125 = scmp.ne.s32.totalorder %s113, %s114
    %p126 = scmp.eq.s32.totalorder %s19, 1
    %p127 = por %p125, %p126
    %p129 = scmp.ne.s32.totalorder %s114, %s128
    %p130 = scmp.eq.s32.totalorder %s19, 0
    %p131 = por %p129, %p130
    %s132 = ssub.s32 %s20, %s32
    %s133 = ssub.s32 %s21, %s28
    %s134 = sor.u32 %s132, %s133
    %p135 = scmp.eq.s32.totalorder %s134, 0
    %s137 = sadd.s32 %s136, 1
    %s138 = scalar_select %p135, %s136, %s137
    %p141 = pneg %p135
    %p142 = scmp.eq.s32.totalorder %s13, 1
    %p143 = por %p141, %p142
    %p144 = scmp.ne.s32.totalorder %s136, %s139
    %p145 = scmp.eq.s32.totalorder %s13, 0
    %p146 = por %p144, %p145
    %p147 = scmp.ne.s32.totalorder %s136, %s139
    %p148 = scmp.eq.s32.totalorder %s18, 1
    %p149 = por %p147, %p148
    %p150 = scmp.ne.s32.totalorder %s139, %s140
    %p151 = scmp.eq.s32.totalorder %s18, 0
    %p152 = por %p150, %p151
    %p153 = scmp.ne.s32.totalorder %s139, %s140
    %p154 = scmp.eq.s32.totalorder %s19, 1
    %p155 = por %p153, %p154
    %p157 = scmp.ne.s32.totalorder %s140, %s156
    %p158 = scmp.eq.s32.totalorder %s19, 0
    %p159 = por %p157, %p158
    %s160 = ssub.s32 %s20, %s32
    %s161 = ssub.s32 %s21, %s28
    %s162 = sor.u32 %s160, %s161
    %p163 = scmp.eq.s32.totalorder %s162, 0
    %s165 = sadd.s32 %s164, 1
    %s166 = scalar_select %p163, %s164, %s165
    %p169 = pneg %p163
    %p170 = scmp.eq.s32.totalorder %s13, 1
    %p171 = por %p169, %p170
    %p172 = scmp.ne.s32.totalorder %s164, %s167
    %p173 = scmp.eq.s32.totalorder %s13, 0
    %p174 = por %p172, %p173
    %p175 = scmp.ne.s32.totalorder %s164, %s167
    %p176 = scmp.eq.s32.totalorder %s18, 1
    %p177 = por %p175, %p176
    %p178 = scmp.ne.s32.totalorder %s167, %s168
    %p179 = scmp.eq.s32.totalorder %s18, 0
    %p180 = por %p178, %p179
    %p181 = scmp.ne.s32.totalorder %s167, %s168
    %p182 = scmp.eq.s32.totalorder %s19, 1
    %p183 = por %p181, %p182
    %p185 = scmp.ne.s32.totalorder %s168, %s184
    %p186 = scmp.eq.s32.totalorder %s19, 0
    %p187 = por %p185, %p186
    %s188 = ssub.s32 %s20, %s32
    %s189 = ssub.s32 %s21, %s28
    %s190 = sor.u32 %s188, %s189
    %p191 = scmp.eq.s32.totalorder %s190, 0
    %s193 = sadd.s32 %s192, 1
    %s194 = scalar_select %p191, %s192, %s193
    %p197 = pneg %p191
    %p198 = scmp.eq.s32.totalorder %s13, 1
    %p199 = por %p197, %p198
    %p200 = scmp.ne.s32.totalorder %s192, %s195
    %p201 = scmp.eq.s32.totalorder %s13, 0
    %p202 = por %p200, %p201
    %p203 = scmp.ne.s32.totalorder %s192, %s195
    %p204 = scmp.eq.s32.totalorder %s18, 1
    %p205 = por %p203, %p204
    %p206 = scmp.ne.s32.totalorder %s195, %s196
    %p207 = scmp.eq.s32.totalorder %s18, 0
    %p208 = por %p206, %p207
    %p209 = scmp.ne.s32.totalorder %s195, %s196
    %p210 = scmp.eq.s32.totalorder %s19, 1
    %p211 = por %p209, %p210
    %p213 = scmp.ne.s32.totalorder %s196, %s212
    %p214 = scmp.eq.s32.totalorder %s19, 0
    %p215 = por %p213, %p214
    %p216 = scmp.le.s32.totalorder 1, %s13
    %p217 = scmp.lt.s32.totalorder %s13, 3
    %p218 = pnand %p216, %p217
    %p219 = pneg %p218
    // Predicated region
    $region9: #{conv_unit_forward.4} parent=5 // pred_check
      _
    $region10: #{conv_unit_forward.4} parent=5 // pred_check_branch
      %221 = sbr.rel (%p218) target = $region12
    $region11: #{conv_unit_forward.4} parent=5 // pred_region
      %s222 = ssub.s32 %s13, 1
      // Predicated region
      $region13: #{conv_unit_forward.4} parent=11 // pred_check
        %p223 = pneg %p77
      $region14: #{conv_unit_forward.4} parent=11 // pred_check_branch
        %225 = sbr.rel (%p223) target = $region16
      $region15: #{conv_unit_forward.4} parent=11 // pred_region
        %p226 = scmp.lt.s32.totalorder %s23, 0
        %s227 = scalar_select %p226, %s23, 0
        %s228 = smul.addr %s227, 4
        %s229 = scalar_lea.vmem %s1, %s228
      $region16: #{conv_unit_forward.4} parent=11 // pred_fallthru
        _
      // Predicated region
      $region17: #{conv_unit_forward.4} parent=11 // pred_check
        %p230 = pneg %p103
      $region18: #{conv_unit_forward.4} parent=11 // pred_check_branch
        %232 = sbr.rel (%p230) target = $region20
      $region19: #{conv_unit_forward.4} parent=11 // pred_region
        %p233 = scmp.lt.s32.totalorder %s23, 0
        %s234 = scalar_select %p233, %s23, 0
        %s235 = scalar_lea.vmem %s2, %s234
      $region20: #{conv_unit_forward.4} parent=11 // pred_fallthru
        _
      // Predicated region
      $region21: #{conv_unit_forward.4} parent=11 // pred_check
        %p236 = pneg %p124
      $region22: #{conv_unit_forward.4} parent=11 // pred_check_branch
        %238 = sbr.rel (%p236) target = $region24
      $region23: #{conv_unit_forward.4} parent=11 // pred_region
        _
      $region24: #{conv_unit_forward.4} parent=11 // pred_fallthru
        _
    $region12: #{conv_unit_forward.4} parent=5 // pred_fallthru
      _
    %p239 = scmp.lt.s32.totalorder %s13, 2
    // Predicated region
    $region25: #{conv_unit_forward.4} parent=5 // pred_check
      %p240 = pneg %p239
    $region26: #{conv_unit_forward.4} parent=5 // pred_check_branch
      %242 = sbr.rel (%p240) target = $region28
    $region27: #{conv_unit_forward.4} parent=5 // pred_region
      // Predicated region
      $region29: #{conv_unit_forward.4} parent=27 // pred_check
        %p243 = pneg %p45
      $region30: #{conv_unit_forward.4} parent=27 // pred_check_branch
        %245 = sbr.rel (%p243) target = $region32
      $region31: #{conv_unit_forward.4} parent=27 // pred_region
        %p246 = scmp.lt.s32.totalorder %s20, 1
        %s247 = scalar_select %p246, %s20, 1
        %s248 = smul.addr %s247, 41
        %s249 = smul.addr %s248, 4
        %s250 = scalar_lea.vmem %s0, %s249
      $region32: #{conv_unit_forward.4} parent=27 // pred_fallthru
        _
    $region28: #{conv_unit_forward.4} parent=5 // pred_fallthru
      _
    %p251 = scmp.le.s32.totalorder 1, %s13
    %p252 = scmp.lt.s32.totalorder %s13, 3
    %p253 = pnand %p251, %p252
    %p254 = pneg %p253
    // Predicated region
    $region33: #{conv_unit_forward.4} parent=5 // pred_check
      _
    $region34: #{conv_unit_forward.4} parent=5 // pred_check_branch
      %256 = sbr.rel (%p253) target = $region36
    $region35: #{conv_unit_forward.4} parent=5 // pred_region
      %s257 = ssub.s32 %s13, 1
      %p258 = scmp.lt.s32.totalorder %s22, 1
      %s259 = scalar_select %p258, %s22, 1
      %s260 = smul.addr %s259, 41
      %s261 = smul.addr %s260, 4
      %s262 = scalar_lea.vmem %s0, %s261
      %p263 = pneg %p51
      %p264 = pneg %p48
      %p265 = scmp.lt.s32.totalorder %s23, 0
      %s266 = scalar_select %p265, %s23, 0
      %s267 = smul.addr %s266, 4
      %s268 = scalar_lea.vmem %s1, %s267
      %p269 = pneg %p77
      %p270 = pneg %p74
      %p271 = scmp.lt.s32.totalorder %s23, 0
      %s272 = scalar_select %p271, %s23, 0
      %s273 = scalar_lea.vmem %s2, %s272
      %p274 = pneg %p103
      %p275 = pneg %p100
      %p276 = pneg %p124
      %p277 = pneg %p121
      %p278 = pneg %p152
      %p279 = pneg %p149
      %p280 = scmp.lt.s32.totalorder %s22, 1
      %s281 = scalar_select %p280, %s22, 1
      %p282 = scmp.lt.s32.totalorder %s23, 0
      %s283 = scalar_select %p282, %s23, 0
      %s284 = smul.addr %s281, 36
      %s285 = sadd.s32 %s283, %s284
      %s286 = smul.addr %s285, 8
      %s287 = scalar_lea.vmem %s4, %s286
      %p288 = pneg %p180
      %p289 = pneg %p177
      %p290 = scmp.lt.s32.totalorder %s22, 1
      %s291 = scalar_select %p290, %s22, 1
      %p292 = scmp.lt.s32.totalorder %s23, 0
      %s293 = scalar_select %p292, %s23, 0
      %s294 = sadd.s32 %s293, %s291
      %s295 = scalar_lea.vmem %s5, %s294
      %p296 = pneg %p208
      %p297 = pneg %p205
      %p298 = scmp.lt.s32.totalorder %s22, 1
      %s299 = scalar_select %p298, %s22, 1
      %p300 = scmp.lt.s32.totalorder %s23, 0
      %s301 = scalar_select %p300, %s23, 0
      %s302 = sadd.s32 %s301, %s299
      %s303 = scalar_lea.vmem %s6, %s302
      %p304 = scmp.lt.s32.totalorder %s22, 1
      %s305 = scalar_select %p304, %s22, 1
      %s306 = smul.addr %s305, 41
      %s307 = smul.addr %s306, 4
      %s308 = scalar_lea.vmem %s0, %s307
      %p309 = scmp.lt.s32.totalorder %s23, 0
      %s310 = scalar_select %p309, %s23, 0
      %s311 = smul.addr %s310, 4
      %s312 = scalar_lea.vmem %s1, %s311
      %p313 = scmp.lt.s32.totalorder %s23, 0
      %s314 = scalar_select %p313, %s23, 0
      %s315 = scalar_lea.vmem %s2, %s314
      %p316 = scmp.lt.s32.totalorder %s22, 1
      %s317 = scalar_select %p316, %s22, 1
      %p318 = scmp.lt.s32.totalorder %s23, 0
      %s319 = scalar_select %p318, %s23, 0
      %s320 = smul.addr %s317, 36
      %s321 = sadd.s32 %s319, %s320
      %s322 = smul.addr %s321, 8
      %s323 = scalar_lea.vmem %s4, %s322
      %p324 = scmp.lt.s32.totalorder %s22, 1
      %s325 = scalar_select %p324, %s22, 1
      %p326 = scmp.lt.s32.totalorder %s23, 0
      %s327 = scalar_select %p326, %s23, 0
      %s328 = sadd.s32 %s327, %s325
      %s329 = scalar_lea.vmem %s5, %s328
      %p330 = scmp.lt.s32.totalorder %s22, 1
      %s331 = scalar_select %p330, %s22, 1
      %p332 = scmp.lt.s32.totalorder %s23, 0
      %s333 = scalar_select %p332, %s23, 0
      %s334 = sadd.s32 %s333, %s331
      %s335 = scalar_lea.vmem %s6, %s334
      %v337 = vld [vmem:[%s308] sm:$0xf]
      %v338 = vld [vmem:[%s308 + $0x4] sm:$0xf]
      %v339 = vld [vmem:[%s308 + $0x8] sm:$0xf]
      %v340 = vld [vmem:[%s308 + $0xc] sm:$0xf]
      %v341 = vld [vmem:[%s308 + $0x10] sm:$0xf]
      %v342 = vld [vmem:[%s308 + $0x14] sm:$0xf]
      %v343 = vld [vmem:[%s308 + $0x18] sm:$0xf]
      %v344 = vld [vmem:[%s308 + $0x1c] sm:$0xf]
      %v345 = vld [vmem:[%s308 + $0x20] sm:$0xf]
      %v346 = vld [vmem:[%s308 + $0x24] sm:$0xf]
      %v347 = vld [vmem:[%s308 + $0x28] sm:$0xf]
      %v348 = vld [vmem:[%s308 + $0x2c] sm:$0xf]
      %v349 = vld [vmem:[%s308 + $0x30] sm:$0xf]
      %v350 = vld [vmem:[%s308 + $0x34] sm:$0xf]
      %v351 = vld [vmem:[%s308 + $0x38] sm:$0xf]
      %v352 = vld [vmem:[%s308 + $0x3c] sm:$0xf]
      %v353 = vld [vmem:[%s308 + $0x40] sm:$0xf]
      %v354 = vld [vmem:[%s308 + $0x44] sm:$0xf]
      %v355 = vld [vmem:[%s308 + $0x48] sm:$0xf]
      %v356 = vld [vmem:[%s308 + $0x4c] sm:$0xf]
      %v357 = vld [vmem:[%s308 + $0x50] sm:$0xf]
      %v358 = vld [vmem:[%s308 + $0x54] sm:$0xf]
      %v359 = vld [vmem:[%s308 + $0x58] sm:$0xf]
      %v360 = vld [vmem:[%s308 + $0x5c] sm:$0xf]
      %v361 = vld [vmem:[%s308 + $0x60] sm:$0xf]
      %v362 = vld [vmem:[%s308 + $0x64] sm:$0xf]
      %v363 = vld [vmem:[%s308 + $0x68] sm:$0xf]
      %v364 = vld [vmem:[%s308 + $0x6c] sm:$0xf]
      %v365 = vld [vmem:[%s308 + $0x70] sm:$0xf]
      %v366 = vld [vmem:[%s308 + $0x74] sm:$0xf]
      %v367 = vld [vmem:[%s308 + $0x78] sm:$0xf]
      %v368 = vld [vmem:[%s308 + $0x7c] sm:$0xf]
      %v369 = vld [vmem:[%s308 + $0x80] sm:$0xf]
      %v370 = vld [vmem:[%s308 + $0x84] sm:$0xf]
      %v371 = vld [vmem:[%s308 + $0x88] sm:$0xf]
      %v372 = vld [vmem:[%s308 + $0x8c] sm:$0xf]
      %v373 = vld [vmem:[%s312] sm:$0xf]
      %v374 = vld [vmem:[%s308 + $0x90] sm:$0x1]
      %s375 = scalar_lea.vmem %s312, 4
      %v376 = vld [vmem:[%s375] sm:$0xf]
      %v414 = vunpack.c.l.b16 %v337
      %v415 = vunpack.c.l.b16 %v338
      %v416 = vunpack.c.l.b16 %v339
      %v417 = vunpack.c.l.b16 %v340
      %v418 = vunpack.c.l.b16 %v341
      %v419 = vunpack.c.l.b16 %v342
      %v420 = vunpack.c.l.b16 %v343
      %v421 = vunpack.c.l.b16 %v344
      %v422 = vunpack.c.l.b16 %v345
      %v423 = vunpack.c.l.b16 %v346
      %v424 = vunpack.c.l.b16 %v347
      %v425 = vunpack.c.l.b16 %v348
      %v426 = vunpack.c.l.b16 %v349
      %v427 = vunpack.c.l.b16 %v350
      %v428 = vunpack.c.l.b16 %v351
      %v429 = vunpack.c.l.b16 %v352
      %v430 = vunpack.c.l.b16 %v353
      %v431 = vunpack.c.l.b16 %v354
      %v432 = vunpack.c.l.b16 %v355
      %v433 = vunpack.c.l.b16 %v356
      %v434 = vunpack.c.l.b16 %v357
      %v435 = vunpack.c.l.b16 %v358
      %v436 = vunpack.c.l.b16 %v359
      %v437 = vunpack.c.l.b16 %v360
      %v438 = vunpack.c.l.b16 %v361
      %v439 = vunpack.c.l.b16 %v362
      %v440 = vunpack.c.l.b16 %v363
      %v441 = vunpack.c.l.b16 %v364
      %v442 = vunpack.c.l.b16 %v365
      %v443 = vunpack.c.l.b16 %v366
      %v444 = vunpack.c.l.b16 %v367
      %v445 = vunpack.c.l.b16 %v368
      %v446 = vunpack.c.l.b16 %v369
      %v447 = vunpack.c.l.b16 %v370
      %v448 = vunpack.c.l.b16 %v371
      %v449 = vunpack.c.l.b16 %v372
      %v450 = vunpack.c.l.b16 %v374
      %v451 = vpack.c.b16 %v415, %v414
      %v452 = vpack.c.b16 %v417, %v416
      %v453 = vpack.c.b16 %v419, %v418
      %v454 = vpack.c.b16 %v421, %v420
      %v455 = vpack.c.b16 %v423, %v422
      %v456 = vpack.c.b16 %v425, %v424
      %v457 = vpack.c.b16 %v427, %v426
      %v458 = vpack.c.b16 %v429, %v428
      %v459 = vpack.c.b16 %v431, %v430
      %v460 = vpack.c.b16 %v433, %v432
      %v461 = vpack.c.b16 %v435, %v434
      %v462 = vpack.c.b16 %v437, %v436
      %v463 = vpack.c.b16 %v439, %v438
      %v464 = vpack.c.b16 %v441, %v440
      %v465 = vpack.c.b16 %v443, %v442
      %v466 = vpack.c.b16 %v445, %v444
      %v467 = vpack.c.b16 %v447, %v446
      %v468 = vpack.c.b16 %v449, %v448
      %v469 = vpack.c.b16 %v450, %v450
      %vm470 = vsmask.f32 7424
      %v472 = vshrl.u32 %v451, 16
      %v474 = vshll.u32 %v451, 16
      %v476 = vrot.slane %v474, 1
      %v477 = vor.u32 %v472, %v476
      %v479 = vshll.u32 %v452, 16
      %v481 = vrot.slane %v479, 1
      %v482 = vsel %vm470, %v477, %v481
      %v483 = vshrl.u32 %v452, 16
      %v485 = vor.u32 %v483, %v481
      %v487 = vshll.u32 %v453, 16
      %v489 = vrot.slane %v487, 1
      %v490 = vsel %vm470, %v485, %v489
      %v491 = vshrl.u32 %v453, 16
      %v493 = vor.u32 %v491, %v489
      %v495 = vshll.u32 %v454, 16
      %v497 = vrot.slane %v495, 1
      %v498 = vsel %vm470, %v493, %v497
      %v499 = vshrl.u32 %v454, 16
      %v501 = vor.u32 %v499, %v497
      %v503 = vshll.u32 %v455, 16
      %v505 = vrot.slane %v503, 1
      %v506 = vsel %vm470, %v501, %v505
      %v507 = vshrl.u32 %v455, 16
      %v509 = vor.u32 %v507, %v505
      %v511 = vshll.u32 %v456, 16
      %v513 = vrot.slane %v511, 1
      %v514 = vsel %vm470, %v509, %v513
      %v515 = vshrl.u32 %v456, 16
      %v517 = vor.u32 %v515, %v513
      %v519 = vshll.u32 %v457, 16
      %v521 = vrot.slane %v519, 1
      %v522 = vsel %vm470, %v517, %v521
      %v523 = vshrl.u32 %v457, 16
      %v525 = vor.u32 %v523, %v521
      %v527 = vshll.u32 %v458, 16
      %v529 = vrot.slane %v527, 1
      %v530 = vsel %vm470, %v525, %v529
      %v531 = vshrl.u32 %v458, 16
      %v533 = vor.u32 %v531, %v529
      %v535 = vshll.u32 %v459, 16
      %v537 = vrot.slane %v535, 1
      %v538 = vsel %vm470, %v533, %v537
      %v539 = vshrl.u32 %v459, 16
      %v541 = vor.u32 %v539, %v537
      %v543 = vshll.u32 %v460, 16
      %v545 = vrot.slane %v543, 1
      %v546 = vsel %vm470, %v541, %v545
      %v547 = vshrl.u32 %v460, 16
      %v549 = vor.u32 %v547, %v545
      %v551 = vshll.u32 %v461, 16
      %v553 = vrot.slane %v551, 1
      %v554 = vsel %vm470, %v549, %v553
      %v555 = vshrl.u32 %v461, 16
      %v557 = vor.u32 %v555, %v553
      %v559 = vshll.u32 %v462, 16
      %v561 = vrot.slane %v559, 1
      %v562 = vsel %vm470, %v557, %v561
      %v563 = vshrl.u32 %v462, 16
      %v565 = vor.u32 %v563, %v561
      %v567 = vshll.u32 %v463, 16
      %v569 = vrot.slane %v567, 1
      %v570 = vsel %vm470, %v565, %v569
      %v571 = vshrl.u32 %v463, 16
      %v573 = vor.u32 %v571, %v569
      %v575 = vshll.u32 %v464, 16
      %v577 = vrot.slane %v575, 1
      %v578 = vsel %vm470, %v573, %v577
      %v579 = vshrl.u32 %v464, 16
      %v581 = vor.u32 %v579, %v577
      %v583 = vshll.u32 %v465, 16
      %v585 = vrot.slane %v583, 1
      %v586 = vsel %vm470, %v581, %v585
      %v587 = vshrl.u32 %v465, 16
      %v589 = vor.u32 %v587, %v585
      %v591 = vshll.u32 %v466, 16
      %v593 = vrot.slane %v591, 1
      %v594 = vsel %vm470, %v589, %v593
      %v595 = vshrl.u32 %v466, 16
      %v597 = vor.u32 %v595, %v593
      %v599 = vshll.u32 %v467, 16
      %v601 = vrot.slane %v599, 1
      %v602 = vsel %vm470, %v597, %v601
      %v603 = vshrl.u32 %v467, 16
      %v605 = vor.u32 %v603, %v601
      %v607 = vshll.u32 %v468, 16
      %v609 = vrot.slane %v607, 1
      %v610 = vsel %vm470, %v605, %v609
      %v611 = vshrl.u32 %v468, 16
      %v613 = vor.u32 %v611, %v609
      %v615 = vshll.u32 %v469, 16
      %v617 = vrot.slane %v615, 1
      %v618 = vsel %vm470, %v613, %v617
      %vm619 = vcmask 64512
      %v621 = vsel %vm619, %v482, 0
      %v624 = vsel %vm619, %v490, 0
      %v627 = vsel %vm619, %v498, 0
      %v630 = vsel %vm619, %v506, 0
      %v633 = vsel %vm619, %v514, 0
      %v636 = vsel %vm619, %v522, 0
      %v639 = vsel %vm619, %v530, 0
      %v642 = vsel %vm619, %v538, 0
      %v645 = vsel %vm619, %v546, 0
      %v648 = vsel %vm619, %v554, 0
      %v651 = vsel %vm619, %v562, 0
      %v654 = vsel %vm619, %v570, 0
      %v657 = vsel %vm619, %v578, 0
      %v660 = vsel %vm619, %v586, 0
      %v663 = vsel %vm619, %v594, 0
      %v666 = vsel %vm619, %v602, 0
      %v669 = vsel %vm619, %v610, 0
      %v672 = vsel %vm619, %v618, 0
      %vm674 = vcmask 1043456
      %v676 = vsel %vm674, %v376, 0
      %678 = vmatprep.subr.bf16.mxu0 0
      %679 = vmatpush1.bf16.msra.mxu0 %v676
      %680 = vmatprep.subr.bf16.mxu0 0
      %681 = vmatpush1.bf16.msra.mxu0 0
      %682 = vmatprep.subr.bf16.mxu0 0
      %683 = vmatpush1.bf16.msra.mxu0 0
      %684 = vmatprep.subr.bf16.mxu0 0
      %685 = vmatpush1.bf16.msra.mxu0 0
      %686 = vmatprep.subr.bf16.mxu0 0
      %687 = vmatpush1.bf16.msra.mxu0 0
      %688 = vmatprep.subr.bf16.mxu0 0
      %689 = vmatpush1.bf16.msra.mxu0 0
      %690 = vmatprep.subr.bf16.mxu0 0
      %691 = vmatpush1.bf16.msra.mxu0 0
      %692 = vmatprep.subr.bf16.mxu0 0
      %693 = vmatpush1.bf16.msra.mxu0 0
      %694 = vmatprep.subr.bf16.mxu0 0
      %695 = vmatpush1.bf16.msra.mxu0 0
      %696 = vmatprep.subr.bf16.mxu0 0
      %697 = vmatpush1.bf16.msra.mxu0 0
      %698 = vmatprep.subr.bf16.mxu0 0
      %699 = vmatpush1.bf16.msra.mxu0 0
      %700 = vmatprep.subr.bf16.mxu0 0
      %701 = vmatpush1.bf16.msra.mxu0 0
      %702 = vmatprep.subr.bf16.mxu0 0
      %703 = vmatpush1.bf16.msra.mxu0 0
      %704 = vmatprep.subr.bf16.mxu0 0
      %705 = vmatpush1.bf16.msra.mxu0 0
      %706 = vmatprep.subr.bf16.mxu0 0
      %707 = vmatpush1.bf16.msra.mxu0 0
      %708 = vmatprep.subr.bf16.mxu0 0
      %709 = vmatpush1.bf16.msra.mxu0 0
      %710 = vmatprep.mubr.bf16.mxu0 0
      %711 = vmatmul.mubr.bf16.gmra.mrb[0].mxu0 %v621
      %v712 = vpop.f32.mrb[0].mxu0
      %v713 = vadd.f32 0.0, %v712
      %v714 = vpop.f32.mrb[0].mxu0
      %v715 = vpop.f32.mrb[0].mxu0
      %v716 = vadd.f32 0.0, %v715
      %v717 = vpop.f32.mrb[0].mxu0
      %718 = vmatprep.mubr.bf16.mxu0 0
      %719 = vmatmul.mubr.bf16.gmra.mrb[0].mxu0 %v624
      %v720 = vpop.f32.mrb[0].mxu0
      %v721 = vadd.f32 0.0, %v720
      %v722 = vpop.f32.mrb[0].mxu0
      %v723 = vpop.f32.mrb[0].mxu0
      %v724 = vadd.f32 0.0, %v723
      %v725 = vpop.f32.mrb[0].mxu0
      %726 = vmatprep.mubr.bf16.mxu0 0
      %727 = vmatmul.mubr.bf16.gmra.mrb[0].mxu0 %v627
      %v728 = vpop.f32.mrb[0].mxu0
      %v729 = vadd.f32 0.0, %v728
      %v730 = vpop.f32.mrb[0].mxu0
      %v731 = vpop.f32.mrb[0].mxu0
      %v732 = vadd.f32 0.0, %v731
      %v733 = vpop.f32.mrb[0].mxu0
      %734 = vmatprep.mubr.bf16.mxu0 0
      %735 = vmatmul.mubr.bf16.gmra.mrb[0].mxu0 %v630
      %v736 = vpop.f32.mrb[0].mxu0
      %v737 = vadd.f32 0.0, %v736
      %v738 = vpop.f32.mrb[0].mxu0
      %v739 = vpop.f32.mrb[0].mxu0
      %v740 = vadd.f32 0.0, %v739
      %v741 = vpop.f32.mrb[0].mxu0
      %742 = vmatprep.mubr.bf16.mxu0 0
      %743 = vmatmul.mubr.bf16.gmra.mrb[0].mxu0 %v633
      %v744 = vpop.f32.mrb[0].mxu0
      %v745 = vadd.f32 0.0, %v744
      %v746 = vpop.f32.mrb[0].mxu0
      %v747 = vpop.f32.mrb[0].mxu0
      %v748 = vadd.f32 0.0, %v747
      %v749 = vpop.f32.mrb[0].mxu0
      %750 = vmatprep.mubr.bf16.mxu0 0
      %751 = vmatmul.mubr.bf16.gmra.mrb[0].mxu0 %v636
      %v752 = vpop.f32.mrb[0].mxu0
      %v753 = vadd.f32 0.0, %v752
      %v754 = vpop.f32.mrb[0].mxu0
      %v755 = vpop.f32.mrb[0].mxu0
      %v756 = vadd.f32 0.0, %v755
      %v757 = vpop.f32.mrb[0].mxu0
      %758 = vmatprep.mubr.bf16.mxu0 0
      %759 = vmatmul.mubr.bf16.gmra.mrb[0].mxu0 %v639
      %v760 = vpop.f32.mrb[0].mxu0
      %v761 = vadd.f32 0.0, %v760
      %v762 = vpop.f32.mrb[0].mxu0
      %v763 = vpop.f32.mrb[0].mxu0
      %v764 = vadd.f32 0.0, %v763
      %v765 = vpop.f32.mrb[0].mxu0
      %766 = vmatprep.mubr.bf16.mxu0 0
      %767 = vmatmul.mubr.bf16.gmra.mrb[0].mxu0 %v642
      %v768 = vpop.f32.mrb[0].mxu0
      %v769 = vadd.f32 0.0, %v768
      %v770 = vpop.f32.mrb[0].mxu0
      %v771 = vpop.f32.mrb[0].mxu0
      %v772 = vadd.f32 0.0, %v771
      %v773 = vpop.f32.mrb[0].mxu0
      %774 = vmatprep.mubr.bf16.mxu0 0
      %775 = vmatmul.mubr.bf16.gmra.mrb[0].mxu0 %v645
      %v776 = vpop.f32.mrb[0].mxu0
      %v777 = vadd.f32 0.0, %v776
      %v778 = vpop.f32.mrb[0].mxu0
      %v779 = vpop.f32.mrb[0].mxu0
      %v780 = vadd.f32 0.0, %v779
      %v781 = vpop.f32.mrb[0].mxu0
      %782 = vmatprep.mubr.bf16.mxu0 0
      %783 = vmatmul.mubr.bf16.gmra.mrb[0].mxu0 %v648
      %v784 = vpop.f32.mrb[0].mxu0
      %v785 = vadd.f32 0.0, %v784
      %v786 = vpop.f32.mrb[0].mxu0
      %v787 = vpop.f32.mrb[0].mxu0
      %v788 = vadd.f32 0.0, %v787
      %v789 = vpop.f32.mrb[0].mxu0
      %790 = vmatprep.mubr.bf16.mxu0 0
      %791 = vmatmul.mubr.bf16.gmra.mrb[0].mxu0 %v651
      %v792 = vpop.f32.mrb[0].mxu0
      %v793 = vadd.f32 0.0, %v792
      %v794 = vpop.f32.mrb[0].mxu0
      %v795 = vpop.f32.mrb[0].mxu0
      %v796 = vadd.f32 0.0, %v795
      %v797 = vpop.f32.mrb[0].mxu0
      %798 = vmatprep.mubr.bf16.mxu0 0
      %799 = vmatmul.mubr.bf16.gmra.mrb[0].mxu0 %v654
      %v800 = vpop.f32.mrb[0].mxu0
      %v801 = vadd.f32 0.0, %v800
      %v802 = vpop.f32.mrb[0].mxu0
      %v803 = vpop.f32.mrb[0].mxu0
      %v804 = vadd.f32 0.0, %v803
      %v805 = vpop.f32.mrb[0].mxu0
      %806 = vmatprep.mubr.bf16.mxu0 0
      %807 = vmatmul.mubr.bf16.gmra.mrb[0].mxu0 %v657
      %v808 = vpop.f32.mrb[0].mxu0
      %v809 = vadd.f32 0.0, %v808
      %v810 = vpop.f32.mrb[0].mxu0
      %v811 = vpop.f32.mrb[0].mxu0
      %v812 = vadd.f32 0.0, %v811
      %v813 = vpop.f32.mrb[0].mxu0
      %814 = vmatprep.mubr.bf16.mxu0 0
      %815 = vmatmul.mubr.bf16.gmra.mrb[0].mxu0 %v660
      %v816 = vpop.f32.mrb[0].mxu0
      %v817 = vadd.f32 0.0, %v816
      %v818 = vpop.f32.mrb[0].mxu0
      %v819 = vpop.f32.mrb[0].mxu0
      %v820 = vadd.f32 0.0, %v819
      %v821 = vpop.f32.mrb[0].mxu0
      %822 = vmatprep.mubr.bf16.mxu0 0
      %823 = vmatmul.mubr.bf16.gmra.mrb[0].mxu0 %v663
      %v824 = vpop.f32.mrb[0].mxu0
      %v825 = vadd.f32 0.0, %v824
      %v826 = vpop.f32.mrb[0].mxu0
      %v827 = vpop.f32.mrb[0].mxu0
      %v828 = vadd.f32 0.0, %v827
      %v829 = vpop.f32.mrb[0].mxu0
      %830 = vmatprep.mubr.bf16.mxu0 0
      %831 = vmatmul.mubr.bf16.gmra.mrb[0].mxu0 %v666
      %v832 = vpop.f32.mrb[0].mxu0
      %v833 = vadd.f32 0.0, %v832
      %v834 = vpop.f32.mrb[0].mxu0
      %v835 = vpop.f32.mrb[0].mxu0
      %v836 = vadd.f32 0.0, %v835
      %v837 = vpop.f32.mrb[0].mxu0
      %838 = vmatprep.mubr.bf16.mxu0 0
      %839 = vmatmul.mubr.bf16.gmra.mrb[0].mxu0 %v669
      %v840 = vpop.f32.mrb[0].mxu0
      %v841 = vadd.f32 0.0, %v840
      %v842 = vpop.f32.mrb[0].mxu0
      %v843 = vpop.f32.mrb[0].mxu0
      %v844 = vadd.f32 0.0, %v843
      %v845 = vpop.f32.mrb[0].mxu0
      %846 = vmatprep.mubr.bf16.mxu0 0
      %847 = vmatmul.mubr.bf16.gmra.mrb[0].mxu0 %v672
      %v848 = vpop.f32.mrb[0].mxu0
      %v849 = vadd.f32 0.0, %v848
      %v850 = vpop.f32.mrb[0].mxu0
      %v851 = vpop.f32.mrb[0].mxu0
      %v852 = vadd.f32 0.0, %v851
      %v853 = vpop.f32.mrb[0].mxu0
      %854 = vdwg.mxu0
      %v855 = vsel %vm619, %v451, 0
      %v857 = vsel %vm619, %v452, 0
      %v859 = vsel %vm619, %v453, 0
      %v861 = vsel %vm619, %v454, 0
      %v863 = vsel %vm619, %v455, 0
      %v865 = vsel %vm619, %v456, 0
      %v867 = vsel %vm619, %v457, 0
      %v869 = vsel %vm619, %v458, 0
      %v871 = vsel %vm619, %v459, 0
      %v873 = vsel %vm619, %v460, 0
      %v875 = vsel %vm619, %v461, 0
      %v877 = vsel %vm619, %v462, 0
      %v879 = vsel %vm619, %v463, 0
      %v881 = vsel %vm619, %v464, 0
      %v883 = vsel %vm619, %v465, 0
      %v885 = vsel %vm619, %v466, 0
      %v887 = vsel %vm619, %v467, 0
      %v889 = vsel %vm619, %v468, 0
      %v892 = vsel %vm674, %v373, 0
      %894 = vmatprep.subr.bf16.mxu0 0
      %895 = vmatpush1.bf16.msra.mxu0 %v892
      %896 = vmatprep.subr.bf16.mxu0 0
      %897 = vmatpush1.bf16.msra.mxu0 0
      %898 = vmatprep.subr.bf16.mxu0 0
      %899 = vmatpush1.bf16.msra.mxu0 0
      %900 = vmatprep.subr.bf16.mxu0 0
      %901 = vmatpush1.bf16.msra.mxu0 0
      %902 = vmatprep.subr.bf16.mxu0 0
      %903 = vmatpush1.bf16.msra.mxu0 0
      %904 = vmatprep.subr.bf16.mxu0 0
      %905 = vmatpush1.bf16.msra.mxu0 0
      %906 = vmatprep.subr.bf16.mxu0 0
      %907 = vmatpush1.bf16.msra.mxu0 0
      %908 = vmatprep.subr.bf16.mxu0 0
      %909 = vmatpush1.bf16.msra.mxu0 0
      %910 = vmatprep.subr.bf16.mxu0 0
      %911 = vmatpush1.bf16.msra.mxu0 0
      %912 = vmatprep.subr.bf16.mxu0 0
      %913 = vmatpush1.bf16.msra.mxu0 0
      %914 = vmatprep.subr.bf16.mxu0 0
      %915 = vmatpush1.bf16.msra.mxu0 0
      %916 = vmatprep.subr.bf16.mxu0 0
      %917 = vmatpush1.bf16.msra.mxu0 0
      %918 = vmatprep.subr.bf16.mxu0 0
      %919 = vmatpush1.bf16.msra.mxu0 0
      %920 = vmatprep.subr.bf16.mxu0 0
      %921 = vmatpush1.bf16.msra.mxu0 0
      %922 = vmatprep.subr.bf16.mxu0 0
      %923 = vmatpush1.bf16.msra.mxu0 0
      %924 = vmatprep.subr.bf16.mxu0 0
      %925 = vmatpush1.bf16.msra.mxu0 0
      %926 = vmatprep.mubr.bf16.mxu0 0
      %927 = vmatmul.mubr.bf16.gmra.mrb[0].mxu0 %v855
      %v928 = vpop.f32.mrb[0].mxu0
      %v929 = vadd.f32 %v713, %v928
      %v930 = vpop.f32.mrb[0].mxu0
      %v931 = vpop.f32.mrb[0].mxu0
      %v932 = vadd.f32 %v716, %v931
      %v933 = vpop.f32.mrb[0].mxu0
      %934 = vmatprep.mubr.bf16.mxu0 0
      %935 = vmatmul.mubr.bf16.gmra.mrb[0].mxu0 %v857
      %v936 = vpop.f32.mrb[0].mxu0
      %v937 = vadd.f32 %v721, %v936
      %v938 = vpop.f32.mrb[0].mxu0
      %v939 = vpop.f32.mrb[0].mxu0
      %v940 = vadd.f32 %v724, %v939
      %v941 = vpop.f32.mrb[0].mxu0
      %942 = vmatprep.mubr.bf16.mxu0 0
      %943 = vmatmul.mubr.bf16.gmra.mrb[0].mxu0 %v859
      %v944 = vpop.f32.mrb[0].mxu0
      %v945 = vadd.f32 %v729, %v944
      %v946 = vpop.f32.mrb[0].mxu0
      %v947 = vpop.f32.mrb[0].mxu0
      %v948 = vadd.f32 %v732, %v947
      %v949 = vpop.f32.mrb[0].mxu0
      %950 = vmatprep.mubr.bf16.mxu0 0
      %951 = vmatmul.mubr.bf16.gmra.mrb[0].mxu0 %v861
      %v952 = vpop.f32.mrb[0].mxu0
      %v953 = vadd.f32 %v737, %v952
      %v954 = vpop.f32.mrb[0].mxu0
      %v955 = vpop.f32.mrb[0].mxu0
      %v956 = vadd.f32 %v740, %v955
      %v957 = vpop.f32.mrb[0].mxu0
      %958 = vmatprep.mubr.bf16.mxu0 0
      %959 = vmatmul.mubr.bf16.gmra.mrb[0].mxu0 %v863
      %v960 = vpop.f32.mrb[0].mxu0
      %v961 = vadd.f32 %v745, %v960
      %v962 = vpop.f32.mrb[0].mxu0
      %v963 = vpop.f32.mrb[0].mxu0
      %v964 = vadd.f32 %v748, %v963
      %v965 = vpop.f32.mrb[0].mxu0
      %966 = vmatprep.mubr.bf16.mxu0 0
      %967 = vmatmul.mubr.bf16.gmra.mrb[0].mxu0 %v865
      %v968 = vpop.f32.mrb[0].mxu0
      %v969 = vadd.f32 %v753, %v968
      %v970 = vpop.f32.mrb[0].mxu0
      %v971 = vpop.f32.mrb[0].mxu0
      %v972 = vadd.f32 %v756, %v971
      %v973 = vpop.f32.mrb[0].mxu0
      %974 = vmatprep.mubr.bf16.mxu0 0
      %975 = vmatmul.mubr.bf16.gmra.mrb[0].mxu0 %v867
      %v976 = vpop.f32.mrb[0].mxu0
      %v977 = vadd.f32 %v761, %v976
      %v978 = vpop.f32.mrb[0].mxu0
      %v979 = vpop.f32.mrb[0].mxu0
      %v980 = vadd.f32 %v764, %v979
      %v981 = vpop.f32.mrb[0].mxu0
      %982 = vmatprep.mubr.bf16.mxu0 0
      %983 = vmatmul.mubr.bf16.gmra.mrb[0].mxu0 %v869
      %v984 = vpop.f32.mrb[0].mxu0
      %v985 = vadd.f32 %v769, %v984
      %v986 = vpop.f32.mrb[0].mxu0
      %v987 = vpop.f32.mrb[0].mxu0
      %v988 = vadd.f32 %v772, %v987
      %v989 = vpop.f32.mrb[0].mxu0
      %990 = vmatprep.mubr.bf16.mxu0 0
      %991 = vmatmul.mubr.bf16.gmra.mrb[0].mxu0 %v871
      %v992 = vpop.f32.mrb[0].mxu0
      %v993 = vadd.f32 %v777, %v992
      %v994 = vpop.f32.mrb[0].mxu0
      %v995 = vpop.f32.mrb[0].mxu0
      %v996 = vadd.f32 %v780, %v995
      %v997 = vpop.f32.mrb[0].mxu0
      %998 = vmatprep.mubr.bf16.mxu0 0
      %999 = vmatmul.mubr.bf16.gmra.mrb[0].mxu0 %v873
      %v1000 = vpop.f32.mrb[0].mxu0
      %v1001 = vadd.f32 %v785, %v1000
      %v1002 = vpop.f32.mrb[0].mxu0
      %v1003 = vpop.f32.mrb[0].mxu0
      %v1004 = vadd.f32 %v788, %v1003
      %v1005 = vpop.f32.mrb[0].mxu0
      %1006 = vmatprep.mubr.bf16.mxu0 0
      %1007 = vmatmul.mubr.bf16.gmra.mrb[0].mxu0 %v875
      %v1008 = vpop.f32.mrb[0].mxu0
      %v1009 = vadd.f32 %v793, %v1008
      %v1010 = vpop.f32.mrb[0].mxu0
      %v1011 = vpop.f32.mrb[0].mxu0
      %v1012 = vadd.f32 %v796, %v1011
      %v1013 = vpop.f32.mrb[0].mxu0
      %1014 = vmatprep.mubr.bf16.mxu0 0
      %1015 = vmatmul.mubr.bf16.gmra.mrb[0].mxu0 %v877
      %v1016 = vpop.f32.mrb[0].mxu0
      %v1017 = vadd.f32 %v801, %v1016
      %v1018 = vpop.f32.mrb[0].mxu0
      %v1019 = vpop.f32.mrb[0].mxu0
      %v1020 = vadd.f32 %v804, %v1019
      %v1021 = vpop.f32.mrb[0].mxu0
      %1022 = vmatprep.mubr.bf16.mxu0 0
      %1023 = vmatmul.mubr.bf16.gmra.mrb[0].mxu0 %v879
      %v1024 = vpop.f32.mrb[0].mxu0
      %v1025 = vadd.f32 %v809, %v1024
      %v1026 = vpop.f32.mrb[0].mxu0
      %v1027 = vpop.f32.mrb[0].mxu0
      %v1028 = vadd.f32 %v812, %v1027
      %v1029 = vpop.f32.mrb[0].mxu0
      %1030 = vmatprep.mubr.bf16.mxu0 0
      %1031 = vmatmul.mubr.bf16.gmra.mrb[0].mxu0 %v881
      %v1032 = vpop.f32.mrb[0].mxu0
      %v1033 = vadd.f32 %v817, %v1032
      %v1034 = vpop.f32.mrb[0].mxu0
      %v1035 = vpop.f32.mrb[0].mxu0
      %v1036 = vadd.f32 %v820, %v1035
      %v1037 = vpop.f32.mrb[0].mxu0
      %1038 = vmatprep.mubr.bf16.mxu0 0
      %1039 = vmatmul.mubr.bf16.gmra.mrb[0].mxu0 %v883
      %v1040 = vpop.f32.mrb[0].mxu0
      %v1041 = vadd.f32 %v825, %v1040
      %v1042 = vpop.f32.mrb[0].mxu0
      %v1043 = vpop.f32.mrb[0].mxu0
      %v1044 = vadd.f32 %v828, %v1043
      %v1045 = vpop.f32.mrb[0].mxu0
      %1046 = vmatprep.mubr.bf16.mxu0 0
      %1047 = vmatmul.mubr.bf16.gmra.mrb[0].mxu0 %v885
      %v1048 = vpop.f32.mrb[0].mxu0
      %v1049 = vadd.f32 %v833, %v1048
      %v1050 = vpop.f32.mrb[0].mxu0
      %v1051 = vpop.f32.mrb[0].mxu0
      %v1052 = vadd.f32 %v836, %v1051
      %v1053 = vpop.f32.mrb[0].mxu0
      %1054 = vmatprep.mubr.bf16.mxu0 0
      %1055 = vmatmul.mubr.bf16.gmra.mrb[0].mxu0 %v887
      %v1056 = vpop.f32.mrb[0].mxu0
      %v1057 = vadd.f32 %v841, %v1056
      %v1058 = vpop.f32.mrb[0].mxu0
      %v1059 = vpop.f32.mrb[0].mxu0
      %v1060 = vadd.f32 %v844, %v1059
      %v1061 = vpop.f32.mrb[0].mxu0
      %1062 = vmatprep.mubr.bf16.mxu0 0
      %1063 = vmatmul.mubr.bf16.gmra.mrb[0].mxu0 %v889
      %v1064 = vpop.f32.mrb[0].mxu0
      %v1065 = vadd.f32 %v849, %v1064
      %v1066 = vpop.f32.mrb[0].mxu0
      %v1067 = vpop.f32.mrb[0].mxu0
      %v1068 = vadd.f32 %v852, %v1067
      %v1069 = vpop.f32.mrb[0].mxu0
      %1070 = vdwg.mxu0
      %v1071 = vld [vmem:[%s308] sm:$0xe]
      %s1072 = scalar_lea.vmem %s312, 8
      %v1073 = vld [vmem:[%s1072] sm:$0xf]
      %v1075 = vunpack.c.l.b16 %v1071
      %v1076 = vpack.c.b16 %v415, %v1075
      %vm1077 = vcmask 1046528
      %v1078 = vrot.slane %v1076, 1
      %v1079 = vrot.slane %v452, 1
      %v1080 = vsel %vm1077, %v1078, %v1079
      %v1081 = vrot.slane %v453, 1
      %v1082 = vsel %vm1077, %v1079, %v1081
      %v1083 = vrot.slane %v454, 1
      %v1084 = vsel %vm1077, %v1081, %v1083
      %v1085 = vrot.slane %v455, 1
      %v1086 = vsel %vm1077, %v1083, %v1085
      %v1087 = vrot.slane %v456, 1
      %v1088 = vsel %vm1077, %v1085, %v1087
      %v1089 = vrot.slane %v457, 1
      %v1090 = vsel %vm1077, %v1087, %v1089
      %v1091 = vrot.slane %v458, 1
      %v1092 = vsel %vm1077, %v1089, %v1091
      %v1093 = vrot.slane %v459, 1
      %v1094 = vsel %vm1077, %v1091, %v1093
      %v1095 = vrot.slane %v460, 1
      %v1096 = vsel %vm1077, %v1093, %v1095
      %v1097 = vrot.slane %v461, 1
      %v1098 = vsel %vm1077, %v1095, %v1097
      %v1099 = vrot.slane %v462, 1
      %v1100 = vsel %vm1077, %v1097, %v1099
      %v1101 = vrot.slane %v463, 1
      %v1102 = vsel %vm1077, %v1099, %v1101
      %v1103 = vrot.slane %v464, 1
      %v1104 = vsel %vm1077, %v1101, %v1103
      %v1105 = vrot.slane %v465, 1
      %v1106 = vsel %vm1077, %v1103, %v1105
      %v1107 = vrot.slane %v466, 1
      %v1108 = vsel %vm1077, %v1105, %v1107
      %v1109 = vrot.slane %v467, 1
      %v1110 = vsel %vm1077, %v1107, %v1109
      %v1111 = vrot.slane %v468, 1
      %v1112 = vsel %vm1077, %v1109, %v1111
      %v1113 = vrot.slane %v469, 1
      %v1114 = vsel %vm1077, %v1111, %v1113
      %v1116 = vsel %vm619, %v1080, 0
      %v1119 = vsel %vm619, %v1082, 0
      %v1122 = vsel %vm619, %v1084, 0
      %v1125 = vsel %vm619, %v1086, 0
      %v1128 = vsel %vm619, %v1088, 0
      %v1131 = vsel %vm619, %v1090, 0
      %v1134 = vsel %vm619, %v1092, 0
      %v1137 = vsel %vm619, %v1094, 0
      %v1140 = vsel %vm619, %v1096, 0
      %v1143 = vsel %vm619, %v1098, 0
      %v1146 = vsel %vm619, %v1100, 0
      %v1149 = vsel %vm619, %v1102, 0
      %v1152 = vsel %vm619, %v1104, 0
      %v1155 = vsel %vm619, %v1106, 0
      %v1158 = vsel %vm619, %v1108, 0
      %v1161 = vsel %vm619, %v1110, 0
      %v1164 = vsel %vm619, %v1112, 0
      %v1167 = vsel %vm619, %v1114, 0
      %v1170 = vsel %vm674, %v1073, 0
      %1172 = vmatprep.subr.bf16.mxu0 0
      %1173 = vmatpush1.bf16.msra.mxu0 %v1170
      %1174 = vmatprep.subr.bf16.mxu0 0
      %1175 = vmatpush1.bf16.msra.mxu0 0
      %1176 = vmatprep.subr.bf16.mxu0 0
      %1177 = vmatpush1.bf16.msra.mxu0 0
      %1178 = vmatprep.subr.bf16.mxu0 0
      %1179 = vmatpush1.bf16.msra.mxu0 0
      %1180 = vmatprep.subr.bf16.mxu0 0
      %1181 = vmatpush1.bf16.msra.mxu0 0
      %1182 = vmatprep.subr.bf16.mxu0 0
      %1183 = vmatpush1.bf16.msra.mxu0 0
      %1184 = vmatprep.subr.bf16.mxu0 0
      %1185 = vmatpush1.bf16.msra.mxu0 0
      %1186 = vmatprep.subr.bf16.mxu0 0
      %1187 = vmatpush1.bf16.msra.mxu0 0
      %1188 = vmatprep.subr.bf16.mxu0 0
      %1189 = vmatpush1.bf16.msra.mxu0 0
      %1190 = vmatprep.subr.bf16.mxu0 0
      %1191 = vmatpush1.bf16.msra.mxu0 0
      %1192 = vmatprep.subr.bf16.mxu0 0
      %1193 = vmatpush1.bf16.msra.mxu0 0
      %1194 = vmatprep.subr.bf16.mxu0 0
      %1195 = vmatpush1.bf16.msra.mxu0 0
      %1196 = vmatprep.subr.bf16.mxu0 0
      %1197 = vmatpush1.bf16.msra.mxu0 0
      %1198 = vmatprep.subr.bf16.mxu0 0
      %1199 = vmatpush1.bf16.msra.mxu0 0
      %1200 = vmatprep.subr.bf16.mxu0 0
      %1201 = vmatpush1.bf16.msra.mxu0 0
      %1202 = vmatprep.subr.bf16.mxu0 0
      %1203 = vmatpush1.bf16.msra.mxu0 0
      %1204 = vmatprep.mubr.bf16.mxu0 0
      %1205 = vmatmul.mubr.bf16.gmra.mrb[0].mxu0 %v1116
      %v1206 = vpop.f32.mrb[0].mxu0
      %v1207 = vadd.f32 0.0, %v1206
      %v1208 = vpop.f32.mrb[0].mxu0
      %v1209 = vpop.f32.mrb[0].mxu0
      %v1210 = vadd.f32 0.0, %v1209
      %v1211 = vpop.f32.mrb[0].mxu0
      %1212 = vmatprep.mubr.bf16.mxu0 0
      %1213 = vmatmul.mubr.bf16.gmra.mrb[0].mxu0 %v1119
      %v1214 = vpop.f32.mrb[0].mxu0
      %v1215 = vadd.f32 0.0, %v1214
      %v1216 = vpop.f32.mrb[0].mxu0
      %v1217 = vpop.f32.mrb[0].mxu0
      %v1218 = vadd.f32 0.0, %v1217
      %v1219 = vpop.f32.mrb[0].mxu0
      %1220 = vmatprep.mubr.bf16.mxu0 0
      %1221 = vmatmul.mubr.bf16.gmra.mrb[0].mxu0 %v1122
      %v1222 = vpop.f32.mrb[0].mxu0
      %v1223 = vadd.f32 0.0, %v1222
      %v1224 = vpop.f32.mrb[0].mxu0
      %v1225 = vpop.f32.mrb[0].mxu0
      %v1226 = vadd.f32 0.0, %v1225
      %v1227 = vpop.f32.mrb[0].mxu0
      %1228 = vmatprep.mubr.bf16.mxu0 0
      %1229 = vmatmul.mubr.bf16.gmra.mrb[0].mxu0 %v1125
      %v1230 = vpop.f32.mrb[0].mxu0
      %v1231 = vadd.f32 0.0, %v1230
      %v1232 = vpop.f32.mrb[0].mxu0
      %v1233 = vpop.f32.mrb[0].mxu0
      %v1234 = vadd.f32 0.0, %v1233
      %v1235 = vpop.f32.mrb[0].mxu0
      %1236 = vmatprep.mubr.bf16.mxu0 0
      %1237 = vmatmul.mubr.bf16.gmra.mrb[0].mxu0 %v1128
      %v1238 = vpop.f32.mrb[0].mxu0
      %v1239 = vadd.f32 0.0, %v1238
      %v1240 = vpop.f32.mrb[0].mxu0
      %v1241 = vpop.f32.mrb[0].mxu0
      %v1242 = vadd.f32 0.0, %v1241
      %v1243 = vpop.f32.mrb[0].mxu0
      %1244 = vmatprep.mubr.bf16.mxu0 0
      %1245 = vmatmul.mubr.bf16.gmra.mrb[0].mxu0 %v1131
      %v1246 = vpop.f32.mrb[0].mxu0
      %v1247 = vadd.f32 0.0, %v1246
      %v1248 = vpop.f32.mrb[0].mxu0
      %v1249 = vpop.f32.mrb[0].mxu0
      %v1250 = vadd.f32 0.0, %v1249
      %v1251 = vpop.f32.mrb[0].mxu0
      %1252 = vmatprep.mubr.bf16.mxu0 0
      %1253 = vmatmul.mubr.bf16.gmra.mrb[0].mxu0 %v1134
      %v1254 = vpop.f32.mrb[0].mxu0
      %v1255 = vadd.f32 0.0, %v1254
      %v1256 = vpop.f32.mrb[0].mxu0
      %v1257 = vpop.f32.mrb[0].mxu0
      %v1258 = vadd.f32 0.0, %v1257
      %v1259 = vpop.f32.mrb[0].mxu0
      %1260 = vmatprep.mubr.bf16.mxu0 0
      %1261 = vmatmul.mubr.bf16.gmra.mrb[0].mxu0 %v1137
      %v1262 = vpop.f32.mrb[0].mxu0
      %v1263 = vadd.f32 0.0, %v1262
      %v1264 = vpop.f32.mrb[0].mxu0
      %v1265 = vpop.f32.mrb[0].mxu0
      %v1266 = vadd.f32 0.0, %v1265
      %v1267 = vpop.f32.mrb[0].mxu0
      %1268 = vmatprep.mubr.bf16.mxu0 0
      %1269 = vmatmul.mubr.bf16.gmra.mrb[0].mxu0 %v1140
      %v1270 = vpop.f32.mrb[0].mxu0
      %v1271 = vadd.f32 0.0, %v1270
      %v1272 = vpop.f32.mrb[0].mxu0
      %v1273 = vpop.f32.mrb[0].mxu0
      %v1274 = vadd.f32 0.0, %v1273
      %v1275 = vpop.f32.mrb[0].mxu0
      %1276 = vmatprep.mubr.bf16.mxu0 0
      %1277 = vmatmul.mubr.bf16.gmra.mrb[0].mxu0 %v1143
      %v1278 = vpop.f32.mrb[0].mxu0
      %v1279 = vadd.f32 0.0, %v1278
      %v1280 = vpop.f32.mrb[0].mxu0
      %v1281 = vpop.f32.mrb[0].mxu0
      %v1282 = vadd.f32 0.0, %v1281
      %v1283 = vpop.f32.mrb[0].mxu0
      %1284 = vmatprep.mubr.bf16.mxu0 0
      %1285 = vmatmul.mubr.bf16.gmra.mrb[0].mxu0 %v1146
      %v1286 = vpop.f32.mrb[0].mxu0
      %v1287 = vadd.f32 0.0, %v1286
      %v1288 = vpop.f32.mrb[0].mxu0
      %v1289 = vpop.f32.mrb[0].mxu0
      %v1290 = vadd.f32 0.0, %v1289
      %v1291 = vpop.f32.mrb[0].mxu0
      %1292 = vmatprep.mubr.bf16.mxu0 0
      %1293 = vmatmul.mubr.bf16.gmra.mrb[0].mxu0 %v1149
      %v1294 = vpop.f32.mrb[0].mxu0
      %v1295 = vadd.f32 0.0, %v1294
      %v1296 = vpop.f32.mrb[0].mxu0
      %v1297 = vpop.f32.mrb[0].mxu0
      %v1298 = vadd.f32 0.0, %v1297
      %v1299 = vpop.f32.mrb[0].mxu0
      %1300 = vmatprep.mubr.bf16.mxu0 0
      %1301 = vmatmul.mubr.bf16.gmra.mrb[0].mxu0 %v1152
      %v1302 = vpop.f32.mrb[0].mxu0
      %v1303 = vadd.f32 0.0, %v1302
      %v1304 = vpop.f32.mrb[0].mxu0
      %v1305 = vpop.f32.mrb[0].mxu0
      %v1306 = vadd.f32 0.0, %v1305
      %v1307 = vpop.f32.mrb[0].mxu0
      %1308 = vmatprep.mubr.bf16.mxu0 0
      %1309 = vmatmul.mubr.bf16.gmra.mrb[0].mxu0 %v1155
      %v1310 = vpop.f32.mrb[0].mxu0
      %v1311 = vadd.f32 0.0, %v1310
      %v1312 = vpop.f32.mrb[0].mxu0
      %v1313 = vpop.f32.mrb[0].mxu0
      %v1314 = vadd.f32 0.0, %v1313
      %v1315 = vpop.f32.mrb[0].mxu0
      %1316 = vmatprep.mubr.bf16.mxu0 0
      %1317 = vmatmul.mubr.bf16.gmra.mrb[0].mxu0 %v1158
      %v1318 = vpop.f32.mrb[0].mxu0
      %v1319 = vadd.f32 0.0, %v1318
      %v1320 = vpop.f32.mrb[0].mxu0
      %v1321 = vpop.f32.mrb[0].mxu0
      %v1322 = vadd.f32 0.0, %v1321
      %v1323 = vpop.f32.mrb[0].mxu0
      %1324 = vmatprep.mubr.bf16.mxu0 0
      %1325 = vmatmul.mubr.bf16.gmra.mrb[0].mxu0 %v1161
      %v1326 = vpop.f32.mrb[0].mxu0
      %v1327 = vadd.f32 0.0, %v1326
      %v1328 = vpop.f32.mrb[0].mxu0
      %v1329 = vpop.f32.mrb[0].mxu0
      %v1330 = vadd.f32 0.0, %v1329
      %v1331 = vpop.f32.mrb[0].mxu0
      %1332 = vmatprep.mubr.bf16.mxu0 0
      %1333 = vmatmul.mubr.bf16.gmra.mrb[0].mxu0 %v1164
      %v1334 = vpop.f32.mrb[0].mxu0
      %v1335 = vadd.f32 0.0, %v1334
      %v1336 = vpop.f32.mrb[0].mxu0
      %v1337 = vpop.f32.mrb[0].mxu0
      %v1338 = vadd.f32 0.0, %v1337
      %v1339 = vpop.f32.mrb[0].mxu0
      %1340 = vmatprep.mubr.bf16.mxu0 0
      %1341 = vmatmul.mubr.bf16.gmra.mrb[0].mxu0 %v1167
      %v1342 = vpop.f32.mrb[0].mxu0
      %v1343 = vadd.f32 0.0, %v1342
      %v1344 = vpop.f32.mrb[0].mxu0
      %v1345 = vpop.f32.mrb[0].mxu0
      %v1346 = vadd.f32 0.0, %v1345
      %v1347 = vpop.f32.mrb[0].mxu0
      %1348 = vdwg.mxu0
      %v1349 = vadd.f32 %v929, %v1207
      %v1350 = vadd.f32 %v932, %v1210
      %v1351 = vadd.f32 %v937, %v1215
      %v1352 = vadd.f32 %v940, %v1218
      %v1353 = vadd.f32 %v945, %v1223
      %v1354 = vadd.f32 %v948, %v1226
      %v1355 = vadd.f32 %v953, %v1231
      %v1356 = vadd.f32 %v956, %v1234
      %v1357 = vadd.f32 %v961, %v1239
      %v1358 = vadd.f32 %v964, %v1242
      %v1359 = vadd.f32 %v969, %v1247
      %v1360 = vadd.f32 %v972, %v1250
      %v1361 = vadd.f32 %v977, %v1255
      %v1362 = vadd.f32 %v980, %v1258
      %v1363 = vadd.f32 %v985, %v1263
      %v1364 = vadd.f32 %v988, %v1266
      %v1365 = vadd.f32 %v993, %v1271
      %v1366 = vadd.f32 %v996, %v1274
      %v1367 = vadd.f32 %v1001, %v1279
      %v1368 = vadd.f32 %v1004, %v1282
      %v1369 = vadd.f32 %v1009, %v1287
      %v1370 = vadd.f32 %v1012, %v1290
      %v1371 = vadd.f32 %v1017, %v1295
      %v1372 = vadd.f32 %v1020, %v1298
      %v1373 = vadd.f32 %v1025, %v1303
      %v1374 = vadd.f32 %v1028, %v1306
      %v1375 = vadd.f32 %v1033, %v1311
      %v1376 = vadd.f32 %v1036, %v1314
      %v1377 = vadd.f32 %v1041, %v1319
      %v1378 = vadd.f32 %v1044, %v1322
      %v1379 = vadd.f32 %v1049, %v1327
      %v1380 = vadd.f32 %v1052, %v1330
      %v1381 = vadd.f32 %v1057, %v1335
      %v1382 = vadd.f32 %v1060, %v1338
      %v1383 = vadd.f32 %v1065, %v1343
      %v1384 = vadd.f32 %v1068, %v1346
      %v1385 = vld [vmem:[%s308 + $0x8] sm:$0xe]
      %v1386 = vld [vmem:[%s308 + $0xc] sm:$0xf]
      %v1387 = vld [vmem:[%s308 + $0x10] sm:$0xf]
      %v1388 = vld [vmem:[%s308 + $0x14] sm:$0xf]
      %v1389 = vld [vmem:[%s308 + $0x18] sm:$0xf]
      %v1390 = vld [vmem:[%s308 + $0x1c] sm:$0xf]
      %v1391 = vld [vmem:[%s308 + $0x20] sm:$0xf]
      %v1392 = vld [vmem:[%s308 + $0x24] sm:$0xf]
      %v1393 = vld [vmem:[%s308 + $0x28] sm:$0xf]
      %v1394 = vld [vmem:[%s308 + $0x2c] sm:$0xf]
      %v1395 = vld [vmem:[%s308 + $0x30] sm:$0xf]
      %v1396 = vld [vmem:[%s308 + $0x34] sm:$0xf]
      %v1397 = vld [vmem:[%s308 + $0x38] sm:$0xf]
      %v1398 = vld [vmem:[%s308 + $0x3c] sm:$0xf]
      %v1399 = vld [vmem:[%s308 + $0x40] sm:$0xf]
      %v1400 = vld [vmem:[%s308 + $0x44] sm:$0xf]
      %v1401 = vld [vmem:[%s308 + $0x48] sm:$0xf]
      %v1402 = vld [vmem:[%s308 + $0x4c] sm:$0xf]
      %v1403 = vld [vmem:[%s308 + $0x50] sm:$0xf]
      %v1404 = vld [vmem:[%s308 + $0x54] sm:$0xf]
      %v1405 = vld [vmem:[%s308 + $0x58] sm:$0xf]
      %v1406 = vld [vmem:[%s308 + $0x5c] sm:$0xf]
      %v1407 = vld [vmem:[%s308 + $0x60] sm:$0xf]
      %v1408 = vld [vmem:[%s308 + $0x64] sm:$0xf]
      %v1409 = vld [vmem:[%s308 + $0x68] sm:$0xf]
      %v1410 = vld [vmem:[%s308 + $0x6c] sm:$0xf]
      %v1411 = vld [vmem:[%s308 + $0x70] sm:$0xf]
      %v1412 = vld [vmem:[%s308 + $0x74] sm:$0xf]
      %v1413 = vld [vmem:[%s308 + $0x78] sm:$0xf]
      %v1414 = vld [vmem:[%s308 + $0x7c] sm:$0xf]
      %v1415 = vld [vmem:[%s308 + $0x80] sm:$0xf]
      %v1416 = vld [vmem:[%s308 + $0x84] sm:$0xf]
      %v1417 = vld [vmem:[%s308 + $0x88] sm:$0xf]
      %v1418 = vld [vmem:[%s308 + $0x8c] sm:$0xf]
      %v1419 = vld [vmem:[%s308 + $0x90] sm:$0xf]
      %v1420 = vld [vmem:[%s308 + $0x94] sm:$0xf]
      %v1421 = vld [vmem:[%s308 + $0x98] sm:$0x1]
      %s1422 = scalar_lea.vmem %s312, 12
      %v1423 = vld [vmem:[%s1422] sm:$0xf]
      %v1461 = vunpack.c.l.b16 %v1385
      %v1462 = vunpack.c.l.b16 %v1386
      %v1463 = vunpack.c.l.b16 %v1387
      %v1464 = vunpack.c.l.b16 %v1388
      %v1465 = vunpack.c.l.b16 %v1389
      %v1466 = vunpack.c.l.b16 %v1390
      %v1467 = vunpack.c.l.b16 %v1391
      %v1468 = vunpack.c.l.b16 %v1392
      %v1469 = vunpack.c.l.b16 %v1393
      %v1470 = vunpack.c.l.b16 %v1394
      %v1471 = vunpack.c.l.b16 %v1395
      %v1472 = vunpack.c.l.b16 %v1396
      %v1473 = vunpack.c.l.b16 %v1397
      %v1474 = vunpack.c.l.b16 %v1398
      %v1475 = vunpack.c.l.b16 %v1399
      %v1476 = vunpack.c.l.b16 %v1400
      %v1477 = vunpack.c.l.b16 %v1401
      %v1478 = vunpack.c.l.b16 %v1402
      %v1479 = vunpack.c.l.b16 %v1403
      %v1480 = vunpack.c.l.b16 %v1404
      %v1481 = vunpack.c.l.b16 %v1405
      %v1482 = vunpack.c.l.b16 %v1406
      %v1483 = vunpack.c.l.b16 %v1407
      %v1484 = vunpack.c.l.b16 %v1408
      %v1485 = vunpack.c.l.b16 %v1409
      %v1486 = vunpack.c.l.b16 %v1410
      %v1487 = vunpack.c.l.b16 %v1411
      %v1488 = vunpack.c.l.b16 %v1412
      %v1489 = vunpack.c.l.b16 %v1413
      %v1490 = vunpack.c.l.b16 %v1414
      %v1491 = vunpack.c.l.b16 %v1415
      %v1492 = vunpack.c.l.b16 %v1416
      %v1493 = vunpack.c.l.b16 %v1417
      %v1494 = vunpack.c.l.b16 %v1418
      %v1495 = vunpack.c.l.b16 %v1419
      %v1496 = vunpack.c.l.b16 %v1420
      %v1497 = vunpack.c.l.b16 %v1421
      %v1498 = vpack.c.b16 %v1462, %v1461
      %v1499 = vpack.c.b16 %v1464, %v1463
      %v1500 = vpack.c.b16 %v1466, %v1465
      %v1501 = vpack.c.b16 %v1468, %v1467
      %v1502 = vpack.c.b16 %v1470, %v1469
      %v1503 = vpack.c.b16 %v1472, %v1471
      %v1504 = vpack.c.b16 %v1474, %v1473
      %v1505 = vpack.c.b16 %v1476, %v1475
      %v1506 = vpack.c.b16 %v1478, %v1477
      %v1507 = vpack.c.b16 %v1480, %v1479
      %v1508 = vpack.c.b16 %v1482, %v1481
      %v1509 = vpack.c.b16 %v1484, %v1483
      %v1510 = vpack.c.b16 %v1486, %v1485
      %v1511 = vpack.c.b16 %v1488, %v1487
      %v1512 = vpack.c.b16 %v1490, %v1489
      %v1513 = vpack.c.b16 %v1492, %v1491
      %v1514 = vpack.c.b16 %v1494, %v1493
      %v1515 = vpack.c.b16 %v1496, %v1495
      %v1516 = vpack.c.b16 %v1497, %v1497
      %v1517 = vrot.slane %v1498, 1
      %v1518 = vrot.slane %v1499, 1
      %v1519 = vsel %vm1077, %v1517, %v1518
      %v1520 = vrot.slane %v1500, 1
      %v1521 = vsel %vm1077, %v1518, %v1520
      %v1522 = vrot.slane %v1501, 1
      %v1523 = vsel %vm1077, %v1520, %v1522
      %v1524 = vrot.slane %v1502, 1
      %v1525 = vsel %vm1077, %v1522, %v1524
      %v1526 = vrot.slane %v1503, 1
      %v1527 = vsel %vm1077, %v1524, %v1526
      %v1528 = vrot.slane %v1504, 1
      %v1529 = vsel %vm1077, %v1526, %v1528
      %v1530 = vrot.slane %v1505, 1
      %v1531 = vsel %vm1077, %v1528, %v1530
      %v1532 = vrot.slane %v1506, 1
      %v1533 = vsel %vm1077, %v1530, %v1532
      %v1534 = vrot.slane %v1507, 1
      %v1535 = vsel %vm1077, %v1532, %v1534
      %v1536 = vrot.slane %v1508, 1
      %v1537 = vsel %vm1077, %v1534, %v1536
      %v1538 = vrot.slane %v1509, 1
      %v1539 = vsel %vm1077, %v1536, %v1538
      %v1540 = vrot.slane %v1510, 1
      %v1541 = vsel %vm1077, %v1538, %v1540
      %v1542 = vrot.slane %v1511, 1
      %v1543 = vsel %vm1077, %v1540, %v1542
      %v1544 = vrot.slane %v1512, 1
      %v1545 = vsel %vm1077, %v1542, %v1544
      %v1546 = vrot.slane %v1513, 1
      %v1547 = vsel %vm1077, %v1544, %v1546
      %v1548 = vrot.slane %v1514, 1
      %v1549 = vsel %vm1077, %v1546, %v1548
      %v1550 = vrot.slane %v1515, 1
      %v1551 = vsel %vm1077, %v1548, %v1550
      %v1552 = vrot.slane %v1516, 1
      %v1553 = vsel %vm1077, %v1550, %v1552
      %v1555 = vsel %vm619, %v1519, 0
      %v1558 = vsel %vm619, %v1521, 0
      %v1561 = vsel %vm619, %v1523, 0
      %v1564 = vsel %vm619, %v1525, 0
      %v1567 = vsel %vm619, %v1527, 0
      %v1570 = vsel %vm619, %v1529, 0
      %v1573 = vsel %vm619, %v1531, 0
      %v1576 = vsel %vm619, %v1533, 0
      %v1579 = vsel %vm619, %v1535, 0
      %v1582 = vsel %vm619, %v1537, 0
      %v1585 = vsel %vm619, %v1539, 0
      %v1588 = vsel %vm619, %v1541, 0
      %v1591 = vsel %vm619, %v1543, 0
      %v1594 = vsel %vm619, %v1545, 0
      %v1597 = vsel %vm619, %v1547, 0
      %v1600 = vsel %vm619, %v1549, 0
      %v1603 = vsel %vm619, %v1551, 0
      %v1606 = vsel %vm619, %v1553, 0
      %v1609 = vsel %vm674, %v1423, 0
      %1611 = vmatprep.subr.bf16.mxu0 0
      %1612 = vmatpush1.bf16.msra.mxu0 %v1609
      %1613 = vmatprep.subr.bf16.mxu0 0
      %1614 = vmatpush1.bf16.msra.mxu0 0
      %1615 = vmatprep.subr.bf16.mxu0 0
      %1616 = vmatpush1.bf16.msra.mxu0 0
      %1617 = vmatprep.subr.bf16.mxu0 0
      %1618 = vmatpush1.bf16.msra.mxu0 0
      %1619 = vmatprep.subr.bf16.mxu0 0
      %1620 = vmatpush1.bf16.msra.mxu0 0
      %1621 = vmatprep.subr.bf16.mxu0 0
      %1622 = vmatpush1.bf16.msra.mxu0 0
      %1623 = vmatprep.subr.bf16.mxu0 0
      %1624 = vmatpush1.bf16.msra.mxu0 0
      %1625 = vmatprep.subr.bf16.mxu0 0
      %1626 = vmatpush1.bf16.msra.mxu0 0
      %1627 = vmatprep.subr.bf16.mxu0 0
      %1628 = vmatpush1.bf16.msra.mxu0 0
      %1629 = vmatprep.subr.bf16.mxu0 0
      %1630 = vmatpush1.bf16.msra.mxu0 0
      %1631 = vmatprep.subr.bf16.mxu0 0
      %1632 = vmatpush1.bf16.msra.mxu0 0
      %1633 = vmatprep.subr.bf16.mxu0 0
      %1634 = vmatpush1.bf16.msra.mxu0 0
      %1635 = vmatprep.subr.bf16.mxu0 0
      %1636 = vmatpush1.bf16.msra.mxu0 0
      %1637 = vmatprep.subr.bf16.mxu0 0
      %1638 = vmatpush1.bf16.msra.mxu0 0
      %1639 = vmatprep.subr.bf16.mxu0 0
      %1640 = vmatpush1.bf16.msra.mxu0 0
      %1641 = vmatprep.subr.bf16.mxu0 0
      %1642 = vmatpush1.bf16.msra.mxu0 0
      %1643 = vmatprep.mubr.bf16.mxu0 0
      %1644 = vmatmul.mubr.bf16.gmra.mrb[0].mxu0 %v1555
      %v1645 = vpop.f32.mrb[0].mxu0
      %v1646 = vadd.f32 0.0, %v1645
      %v1647 = vpop.f32.mrb[0].mxu0
      %v1648 = vpop.f32.mrb[0].mxu0
      %v1649 = vadd.f32 0.0, %v1648
      %v1650 = vpop.f32.mrb[0].mxu0
      %1651 = vmatprep.mubr.bf16.mxu0 0
      %1652 = vmatmul.mubr.bf16.gmra.mrb[0].mxu0 %v1558
      %v1653 = vpop.f32.mrb[0].mxu0
      %v1654 = vadd.f32 0.0, %v1653
      %v1655 = vpop.f32.mrb[0].mxu0
      %v1656 = vpop.f32.mrb[0].mxu0
      %v1657 = vadd.f32 0.0, %v1656
      %v1658 = vpop.f32.mrb[0].mxu0
      %1659 = vmatprep.mubr.bf16.mxu0 0
      %1660 = vmatmul.mubr.bf16.gmra.mrb[0].mxu0 %v1561
      %v1661 = vpop.f32.mrb[0].mxu0
      %v1662 = vadd.f32 0.0, %v1661
      %v1663 = vpop.f32.mrb[0].mxu0
      %v1664 = vpop.f32.mrb[0].mxu0
      %v1665 = vadd.f32 0.0, %v1664
      %v1666 = vpop.f32.mrb[0].mxu0
      %1667 = vmatprep.mubr.bf16.mxu0 0
      %1668 = vmatmul.mubr.bf16.gmra.mrb[0].mxu0 %v1564
      %v1669 = vpop.f32.mrb[0].mxu0
      %v1670 = vadd.f32 0.0, %v1669
      %v1671 = vpop.f32.mrb[0].mxu0
      %v1672 = vpop.f32.mrb[0].mxu0
      %v1673 = vadd.f32 0.0, %v1672
      %v1674 = vpop.f32.mrb[0].mxu0
      %1675 = vmatprep.mubr.bf16.mxu0 0
      %1676 = vmatmul.mubr.bf16.gmra.mrb[0].mxu0 %v1567
      %v1677 = vpop.f32.mrb[0].mxu0
      %v1678 = vadd.f32 0.0, %v1677
      %v1679 = vpop.f32.mrb[0].mxu0
      %v1680 = vpop.f32.mrb[0].mxu0
      %v1681 = vadd.f32 0.0, %v1680
      %v1682 = vpop.f32.mrb[0].mxu0
      %1683 = vmatprep.mubr.bf16.mxu0 0
      %1684 = vmatmul.mubr.bf16.gmra.mrb[0].mxu0 %v1570
      %v1685 = vpop.f32.mrb[0].mxu0
      %v1686 = vadd.f32 0.0, %v1685
      %v1687 = vpop.f32.mrb[0].mxu0
      %v1688 = vpop.f32.mrb[0].mxu0
      %v1689 = vadd.f32 0.0, %v1688
      %v1690 = vpop.f32.mrb[0].mxu0
      %1691 = vmatprep.mubr.bf16.mxu0 0
      %1692 = vmatmul.mubr.bf16.gmra.mrb[0].mxu0 %v1573
      %v1693 = vpop.f32.mrb[0].mxu0
      %v1694 = vadd.f32 0.0, %v1693
      %v1695 = vpop.f32.mrb[0].mxu0
      %v1696 = vpop.f32.mrb[0].mxu0
      %v1697 = vadd.f32 0.0, %v1696
      %v1698 = vpop.f32.mrb[0].mxu0
      %1699 = vmatprep.mubr.bf16.mxu0 0
      %1700 = vmatmul.mubr.bf16.gmra.mrb[0].mxu0 %v1576
      %v1701 = vpop.f32.mrb[0].mxu0
      %v1702 = vadd.f32 0.0, %v1701
      %v1703 = vpop.f32.mrb[0].mxu0
      %v1704 = vpop.f32.mrb[0].mxu0
      %v1705 = vadd.f32 0.0, %v1704
      %v1706 = vpop.f32.mrb[0].mxu0
      %1707 = vmatprep.mubr.bf16.mxu0 0
      %1708 = vmatmul.mubr.bf16.gmra.mrb[0].mxu0 %v1579
      %v1709 = vpop.f32.mrb[0].mxu0
      %v1710 = vadd.f32 0.0, %v1709
      %v1711 = vpop.f32.mrb[0].mxu0
      %v1712 = vpop.f32.mrb[0].mxu0
      %v1713 = vadd.f32 0.0, %v1712
      %v1714 = vpop.f32.mrb[0].mxu0
      %1715 = vmatprep.mubr.bf16.mxu0 0
      %1716 = vmatmul.mubr.bf16.gmra.mrb[0].mxu0 %v1582
      %v1717 = vpop.f32.mrb[0].mxu0
      %v1718 = vadd.f32 0.0, %v1717
      %v1719 = vpop.f32.mrb[0].mxu0
      %v1720 = vpop.f32.mrb[0].mxu0
      %v1721 = vadd.f32 0.0, %v1720
      %v1722 = vpop.f32.mrb[0].mxu0
      %1723 = vmatprep.mubr.bf16.mxu0 0
      %1724 = vmatmul.mubr.bf16.gmra.mrb[0].mxu0 %v1585
      %v1725 = vpop.f32.mrb[0].mxu0
      %v1726 = vadd.f32 0.0, %v1725
      %v1727 = vpop.f32.mrb[0].mxu0
      %v1728 = vpop.f32.mrb[0].mxu0
      %v1729 = vadd.f32 0.0, %v1728
      %v1730 = vpop.f32.mrb[0].mxu0
      %1731 = vmatprep.mubr.bf16.mxu0 0
      %1732 = vmatmul.mubr.bf16.gmra.mrb[0].mxu0 %v1588
      %v1733 = vpop.f32.mrb[0].mxu0
      %v1734 = vadd.f32 0.0, %v1733
      %v1735 = vpop.f32.mrb[0].mxu0
      %v1736 = vpop.f32.mrb[0].mxu0
      %v1737 = vadd.f32 0.0, %v1736
      %v1738 = vpop.f32.mrb[0].mxu0
      %1739 = vmatprep.mubr.bf16.mxu0 0
      %1740 = vmatmul.mubr.bf16.gmra.mrb[0].mxu0 %v1591
      %v1741 = vpop.f32.mrb[0].mxu0
      %v1742 = vadd.f32 0.0, %v1741
      %v1743 = vpop.f32.mrb[0].mxu0
      %v1744 = vpop.f32.mrb[0].mxu0
      %v1745 = vadd.f32 0.0, %v1744
      %v1746 = vpop.f32.mrb[0].mxu0
      %1747 = vmatprep.mubr.bf16.mxu0 0
      %1748 = vmatmul.mubr.bf16.gmra.mrb[0].mxu0 %v1594
      %v1749 = vpop.f32.mrb[0].mxu0
      %v1750 = vadd.f32 0.0, %v1749
      %v1751 = vpop.f32.mrb[0].mxu0
      %v1752 = vpop.f32.mrb[0].mxu0
      %v1753 = vadd.f32 0.0, %v1752
      %v1754 = vpop.f32.mrb[0].mxu0
      %1755 = vmatprep.mubr.bf16.mxu0 0
      %1756 = vmatmul.mubr.bf16.gmra.mrb[0].mxu0 %v1597
      %v1757 = vpop.f32.mrb[0].mxu0
      %v1758 = vadd.f32 0.0, %v1757
      %v1759 = vpop.f32.mrb[0].mxu0
      %v1760 = vpop.f32.mrb[0].mxu0
      %v1761 = vadd.f32 0.0, %v1760
      %v1762 = vpop.f32.mrb[0].mxu0
      %1763 = vmatprep.mubr.bf16.mxu0 0
      %1764 = vmatmul.mubr.bf16.gmra.mrb[0].mxu0 %v1600
      %v1765 = vpop.f32.mrb[0].mxu0
      %v1766 = vadd.f32 0.0, %v1765
      %v1767 = vpop.f32.mrb[0].mxu0
      %v1768 = vpop.f32.mrb[0].mxu0
      %v1769 = vadd.f32 0.0, %v1768
      %v1770 = vpop.f32.mrb[0].mxu0
      %1771 = vmatprep.mubr.bf16.mxu0 0
      %1772 = vmatmul.mubr.bf16.gmra.mrb[0].mxu0 %v1603
      %v1773 = vpop.f32.mrb[0].mxu0
      %v1774 = vadd.f32 0.0, %v1773
      %v1775 = vpop.f32.mrb[0].mxu0
      %v1776 = vpop.f32.mrb[0].mxu0
      %v1777 = vadd.f32 0.0, %v1776
      %v1778 = vpop.f32.mrb[0].mxu0
      %1779 = vmatprep.mubr.bf16.mxu0 0
      %1780 = vmatmul.mubr.bf16.gmra.mrb[0].mxu0 %v1606
      %v1781 = vpop.f32.mrb[0].mxu0
      %v1782 = vadd.f32 0.0, %v1781
      %v1783 = vpop.f32.mrb[0].mxu0
      %v1784 = vpop.f32.mrb[0].mxu0
      %v1785 = vadd.f32 0.0, %v1784
      %v1786 = vpop.f32.mrb[0].mxu0
      %1787 = vdwg.mxu0
      %v1788 = vadd.f32 %v1349, %v1646
      %v1789 = vadd.f32 %v1350, %v1649
      %v1790 = vadd.f32 %v1351, %v1654
      %v1791 = vadd.f32 %v1352, %v1657
      %v1792 = vadd.f32 %v1353, %v1662
      %v1793 = vadd.f32 %v1354, %v1665
      %v1794 = vadd.f32 %v1355, %v1670
      %v1795 = vadd.f32 %v1356, %v1673
      %v1796 = vadd.f32 %v1357, %v1678
      %v1797 = vadd.f32 %v1358, %v1681
      %v1798 = vadd.f32 %v1359, %v1686
      %v1799 = vadd.f32 %v1360, %v1689
      %v1800 = vadd.f32 %v1361, %v1694
      %v1801 = vadd.f32 %v1362, %v1697
      %v1802 = vadd.f32 %v1363, %v1702
      %v1803 = vadd.f32 %v1364, %v1705
      %v1804 = vadd.f32 %v1365, %v1710
      %v1805 = vadd.f32 %v1366, %v1713
      %v1806 = vadd.f32 %v1367, %v1718
      %v1807 = vadd.f32 %v1368, %v1721
      %v1808 = vadd.f32 %v1369, %v1726
      %v1809 = vadd.f32 %v1370, %v1729
      %v1810 = vadd.f32 %v1371, %v1734
      %v1811 = vadd.f32 %v1372, %v1737
      %v1812 = vadd.f32 %v1373, %v1742
      %v1813 = vadd.f32 %v1374, %v1745
      %v1814 = vadd.f32 %v1375, %v1750
      %v1815 = vadd.f32 %v1376, %v1753
      %v1816 = vadd.f32 %v1377, %v1758
      %v1817 = vadd.f32 %v1378, %v1761
      %v1818 = vadd.f32 %v1379, %v1766
      %v1819 = vadd.f32 %v1380, %v1769
      %v1820 = vadd.f32 %v1381, %v1774
      %v1821 = vadd.f32 %v1382, %v1777
      %v1822 = vadd.f32 %v1383, %v1782
      %v1823 = vadd.f32 %v1384, %v1785
      %v1824 = vld [vmem:[%s308 + $0x98] sm:$0x3]
      %s1825 = scalar_lea.vmem %s312, 16
      %v1826 = vld [vmem:[%s1825] sm:$0xf]
      %v1828 = vunpack.c.l.b16 %v1824
      %v1829 = vpack.c.b16 %v1828, %v1828
      %vm1830 = vsmask.f32 6400
      %v1832 = vshrl.u32 %v1498, 16
      %v1834 = vrot.slane %v1832, 1
      %v1835 = vshll.u32 %v1498, 16
      %v1837 = vrot.slane %v1835, 2
      %v1838 = vor.u32 %v1834, %v1837
      %v1840 = vshrl.u32 %v1499, 16
      %v1842 = vrot.slane %v1840, 1
      %v1843 = vshll.u32 %v1499, 16
      %v1845 = vrot.slane %v1843, 2
      %v1846 = vor.u32 %v1842, %v1845
      %v1847 = vsel %vm1830, %v1838, %v1846
      %v1849 = vshrl.u32 %v1500, 16
      %v1851 = vrot.slane %v1849, 1
      %v1852 = vshll.u32 %v1500, 16
      %v1854 = vrot.slane %v1852, 2
      %v1855 = vor.u32 %v1851, %v1854
      %v1856 = vsel %vm1830, %v1846, %v1855
      %v1858 = vshrl.u32 %v1501, 16
      %v1860 = vrot.slane %v1858, 1
      %v1861 = vshll.u32 %v1501, 16
      %v1863 = vrot.slane %v1861, 2
      %v1864 = vor.u32 %v1860, %v1863
      %v1865 = vsel %vm1830, %v1855, %v1864
      %v1867 = vshrl.u32 %v1502, 16
      %v1869 = vrot.slane %v1867, 1
      %v1870 = vshll.u32 %v1502, 16
      %v1872 = vrot.slane %v1870, 2
      %v1873 = vor.u32 %v1869, %v1872
      %v1874 = vsel %vm1830, %v1864, %v1873
      %v1876 = vshrl.u32 %v1503, 16
      %v1878 = vrot.slane %v1876, 1
      %v1879 = vshll.u32 %v1503, 16
      %v1881 = vrot.slane %v1879, 2
      %v1882 = vor.u32 %v1878, %v1881
      %v1883 = vsel %vm1830, %v1873, %v1882
      %v1885 = vshrl.u32 %v1504, 16
      %v1887 = vrot.slane %v1885, 1
      %v1888 = vshll.u32 %v1504, 16
      %v1890 = vrot.slane %v1888, 2
      %v1891 = vor.u32 %v1887, %v1890
      %v1892 = vsel %vm1830, %v1882, %v1891
      %v1894 = vshrl.u32 %v1505, 16
      %v1896 = vrot.slane %v1894, 1
      %v1897 = vshll.u32 %v1505, 16
      %v1899 = vrot.slane %v1897, 2
      %v1900 = vor.u32 %v1896, %v1899
      %v1901 = vsel %vm1830, %v1891, %v1900
      %v1903 = vshrl.u32 %v1506, 16
      %v1905 = vrot.slane %v1903, 1
      %v1906 = vshll.u32 %v1506, 16
      %v1908 = vrot.slane %v1906, 2
      %v1909 = vor.u32 %v1905, %v1908
      %v1910 = vsel %vm1830, %v1900, %v1909
      %v1912 = vshrl.u32 %v1507, 16
      %v1914 = vrot.slane %v1912, 1
      %v1915 = vshll.u32 %v1507, 16
      %v1917 = vrot.slane %v1915, 2
      %v1918 = vor.u32 %v1914, %v1917
      %v1919 = vsel %vm1830, %v1909, %v1918
      %v1921 = vshrl.u32 %v1508, 16
      %v1923 = vrot.slane %v1921, 1
      %v1924 = vshll.u32 %v1508, 16
      %v1926 = vrot.slane %v1924, 2
      %v1927 = vor.u32 %v1923, %v1926
      %v1928 = vsel %vm1830, %v1918, %v1927
      %v1930 = vshrl.u32 %v1509, 16
      %v1932 = vrot.slane %v1930, 1
      %v1933 = vshll.u32 %v1509, 16
      %v1935 = vrot.slane %v1933, 2
      %v1936 = vor.u32 %v1932, %v1935
      %v1937 = vsel %vm1830, %v1927, %v1936
      %v1939 = vshrl.u32 %v1510, 16
      %v1941 = vrot.slane %v1939, 1
      %v1942 = vshll.u32 %v1510, 16
      %v1944 = vrot.slane %v1942, 2
      %v1945 = vor.u32 %v1941, %v1944
      %v1946 = vsel %vm1830, %v1936, %v1945
      %v1948 = vshrl.u32 %v1511, 16
      %v1950 = vrot.slane %v1948, 1
      %v1951 = vshll.u32 %v1511, 16
      %v1953 = vrot.slane %v1951, 2
      %v1954 = vor.u32 %v1950, %v1953
      %v1955 = vsel %vm1830, %v1945, %v1954
      %v1957 = vshrl.u32 %v1512, 16
      %v1959 = vrot.slane %v1957, 1
      %v1960 = vshll.u32 %v1512, 16
      %v1962 = vrot.slane %v1960, 2
      %v1963 = vor.u32 %v1959, %v1962
      %v1964 = vsel %vm1830, %v1954, %v1963
      %v1966 = vshrl.u32 %v1513, 16
      %v1968 = vrot.slane %v1966, 1
      %v1969 = vshll.u32 %v1513, 16
      %v1971 = vrot.slane %v1969, 2
      %v1972 = vor.u32 %v1968, %v1971
      %v1973 = vsel %vm1830, %v1963, %v1972
      %v1975 = vshrl.u32 %v1514, 16
      %v1977 = vrot.slane %v1975, 1
      %v1978 = vshll.u32 %v1514, 16
      %v1980 = vrot.slane %v1978, 2
      %v1981 = vor.u32 %v1977, %v1980
      %v1982 = vsel %vm1830, %v1972, %v1981
      %v1984 = vshrl.u32 %v1515, 16
      %v1986 = vrot.slane %v1984, 1
      %v1987 = vshll.u32 %v1515, 16
      %v1989 = vrot.slane %v1987, 2
      %v1990 = vor.u32 %v1986, %v1989
      %v1991 = vsel %vm1830, %v1981, %v1990
      %v1993 = vshrl.u32 %v1829, 16
      %v1995 = vrot.slane %v1993, 1
      %v1996 = vshll.u32 %v1829, 16
      %v1998 = vrot.slane %v1996, 2
      %v1999 = vor.u32 %v1995, %v1998
      %v2000 = vsel %vm1830, %v1990, %v1999
      %v2002 = vsel %vm619, %v1847, 0
      %v2005 = vsel %vm619, %v1856, 0
      %v2008 = vsel %vm619, %v1865, 0
      %v2011 = vsel %vm619, %v1874, 0
      %v2014 = vsel %vm619, %v1883, 0
      %v2017 = vsel %vm619, %v1892, 0
      %v2020 = vsel %vm619, %v1901, 0
      %v2023 = vsel %vm619, %v1910, 0
      %v2026 = vsel %vm619, %v1919, 0
      %v2029 = vsel %vm619, %v1928, 0
      %v2032 = vsel %vm619, %v1937, 0
      %v2035 = vsel %vm619, %v1946, 0
      %v2038 = vsel %vm619, %v1955, 0
      %v2041 = vsel %vm619, %v1964, 0
      %v2044 = vsel %vm619, %v1973, 0
      %v2047 = vsel %vm619, %v1982, 0
      %v2050 = vsel %vm619, %v1991, 0
      %v2053 = vsel %vm619, %v2000, 0
      %v2056 = vsel %vm674, %v1826, 0
      %2058 = vmatprep.subr.bf16.mxu0 0
      %2059 = vmatpush1.bf16.msra.mxu0 %v2056
      %2060 = vmatprep.subr.bf16.mxu0 0
      %2061 = vmatpush1.bf16.msra.mxu0 0
      %2062 = vmatprep.subr.bf16.mxu0 0
      %2063 = vmatpush1.bf16.msra.mxu0 0
      %2064 = vmatprep.subr.bf16.mxu0 0
      %2065 = vmatpush1.bf16.msra.mxu0 0
      %2066 = vmatprep.subr.bf16.mxu0 0
      %2067 = vmatpush1.bf16.msra.mxu0 0
      %2068 = vmatprep.subr.bf16.mxu0 0
      %2069 = vmatpush1.bf16.msra.mxu0 0
      %2070 = vmatprep.subr.bf16.mxu0 0
      %2071 = vmatpush1.bf16.msra.mxu0 0
      %2072 = vmatprep.subr.bf16.mxu0 0
      %2073 = vmatpush1.bf16.msra.mxu0 0
      %2074 = vmatprep.subr.bf16.mxu0 0
      %2075 = vmatpush1.bf16.msra.mxu0 0
      %2076 = vmatprep.subr.bf16.mxu0 0
      %2077 = vmatpush1.bf16.msra.mxu0 0
      %2078 = vmatprep.subr.bf16.mxu0 0
      %2079 = vmatpush1.bf16.msra.mxu0 0
      %2080 = vmatprep.subr.bf16.mxu0 0
      %2081 = vmatpush1.bf16.msra.mxu0 0
      %2082 = vmatprep.subr.bf16.mxu0 0
      %2083 = vmatpush1.bf16.msra.mxu0 0
      %2084 = vmatprep.subr.bf16.mxu0 0
      %2085 = vmatpush1.bf16.msra.mxu0 0
      %2086 = vmatprep.subr.bf16.mxu0 0
      %2087 = vmatpush1.bf16.msra.mxu0 0
      %2088 = vmatprep.subr.bf16.mxu0 0
      %2089 = vmatpush1.bf16.msra.mxu0 0
      %2090 = vmatprep.mubr.bf16.mxu0 0
      %2091 = vmatmul.mubr.bf16.gmra.mrb[0].mxu0 %v2002
      %v2092 = vpop.f32.mrb[0].mxu0
      %v2093 = vadd.f32 0.0, %v2092
      %v2094 = vpop.f32.mrb[0].mxu0
      %v2095 = vpop.f32.mrb[0].mxu0
      %v2096 = vadd.f32 0.0, %v2095
      %v2097 = vpop.f32.mrb[0].mxu0
      %2098 = vmatprep.mubr.bf16.mxu0 0
      %2099 = vmatmul.mubr.bf16.gmra.mrb[0].mxu0 %v2005
      %v2100 = vpop.f32.mrb[0].mxu0
      %v2101 = vadd.f32 0.0, %v2100
      %v2102 = vpop.f32.mrb[0].mxu0
      %v2103 = vpop.f32.mrb[0].mxu0
      %v2104 = vadd.f32 0.0, %v2103
      %v2105 = vpop.f32.mrb[0].mxu0
      %2106 = vmatprep.mubr.bf16.mxu0 0
      %2107 = vmatmul.mubr.bf16.gmra.mrb[0].mxu0 %v2008
      %v2108 = vpop.f32.mrb[0].mxu0
      %v2109 = vadd.f32 0.0, %v2108
      %v2110 = vpop.f32.mrb[0].mxu0
      %v2111 = vpop.f32.mrb[0].mxu0
      %v2112 = vadd.f32 0.0, %v2111
      %v2113 = vpop.f32.mrb[0].mxu0
      %2114 = vmatprep.mubr.bf16.mxu0 0
      %2115 = vmatmul.mubr.bf16.gmra.mrb[0].mxu0 %v2011
      %v2116 = vpop.f32.mrb[0].mxu0
      %v2117 = vadd.f32 0.0, %v2116
      %v2118 = vpop.f32.mrb[0].mxu0
      %v2119 = vpop.f32.mrb[0].mxu0
      %v2120 = vadd.f32 0.0, %v2119
      %v2121 = vpop.f32.mrb[0].mxu0
      %2122 = vmatprep.mubr.bf16.mxu0 0
      %2123 = vmatmul.mubr.bf16.gmra.mrb[0].mxu0 %v2014
      %v2124 = vpop.f32.mrb[0].mxu0
      %v2125 = vadd.f32 0.0, %v2124
      %v2126 = vpop.f32.mrb[0].mxu0
      %v2127 = vpop.f32.mrb[0].mxu0
      %v2128 = vadd.f32 0.0, %v2127
      %v2129 = vpop.f32.mrb[0].mxu0
      %2130 = vmatprep.mubr.bf16.mxu0 0
      %2131 = vmatmul.mubr.bf16.gmra.mrb[0].mxu0 %v2017
      %v2132 = vpop.f32.mrb[0].mxu0
      %v2133 = vadd.f32 0.0, %v2132
      %v2134 = vpop.f32.mrb[0].mxu0
      %v2135 = vpop.f32.mrb[0].mxu0
      %v2136 = vadd.f32 0.0, %v2135
      %v2137 = vpop.f32.mrb[0].mxu0
      %2138 = vmatprep.mubr.bf16.mxu0 0
      %2139 = vmatmul.mubr.bf16.gmra.mrb[0].mxu0 %v2020
      %v2140 = vpop.f32.mrb[0].mxu0
      %v2141 = vadd.f32 0.0, %v2140
      %v2142 = vpop.f32.mrb[0].mxu0
      %v2143 = vpop.f32.mrb[0].mxu0
      %v2144 = vadd.f32 0.0, %v2143
      %v2145 = vpop.f32.mrb[0].mxu0
      %2146 = vmatprep.mubr.bf16.mxu0 0
      %2147 = vmatmul.mubr.bf16.gmra.mrb[0].mxu0 %v2023
      %v2148 = vpop.f32.mrb[0].mxu0
      %v2149 = vadd.f32 0.0, %v2148
      %v2150 = vpop.f32.mrb[0].mxu0
      %v2151 = vpop.f32.mrb[0].mxu0
      %v2152 = vadd.f32 0.0, %v2151
      %v2153 = vpop.f32.mrb[0].mxu0
      %2154 = vmatprep.mubr.bf16.mxu0 0
      %2155 = vmatmul.mubr.bf16.gmra.mrb[0].mxu0 %v2026
      %v2156 = vpop.f32.mrb[0].mxu0
      %v2157 = vadd.f32 0.0, %v2156
      %v2158 = vpop.f32.mrb[0].mxu0
      %v2159 = vpop.f32.mrb[0].mxu0
      %v2160 = vadd.f32 0.0, %v2159
      %v2161 = vpop.f32.mrb[0].mxu0
      %2162 = vmatprep.mubr.bf16.mxu0 0
      %2163 = vmatmul.mubr.bf16.gmra.mrb[0].mxu0 %v2029
      %v2164 = vpop.f32.mrb[0].mxu0
      %v2165 = vadd.f32 0.0, %v2164
      %v2166 = vpop.f32.mrb[0].mxu0
      %v2167 = vpop.f32.mrb[0].mxu0
      %v2168 = vadd.f32 0.0, %v2167
      %v2169 = vpop.f32.mrb[0].mxu0
      %2170 = vmatprep.mubr.bf16.mxu0 0
      %2171 = vmatmul.mubr.bf16.gmra.mrb[0].mxu0 %v2032
      %v2172 = vpop.f32.mrb[0].mxu0
      %v2173 = vadd.f32 0.0, %v2172
      %v2174 = vpop.f32.mrb[0].mxu0
      %v2175 = vpop.f32.mrb[0].mxu0
      %v2176 = vadd.f32 0.0, %v2175
      %v2177 = vpop.f32.mrb[0].mxu0
      %2178 = vmatprep.mubr.bf16.mxu0 0
      %2179 = vmatmul.mubr.bf16.gmra.mrb[0].mxu0 %v2035
      %v2180 = vpop.f32.mrb[0].mxu0
      %v2181 = vadd.f32 0.0, %v2180
      %v2182 = vpop.f32.mrb[0].mxu0
      %v2183 = vpop.f32.mrb[0].mxu0
      %v2184 = vadd.f32 0.0, %v2183
      %v2185 = vpop.f32.mrb[0].mxu0
      %2186 = vmatprep.mubr.bf16.mxu0 0
      %2187 = vmatmul.mubr.bf16.gmra.mrb[0].mxu0 %v2038
      %v2188 = vpop.f32.mrb[0].mxu0
      %v2189 = vadd.f32 0.0, %v2188
      %v2190 = vpop.f32.mrb[0].mxu0
      %v2191 = vpop.f32.mrb[0].mxu0
      %v2192 = vadd.f32 0.0, %v2191
      %v2193 = vpop.f32.mrb[0].mxu0
      %2194 = vmatprep.mubr.bf16.mxu0 0
      %2195 = vmatmul.mubr.bf16.gmra.mrb[0].mxu0 %v2041
      %v2196 = vpop.f32.mrb[0].mxu0
      %v2197 = vadd.f32 0.0, %v2196
      %v2198 = vpop.f32.mrb[0].mxu0
      %v2199 = vpop.f32.mrb[0].mxu0
      %v2200 = vadd.f32 0.0, %v2199
      %v2201 = vpop.f32.mrb[0].mxu0
      %2202 = vmatprep.mubr.bf16.mxu0 0
      %2203 = vmatmul.mubr.bf16.gmra.mrb[0].mxu0 %v2044
      %v2204 = vpop.f32.mrb[0].mxu0
      %v2205 = vadd.f32 0.0, %v2204
      %v2206 = vpop.f32.mrb[0].mxu0
      %v2207 = vpop.f32.mrb[0].mxu0
      %v2208 = vadd.f32 0.0, %v2207
      %v2209 = vpop.f32.mrb[0].mxu0
      %2210 = vmatprep.mubr.bf16.mxu0 0
      %2211 = vmatmul.mubr.bf16.gmra.mrb[0].mxu0 %v2047
      %v2212 = vpop.f32.mrb[0].mxu0
      %v2213 = vadd.f32 0.0, %v2212
      %v2214 = vpop.f32.mrb[0].mxu0
      %v2215 = vpop.f32.mrb[0].mxu0
      %v2216 = vadd.f32 0.0, %v2215
      %v2217 = vpop.f32.mrb[0].mxu0
      %2218 = vmatprep.mubr.bf16.mxu0 0
      %2219 = vmatmul.mubr.bf16.gmra.mrb[0].mxu0 %v2050
      %v2220 = vpop.f32.mrb[0].mxu0
      %v2221 = vadd.f32 0.0, %v2220
      %v2222 = vpop.f32.mrb[0].mxu0
      %v2223 = vpop.f32.mrb[0].mxu0
      %v2224 = vadd.f32 0.0, %v2223
      %v2225 = vpop.f32.mrb[0].mxu0
      %2226 = vmatprep.mubr.bf16.mxu0 0
      %2227 = vmatmul.mubr.bf16.gmra.mrb[0].mxu0 %v2053
      %v2228 = vpop.f32.mrb[0].mxu0
      %v2229 = vadd.f32 0.0, %v2228
      %v2230 = vpop.f32.mrb[0].mxu0
      %v2231 = vpop.f32.mrb[0].mxu0
      %v2232 = vadd.f32 0.0, %v2231
      %v2233 = vpop.f32.mrb[0].mxu0
      %2234 = vdwg.mxu0
      %v2235 = vadd.f32 %v1788, %v2093
      %v2236 = vadd.f32 %v1789, %v2096
      %v2237 = vadd.f32 %v1790, %v2101
      %v2238 = vadd.f32 %v1791, %v2104
      %v2239 = vadd.f32 %v1792, %v2109
      %v2240 = vadd.f32 %v1793, %v2112
      %v2241 = vadd.f32 %v1794, %v2117
      %v2242 = vadd.f32 %v1795, %v2120
      %v2243 = vadd.f32 %v1796, %v2125
      %v2244 = vadd.f32 %v1797, %v2128
      %v2245 = vadd.f32 %v1798, %v2133
      %v2246 = vadd.f32 %v1799, %v2136
      %v2247 = vadd.f32 %v1800, %v2141
      %v2248 = vadd.f32 %v1801, %v2144
      %v2249 = vadd.f32 %v1802, %v2149
      %v2250 = vadd.f32 %v1803, %v2152
      %v2251 = vadd.f32 %v1804, %v2157
      %v2252 = vadd.f32 %v1805, %v2160
      %v2253 = vadd.f32 %v1806, %v2165
      %v2254 = vadd.f32 %v1807, %v2168
      %v2255 = vadd.f32 %v1808, %v2173
      %v2256 = vadd.f32 %v1809, %v2176
      %v2257 = vadd.f32 %v1810, %v2181
      %v2258 = vadd.f32 %v1811, %v2184
      %v2259 = vadd.f32 %v1812, %v2189
      %v2260 = vadd.f32 %v1813, %v2192
      %v2261 = vadd.f32 %v1814, %v2197
      %v2262 = vadd.f32 %v1815, %v2200
      %v2263 = vadd.f32 %v1816, %v2205
      %v2264 = vadd.f32 %v1817, %v2208
      %v2265 = vadd.f32 %v1818, %v2213
      %v2266 = vadd.f32 %v1819, %v2216
      %v2267 = vadd.f32 %v1820, %v2221
      %v2268 = vadd.f32 %v1821, %v2224
      %v2269 = vadd.f32 %v1822, %v2229
      %v2270 = vadd.f32 %v1823, %v2232
      %v2271 = vld [vmem:[%s308 + $0x8] sm:$0xc]
      %s2272 = scalar_lea.vmem %s312, 20
      %v2273 = vld [vmem:[%s2272] sm:$0xf]
      %v2275 = vunpack.c.l.b16 %v2271
      %v2276 = vpack.c.b16 %v1462, %v2275
      %vm2277 = vcmask 1045504
      %v2278 = vrot.slane %v2276, 2
      %v2279 = vrot.slane %v1499, 2
      %v2280 = vsel %vm2277, %v2278, %v2279
      %v2281 = vrot.slane %v1500, 2
      %v2282 = vsel %vm2277, %v2279, %v2281
      %v2283 = vrot.slane %v1501, 2
      %v2284 = vsel %vm2277, %v2281, %v2283
      %v2285 = vrot.slane %v1502, 2
      %v2286 = vsel %vm2277, %v2283, %v2285
      %v2287 = vrot.slane %v1503, 2
      %v2288 = vsel %vm2277, %v2285, %v2287
      %v2289 = vrot.slane %v1504, 2
      %v2290 = vsel %vm2277, %v2287, %v2289
      %v2291 = vrot.slane %v1505, 2
      %v2292 = vsel %vm2277, %v2289, %v2291
      %v2293 = vrot.slane %v1506, 2
      %v2294 = vsel %vm2277, %v2291, %v2293
      %v2295 = vrot.slane %v1507, 2
      %v2296 = vsel %vm2277, %v2293, %v2295
      %v2297 = vrot.slane %v1508, 2
      %v2298 = vsel %vm2277, %v2295, %v2297
      %v2299 = vrot.slane %v1509, 2
      %v2300 = vsel %vm2277, %v2297, %v2299
      %v2301 = vrot.slane %v1510, 2
      %v2302 = vsel %vm2277, %v2299, %v2301
      %v2303 = vrot.slane %v1511, 2
      %v2304 = vsel %vm2277, %v2301, %v2303
      %v2305 = vrot.slane %v1512, 2
      %v2306 = vsel %vm2277, %v2303, %v2305
      %v2307 = vrot.slane %v1513, 2
      %v2308 = vsel %vm2277, %v2305, %v2307
      %v2309 = vrot.slane %v1514, 2
      %v2310 = vsel %vm2277, %v2307, %v2309
      %v2311 = vrot.slane %v1515, 2
      %v2312 = vsel %vm2277, %v2309, %v2311
      %v2313 = vrot.slane %v1829, 2
      %v2314 = vsel %vm2277, %v2311, %v2313
      %v2316 = vsel %vm619, %v2280, 0
      %v2319 = vsel %vm619, %v2282, 0
      %v2322 = vsel %vm619, %v2284, 0
      %v2325 = vsel %vm619, %v2286, 0
      %v2328 = vsel %vm619, %v2288, 0
      %v2331 = vsel %vm619, %v2290, 0
      %v2334 = vsel %vm619, %v2292, 0
      %v2337 = vsel %vm619, %v2294, 0
      %v2340 = vsel %vm619, %v2296, 0
      %v2343 = vsel %vm619, %v2298, 0
      %v2346 = vsel %vm619, %v2300, 0
      %v2349 = vsel %vm619, %v2302, 0
      %v2352 = vsel %vm619, %v2304, 0
      %v2355 = vsel %vm619, %v2306, 0
      %v2358 = vsel %vm619, %v2308, 0
      %v2361 = vsel %vm619, %v2310, 0
      %v2364 = vsel %vm619, %v2312, 0
      %v2367 = vsel %vm619, %v2314, 0
      %v2370 = vsel %vm674, %v2273, 0
      %2372 = vmatprep.subr.bf16.mxu0 0
      %2373 = vmatpush1.bf16.msra.mxu0 %v2370
      %2374 = vmatprep.subr.bf16.mxu0 0
      %2375 = vmatpush1.bf16.msra.mxu0 0
      %2376 = vmatprep.subr.bf16.mxu0 0
      %2377 = vmatpush1.bf16.msra.mxu0 0
      %2378 = vmatprep.subr.bf16.mxu0 0
      %2379 = vmatpush1.bf16.msra.mxu0 0
      %2380 = vmatprep.subr.bf16.mxu0 0
      %2381 = vmatpush1.bf16.msra.mxu0 0
      %2382 = vmatprep.subr.bf16.mxu0 0
      %2383 = vmatpush1.bf16.msra.mxu0 0
      %2384 = vmatprep.subr.bf16.mxu0 0
      %2385 = vmatpush1.bf16.msra.mxu0 0
      %2386 = vmatprep.subr.bf16.mxu0 0
      %2387 = vmatpush1.bf16.msra.mxu0 0
      %2388 = vmatprep.subr.bf16.mxu0 0
      %2389 = vmatpush1.bf16.msra.mxu0 0
      %2390 = vmatprep.subr.bf16.mxu0 0
      %2391 = vmatpush1.bf16.msra.mxu0 0
      %2392 = vmatprep.subr.bf16.mxu0 0
      %2393 = vmatpush1.bf16.msra.mxu0 0
      %2394 = vmatprep.subr.bf16.mxu0 0
      %2395 = vmatpush1.bf16.msra.mxu0 0
      %2396 = vmatprep.subr.bf16.mxu0 0
      %2397 = vmatpush1.bf16.msra.mxu0 0
      %2398 = vmatprep.subr.bf16.mxu0 0
      %2399 = vmatpush1.bf16.msra.mxu0 0
      %2400 = vmatprep.subr.bf16.mxu0 0
      %2401 = vmatpush1.bf16.msra.mxu0 0
      %2402 = vmatprep.subr.bf16.mxu0 0
      %2403 = vmatpush1.bf16.msra.mxu0 0
      %2404 = vmatprep.mubr.bf16.mxu0 0
      %2405 = vmatmul.mubr.bf16.gmra.mrb[0].mxu0 %v2316
      %v2406 = vpop.f32.mrb[0].mxu0
      %v2407 = vadd.f32 0.0, %v2406
      %v2408 = vpop.f32.mrb[0].mxu0
      %v2409 = vpop.f32.mrb[0].mxu0
      %v2410 = vadd.f32 0.0, %v2409
      %v2411 = vpop.f32.mrb[0].mxu0
      %2412 = vmatprep.mubr.bf16.mxu0 0
      %2413 = vmatmul.mubr.bf16.gmra.mrb[0].mxu0 %v2319
      %v2414 = vpop.f32.mrb[0].mxu0
      %v2415 = vadd.f32 0.0, %v2414
      %v2416 = vpop.f32.mrb[0].mxu0
      %v2417 = vpop.f32.mrb[0].mxu0
      %v2418 = vadd.f32 0.0, %v2417
      %v2419 = vpop.f32.mrb[0].mxu0
      %2420 = vmatprep.mubr.bf16.mxu0 0
      %2421 = vmatmul.mubr.bf16.gmra.mrb[0].mxu0 %v2322
      %v2422 = vpop.f32.mrb[0].mxu0
      %v2423 = vadd.f32 0.0, %v2422
      %v2424 = vpop.f32.mrb[0].mxu0
      %v2425 = vpop.f32.mrb[0].mxu0
      %v2426 = vadd.f32 0.0, %v2425
      %v2427 = vpop.f32.mrb[0].mxu0
      %2428 = vmatprep.mubr.bf16.mxu0 0
      %2429 = vmatmul.mubr.bf16.gmra.mrb[0].mxu0 %v2325
      %v2430 = vpop.f32.mrb[0].mxu0
      %v2431 = vadd.f32 0.0, %v2430
      %v2432 = vpop.f32.mrb[0].mxu0
      %v2433 = vpop.f32.mrb[0].mxu0
      %v2434 = vadd.f32 0.0, %v2433
      %v2435 = vpop.f32.mrb[0].mxu0
      %2436 = vmatprep.mubr.bf16.mxu0 0
      %2437 = vmatmul.mubr.bf16.gmra.mrb[0].mxu0 %v2328
      %v2438 = vpop.f32.mrb[0].mxu0
      %v2439 = vadd.f32 0.0, %v2438
      %v2440 = vpop.f32.mrb[0].mxu0
      %v2441 = vpop.f32.mrb[0].mxu0
      %v2442 = vadd.f32 0.0, %v2441
      %v2443 = vpop.f32.mrb[0].mxu0
      %2444 = vmatprep.mubr.bf16.mxu0 0
      %2445 = vmatmul.mubr.bf16.gmra.mrb[0].mxu0 %v2331
      %v2446 = vpop.f32.mrb[0].mxu0
      %v2447 = vadd.f32 0.0, %v2446
      %v2448 = vpop.f32.mrb[0].mxu0
      %v2449 = vpop.f32.mrb[0].mxu0
      %v2450 = vadd.f32 0.0, %v2449
      %v2451 = vpop.f32.mrb[0].mxu0
      %2452 = vmatprep.mubr.bf16.mxu0 0
      %2453 = vmatmul.mubr.bf16.gmra.mrb[0].mxu0 %v2334
      %v2454 = vpop.f32.mrb[0].mxu0
      %v2455 = vadd.f32 0.0, %v2454
      %v2456 = vpop.f32.mrb[0].mxu0
      %v2457 = vpop.f32.mrb[0].mxu0
      %v2458 = vadd.f32 0.0, %v2457
      %v2459 = vpop.f32.mrb[0].mxu0
      %2460 = vmatprep.mubr.bf16.mxu0 0
      %2461 = vmatmul.mubr.bf16.gmra.mrb[0].mxu0 %v2337
      %v2462 = vpop.f32.mrb[0].mxu0
      %v2463 = vadd.f32 0.0, %v2462
      %v2464 = vpop.f32.mrb[0].mxu0
      %v2465 = vpop.f32.mrb[0].mxu0
      %v2466 = vadd.f32 0.0, %v2465
      %v2467 = vpop.f32.mrb[0].mxu0
      %2468 = vmatprep.mubr.bf16.mxu0 0
      %2469 = vmatmul.mubr.bf16.gmra.mrb[0].mxu0 %v2340
      %v2470 = vpop.f32.mrb[0].mxu0
      %v2471 = vadd.f32 0.0, %v2470
      %v2472 = vpop.f32.mrb[0].mxu0
      %v2473 = vpop.f32.mrb[0].mxu0
      %v2474 = vadd.f32 0.0, %v2473
      %v2475 = vpop.f32.mrb[0].mxu0
      %2476 = vmatprep.mubr.bf16.mxu0 0
      %2477 = vmatmul.mubr.bf16.gmra.mrb[0].mxu0 %v2343
      %v2478 = vpop.f32.mrb[0].mxu0
      %v2479 = vadd.f32 0.0, %v2478
      %v2480 = vpop.f32.mrb[0].mxu0
      %v2481 = vpop.f32.mrb[0].mxu0
      %v2482 = vadd.f32 0.0, %v2481
      %v2483 = vpop.f32.mrb[0].mxu0
      %2484 = vmatprep.mubr.bf16.mxu0 0
      %2485 = vmatmul.mubr.bf16.gmra.mrb[0].mxu0 %v2346
      %v2486 = vpop.f32.mrb[0].mxu0
      %v2487 = vadd.f32 0.0, %v2486
      %v2488 = vpop.f32.mrb[0].mxu0
      %v2489 = vpop.f32.mrb[0].mxu0
      %v2490 = vadd.f32 0.0, %v2489
      %v2491 = vpop.f32.mrb[0].mxu0
      %2492 = vmatprep.mubr.bf16.mxu0 0
      %2493 = vmatmul.mubr.bf16.gmra.mrb[0].mxu0 %v2349
      %v2494 = vpop.f32.mrb[0].mxu0
      %v2495 = vadd.f32 0.0, %v2494
      %v2496 = vpop.f32.mrb[0].mxu0
      %v2497 = vpop.f32.mrb[0].mxu0
      %v2498 = vadd.f32 0.0, %v2497
      %v2499 = vpop.f32.mrb[0].mxu0
      %2500 = vmatprep.mubr.bf16.mxu0 0
      %2501 = vmatmul.mubr.bf16.gmra.mrb[0].mxu0 %v2352
      %v2502 = vpop.f32.mrb[0].mxu0
      %v2503 = vadd.f32 0.0, %v2502
      %v2504 = vpop.f32.mrb[0].mxu0
      %v2505 = vpop.f32.mrb[0].mxu0
      %v2506 = vadd.f32 0.0, %v2505
      %v2507 = vpop.f32.mrb[0].mxu0
      %2508 = vmatprep.mubr.bf16.mxu0 0
      %2509 = vmatmul.mubr.bf16.gmra.mrb[0].mxu0 %v2355
      %v2510 = vpop.f32.mrb[0].mxu0
      %v2511 = vadd.f32 0.0, %v2510
      %v2512 = vpop.f32.mrb[0].mxu0
      %v2513 = vpop.f32.mrb[0].mxu0
      %v2514 = vadd.f32 0.0, %v2513
      %v2515 = vpop.f32.mrb[0].mxu0
      %2516 = vmatprep.mubr.bf16.mxu0 0
      %2517 = vmatmul.mubr.bf16.gmra.mrb[0].mxu0 %v2358
      %v2518 = vpop.f32.mrb[0].mxu0
      %v2519 = vadd.f32 0.0, %v2518
      %v2520 = vpop.f32.mrb[0].mxu0
      %v2521 = vpop.f32.mrb[0].mxu0
      %v2522 = vadd.f32 0.0, %v2521
      %v2523 = vpop.f32.mrb[0].mxu0
      %2524 = vmatprep.mubr.bf16.mxu0 0
      %2525 = vmatmul.mubr.bf16.gmra.mrb[0].mxu0 %v2361
      %v2526 = vpop.f32.mrb[0].mxu0
      %v2527 = vadd.f32 0.0, %v2526
      %v2528 = vpop.f32.mrb[0].mxu0
      %v2529 = vpop.f32.mrb[0].mxu0
      %v2530 = vadd.f32 0.0, %v2529
      %v2531 = vpop.f32.mrb[0].mxu0
      %2532 = vmatprep.mubr.bf16.mxu0 0
      %2533 = vmatmul.mubr.bf16.gmra.mrb[0].mxu0 %v2364
      %v2534 = vpop.f32.mrb[0].mxu0
      %v2535 = vadd.f32 0.0, %v2534
      %v2536 = vpop.f32.mrb[0].mxu0
      %v2537 = vpop.f32.mrb[0].mxu0
      %v2538 = vadd.f32 0.0, %v2537
      %v2539 = vpop.f32.mrb[0].mxu0
      %2540 = vmatprep.mubr.bf16.mxu0 0
      %2541 = vmatmul.mubr.bf16.gmra.mrb[0].mxu0 %v2367
      %v2542 = vpop.f32.mrb[0].mxu0
      %v2543 = vadd.f32 0.0, %v2542
      %v2544 = vpop.f32.mrb[0].mxu0
      %v2545 = vpop.f32.mrb[0].mxu0
      %v2546 = vadd.f32 0.0, %v2545
      %v2547 = vpop.f32.mrb[0].mxu0
      %2548 = vdwg.mxu0
      %v2549 = vadd.f32 %v2235, %v2407
      %v2550 = vadd.f32 %v2236, %v2410
      %v2551 = vadd.f32 %v2237, %v2415
      %v2552 = vadd.f32 %v2238, %v2418
      %v2553 = vadd.f32 %v2239, %v2423
      %v2554 = vadd.f32 %v2240, %v2426
      %v2555 = vadd.f32 %v2241, %v2431
      %v2556 = vadd.f32 %v2242, %v2434
      %v2557 = vadd.f32 %v2243, %v2439
      %v2558 = vadd.f32 %v2244, %v2442
      %v2559 = vadd.f32 %v2245, %v2447
      %v2560 = vadd.f32 %v2246, %v2450
      %v2561 = vadd.f32 %v2247, %v2455
      %v2562 = vadd.f32 %v2248, %v2458
      %v2563 = vadd.f32 %v2249, %v2463
      %v2564 = vadd.f32 %v2250, %v2466
      %v2565 = vadd.f32 %v2251, %v2471
      %v2566 = vadd.f32 %v2252, %v2474
      %v2567 = vadd.f32 %v2253, %v2479
      %v2568 = vadd.f32 %v2254, %v2482
      %v2569 = vadd.f32 %v2255, %v2487
      %v2570 = vadd.f32 %v2256, %v2490
      %v2571 = vadd.f32 %v2257, %v2495
      %v2572 = vadd.f32 %v2258, %v2498
      %v2573 = vadd.f32 %v2259, %v2503
      %v2574 = vadd.f32 %v2260, %v2506
      %v2575 = vadd.f32 %v2261, %v2511
      %v2576 = vadd.f32 %v2262, %v2514
      %v2577 = vadd.f32 %v2263, %v2519
      %v2578 = vadd.f32 %v2264, %v2522
      %v2579 = vadd.f32 %v2265, %v2527
      %v2580 = vadd.f32 %v2266, %v2530
      %v2581 = vadd.f32 %v2267, %v2535
      %v2582 = vadd.f32 %v2268, %v2538
      %v2583 = vadd.f32 %v2269, %v2543
      %v2584 = vadd.f32 %v2270, %v2546
      %v2585 = vld [vmem:[%s308 + $0x10] sm:$0xc]
      %v2586 = vld [vmem:[%s308 + $0x14] sm:$0xf]
      %v2587 = vld [vmem:[%s308 + $0x18] sm:$0xf]
      %v2588 = vld [vmem:[%s308 + $0x1c] sm:$0xf]
      %v2589 = vld [vmem:[%s308 + $0x20] sm:$0xf]
      %v2590 = vld [vmem:[%s308 + $0x24] sm:$0xf]
      %v2591 = vld [vmem:[%s308 + $0x28] sm:$0xf]
      %v2592 = vld [vmem:[%s308 + $0x2c] sm:$0xf]
      %v2593 = vld [vmem:[%s308 + $0x30] sm:$0xf]
      %v2594 = vld [vmem:[%s308 + $0x34] sm:$0xf]
      %v2595 = vld [vmem:[%s308 + $0x38] sm:$0xf]
      %v2596 = vld [vmem:[%s308 + $0x3c] sm:$0xf]
      %v2597 = vld [vmem:[%s308 + $0x40] sm:$0xf]
      %v2598 = vld [vmem:[%s308 + $0x44] sm:$0xf]
      %v2599 = vld [vmem:[%s308 + $0x48] sm:$0xf]
      %v2600 = vld [vmem:[%s308 + $0x4c] sm:$0xf]
      %v2601 = vld [vmem:[%s308 + $0x50] sm:$0xf]
      %v2602 = vld [vmem:[%s308 + $0x54] sm:$0xf]
      %v2603 = vld [vmem:[%s308 + $0x58] sm:$0xf]
      %v2604 = vld [vmem:[%s308 + $0x5c] sm:$0xf]
      %v2605 = vld [vmem:[%s308 + $0x60] sm:$0xf]
      %v2606 = vld [vmem:[%s308 + $0x64] sm:$0xf]
      %v2607 = vld [vmem:[%s308 + $0x68] sm:$0xf]
      %v2608 = vld [vmem:[%s308 + $0x6c] sm:$0xf]
      %v2609 = vld [vmem:[%s308 + $0x70] sm:$0xf]
      %v2610 = vld [vmem:[%s308 + $0x74] sm:$0xf]
      %v2611 = vld [vmem:[%s308 + $0x78] sm:$0xf]
      %v2612 = vld [vmem:[%s308 + $0x7c] sm:$0xf]
      %v2613 = vld [vmem:[%s308 + $0x80] sm:$0xf]
      %v2614 = vld [vmem:[%s308 + $0x84] sm:$0xf]
      %v2615 = vld [vmem:[%s308 + $0x88] sm:$0xf]
      %v2616 = vld [vmem:[%s308 + $0x8c] sm:$0xf]
      %v2617 = vld [vmem:[%s308 + $0x90] sm:$0xf]
      %v2618 = vld [vmem:[%s308 + $0x94] sm:$0xf]
      %v2619 = vld [vmem:[%s308 + $0x98] sm:$0xf]
      %v2620 = vld [vmem:[%s308 + $0x9c] sm:$0xf]
      %v2621 = vld [vmem:[%s308 + $0xa0] sm:$0x3]
      %s2622 = scalar_lea.vmem %s312, 24
      %v2623 = vld [vmem:[%s2622] sm:$0xf]
      %v2661 = vunpack.c.l.b16 %v2585
      %v2662 = vunpack.c.l.b16 %v2586
      %v2663 = vunpack.c.l.b16 %v2587
      %v2664 = vunpack.c.l.b16 %v2588
      %v2665 = vunpack.c.l.b16 %v2589
      %v2666 = vunpack.c.l.b16 %v2590
      %v2667 = vunpack.c.l.b16 %v2591
      %v2668 = vunpack.c.l.b16 %v2592
      %v2669 = vunpack.c.l.b16 %v2593
      %v2670 = vunpack.c.l.b16 %v2594
      %v2671 = vunpack.c.l.b16 %v2595
      %v2672 = vunpack.c.l.b16 %v2596
      %v2673 = vunpack.c.l.b16 %v2597
      %v2674 = vunpack.c.l.b16 %v2598
      %v2675 = vunpack.c.l.b16 %v2599
      %v2676 = vunpack.c.l.b16 %v2600
      %v2677 = vunpack.c.l.b16 %v2601
      %v2678 = vunpack.c.l.b16 %v2602
      %v2679 = vunpack.c.l.b16 %v2603
      %v2680 = vunpack.c.l.b16 %v2604
      %v2681 = vunpack.c.l.b16 %v2605
      %v2682 = vunpack.c.l.b16 %v2606
      %v2683 = vunpack.c.l.b16 %v2607
      %v2684 = vunpack.c.l.b16 %v2608
      %v2685 = vunpack.c.l.b16 %v2609
      %v2686 = vunpack.c.l.b16 %v2610
      %v2687 = vunpack.c.l.b16 %v2611
      %v2688 = vunpack.c.l.b16 %v2612
      %v2689 = vunpack.c.l.b16 %v2613
      %v2690 = vunpack.c.l.b16 %v2614
      %v2691 = vunpack.c.l.b16 %v2615
      %v2692 = vunpack.c.l.b16 %v2616
      %v2693 = vunpack.c.l.b16 %v2617
      %v2694 = vunpack.c.l.b16 %v2618
      %v2695 = vunpack.c.l.b16 %v2619
      %v2696 = vunpack.c.l.b16 %v2620
      %v2697 = vunpack.c.l.b16 %v2621
      %v2698 = vpack.c.b16 %v2662, %v2661
      %v2699 = vpack.c.b16 %v2664, %v2663
      %v2700 = vpack.c.b16 %v2666, %v2665
      %v2701 = vpack.c.b16 %v2668, %v2667
      %v2702 = vpack.c.b16 %v2670, %v2669
      %v2703 = vpack.c.b16 %v2672, %v2671
      %v2704 = vpack.c.b16 %v2674, %v2673
      %v2705 = vpack.c.b16 %v2676, %v2675
      %v2706 = vpack.c.b16 %v2678, %v2677
      %v2707 = vpack.c.b16 %v2680, %v2679
      %v2708 = vpack.c.b16 %v2682, %v2681
      %v2709 = vpack.c.b16 %v2684, %v2683
      %v2710 = vpack.c.b16 %v2686, %v2685
      %v2711 = vpack.c.b16 %v2688, %v2687
      %v2712 = vpack.c.b16 %v2690, %v2689
      %v2713 = vpack.c.b16 %v2692, %v2691
      %v2714 = vpack.c.b16 %v2694, %v2693
      %v2715 = vpack.c.b16 %v2696, %v2695
      %v2716 = vpack.c.b16 %v2697, %v2697
      %v2717 = vrot.slane %v2698, 2
      %v2718 = vrot.slane %v2699, 2
      %v2719 = vsel %vm2277, %v2717, %v2718
      %v2720 = vrot.slane %v2700, 2
      %v2721 = vsel %vm2277, %v2718, %v2720
      %v2722 = vrot.slane %v2701, 2
      %v2723 = vsel %vm2277, %v2720, %v2722
      %v2724 = vrot.slane %v2702, 2
      %v2725 = vsel %vm2277, %v2722, %v2724
      %v2726 = vrot.slane %v2703, 2
      %v2727 = vsel %vm2277, %v2724, %v2726
      %v2728 = vrot.slane %v2704, 2
      %v2729 = vsel %vm2277, %v2726, %v2728
      %v2730 = vrot.slane %v2705, 2
      %v2731 = vsel %vm2277, %v2728, %v2730
      %v2732 = vrot.slane %v2706, 2
      %v2733 = vsel %vm2277, %v2730, %v2732
      %v2734 = vrot.slane %v2707, 2
      %v2735 = vsel %vm2277, %v2732, %v2734
      %v2736 = vrot.slane %v2708, 2
      %v2737 = vsel %vm2277, %v2734, %v2736
      %v2738 = vrot.slane %v2709, 2
      %v2739 = vsel %vm2277, %v2736, %v2738
      %v2740 = vrot.slane %v2710, 2
      %v2741 = vsel %vm2277, %v2738, %v2740
      %v2742 = vrot.slane %v2711, 2
      %v2743 = vsel %vm2277, %v2740, %v2742
      %v2744 = vrot.slane %v2712, 2
      %v2745 = vsel %vm2277, %v2742, %v2744
      %v2746 = vrot.slane %v2713, 2
      %v2747 = vsel %vm2277, %v2744, %v2746
      %v2748 = vrot.slane %v2714, 2
      %v2749 = vsel %vm2277, %v2746, %v2748
      %v2750 = vrot.slane %v2715, 2
      %v2751 = vsel %vm2277, %v2748, %v2750
      %v2752 = vrot.slane %v2716, 2
      %v2753 = vsel %vm2277, %v2750, %v2752
      %v2755 = vsel %vm619, %v2719, 0
      %v2758 = vsel %vm619, %v2721, 0
      %v2761 = vsel %vm619, %v2723, 0
      %v2764 = vsel %vm619, %v2725, 0
      %v2767 = vsel %vm619, %v2727, 0
      %v2770 = vsel %vm619, %v2729, 0
      %v2773 = vsel %vm619, %v2731, 0
      %v2776 = vsel %vm619, %v2733, 0
      %v2779 = vsel %vm619, %v2735, 0
      %v2782 = vsel %vm619, %v2737, 0
      %v2785 = vsel %vm619, %v2739, 0
      %v2788 = vsel %vm619, %v2741, 0
      %v2791 = vsel %vm619, %v2743, 0
      %v2794 = vsel %vm619, %v2745, 0
      %v2797 = vsel %vm619, %v2747, 0
      %v2800 = vsel %vm619, %v2749, 0
      %v2803 = vsel %vm619, %v2751, 0
      %v2806 = vsel %vm619, %v2753, 0
      %v2809 = vsel %vm674, %v2623, 0
      %2811 = vmatprep.subr.bf16.mxu0 0
      %2812 = vmatpush1.bf16.msra.mxu0 %v2809
      %2813 = vmatprep.subr.bf16.mxu0 0
      %2814 = vmatpush1.bf16.msra.mxu0 0
      %2815 = vmatprep.subr.bf16.mxu0 0
      %2816 = vmatpush1.bf16.msra.mxu0 0
      %2817 = vmatprep.subr.bf16.mxu0 0
      %2818 = vmatpush1.bf16.msra.mxu0 0
      %2819 = vmatprep.subr.bf16.mxu0 0
      %2820 = vmatpush1.bf16.msra.mxu0 0
      %2821 = vmatprep.subr.bf16.mxu0 0
      %2822 = vmatpush1.bf16.msra.mxu0 0
      %2823 = vmatprep.subr.bf16.mxu0 0
      %2824 = vmatpush1.bf16.msra.mxu0 0
      %2825 = vmatprep.subr.bf16.mxu0 0
      %2826 = vmatpush1.bf16.msra.mxu0 0
      %2827 = vmatprep.subr.bf16.mxu0 0
      %2828 = vmatpush1.bf16.msra.mxu0 0
      %2829 = vmatprep.subr.bf16.mxu0 0
      %2830 = vmatpush1.bf16.msra.mxu0 0
      %2831 = vmatprep.subr.bf16.mxu0 0
      %2832 = vmatpush1.bf16.msra.mxu0 0
      %2833 = vmatprep.subr.bf16.mxu0 0
      %2834 = vmatpush1.bf16.msra.mxu0 0
      %2835 = vmatprep.subr.bf16.mxu0 0
      %2836 = vmatpush1.bf16.msra.mxu0 0
      %2837 = vmatprep.subr.bf16.mxu0 0
      %2838 = vmatpush1.bf16.msra.mxu0 0
      %2839 = vmatprep.subr.bf16.mxu0 0
      %2840 = vmatpush1.bf16.msra.mxu0 0
      %2841 = vmatprep.subr.bf16.mxu0 0
      %2842 = vmatpush1.bf16.msra.mxu0 0
      %2843 = vmatprep.mubr.bf16.mxu0 0
      %2844 = vmatmul.mubr.bf16.gmra.mrb[0].mxu0 %v2755
      %v2845 = vpop.f32.mrb[0].mxu0
      %v2846 = vadd.f32 0.0, %v2845
      %v2847 = vpop.f32.mrb[0].mxu0
      %v2848 = vpop.f32.mrb[0].mxu0
      %v2849 = vadd.f32 0.0, %v2848
      %v2850 = vpop.f32.mrb[0].mxu0
      %2851 = vmatprep.mubr.bf16.mxu0 0
      %2852 = vmatmul.mubr.bf16.gmra.mrb[0].mxu0 %v2758
      %v2853 = vpop.f32.mrb[0].mxu0
      %v2854 = vadd.f32 0.0, %v2853
      %v2855 = vpop.f32.mrb[0].mxu0
      %v2856 = vpop.f32.mrb[0].mxu0
      %v2857 = vadd.f32 0.0, %v2856
      %v2858 = vpop.f32.mrb[0].mxu0
      %2859 = vmatprep.mubr.bf16.mxu0 0
      %2860 = vmatmul.mubr.bf16.gmra.mrb[0].mxu0 %v2761
      %v2861 = vpop.f32.mrb[0].mxu0
      %v2862 = vadd.f32 0.0, %v2861
      %v2863 = vpop.f32.mrb[0].mxu0
      %v2864 = vpop.f32.mrb[0].mxu0
      %v2865 = vadd.f32 0.0, %v2864
      %v2866 = vpop.f32.mrb[0].mxu0
      %2867 = vmatprep.mubr.bf16.mxu0 0
      %2868 = vmatmul.mubr.bf16.gmra.mrb[0].mxu0 %v2764
      %v2869 = vpop.f32.mrb[0].mxu0
      %v2870 = vadd.f32 0.0, %v2869
      %v2871 = vpop.f32.mrb[0].mxu0
      %v2872 = vpop.f32.mrb[0].mxu0
      %v2873 = vadd.f32 0.0, %v2872
      %v2874 = vpop.f32.mrb[0].mxu0
      %2875 = vmatprep.mubr.bf16.mxu0 0
      %2876 = vmatmul.mubr.bf16.gmra.mrb[0].mxu0 %v2767
      %v2877 = vpop.f32.mrb[0].mxu0
      %v2878 = vadd.f32 0.0, %v2877
      %v2879 = vpop.f32.mrb[0].mxu0
      %v2880 = vpop.f32.mrb[0].mxu0
      %v2881 = vadd.f32 0.0, %v2880
      %v2882 = vpop.f32.mrb[0].mxu0
      %2883 = vmatprep.mubr.bf16.mxu0 0
      %2884 = vmatmul.mubr.bf16.gmra.mrb[0].mxu0 %v2770
      %v2885 = vpop.f32.mrb[0].mxu0
      %v2886 = vadd.f32 0.0, %v2885
      %v2887 = vpop.f32.mrb[0].mxu0
      %v2888 = vpop.f32.mrb[0].mxu0
      %v2889 = vadd.f32 0.0, %v2888
      %v2890 = vpop.f32.mrb[0].mxu0
      %2891 = vmatprep.mubr.bf16.mxu0 0
      %2892 = vmatmul.mubr.bf16.gmra.mrb[0].mxu0 %v2773
      %v2893 = vpop.f32.mrb[0].mxu0
      %v2894 = vadd.f32 0.0, %v2893
      %v2895 = vpop.f32.mrb[0].mxu0
      %v2896 = vpop.f32.mrb[0].mxu0
      %v2897 = vadd.f32 0.0, %v2896
      %v2898 = vpop.f32.mrb[0].mxu0
      %2899 = vmatprep.mubr.bf16.mxu0 0
      %2900 = vmatmul.mubr.bf16.gmra.mrb[0].mxu0 %v2776
      %v2901 = vpop.f32.mrb[0].mxu0
      %v2902 = vadd.f32 0.0, %v2901
      %v2903 = vpop.f32.mrb[0].mxu0
      %v2904 = vpop.f32.mrb[0].mxu0
      %v2905 = vadd.f32 0.0, %v2904
      %v2906 = vpop.f32.mrb[0].mxu0
      %2907 = vmatprep.mubr.bf16.mxu0 0
      %2908 = vmatmul.mubr.bf16.gmra.mrb[0].mxu0 %v2779
      %v2909 = vpop.f32.mrb[0].mxu0
      %v2910 = vadd.f32 0.0, %v2909
      %v2911 = vpop.f32.mrb[0].mxu0
      %v2912 = vpop.f32.mrb[0].mxu0
      %v2913 = vadd.f32 0.0, %v2912
      %v2914 = vpop.f32.mrb[0].mxu0
      %2915 = vmatprep.mubr.bf16.mxu0 0
      %2916 = vmatmul.mubr.bf16.gmra.mrb[0].mxu0 %v2782
      %v2917 = vpop.f32.mrb[0].mxu0
      %v2918 = vadd.f32 0.0, %v2917
      %v2919 = vpop.f32.mrb[0].mxu0
      %v2920 = vpop.f32.mrb[0].mxu0
      %v2921 = vadd.f32 0.0, %v2920
      %v2922 = vpop.f32.mrb[0].mxu0
      %2923 = vmatprep.mubr.bf16.mxu0 0
      %2924 = vmatmul.mubr.bf16.gmra.mrb[0].mxu0 %v2785
      %v2925 = vpop.f32.mrb[0].mxu0
      %v2926 = vadd.f32 0.0, %v2925
      %v2927 = vpop.f32.mrb[0].mxu0
      %v2928 = vpop.f32.mrb[0].mxu0
      %v2929 = vadd.f32 0.0, %v2928
      %v2930 = vpop.f32.mrb[0].mxu0
      %2931 = vmatprep.mubr.bf16.mxu0 0
      %2932 = vmatmul.mubr.bf16.gmra.mrb[0].mxu0 %v2788
      %v2933 = vpop.f32.mrb[0].mxu0
      %v2934 = vadd.f32 0.0, %v2933
      %v2935 = vpop.f32.mrb[0].mxu0
      %v2936 = vpop.f32.mrb[0].mxu0
      %v2937 = vadd.f32 0.0, %v2936
      %v2938 = vpop.f32.mrb[0].mxu0
      %2939 = vmatprep.mubr.bf16.mxu0 0
      %2940 = vmatmul.mubr.bf16.gmra.mrb[0].mxu0 %v2791
      %v2941 = vpop.f32.mrb[0].mxu0
      %v2942 = vadd.f32 0.0, %v2941
      %v2943 = vpop.f32.mrb[0].mxu0
      %v2944 = vpop.f32.mrb[0].mxu0
      %v2945 = vadd.f32 0.0, %v2944
      %v2946 = vpop.f32.mrb[0].mxu0
      %2947 = vmatprep.mubr.bf16.mxu0 0
      %2948 = vmatmul.mubr.bf16.gmra.mrb[0].mxu0 %v2794
      %v2949 = vpop.f32.mrb[0].mxu0
      %v2950 = vadd.f32 0.0, %v2949
      %v2951 = vpop.f32.mrb[0].mxu0
      %v2952 = vpop.f32.mrb[0].mxu0
      %v2953 = vadd.f32 0.0, %v2952
      %v2954 = vpop.f32.mrb[0].mxu0
      %2955 = vmatprep.mubr.bf16.mxu0 0
      %2956 = vmatmul.mubr.bf16.gmra.mrb[0].mxu0 %v2797
      %v2957 = vpop.f32.mrb[0].mxu0
      %v2958 = vadd.f32 0.0, %v2957
      %v2959 = vpop.f32.mrb[0].mxu0
      %v2960 = vpop.f32.mrb[0].mxu0
      %v2961 = vadd.f32 0.0, %v2960
      %v2962 = vpop.f32.mrb[0].mxu0
      %2963 = vmatprep.mubr.bf16.mxu0 0
      %2964 = vmatmul.mubr.bf16.gmra.mrb[0].mxu0 %v2800
      %v2965 = vpop.f32.mrb[0].mxu0
      %v2966 = vadd.f32 0.0, %v2965
      %v2967 = vpop.f32.mrb[0].mxu0
      %v2968 = vpop.f32.mrb[0].mxu0
      %v2969 = vadd.f32 0.0, %v2968
      %v2970 = vpop.f32.mrb[0].mxu0
      %2971 = vmatprep.mubr.bf16.mxu0 0
      %2972 = vmatmul.mubr.bf16.gmra.mrb[0].mxu0 %v2803
      %v2973 = vpop.f32.mrb[0].mxu0
      %v2974 = vadd.f32 0.0, %v2973
      %v2975 = vpop.f32.mrb[0].mxu0
      %v2976 = vpop.f32.mrb[0].mxu0
      %v2977 = vadd.f32 0.0, %v2976
      %v2978 = vpop.f32.mrb[0].mxu0
      %2979 = vmatprep.mubr.bf16.mxu0 0
      %2980 = vmatmul.mubr.bf16.gmra.mrb[0].mxu0 %v2806
      %v2981 = vpop.f32.mrb[0].mxu0
      %v2982 = vadd.f32 0.0, %v2981
      %v2983 = vpop.f32.mrb[0].mxu0
      %v2984 = vpop.f32.mrb[0].mxu0
      %v2985 = vadd.f32 0.0, %v2984
      %v2986 = vpop.f32.mrb[0].mxu0
      %2987 = vdwg.mxu0
      %v2988 = vadd.f32 %v2549, %v2846
      %v2989 = vadd.f32 %v2550, %v2849
      %v2990 = vadd.f32 %v2551, %v2854
      %v2991 = vadd.f32 %v2552, %v2857
      %v2992 = vadd.f32 %v2553, %v2862
      %v2993 = vadd.f32 %v2554, %v2865
      %v2994 = vadd.f32 %v2555, %v2870
      %v2995 = vadd.f32 %v2556, %v2873
      %v2996 = vadd.f32 %v2557, %v2878
      %v2997 = vadd.f32 %v2558, %v2881
      %v2998 = vadd.f32 %v2559, %v2886
      %v2999 = vadd.f32 %v2560, %v2889
      %v3000 = vadd.f32 %v2561, %v2894
      %v3001 = vadd.f32 %v2562, %v2897
      %v3002 = vadd.f32 %v2563, %v2902
      %v3003 = vadd.f32 %v2564, %v2905
      %v3004 = vadd.f32 %v2565, %v2910
      %v3005 = vadd.f32 %v2566, %v2913
      %v3006 = vadd.f32 %v2567, %v2918
      %v3007 = vadd.f32 %v2568, %v2921
      %v3008 = vadd.f32 %v2569, %v2926
      %v3009 = vadd.f32 %v2570, %v2929
      %v3010 = vadd.f32 %v2571, %v2934
      %v3011 = vadd.f32 %v2572, %v2937
      %v3012 = vadd.f32 %v2573, %v2942
      %v3013 = vadd.f32 %v2574, %v2945
      %v3014 = vadd.f32 %v2575, %v2950
      %v3015 = vadd.f32 %v2576, %v2953
      %v3016 = vadd.f32 %v2577, %v2958
      %v3017 = vadd.f32 %v2578, %v2961
      %v3018 = vadd.f32 %v2579, %v2966
      %v3019 = vadd.f32 %v2580, %v2969
      %v3020 = vadd.f32 %v2581, %v2974
      %v3021 = vadd.f32 %v2582, %v2977
      %v3022 = vadd.f32 %v2583, %v2982
      %v3023 = vadd.f32 %v2584, %v2985
      %v3024 = vld [vmem:[%s308 + $0xa0] sm:$0x7]
      %s3025 = scalar_lea.vmem %s312, 28
      %v3026 = vld [vmem:[%s3025] sm:$0xf]
      %v3028 = vunpack.c.l.b16 %v3024
      %v3029 = vpack.c.b16 %v3028, %v3028
      %vm3030 = vsmask.f32 5376
      %v3032 = vshrl.u32 %v2698, 16
      %v3034 = vrot.slane %v3032, 2
      %v3035 = vshll.u32 %v2698, 16
      %v3037 = vrot.slane %v3035, 3
      %v3038 = vor.u32 %v3034, %v3037
      %v3040 = vshrl.u32 %v2699, 16
      %v3042 = vrot.slane %v3040, 2
      %v3043 = vshll.u32 %v2699, 16
      %v3045 = vrot.slane %v3043, 3
      %v3046 = vor.u32 %v3042, %v3045
      %v3047 = vsel %vm3030, %v3038, %v3046
      %v3049 = vshrl.u32 %v2700, 16
      %v3051 = vrot.slane %v3049, 2
      %v3052 = vshll.u32 %v2700, 16
      %v3054 = vrot.slane %v3052, 3
      %v3055 = vor.u32 %v3051, %v3054
      %v3056 = vsel %vm3030, %v3046, %v3055
      %v3058 = vshrl.u32 %v2701, 16
      %v3060 = vrot.slane %v3058, 2
      %v3061 = vshll.u32 %v2701, 16
      %v3063 = vrot.slane %v3061, 3
      %v3064 = vor.u32 %v3060, %v3063
      %v3065 = vsel %vm3030, %v3055, %v3064
      %v3067 = vshrl.u32 %v2702, 16
      %v3069 = vrot.slane %v3067, 2
      %v3070 = vshll.u32 %v2702, 16
      %v3072 = vrot.slane %v3070, 3
      %v3073 = vor.u32 %v3069, %v3072
      %v3074 = vsel %vm3030, %v3064, %v3073
      %v3076 = vshrl.u32 %v2703, 16
      %v3078 = vrot.slane %v3076, 2
      %v3079 = vshll.u32 %v2703, 16
      %v3081 = vrot.slane %v3079, 3
      %v3082 = vor.u32 %v3078, %v3081
      %v3083 = vsel %vm3030, %v3073, %v3082
      %v3085 = vshrl.u32 %v2704, 16
      %v3087 = vrot.slane %v3085, 2
      %v3088 = vshll.u32 %v2704, 16
      %v3090 = vrot.slane %v3088, 3
      %v3091 = vor.u32 %v3087, %v3090
      %v3092 = vsel %vm3030, %v3082, %v3091
      %v3094 = vshrl.u32 %v2705, 16
      %v3096 = vrot.slane %v3094, 2
      %v3097 = vshll.u32 %v2705, 16
      %v3099 = vrot.slane %v3097, 3
      %v3100 = vor.u32 %v3096, %v3099
      %v3101 = vsel %vm3030, %v3091, %v3100
      %v3103 = vshrl.u32 %v2706, 16
      %v3105 = vrot.slane %v3103, 2
      %v3106 = vshll.u32 %v2706, 16
      %v3108 = vrot.slane %v3106, 3
      %v3109 = vor.u32 %v3105, %v3108
      %v3110 = vsel %vm3030, %v3100, %v3109
      %v3112 = vshrl.u32 %v2707, 16
      %v3114 = vrot.slane %v3112, 2
      %v3115 = vshll.u32 %v2707, 16
      %v3117 = vrot.slane %v3115, 3
      %v3118 = vor.u32 %v3114, %v3117
      %v3119 = vsel %vm3030, %v3109, %v3118
      %v3121 = vshrl.u32 %v2708, 16
      %v3123 = vrot.slane %v3121, 2
      %v3124 = vshll.u32 %v2708, 16
      %v3126 = vrot.slane %v3124, 3
      %v3127 = vor.u32 %v3123, %v3126
      %v3128 = vsel %vm3030, %v3118, %v3127
      %v3130 = vshrl.u32 %v2709, 16
      %v3132 = vrot.slane %v3130, 2
      %v3133 = vshll.u32 %v2709, 16
      %v3135 = vrot.slane %v3133, 3
      %v3136 = vor.u32 %v3132, %v3135
      %v3137 = vsel %vm3030, %v3127, %v3136
      %v3139 = vshrl.u32 %v2710, 16
      %v3141 = vrot.slane %v3139, 2
      %v3142 = vshll.u32 %v2710, 16
      %v3144 = vrot.slane %v3142, 3
      %v3145 = vor.u32 %v3141, %v3144
      %v3146 = vsel %vm3030, %v3136, %v3145
      %v3148 = vshrl.u32 %v2711, 16
      %v3150 = vrot.slane %v3148, 2
      %v3151 = vshll.u32 %v2711, 16
      %v3153 = vrot.slane %v3151, 3
      %v3154 = vor.u32 %v3150, %v3153
      %v3155 = vsel %vm3030, %v3145, %v3154
      %v3157 = vshrl.u32 %v2712, 16
      %v3159 = vrot.slane %v3157, 2
      %v3160 = vshll.u32 %v2712, 16
      %v3162 = vrot.slane %v3160, 3
      %v3163 = vor.u32 %v3159, %v3162
      %v3164 = vsel %vm3030, %v3154, %v3163
      %v3166 = vshrl.u32 %v2713, 16
      %v3168 = vrot.slane %v3166, 2
      %v3169 = vshll.u32 %v2713, 16
      %v3171 = vrot.slane %v3169, 3
      %v3172 = vor.u32 %v3168, %v3171
      %v3173 = vsel %vm3030, %v3163, %v3172
      %v3175 = vshrl.u32 %v2714, 16
      %v3177 = vrot.slane %v3175, 2
      %v3178 = vshll.u32 %v2714, 16
      %v3180 = vrot.slane %v3178, 3
      %v3181 = vor.u32 %v3177, %v3180
      %v3182 = vsel %vm3030, %v3172, %v3181
      %v3184 = vshrl.u32 %v2715, 16
      %v3186 = vrot.slane %v3184, 2
      %v3187 = vshll.u32 %v2715, 16
      %v3189 = vrot.slane %v3187, 3
      %v3190 = vor.u32 %v3186, %v3189
      %v3191 = vsel %vm3030, %v3181, %v3190
      %v3193 = vshrl.u32 %v3029, 16
      %v3195 = vrot.slane %v3193, 2
      %v3196 = vshll.u32 %v3029, 16
      %v3198 = vrot.slane %v3196, 3
      %v3199 = vor.u32 %v3195, %v3198
      %v3200 = vsel %vm3030, %v3190, %v3199
      %v3202 = vsel %vm619, %v3047, 0
      %v3205 = vsel %vm619, %v3056, 0
      %v3208 = vsel %vm619, %v3065, 0
      %v3211 = vsel %vm619, %v3074, 0
      %v3214 = vsel %vm619, %v3083, 0
      %v3217 = vsel %vm619, %v3092, 0
      %v3220 = vsel %vm619, %v3101, 0
      %v3223 = vsel %vm619, %v3110, 0
      %v3226 = vsel %vm619, %v3119, 0
      %v3229 = vsel %vm619, %v3128, 0
      %v3232 = vsel %vm619, %v3137, 0
      %v3235 = vsel %vm619, %v3146, 0
      %v3238 = vsel %vm619, %v3155, 0
      %v3241 = vsel %vm619, %v3164, 0
      %v3244 = vsel %vm619, %v3173, 0
      %v3247 = vsel %vm619, %v3182, 0
      %v3250 = vsel %vm619, %v3191, 0
      %v3253 = vsel %vm619, %v3200, 0
      %v3256 = vsel %vm674, %v3026, 0
      %3258 = vmatprep.subr.bf16.mxu0 0
      %3259 = vmatpush1.bf16.msra.mxu0 %v3256
      %3260 = vmatprep.subr.bf16.mxu0 0
      %3261 = vmatpush1.bf16.msra.mxu0 0
      %3262 = vmatprep.subr.bf16.mxu0 0
      %3263 = vmatpush1.bf16.msra.mxu0 0
      %3264 = vmatprep.subr.bf16.mxu0 0
      %3265 = vmatpush1.bf16.msra.mxu0 0
      %3266 = vmatprep.subr.bf16.mxu0 0
      %3267 = vmatpush1.bf16.msra.mxu0 0
      %3268 = vmatprep.subr.bf16.mxu0 0
      %3269 = vmatpush1.bf16.msra.mxu0 0
      %3270 = vmatprep.subr.bf16.mxu0 0
      %3271 = vmatpush1.bf16.msra.mxu0 0
      %3272 = vmatprep.subr.bf16.mxu0 0
      %3273 = vmatpush1.bf16.msra.mxu0 0
      %3274 = vmatprep.subr.bf16.mxu0 0
      %3275 = vmatpush1.bf16.msra.mxu0 0
      %3276 = vmatprep.subr.bf16.mxu0 0
      %3277 = vmatpush1.bf16.msra.mxu0 0
      %3278 = vmatprep.subr.bf16.mxu0 0
      %3279 = vmatpush1.bf16.msra.mxu0 0
      %3280 = vmatprep.subr.bf16.mxu0 0
      %3281 = vmatpush1.bf16.msra.mxu0 0
      %3282 = vmatprep.subr.bf16.mxu0 0
      %3283 = vmatpush1.bf16.msra.mxu0 0
      %3284 = vmatprep.subr.bf16.mxu0 0
      %3285 = vmatpush1.bf16.msra.mxu0 0
      %3286 = vmatprep.subr.bf16.mxu0 0
      %3287 = vmatpush1.bf16.msra.mxu0 0
      %3288 = vmatprep.subr.bf16.mxu0 0
      %3289 = vmatpush1.bf16.msra.mxu0 0
      %3290 = vmatprep.mubr.bf16.mxu0 0
      %3291 = vmatmul.mubr.bf16.gmra.mrb[0].mxu0 %v3202
      %v3292 = vpop.f32.mrb[0].mxu0
      %v3293 = vadd.f32 0.0, %v3292
      %v3294 = vpop.f32.mrb[0].mxu0
      %v3295 = vpop.f32.mrb[0].mxu0
      %v3296 = vadd.f32 0.0, %v3295
      %v3297 = vpop.f32.mrb[0].mxu0
      %3298 = vmatprep.mubr.bf16.mxu0 0
      %3299 = vmatmul.mubr.bf16.gmra.mrb[0].mxu0 %v3205
      %v3300 = vpop.f32.mrb[0].mxu0
      %v3301 = vadd.f32 0.0, %v3300
      %v3302 = vpop.f32.mrb[0].mxu0
      %v3303 = vpop.f32.mrb[0].mxu0
      %v3304 = vadd.f32 0.0, %v3303
      %v3305 = vpop.f32.mrb[0].mxu0
      %3306 = vmatprep.mubr.bf16.mxu0 0
      %3307 = vmatmul.mubr.bf16.gmra.mrb[0].mxu0 %v3208
      %v3308 = vpop.f32.mrb[0].mxu0
      %v3309 = vadd.f32 0.0, %v3308
      %v3310 = vpop.f32.mrb[0].mxu0
      %v3311 = vpop.f32.mrb[0].mxu0
      %v3312 = vadd.f32 0.0, %v3311
      %v3313 = vpop.f32.mrb[0].mxu0
      %3314 = vmatprep.mubr.bf16.mxu0 0
      %3315 = vmatmul.mubr.bf16.gmra.mrb[0].mxu0 %v3211
      %v3316 = vpop.f32.mrb[0].mxu0
      %v3317 = vadd.f32 0.0, %v3316
      %v3318 = vpop.f32.mrb[0].mxu0
      %v3319 = vpop.f32.mrb[0].mxu0
      %v3320 = vadd.f32 0.0, %v3319
      %v3321 = vpop.f32.mrb[0].mxu0
      %3322 = vmatprep.mubr.bf16.mxu0 0
      %3323 = vmatmul.mubr.bf16.gmra.mrb[0].mxu0 %v3214
      %v3324 = vpop.f32.mrb[0].mxu0
      %v3325 = vadd.f32 0.0, %v3324
      %v3326 = vpop.f32.mrb[0].mxu0
      %v3327 = vpop.f32.mrb[0].mxu0
      %v3328 = vadd.f32 0.0, %v3327
      %v3329 = vpop.f32.mrb[0].mxu0
      %3330 = vmatprep.mubr.bf16.mxu0 0
      %3331 = vmatmul.mubr.bf16.gmra.mrb[0].mxu0 %v3217
      %v3332 = vpop.f32.mrb[0].mxu0
      %v3333 = vadd.f32 0.0, %v3332
      %v3334 = vpop.f32.mrb[0].mxu0
      %v3335 = vpop.f32.mrb[0].mxu0
      %v3336 = vadd.f32 0.0, %v3335
      %v3337 = vpop.f32.mrb[0].mxu0
      %3338 = vmatprep.mubr.bf16.mxu0 0
      %3339 = vmatmul.mubr.bf16.gmra.mrb[0].mxu0 %v3220
      %v3340 = vpop.f32.mrb[0].mxu0
      %v3341 = vadd.f32 0.0, %v3340
      %v3342 = vpop.f32.mrb[0].mxu0
      %v3343 = vpop.f32.mrb[0].mxu0
      %v3344 = vadd.f32 0.0, %v3343
      %v3345 = vpop.f32.mrb[0].mxu0
      %3346 = vmatprep.mubr.bf16.mxu0 0
      %3347 = vmatmul.mubr.bf16.gmra.mrb[0].mxu0 %v3223
      %v3348 = vpop.f32.mrb[0].mxu0
      %v3349 = vadd.f32 0.0, %v3348
      %v3350 = vpop.f32.mrb[0].mxu0
      %v3351 = vpop.f32.mrb[0].mxu0
      %v3352 = vadd.f32 0.0, %v3351
      %v3353 = vpop.f32.mrb[0].mxu0
      %3354 = vmatprep.mubr.bf16.mxu0 0
      %3355 = vmatmul.mubr.bf16.gmra.mrb[0].mxu0 %v3226
      %v3356 = vpop.f32.mrb[0].mxu0
      %v3357 = vadd.f32 0.0, %v3356
      %v3358 = vpop.f32.mrb[0].mxu0
      %v3359 = vpop.f32.mrb[0].mxu0
      %v3360 = vadd.f32 0.0, %v3359
      %v3361 = vpop.f32.mrb[0].mxu0
      %3362 = vmatprep.mubr.bf16.mxu0 0
      %3363 = vmatmul.mubr.bf16.gmra.mrb[0].mxu0 %v3229
      %v3364 = vpop.f32.mrb[0].mxu0
      %v3365 = vadd.f32 0.0, %v3364
      %v3366 = vpop.f32.mrb[0].mxu0
      %v3367 = vpop.f32.mrb[0].mxu0
      %v3368 = vadd.f32 0.0, %v3367
      %v3369 = vpop.f32.mrb[0].mxu0
      %3370 = vmatprep.mubr.bf16.mxu0 0
      %3371 = vmatmul.mubr.bf16.gmra.mrb[0].mxu0 %v3232
      %v3372 = vpop.f32.mrb[0].mxu0
      %v3373 = vadd.f32 0.0, %v3372
      %v3374 = vpop.f32.mrb[0].mxu0
      %v3375 = vpop.f32.mrb[0].mxu0
      %v3376 = vadd.f32 0.0, %v3375
      %v3377 = vpop.f32.mrb[0].mxu0
      %3378 = vmatprep.mubr.bf16.mxu0 0
      %3379 = vmatmul.mubr.bf16.gmra.mrb[0].mxu0 %v3235
      %v3380 = vpop.f32.mrb[0].mxu0
      %v3381 = vadd.f32 0.0, %v3380
      %v3382 = vpop.f32.mrb[0].mxu0
      %v3383 = vpop.f32.mrb[0].mxu0
      %v3384 = vadd.f32 0.0, %v3383
      %v3385 = vpop.f32.mrb[0].mxu0
      %3386 = vmatprep.mubr.bf16.mxu0 0
      %3387 = vmatmul.mubr.bf16.gmra.mrb[0].mxu0 %v3238
      %v3388 = vpop.f32.mrb[0].mxu0
      %v3389 = vadd.f32 0.0, %v3388
      %v3390 = vpop.f32.mrb[0].mxu0
      %v3391 = vpop.f32.mrb[0].mxu0
      %v3392 = vadd.f32 0.0, %v3391
      %v3393 = vpop.f32.mrb[0].mxu0
      %3394 = vmatprep.mubr.bf16.mxu0 0
      %3395 = vmatmul.mubr.bf16.gmra.mrb[0].mxu0 %v3241
      %v3396 = vpop.f32.mrb[0].mxu0
      %v3397 = vadd.f32 0.0, %v3396
      %v3398 = vpop.f32.mrb[0].mxu0
      %v3399 = vpop.f32.mrb[0].mxu0
      %v3400 = vadd.f32 0.0, %v3399
      %v3401 = vpop.f32.mrb[0].mxu0
      %3402 = vmatprep.mubr.bf16.mxu0 0
      %3403 = vmatmul.mubr.bf16.gmra.mrb[0].mxu0 %v3244
      %v3404 = vpop.f32.mrb[0].mxu0
      %v3405 = vadd.f32 0.0, %v3404
      %v3406 = vpop.f32.mrb[0].mxu0
      %v3407 = vpop.f32.mrb[0].mxu0
      %v3408 = vadd.f32 0.0, %v3407
      %v3409 = vpop.f32.mrb[0].mxu0
      %3410 = vmatprep.mubr.bf16.mxu0 0
      %3411 = vmatmul.mubr.bf16.gmra.mrb[0].mxu0 %v3247
      %v3412 = vpop.f32.mrb[0].mxu0
      %v3413 = vadd.f32 0.0, %v3412
      %v3414 = vpop.f32.mrb[0].mxu0
      %v3415 = vpop.f32.mrb[0].mxu0
      %v3416 = vadd.f32 0.0, %v3415
      %v3417 = vpop.f32.mrb[0].mxu0
      %3418 = vmatprep.mubr.bf16.mxu0 0
      %3419 = vmatmul.mubr.bf16.gmra.mrb[0].mxu0 %v3250
      %v3420 = vpop.f32.mrb[0].mxu0
      %v3421 = vadd.f32 0.0, %v3420
      %v3422 = vpop.f32.mrb[0].mxu0
      %v3423 = vpop.f32.mrb[0].mxu0
      %v3424 = vadd.f32 0.0, %v3423
      %v3425 = vpop.f32.mrb[0].mxu0
      %3426 = vmatprep.mubr.bf16.mxu0 0
      %3427 = vmatmul.mubr.bf16.gmra.mrb[0].mxu0 %v3253
      %v3428 = vpop.f32.mrb[0].mxu0
      %v3429 = vadd.f32 0.0, %v3428
      %v3430 = vpop.f32.mrb[0].mxu0
      %v3431 = vpop.f32.mrb[0].mxu0
      %v3432 = vadd.f32 0.0, %v3431
      %v3433 = vpop.f32.mrb[0].mxu0
      %3434 = vdwg.mxu0
      %v3435 = vadd.f32 %v2988, %v3293
      %v3436 = vadd.f32 %v2989, %v3296
      %v3437 = vadd.f32 %v2990, %v3301
      %v3438 = vadd.f32 %v2991, %v3304
      %v3439 = vadd.f32 %v2992, %v3309
      %v3440 = vadd.f32 %v2993, %v3312
      %v3441 = vadd.f32 %v2994, %v3317
      %v3442 = vadd.f32 %v2995, %v3320
      %v3443 = vadd.f32 %v2996, %v3325
      %v3444 = vadd.f32 %v2997, %v3328
      %v3445 = vadd.f32 %v2998, %v3333
      %v3446 = vadd.f32 %v2999, %v3336
      %v3447 = vadd.f32 %v3000, %v3341
      %v3448 = vadd.f32 %v3001, %v3344
      %v3449 = vadd.f32 %v3002, %v3349
      %v3450 = vadd.f32 %v3003, %v3352
      %v3451 = vadd.f32 %v3004, %v3357
      %v3452 = vadd.f32 %v3005, %v3360
      %v3453 = vadd.f32 %v3006, %v3365
      %v3454 = vadd.f32 %v3007, %v3368
      %v3455 = vadd.f32 %v3008, %v3373
      %v3456 = vadd.f32 %v3009, %v3376
      %v3457 = vadd.f32 %v3010, %v3381
      %v3458 = vadd.f32 %v3011, %v3384
      %v3459 = vadd.f32 %v3012, %v3389
      %v3460 = vadd.f32 %v3013, %v3392
      %v3461 = vadd.f32 %v3014, %v3397
      %v3462 = vadd.f32 %v3015, %v3400
      %v3463 = vadd.f32 %v3016, %v3405
      %v3464 = vadd.f32 %v3017, %v3408
      %v3465 = vadd.f32 %v3018, %v3413
      %v3466 = vadd.f32 %v3019, %v3416
      %v3467 = vadd.f32 %v3020, %v3421
      %v3468 = vadd.f32 %v3021, %v3424
      %v3469 = vadd.f32 %v3022, %v3429
      %v3470 = vadd.f32 %v3023, %v3432
      %v3471 = vld [vmem:[%s308 + $0x10] sm:$0x8]
      %s3472 = scalar_lea.vmem %s312, 32
      %v3473 = vld [vmem:[%s3472] sm:$0xf]
      %v3475 = vunpack.c.l.b16 %v3471
      %v3476 = vpack.c.b16 %v2662, %v3475
      %vm3477 = vcmask 1044480
      %v3478 = vrot.slane %v3476, 3
      %v3479 = vrot.slane %v2699, 3
      %v3480 = vsel %vm3477, %v3478, %v3479
      %v3481 = vrot.slane %v2700, 3
      %v3482 = vsel %vm3477, %v3479, %v3481
      %v3483 = vrot.slane %v2701, 3
      %v3484 = vsel %vm3477, %v3481, %v3483
      %v3485 = vrot.slane %v2702, 3
      %v3486 = vsel %vm3477, %v3483, %v3485
      %v3487 = vrot.slane %v2703, 3
      %v3488 = vsel %vm3477, %v3485, %v3487
      %v3489 = vrot.slane %v2704, 3
      %v3490 = vsel %vm3477, %v3487, %v3489
      %v3491 = vrot.slane %v2705, 3
      %v3492 = vsel %vm3477, %v3489, %v3491
      %v3493 = vrot.slane %v2706, 3
      %v3494 = vsel %vm3477, %v3491, %v3493
      %v3495 = vrot.slane %v2707, 3
      %v3496 = vsel %vm3477, %v3493, %v3495
      %v3497 = vrot.slane %v2708, 3
      %v3498 = vsel %vm3477, %v3495, %v3497
      %v3499 = vrot.slane %v2709, 3
      %v3500 = vsel %vm3477, %v3497, %v3499
      %v3501 = vrot.slane %v2710, 3
      %v3502 = vsel %vm3477, %v3499, %v3501
      %v3503 = vrot.slane %v2711, 3
      %v3504 = vsel %vm3477, %v3501, %v3503
      %v3505 = vrot.slane %v2712, 3
      %v3506 = vsel %vm3477, %v3503, %v3505
      %v3507 = vrot.slane %v2713, 3
      %v3508 = vsel %vm3477, %v3505, %v3507
      %v3509 = vrot.slane %v2714, 3
      %v3510 = vsel %vm3477, %v3507, %v3509
      %v3511 = vrot.slane %v2715, 3
      %v3512 = vsel %vm3477, %v3509, %v3511
      %v3513 = vrot.slane %v3029, 3
      %v3514 = vsel %vm3477, %v3511, %v3513
      %v3516 = vsel %vm619, %v3480, 0
      %v3519 = vsel %vm619, %v3482, 0
      %v3522 = vsel %vm619, %v3484, 0
      %v3525 = vsel %vm619, %v3486, 0
      %v3528 = vsel %vm619, %v3488, 0
      %v3531 = vsel %vm619, %v3490, 0
      %v3534 = vsel %vm619, %v3492, 0
      %v3537 = vsel %vm619, %v3494, 0
      %v3540 = vsel %vm619, %v3496, 0
      %v3543 = vsel %vm619, %v3498, 0
      %v3546 = vsel %vm619, %v3500, 0
      %v3549 = vsel %vm619, %v3502, 0
      %v3552 = vsel %vm619, %v3504, 0
      %v3555 = vsel %vm619, %v3506, 0
      %v3558 = vsel %vm619, %v3508, 0
      %v3561 = vsel %vm619, %v3510, 0
      %v3564 = vsel %vm619, %v3512, 0
      %v3567 = vsel %vm619, %v3514, 0
      %v3570 = vsel %vm674, %v3473, 0
      %3572 = vmatprep.subr.bf16.mxu0 0
      %3573 = vmatpush1.bf16.msra.mxu0 %v3570
      %3574 = vmatprep.subr.bf16.mxu0 0
      %3575 = vmatpush1.bf16.msra.mxu0 0
      %3576 = vmatprep.subr.bf16.mxu0 0
      %3577 = vmatpush1.bf16.msra.mxu0 0
      %3578 = vmatprep.subr.bf16.mxu0 0
      %3579 = vmatpush1.bf16.msra.mxu0 0
      %3580 = vmatprep.subr.bf16.mxu0 0
      %3581 = vmatpush1.bf16.msra.mxu0 0
      %3582 = vmatprep.subr.bf16.mxu0 0
      %3583 = vmatpush1.bf16.msra.mxu0 0
      %3584 = vmatprep.subr.bf16.mxu0 0
      %3585 = vmatpush1.bf16.msra.mxu0 0
      %3586 = vmatprep.subr.bf16.mxu0 0
      %3587 = vmatpush1.bf16.msra.mxu0 0
      %3588 = vmatprep.subr.bf16.mxu0 0
      %3589 = vmatpush1.bf16.msra.mxu0 0
      %3590 = vmatprep.subr.bf16.mxu0 0
      %3591 = vmatpush1.bf16.msra.mxu0 0
      %3592 = vmatprep.subr.bf16.mxu0 0
      %3593 = vmatpush1.bf16.msra.mxu0 0
      %3594 = vmatprep.subr.bf16.mxu0 0
      %3595 = vmatpush1.bf16.msra.mxu0 0
      %3596 = vmatprep.subr.bf16.mxu0 0
      %3597 = vmatpush1.bf16.msra.mxu0 0
      %3598 = vmatprep.subr.bf16.mxu0 0
      %3599 = vmatpush1.bf16.msra.mxu0 0
      %3600 = vmatprep.subr.bf16.mxu0 0
      %3601 = vmatpush1.bf16.msra.mxu0 0
      %3602 = vmatprep.subr.bf16.mxu0 0
      %3603 = vmatpush1.bf16.msra.mxu0 0
      %3604 = vmatprep.mubr.bf16.mxu0 0
      %3605 = vmatmul.mubr.bf16.gmra.mrb[0].mxu0 %v3516
      %v3606 = vpop.f32.mrb[0].mxu0
      %v3607 = vadd.f32 0.0, %v3606
      %v3608 = vpop.f32.mrb[0].mxu0
      %v3609 = vpop.f32.mrb[0].mxu0
      %v3610 = vadd.f32 0.0, %v3609
      %v3611 = vpop.f32.mrb[0].mxu0
      %3612 = vmatprep.mubr.bf16.mxu0 0
      %3613 = vmatmul.mubr.bf16.gmra.mrb[0].mxu0 %v3519
      %v3614 = vpop.f32.mrb[0].mxu0
      %v3615 = vadd.f32 0.0, %v3614
      %v3616 = vpop.f32.mrb[0].mxu0
      %v3617 = vpop.f32.mrb[0].mxu0
      %v3618 = vadd.f32 0.0, %v3617
      %v3619 = vpop.f32.mrb[0].mxu0
      %3620 = vmatprep.mubr.bf16.mxu0 0
      %3621 = vmatmul.mubr.bf16.gmra.mrb[0].mxu0 %v3522
      %v3622 = vpop.f32.mrb[0].mxu0
      %v3623 = vadd.f32 0.0, %v3622
      %v3624 = vpop.f32.mrb[0].mxu0
      %v3625 = vpop.f32.mrb[0].mxu0
      %v3626 = vadd.f32 0.0, %v3625
      %v3627 = vpop.f32.mrb[0].mxu0
      %3628 = vmatprep.mubr.bf16.mxu0 0
      %3629 = vmatmul.mubr.bf16.gmra.mrb[0].mxu0 %v3525
      %v3630 = vpop.f32.mrb[0].mxu0
      %v3631 = vadd.f32 0.0, %v3630
      %v3632 = vpop.f32.mrb[0].mxu0
      %v3633 = vpop.f32.mrb[0].mxu0
      %v3634 = vadd.f32 0.0, %v3633
      %v3635 = vpop.f32.mrb[0].mxu0
      %3636 = vmatprep.mubr.bf16.mxu0 0
      %3637 = vmatmul.mubr.bf16.gmra.mrb[0].mxu0 %v3528
      %v3638 = vpop.f32.mrb[0].mxu0
      %v3639 = vadd.f32 0.0, %v3638
      %v3640 = vpop.f32.mrb[0].mxu0
      %v3641 = vpop.f32.mrb[0].mxu0
      %v3642 = vadd.f32 0.0, %v3641
      %v3643 = vpop.f32.mrb[0].mxu0
      %3644 = vmatprep.mubr.bf16.mxu0 0
      %3645 = vmatmul.mubr.bf16.gmra.mrb[0].mxu0 %v3531
      %v3646 = vpop.f32.mrb[0].mxu0
      %v3647 = vadd.f32 0.0, %v3646
      %v3648 = vpop.f32.mrb[0].mxu0
      %v3649 = vpop.f32.mrb[0].mxu0
      %v3650 = vadd.f32 0.0, %v3649
      %v3651 = vpop.f32.mrb[0].mxu0
      %3652 = vmatprep.mubr.bf16.mxu0 0
      %3653 = vmatmul.mubr.bf16.gmra.mrb[0].mxu0 %v3534
      %v3654 = vpop.f32.mrb[0].mxu0
      %v3655 = vadd.f32 0.0, %v3654
      %v3656 = vpop.f32.mrb[0].mxu0
      %v3657 = vpop.f32.mrb[0].mxu0
      %v3658 = vadd.f32 0.0, %v3657
      %v3659 = vpop.f32.mrb[0].mxu0
      %3660 = vmatprep.mubr.bf16.mxu0 0
      %3661 = vmatmul.mubr.bf16.gmra.mrb[0].mxu0 %v3537
      %v3662 = vpop.f32.mrb[0].mxu0
      %v3663 = vadd.f32 0.0, %v3662
      %v3664 = vpop.f32.mrb[0].mxu0
      %v3665 = vpop.f32.mrb[0].mxu0
      %v3666 = vadd.f32 0.0, %v3665
      %v3667 = vpop.f32.mrb[0].mxu0
      %3668 = vmatprep.mubr.bf16.mxu0 0
      %3669 = vmatmul.mubr.bf16.gmra.mrb[0].mxu0 %v3540
      %v3670 = vpop.f32.mrb[0].mxu0
      %v3671 = vadd.f32 0.0, %v3670
      %v3672 = vpop.f32.mrb[0].mxu0
      %v3673 = vpop.f32.mrb[0].mxu0
      %v3674 = vadd.f32 0.0, %v3673
      %v3675 = vpop.f32.mrb[0].mxu0
      %3676 = vmatprep.mubr.bf16.mxu0 0
      %3677 = vmatmul.mubr.bf16.gmra.mrb[0].mxu0 %v3543
      %v3678 = vpop.f32.mrb[0].mxu0
      %v3679 = vadd.f32 0.0, %v3678
      %v3680 = vpop.f32.mrb[0].mxu0
      %v3681 = vpop.f32.mrb[0].mxu0
      %v3682 = vadd.f32 0.0, %v3681
      %v3683 = vpop.f32.mrb[0].mxu0
      %3684 = vmatprep.mubr.bf16.mxu0 0
      %3685 = vmatmul.mubr.bf16.gmra.mrb[0].mxu0 %v3546
      %v3686 = vpop.f32.mrb[0].mxu0
      %v3687 = vadd.f32 0.0, %v3686
      %v3688 = vpop.f32.mrb[0].mxu0
      %v3689 = vpop.f32.mrb[0].mxu0
      %v3690 = vadd.f32 0.0, %v3689
      %v3691 = vpop.f32.mrb[0].mxu0
      %3692 = vmatprep.mubr.bf16.mxu0 0
      %3693 = vmatmul.mubr.bf16.gmra.mrb[0].mxu0 %v3549
      %v3694 = vpop.f32.mrb[0].mxu0
      %v3695 = vadd.f32 0.0, %v3694
      %v3696 = vpop.f32.mrb[0].mxu0
      %v3697 = vpop.f32.mrb[0].mxu0
      %v3698 = vadd.f32 0.0, %v3697
      %v3699 = vpop.f32.mrb[0].mxu0
      %3700 = vmatprep.mubr.bf16.mxu0 0
      %3701 = vmatmul.mubr.bf16.gmra.mrb[0].mxu0 %v3552
      %v3702 = vpop.f32.mrb[0].mxu0
      %v3703 = vadd.f32 0.0, %v3702
      %v3704 = vpop.f32.mrb[0].mxu0
      %v3705 = vpop.f32.mrb[0].mxu0
      %v3706 = vadd.f32 0.0, %v3705
      %v3707 = vpop.f32.mrb[0].mxu0
      %3708 = vmatprep.mubr.bf16.mxu0 0
      %3709 = vmatmul.mubr.bf16.gmra.mrb[0].mxu0 %v3555
      %v3710 = vpop.f32.mrb[0].mxu0
      %v3711 = vadd.f32 0.0, %v3710
      %v3712 = vpop.f32.mrb[0].mxu0
      %v3713 = vpop.f32.mrb[0].mxu0
      %v3714 = vadd.f32 0.0, %v3713
      %v3715 = vpop.f32.mrb[0].mxu0
      %3716 = vmatprep.mubr.bf16.mxu0 0
      %3717 = vmatmul.mubr.bf16.gmra.mrb[0].mxu0 %v3558
      %v3718 = vpop.f32.mrb[0].mxu0
      %v3719 = vadd.f32 0.0, %v3718
      %v3720 = vpop.f32.mrb[0].mxu0
      %v3721 = vpop.f32.mrb[0].mxu0
      %v3722 = vadd.f32 0.0, %v3721
      %v3723 = vpop.f32.mrb[0].mxu0
      %3724 = vmatprep.mubr.bf16.mxu0 0
      %3725 = vmatmul.mubr.bf16.gmra.mrb[0].mxu0 %v3561
      %v3726 = vpop.f32.mrb[0].mxu0
      %v3727 = vadd.f32 0.0, %v3726
      %v3728 = vpop.f32.mrb[0].mxu0
      %v3729 = vpop.f32.mrb[0].mxu0
      %v3730 = vadd.f32 0.0, %v3729
      %v3731 = vpop.f32.mrb[0].mxu0
      %3732 = vmatprep.mubr.bf16.mxu0 0
      %3733 = vmatmul.mubr.bf16.gmra.mrb[0].mxu0 %v3564
      %v3734 = vpop.f32.mrb[0].mxu0
      %v3735 = vadd.f32 0.0, %v3734
      %v3736 = vpop.f32.mrb[0].mxu0
      %v3737 = vpop.f32.mrb[0].mxu0
      %v3738 = vadd.f32 0.0, %v3737
      %v3739 = vpop.f32.mrb[0].mxu0
      %3740 = vmatprep.mubr.bf16.mxu0 0
      %3741 = vmatmul.mubr.bf16.gmra.mrb[0].mxu0 %v3567
      %v3742 = vpop.f32.mrb[0].mxu0
      %v3743 = vadd.f32 0.0, %v3742
      %v3744 = vpop.f32.mrb[0].mxu0
      %v3745 = vpop.f32.mrb[0].mxu0
      %v3746 = vadd.f32 0.0, %v3745
      %v3747 = vpop.f32.mrb[0].mxu0
      %3748 = vdwg.mxu0
      %v3749 = vadd.f32 %v3435, %v3607
      %v3750 = vadd.f32 %v3436, %v3610
      %v3751 = vadd.f32 %v3437, %v3615
      %v3752 = vadd.f32 %v3438, %v3618
      %v3753 = vadd.f32 %v3439, %v3623
      %v3754 = vadd.f32 %v3440, %v3626
      %v3755 = vadd.f32 %v3441, %v3631
      %v3756 = vadd.f32 %v3442, %v3634
      %v3757 = vadd.f32 %v3443, %v3639
      %v3758 = vadd.f32 %v3444, %v3642
      %v3759 = vadd.f32 %v3445, %v3647
      %v3760 = vadd.f32 %v3446, %v3650
      %v3761 = vadd.f32 %v3447, %v3655
      %v3762 = vadd.f32 %v3448, %v3658
      %v3763 = vadd.f32 %v3449, %v3663
      %v3764 = vadd.f32 %v3450, %v3666
      %v3765 = vadd.f32 %v3451, %v3671
      %v3766 = vadd.f32 %v3452, %v3674
      %v3767 = vadd.f32 %v3453, %v3679
      %v3768 = vadd.f32 %v3454, %v3682
      %v3769 = vadd.f32 %v3455, %v3687
      %v3770 = vadd.f32 %v3456, %v3690
      %v3771 = vadd.f32 %v3457, %v3695
      %v3772 = vadd.f32 %v3458, %v3698
      %v3773 = vadd.f32 %v3459, %v3703
      %v3774 = vadd.f32 %v3460, %v3706
      %v3775 = vadd.f32 %v3461, %v3711
      %v3776 = vadd.f32 %v3462, %v3714
      %v3777 = vadd.f32 %v3463, %v3719
      %v3778 = vadd.f32 %v3464, %v3722
      %v3779 = vadd.f32 %v3465, %v3727
      %v3780 = vadd.f32 %v3466, %v3730
      %v3781 = vadd.f32 %v3467, %v3735
      %v3782 = vadd.f32 %v3468, %v3738
      %v3783 = vadd.f32 %v3469, %v3743
      %v3784 = vadd.f32 %v3470, %v3746
      %v3785 = vld [vmem:[%s315] sm:$0x1]
      %v3787 = vlaneseq
      %v3788 = vshrl.u32 %v3787, 7
      %v3789 = vsub.s32 0, %v3788
      %v3790 = vrot.slane %v3785, %v3789
      %v3792 = vadd.f32 %v3749, %v3790
      %v3793 = vadd.f32 %v3750, %v3790
      %v3794 = vadd.f32 %v3751, %v3790
      %v3795 = vadd.f32 %v3752, %v3790
      %v3796 = vadd.f32 %v3753, %v3790
      %v3797 = vadd.f32 %v3754, %v3790
      %v3798 = vadd.f32 %v3755, %v3790
      %v3799 = vadd.f32 %v3756, %v3790
      %v3800 = vadd.f32 %v3757, %v3790
      %v3801 = vadd.f32 %v3758, %v3790
      %v3802 = vadd.f32 %v3759, %v3790
      %v3803 = vadd.f32 %v3760, %v3790
      %v3804 = vadd.f32 %v3761, %v3790
      %v3805 = vadd.f32 %v3762, %v3790
      %v3806 = vadd.f32 %v3763, %v3790
      %v3807 = vadd.f32 %v3764, %v3790
      %v3808 = vadd.f32 %v3765, %v3790
      %v3809 = vadd.f32 %v3766, %v3790
      %v3810 = vadd.f32 %v3767, %v3790
      %v3811 = vadd.f32 %v3768, %v3790
      %v3812 = vadd.f32 %v3769, %v3790
      %v3813 = vadd.f32 %v3770, %v3790
      %v3814 = vadd.f32 %v3771, %v3790
      %v3815 = vadd.f32 %v3772, %v3790
      %v3816 = vadd.f32 %v3773, %v3790
      %v3817 = vadd.f32 %v3774, %v3790
      %v3818 = vadd.f32 %v3775, %v3790
      %v3819 = vadd.f32 %v3776, %v3790
      %v3820 = vadd.f32 %v3777, %v3790
      %v3821 = vadd.f32 %v3778, %v3790
      %v3822 = vadd.f32 %v3779, %v3790
      %v3823 = vadd.f32 %v3780, %v3790
      %v3824 = vadd.f32 %v3781, %v3790
      %v3825 = vadd.f32 %v3782, %v3790
      %v3826 = vadd.f32 %v3783, %v3790
      %v3827 = vadd.f32 %v3784, %v3790
      %vm3828 = vcmask 261120
      %3829 = vst.msk [vmem:[%s323] sm:$0xff] %vm3828, %v3792
      %3830 = vst.msk [vmem:[%s323 + $0x8] sm:$0xff] %vm3828, %v3793
      %3831 = vst.msk [vmem:[%s323 + $0x10] sm:$0xff] %vm3828, %v3794
      %3832 = vst.msk [vmem:[%s323 + $0x18] sm:$0xff] %vm3828, %v3795
      %3833 = vst.msk [vmem:[%s323 + $0x20] sm:$0xff] %vm3828, %v3796
      %3834 = vst.msk [vmem:[%s323 + $0x28] sm:$0xff] %vm3828, %v3797
      %3835 = vst.msk [vmem:[%s323 + $0x30] sm:$0xff] %vm3828, %v3798
      %3836 = vst.msk [vmem:[%s323 + $0x38] sm:$0xff] %vm3828, %v3799
      %3837 = vst.msk [vmem:[%s323 + $0x40] sm:$0xff] %vm3828, %v3800
      %3838 = vst.msk [vmem:[%s323 + $0x48] sm:$0xff] %vm3828, %v3801
      %3839 = vst.msk [vmem:[%s323 + $0x50] sm:$0xff] %vm3828, %v3802
      %3840 = vst.msk [vmem:[%s323 + $0x58] sm:$0xff] %vm3828, %v3803
      %3841 = vst.msk [vmem:[%s323 + $0x60] sm:$0xff] %vm3828, %v3804
      %3842 = vst.msk [vmem:[%s323 + $0x68] sm:$0xff] %vm3828, %v3805
      %3843 = vst.msk [vmem:[%s323 + $0x70] sm:$0xff] %vm3828, %v3806
      %3844 = vst.msk [vmem:[%s323 + $0x78] sm:$0xff] %vm3828, %v3807
      %3845 = vst.msk [vmem:[%s323 + $0x80] sm:$0xff] %vm3828, %v3808
      %3846 = vst.msk [vmem:[%s323 + $0x88] sm:$0xff] %vm3828, %v3809
      %3847 = vst.msk [vmem:[%s323 + $0x90] sm:$0xff] %vm3828, %v3810
      %3848 = vst.msk [vmem:[%s323 + $0x98] sm:$0xff] %vm3828, %v3811
      %3849 = vst.msk [vmem:[%s323 + $0xa0] sm:$0xff] %vm3828, %v3812
      %3850 = vst.msk [vmem:[%s323 + $0xa8] sm:$0xff] %vm3828, %v3813
      %3851 = vst.msk [vmem:[%s323 + $0xb0] sm:$0xff] %vm3828, %v3814
      %3852 = vst.msk [vmem:[%s323 + $0xb8] sm:$0xff] %vm3828, %v3815
      %3853 = vst.msk [vmem:[%s323 + $0xc0] sm:$0xff] %vm3828, %v3816
      %3854 = vst.msk [vmem:[%s323 + $0xc8] sm:$0xff] %vm3828, %v3817
      %3855 = vst.msk [vmem:[%s323 + $0xd0] sm:$0xff] %vm3828, %v3818
      %3856 = vst.msk [vmem:[%s323 + $0xd8] sm:$0xff] %vm3828, %v3819
      %3857 = vst.msk [vmem:[%s323 + $0xe0] sm:$0xff] %vm3828, %v3820
      %3858 = vst.msk [vmem:[%s323 + $0xe8] sm:$0xff] %vm3828, %v3821
      %3859 = vst.msk [vmem:[%s323 + $0xf0] sm:$0xff] %vm3828, %v3822
      %3860 = vst.msk [vmem:[%s323 + $0xf8] sm:$0xff] %vm3828, %v3823
      %3861 = vst.msk [vmem:[%s323 + $0x100] sm:$0xff] %vm3828, %v3824
      %3862 = vst.msk [vmem:[%s323 + $0x108] sm:$0xff] %vm3828, %v3825
      %3863 = vst.msk [vmem:[%s323 + $0x110] sm:$0xff] %vm3828, %v3826
      %3864 = vst.msk [vmem:[%s323 + $0x118] sm:$0xff] %vm3828, %v3827
      %v3865 = vld [vmem:[%s3] sm:$0xff]
      %v3866 = vld [vmem:[%s3 + $0x8] sm:$0xff]
      %v3867 = vld [vmem:[%s3 + $0x10] sm:$0xff]
      %v3868 = vld [vmem:[%s3 + $0x18] sm:$0xff]
      %v3869 = vld [vmem:[%s3 + $0x20] sm:$0xff]
      %v3870 = vld [vmem:[%s3 + $0x28] sm:$0xff]
      %v3871 = vld [vmem:[%s3 + $0x30] sm:$0xff]
      %v3872 = vld [vmem:[%s3 + $0x38] sm:$0xff]
      %v3873 = vld [vmem:[%s3 + $0x40] sm:$0xff]
      %v3874 = vld [vmem:[%s3 + $0x48] sm:$0xff]
      %v3875 = vld [vmem:[%s3 + $0x50] sm:$0xff]
      %v3876 = vld [vmem:[%s3 + $0x58] sm:$0xff]
      %v3877 = vld [vmem:[%s3 + $0x60] sm:$0xff]
      %v3878 = vld [vmem:[%s3 + $0x68] sm:$0xff]
      %v3879 = vld [vmem:[%s3 + $0x70] sm:$0xff]
      %v3880 = vld [vmem:[%s3 + $0x78] sm:$0xff]
      %v3881 = vld [vmem:[%s3 + $0x80] sm:$0xff]
      %v3882 = vld [vmem:[%s3 + $0x88] sm:$0xff]
      %v3883 = vld [vmem:[%s3 + $0x90] sm:$0xff]
      %v3884 = vld [vmem:[%s3 + $0x98] sm:$0xff]
      %v3885 = vld [vmem:[%s3 + $0xa0] sm:$0xff]
      %v3886 = vld [vmem:[%s3 + $0xa8] sm:$0xff]
      %v3887 = vld [vmem:[%s3 + $0xb0] sm:$0xff]
      %v3888 = vld [vmem:[%s3 + $0xb8] sm:$0xff]
      %v3889 = vld [vmem:[%s3 + $0xc0] sm:$0xff]
      %v3890 = vld [vmem:[%s3 + $0xc8] sm:$0xff]
      %v3891 = vld [vmem:[%s3 + $0xd0] sm:$0xff]
      %v3892 = vld [vmem:[%s3 + $0xd8] sm:$0xff]
      %v3893 = vld [vmem:[%s3 + $0xe0] sm:$0xff]
      %v3894 = vld [vmem:[%s3 + $0xe8] sm:$0xff]
      %v3895 = vld [vmem:[%s3 + $0xf0] sm:$0xff]
      %v3896 = vld [vmem:[%s3 + $0xf8] sm:$0xff]
      %v3897 = vld [vmem:[%s3 + $0x100] sm:$0xff]
      %v3898 = vld [vmem:[%s3 + $0x108] sm:$0xff]
      %v3899 = vld [vmem:[%s3 + $0x110] sm:$0xff]
      %v3900 = vld [vmem:[%s3 + $0x118] sm:$0xff]
      %3902 = vset.pattern.permute.xlu0 0
      %3903 = vperm.xlu0 %3902, %v3865
      %v3904 = vpop.permute.xlu0 %3903
      %3907 = vset.pattern.permute.xlu0 0
      %3908 = vperm.xlu0 %3907, %v3866
      %v3909 = vpop.permute.xlu0 %3908
      %3912 = vset.pattern.permute.xlu0 0
      %3913 = vperm.xlu0 %3912, %v3867
      %v3914 = vpop.permute.xlu0 %3913
      %3917 = vset.pattern.permute.xlu0 0
      %3918 = vperm.xlu0 %3917, %v3868
      %v3919 = vpop.permute.xlu0 %3918
      %3922 = vset.pattern.permute.xlu0 0
      %3923 = vperm.xlu0 %3922, %v3869
      %v3924 = vpop.permute.xlu0 %3923
      %3927 = vset.pattern.permute.xlu0 0
      %3928 = vperm.xlu0 %3927, %v3870
      %v3929 = vpop.permute.xlu0 %3928
      %3932 = vset.pattern.permute.xlu0 0
      %3933 = vperm.xlu0 %3932, %v3871
      %v3934 = vpop.permute.xlu0 %3933
      %3937 = vset.pattern.permute.xlu0 0
      %3938 = vperm.xlu0 %3937, %v3872
      %v3939 = vpop.permute.xlu0 %3938
      %3942 = vset.pattern.permute.xlu0 0
      %3943 = vperm.xlu0 %3942, %v3873
      %v3944 = vpop.permute.xlu0 %3943
      %3947 = vset.pattern.permute.xlu0 0
      %3948 = vperm.xlu0 %3947, %v3874
      %v3949 = vpop.permute.xlu0 %3948
      %3952 = vset.pattern.permute.xlu0 0
      %3953 = vperm.xlu0 %3952, %v3875
      %v3954 = vpop.permute.xlu0 %3953
      %3957 = vset.pattern.permute.xlu0 0
      %3958 = vperm.xlu0 %3957, %v3876
      %v3959 = vpop.permute.xlu0 %3958
      %3962 = vset.pattern.permute.xlu0 0
      %3963 = vperm.xlu0 %3962, %v3877
      %v3964 = vpop.permute.xlu0 %3963
      %3967 = vset.pattern.permute.xlu0 0
      %3968 = vperm.xlu0 %3967, %v3878
      %v3969 = vpop.permute.xlu0 %3968
      %3972 = vset.pattern.permute.xlu0 0
      %3973 = vperm.xlu0 %3972, %v3879
      %v3974 = vpop.permute.xlu0 %3973
      %3977 = vset.pattern.permute.xlu0 0
      %3978 = vperm.xlu0 %3977, %v3880
      %v3979 = vpop.permute.xlu0 %3978
      %3982 = vset.pattern.permute.xlu0 0
      %3983 = vperm.xlu0 %3982, %v3881
      %v3984 = vpop.permute.xlu0 %3983
      %3987 = vset.pattern.permute.xlu0 0
      %3988 = vperm.xlu0 %3987, %v3882
      %v3989 = vpop.permute.xlu0 %3988
      %3992 = vset.pattern.permute.xlu0 0
      %3993 = vperm.xlu0 %3992, %v3883
      %v3994 = vpop.permute.xlu0 %3993
      %3997 = vset.pattern.permute.xlu0 0
      %3998 = vperm.xlu0 %3997, %v3884
      %v3999 = vpop.permute.xlu0 %3998
      %4002 = vset.pattern.permute.xlu0 0
      %4003 = vperm.xlu0 %4002, %v3885
      %v4004 = vpop.permute.xlu0 %4003
      %4007 = vset.pattern.permute.xlu0 0
      %4008 = vperm.xlu0 %4007, %v3886
      %v4009 = vpop.permute.xlu0 %4008
      %4012 = vset.pattern.permute.xlu0 0
      %4013 = vperm.xlu0 %4012, %v3887
      %v4014 = vpop.permute.xlu0 %4013
      %4017 = vset.pattern.permute.xlu0 0
      %4018 = vperm.xlu0 %4017, %v3888
      %v4019 = vpop.permute.xlu0 %4018
      %4022 = vset.pattern.permute.xlu0 0
      %4023 = vperm.xlu0 %4022, %v3889
      %v4024 = vpop.permute.xlu0 %4023
      %4027 = vset.pattern.permute.xlu0 0
      %4028 = vperm.xlu0 %4027, %v3890
      %v4029 = vpop.permute.xlu0 %4028
      %4032 = vset.pattern.permute.xlu0 0
      %4033 = vperm.xlu0 %4032, %v3891
      %v4034 = vpop.permute.xlu0 %4033
      %4037 = vset.pattern.permute.xlu0 0
      %4038 = vperm.xlu0 %4037, %v3892
      %v4039 = vpop.permute.xlu0 %4038
      %4042 = vset.pattern.permute.xlu0 0
      %4043 = vperm.xlu0 %4042, %v3893
      %v4044 = vpop.permute.xlu0 %4043
      %4047 = vset.pattern.permute.xlu0 0
      %4048 = vperm.xlu0 %4047, %v3894
      %v4049 = vpop.permute.xlu0 %4048
      %4052 = vset.pattern.permute.xlu0 0
      %4053 = vperm.xlu0 %4052, %v3895
      %v4054 = vpop.permute.xlu0 %4053
      %4057 = vset.pattern.permute.xlu0 0
      %4058 = vperm.xlu0 %4057, %v3896
      %v4059 = vpop.permute.xlu0 %4058
      %4062 = vset.pattern.permute.xlu0 0
      %4063 = vperm.xlu0 %4062, %v3897
      %v4064 = vpop.permute.xlu0 %4063
      %4067 = vset.pattern.permute.xlu0 0
      %4068 = vperm.xlu0 %4067, %v3898
      %v4069 = vpop.permute.xlu0 %4068
      %4072 = vset.pattern.permute.xlu0 0
      %4073 = vperm.xlu0 %4072, %v3899
      %v4074 = vpop.permute.xlu0 %4073
      %4077 = vset.pattern.permute.xlu0 0
      %4078 = vperm.xlu0 %4077, %v3900
      %v4079 = vpop.permute.xlu0 %4078
      %v4081 = vmul.f32 %v3792, %v3904
      %v4082 = vmul.f32 %v3793, %v3909
      %v4083 = vmul.f32 %v3794, %v3914
      %v4084 = vmul.f32 %v3795, %v3919
      %v4085 = vmul.f32 %v3796, %v3924
      %v4086 = vmul.f32 %v3797, %v3929
      %v4087 = vmul.f32 %v3798, %v3934
      %v4088 = vmul.f32 %v3799, %v3939
      %v4089 = vmul.f32 %v3800, %v3944
      %v4090 = vmul.f32 %v3801, %v3949
      %v4091 = vmul.f32 %v3802, %v3954
      %v4092 = vmul.f32 %v3803, %v3959
      %v4093 = vmul.f32 %v3804, %v3964
      %v4094 = vmul.f32 %v3805, %v3969
      %v4095 = vmul.f32 %v3806, %v3974
      %v4096 = vmul.f32 %v3807, %v3979
      %v4097 = vmul.f32 %v3808, %v3984
      %v4098 = vmul.f32 %v3809, %v3989
      %v4099 = vmul.f32 %v3810, %v3994
      %v4100 = vmul.f32 %v3811, %v3999
      %v4101 = vmul.f32 %v3812, %v4004
      %v4102 = vmul.f32 %v3813, %v4009
      %v4103 = vmul.f32 %v3814, %v4014
      %v4104 = vmul.f32 %v3815, %v4019
      %v4105 = vmul.f32 %v3816, %v4024
      %v4106 = vmul.f32 %v3817, %v4029
      %v4107 = vmul.f32 %v3818, %v4034
      %v4108 = vmul.f32 %v3819, %v4039
      %v4109 = vmul.f32 %v3820, %v4044
      %v4110 = vmul.f32 %v3821, %v4049
      %v4111 = vmul.f32 %v3822, %v4054
      %v4112 = vmul.f32 %v3823, %v4059
      %v4113 = vmul.f32 %v3824, %v4064
      %v4114 = vmul.f32 %v3825, %v4069
      %v4115 = vmul.f32 %v3826, %v4074
      %v4116 = vmul.f32 %v3827, %v4079
      %v4117 = vsel %vm3828, %v4081, 0.0
      %v4118 = vsel %vm3828, %v4082, 0.0
      %v4119 = vadd.f32 %v4117, %v4118
      %v4120 = vsel %vm3828, %v4083, 0.0
      %v4121 = vadd.f32 %v4119, %v4120
      %v4122 = vsel %vm3828, %v4084, 0.0
      %v4123 = vadd.f32 %v4121, %v4122
      %v4124 = vsel %vm3828, %v4085, 0.0
      %v4125 = vadd.f32 %v4123, %v4124
      %v4126 = vsel %vm3828, %v4086, 0.0
      %v4127 = vadd.f32 %v4125, %v4126
      %v4128 = vsel %vm3828, %v4087, 0.0
      %v4129 = vadd.f32 %v4127, %v4128
      %v4130 = vsel %vm3828, %v4088, 0.0
      %v4131 = vadd.f32 %v4129, %v4130
      %v4132 = vsel %vm3828, %v4089, 0.0
      %v4133 = vadd.f32 %v4131, %v4132
      %v4134 = vsel %vm3828, %v4090, 0.0
      %v4135 = vadd.f32 %v4133, %v4134
      %v4136 = vsel %vm3828, %v4091, 0.0
      %v4137 = vadd.f32 %v4135, %v4136
      %v4138 = vsel %vm3828, %v4092, 0.0
      %v4139 = vadd.f32 %v4137, %v4138
      %v4140 = vsel %vm3828, %v4093, 0.0
      %v4141 = vadd.f32 %v4139, %v4140
      %v4142 = vsel %vm3828, %v4094, 0.0
      %v4143 = vadd.f32 %v4141, %v4142
      %v4144 = vsel %vm3828, %v4095, 0.0
      %v4145 = vadd.f32 %v4143, %v4144
      %v4146 = vsel %vm3828, %v4096, 0.0
      %v4147 = vadd.f32 %v4145, %v4146
      %v4148 = vsel %vm3828, %v4097, 0.0
      %v4149 = vadd.f32 %v4147, %v4148
      %v4150 = vsel %vm3828, %v4098, 0.0
      %v4151 = vadd.f32 %v4149, %v4150
      %v4152 = vsel %vm3828, %v4099, 0.0
      %v4153 = vadd.f32 %v4151, %v4152
      %v4154 = vsel %vm3828, %v4100, 0.0
      %v4155 = vadd.f32 %v4153, %v4154
      %v4156 = vsel %vm3828, %v4101, 0.0
      %v4157 = vadd.f32 %v4155, %v4156
      %v4158 = vsel %vm3828, %v4102, 0.0
      %v4159 = vadd.f32 %v4157, %v4158
      %v4160 = vsel %vm3828, %v4103, 0.0
      %v4161 = vadd.f32 %v4159, %v4160
      %v4162 = vsel %vm3828, %v4104, 0.0
      %v4163 = vadd.f32 %v4161, %v4162
      %v4164 = vsel %vm3828, %v4105, 0.0
      %v4165 = vadd.f32 %v4163, %v4164
      %v4166 = vsel %vm3828, %v4106, 0.0
      %v4167 = vadd.f32 %v4165, %v4166
      %v4168 = vsel %vm3828, %v4107, 0.0
      %v4169 = vadd.f32 %v4167, %v4168
      %v4170 = vsel %vm3828, %v4108, 0.0
      %v4171 = vadd.f32 %v4169, %v4170
      %v4172 = vsel %vm3828, %v4109, 0.0
      %v4173 = vadd.f32 %v4171, %v4172
      %v4174 = vsel %vm3828, %v4110, 0.0
      %v4175 = vadd.f32 %v4173, %v4174
      %v4176 = vsel %vm3828, %v4111, 0.0
      %v4177 = vadd.f32 %v4175, %v4176
      %v4178 = vsel %vm3828, %v4112, 0.0
      %v4179 = vadd.f32 %v4177, %v4178
      %v4180 = vsel %vm3828, %v4113, 0.0
      %v4181 = vadd.f32 %v4179, %v4180
      %v4182 = vsel %vm3828, %v4114, 0.0
      %v4183 = vadd.f32 %v4181, %v4182
      %v4184 = vsel %vm3828, %v4115, 0.0
      %v4185 = vadd.f32 %v4183, %v4184
      %v4186 = vsel %vm3828, %v4116, 0.0
      %v4187 = vadd.f32 %v4185, %v4186
      %v4188 = vrot.slane %v4187, 4
      %v4189 = vadd.f32 %v4187, %v4188
      %v4190 = vrot.slane %v4189, 2
      %v4191 = vadd.f32 %v4189, %v4190
      %v4192 = vrot.slane %v4191, 1
      %v4193 = vadd.f32 %v4191, %v4192
      %vm4194 = vcmask 253952
      %4195 = vst.msk [vmem:[%s329] sm:$0x1] %vm4194, %v4193
      %v4196 = vmul.f32 %v4081, %v3792
      %v4197 = vmul.f32 %v4082, %v3793
      %v4198 = vmul.f32 %v4083, %v3794
      %v4199 = vmul.f32 %v4084, %v3795
      %v4200 = vmul.f32 %v4085, %v3796
      %v4201 = vmul.f32 %v4086, %v3797
      %v4202 = vmul.f32 %v4087, %v3798
      %v4203 = vmul.f32 %v4088, %v3799
      %v4204 = vmul.f32 %v4089, %v3800
      %v4205 = vmul.f32 %v4090, %v3801
      %v4206 = vmul.f32 %v4091, %v3802
      %v4207 = vmul.f32 %v4092, %v3803
      %v4208 = vmul.f32 %v4093, %v3804
      %v4209 = vmul.f32 %v4094, %v3805
      %v4210 = vmul.f32 %v4095, %v3806
      %v4211 = vmul.f32 %v4096, %v3807
      %v4212 = vmul.f32 %v4097, %v3808
      %v4213 = vmul.f32 %v4098, %v3809
      %v4214 = vmul.f32 %v4099, %v3810
      %v4215 = vmul.f32 %v4100, %v3811
      %v4216 = vmul.f32 %v4101, %v3812
      %v4217 = vmul.f32 %v4102, %v3813
      %v4218 = vmul.f32 %v4103, %v3814
      %v4219 = vmul.f32 %v4104, %v3815
      %v4220 = vmul.f32 %v4105, %v3816
      %v4221 = vmul.f32 %v4106, %v3817
      %v4222 = vmul.f32 %v4107, %v3818
      %v4223 = vmul.f32 %v4108, %v3819
      %v4224 = vmul.f32 %v4109, %v3820
      %v4225 = vmul.f32 %v4110, %v3821
      %v4226 = vmul.f32 %v4111, %v3822
      %v4227 = vmul.f32 %v4112, %v3823
      %v4228 = vmul.f32 %v4113, %v3824
      %v4229 = vmul.f32 %v4114, %v3825
      %v4230 = vmul.f32 %v4115, %v3826
      %v4231 = vmul.f32 %v4116, %v3827
      %v4232 = vsel %vm3828, %v4196, 0.0
      %v4233 = vsel %vm3828, %v4197, 0.0
      %v4234 = vadd.f32 %v4232, %v4233
      %v4235 = vsel %vm3828, %v4198, 0.0
      %v4236 = vadd.f32 %v4234, %v4235
      %v4237 = vsel %vm3828, %v4199, 0.0
      %v4238 = vadd.f32 %v4236, %v4237
      %v4239 = vsel %vm3828, %v4200, 0.0
      %v4240 = vadd.f32 %v4238, %v4239
      %v4241 = vsel %vm3828, %v4201, 0.0
      %v4242 = vadd.f32 %v4240, %v4241
      %v4243 = vsel %vm3828, %v4202, 0.0
      %v4244 = vadd.f32 %v4242, %v4243
      %v4245 = vsel %vm3828, %v4203, 0.0
      %v4246 = vadd.f32 %v4244, %v4245
      %v4247 = vsel %vm3828, %v4204, 0.0
      %v4248 = vadd.f32 %v4246, %v4247
      %v4249 = vsel %vm3828, %v4205, 0.0
      %v4250 = vadd.f32 %v4248, %v4249
      %v4251 = vsel %vm3828, %v4206, 0.0
      %v4252 = vadd.f32 %v4250, %v4251
      %v4253 = vsel %vm3828, %v4207, 0.0
      %v4254 = vadd.f32 %v4252, %v4253
      %v4255 = vsel %vm3828, %v4208, 0.0
      %v4256 = vadd.f32 %v4254, %v4255
      %v4257 = vsel %vm3828, %v4209, 0.0
      %v4258 = vadd.f32 %v4256, %v4257
      %v4259 = vsel %vm3828, %v4210, 0.0
      %v4260 = vadd.f32 %v4258, %v4259
      %v4261 = vsel %vm3828, %v4211, 0.0
      %v4262 = vadd.f32 %v4260, %v4261
      %v4263 = vsel %vm3828, %v4212, 0.0
      %v4264 = vadd.f32 %v4262, %v4263
      %v4265 = vsel %vm3828, %v4213, 0.0
      %v4266 = vadd.f32 %v4264, %v4265
      %v4267 = vsel %vm3828, %v4214, 0.0
      %v4268 = vadd.f32 %v4266, %v4267
      %v4269 = vsel %vm3828, %v4215, 0.0
      %v4270 = vadd.f32 %v4268, %v4269
      %v4271 = vsel %vm3828, %v4216, 0.0
      %v4272 = vadd.f32 %v4270, %v4271
      %v4273 = vsel %vm3828, %v4217, 0.0
      %v4274 = vadd.f32 %v4272, %v4273
      %v4275 = vsel %vm3828, %v4218, 0.0
      %v4276 = vadd.f32 %v4274, %v4275
      %v4277 = vsel %vm3828, %v4219, 0.0
      %v4278 = vadd.f32 %v4276, %v4277
      %v4279 = vsel %vm3828, %v4220, 0.0
      %v4280 = vadd.f32 %v4278, %v4279
      %v4281 = vsel %vm3828, %v4221, 0.0
      %v4282 = vadd.f32 %v4280, %v4281
      %v4283 = vsel %vm3828, %v4222, 0.0
      %v4284 = vadd.f32 %v4282, %v4283
      %v4285 = vsel %vm3828, %v4223, 0.0
      %v4286 = vadd.f32 %v4284, %v4285
      %v4287 = vsel %vm3828, %v4224, 0.0
      %v4288 = vadd.f32 %v4286, %v4287
      %v4289 = vsel %vm3828, %v4225, 0.0
      %v4290 = vadd.f32 %v4288, %v4289
      %v4291 = vsel %vm3828, %v4226, 0.0
      %v4292 = vadd.f32 %v4290, %v4291
      %v4293 = vsel %vm3828, %v4227, 0.0
      %v4294 = vadd.f32 %v4292, %v4293
      %v4295 = vsel %vm3828, %v4228, 0.0
      %v4296 = vadd.f32 %v4294, %v4295
      %v4297 = vsel %vm3828, %v4229, 0.0
      %v4298 = vadd.f32 %v4296, %v4297
      %v4299 = vsel %vm3828, %v4230, 0.0
      %v4300 = vadd.f32 %v4298, %v4299
      %v4301 = vsel %vm3828, %v4231, 0.0
      %v4302 = vadd.f32 %v4300, %v4301
      %v4303 = vrot.slane %v4302, 4
      %v4304 = vadd.f32 %v4302, %v4303
      %v4305 = vrot.slane %v4304, 2
      %v4306 = vadd.f32 %v4304, %v4305
      %v4307 = vrot.slane %v4306, 1
      %v4308 = vadd.f32 %v4306, %v4307
      %4309 = vst.msk [vmem:[%s335] sm:$0x1] %vm4194, %v4308
      %p4310 = scmp.lt.s32.totalorder %s22, 1
      %s4311 = scalar_select %p4310, %s22, 1
      %p4312 = scmp.lt.s32.totalorder %s23, 0
      %s4313 = scalar_select %p4312, %s23, 0
      %s4314 = smul.addr %s4311, 36
      %s4315 = sadd.s32 %s4313, %s4314
      %s4316 = smul.addr %s4315, 8
      %s4317 = scalar_lea.vmem %s4, %s4316
      %p4318 = scmp.lt.s32.totalorder %s22, 1
      %s4319 = scalar_select %p4318, %s22, 1
      %p4320 = scmp.lt.s32.totalorder %s23, 0
      %s4321 = scalar_select %p4320, %s23, 0
      %s4322 = sadd.s32 %s4321, %s4319
      %s4323 = scalar_lea.vmem %s5, %s4322
      %p4324 = scmp.lt.s32.totalorder %s22, 1
      %s4325 = scalar_select %p4324, %s22, 1
      %p4326 = scmp.lt.s32.totalorder %s23, 0
      %s4327 = scalar_select %p4326, %s23, 0
      %s4328 = sadd.s32 %s4327, %s4325
      %s4329 = scalar_lea.vmem %s6, %s4328
      // Predicated region
      $region37: #{conv_unit_forward.4} parent=35 // pred_check
        %p4330 = pneg %p149
      $region38: #{conv_unit_forward.4} parent=35 // pred_check_branch
        %4332 = sbr.rel (%p4330) target = $region40
      $region39: #{conv_unit_forward.4} parent=35 // pred_region
        _
      $region40: #{conv_unit_forward.4} parent=35 // pred_fallthru
        _
      // Predicated region
      $region41: #{conv_unit_forward.4} parent=35 // pred_check
        %p4333 = pneg %p177
      $region42: #{conv_unit_forward.4} parent=35 // pred_check_branch
        %4335 = sbr.rel (%p4333) target = $region44
      $region43: #{conv_unit_forward.4} parent=35 // pred_region
        _
      $region44: #{conv_unit_forward.4} parent=35 // pred_fallthru
        _
      // Predicated region
      $region45: #{conv_unit_forward.4} parent=35 // pred_check
        %p4336 = pneg %p205
      $region46: #{conv_unit_forward.4} parent=35 // pred_check_branch
        %4338 = sbr.rel (%p4336) target = $region48
      $region47: #{conv_unit_forward.4} parent=35 // pred_region
        _
      $region48: #{conv_unit_forward.4} parent=35 // pred_fallthru
        _
    $region36: #{conv_unit_forward.4} parent=5 // pred_fallthru
      _
    %p4339 = scmp.le.s32.totalorder 2, %s13
    // Predicated region
    $region49: #{conv_unit_forward.4} parent=5 // pred_check
      %p4340 = pneg %p4339
    $region50: #{conv_unit_forward.4} parent=5 // pred_check_branch
      %4342 = sbr.rel (%p4340) target = $region52
    $region51: #{conv_unit_forward.4} parent=5 // pred_region
      %s4343 = ssub.s32 %s13, 2
      // Predicated region
      $region53: #{conv_unit_forward.4} parent=51 // pred_check
        %p4344 = pneg %p155
      $region54: #{conv_unit_forward.4} parent=51 // pred_check_branch
        %4346 = sbr.rel (%p4344) target = $region56
      $region55: #{conv_unit_forward.4} parent=51 // pred_region
        %p4347 = scmp.lt.s32.totalorder %s24, 1
        %s4348 = scalar_select %p4347, %s24, 1
        %p4349 = scmp.lt.s32.totalorder %s25, 0
        %s4350 = scalar_select %p4349, %s25, 0
        %s4351 = smul.addr %s4348, 36
        %s4352 = sadd.s32 %s4350, %s4351
        %s4353 = smul.addr %s4352, 8
        %s4354 = scalar_lea.vmem %s4, %s4353
      $region56: #{conv_unit_forward.4} parent=51 // pred_fallthru
        _
      // Predicated region
      $region57: #{conv_unit_forward.4} parent=51 // pred_check
        %p4355 = pneg %p183
      $region58: #{conv_unit_forward.4} parent=51 // pred_check_branch
        %4357 = sbr.rel (%p4355) target = $region60
      $region59: #{conv_unit_forward.4} parent=51 // pred_region
        %p4358 = scmp.lt.s32.totalorder %s24, 1
        %s4359 = scalar_select %p4358, %s24, 1
        %p4360 = scmp.lt.s32.totalorder %s25, 0
        %s4361 = scalar_select %p4360, %s25, 0
        %s4362 = sadd.s32 %s4361, %s4359
        %s4363 = scalar_lea.vmem %s5, %s4362
      $region60: #{conv_unit_forward.4} parent=51 // pred_fallthru
        _
      // Predicated region
      $region61: #{conv_unit_forward.4} parent=51 // pred_check
        %p4364 = pneg %p211
      $region62: #{conv_unit_forward.4} parent=51 // pred_check_branch
        %4366 = sbr.rel (%p4364) target = $region64
      $region63: #{conv_unit_forward.4} parent=51 // pred_region
        %p4367 = scmp.lt.s32.totalorder %s24, 1
        %s4368 = scalar_select %p4367, %s24, 1
        %p4369 = scmp.lt.s32.totalorder %s25, 0
        %s4370 = scalar_select %p4369, %s25, 0
        %s4371 = sadd.s32 %s4370, %s4368
        %s4372 = scalar_lea.vmem %s6, %s4371
      $region64: #{conv_unit_forward.4} parent=51 // pred_fallthru
        _
    $region52: #{conv_unit_forward.4} parent=5 // pred_fallthru
      _
  $region6: #{conv_unit_forward.4} parent=0 // loop_footer
    %s17 = sadd.s32 1, %s13
  $region7: #{conv_unit_forward.4} parent=0 // loop_footer_branch
    %12 = sbr.rel target = $region3
  $region8: #{conv_unit_forward.4} parent=0 // loop_exit
    _

// kernel: conv_unit_forward.6
$region0: #{conv_unit_forward.6}
  #allocation0 [shape = 'u32[]', space=smem, size = 0x4, offset = 0x4, fixed_abs, tag = 'smem constant byte address 0x4 - core index']
  #allocation1 [shape = 'u32[144,128]{1,0:T(1,128)}', space=vmem, size = 0x12000, scoped, tag = 'internal scratch']
  %s0 = inlined_call_operand.vmem [shape: bf16[2,336,32], index: 0, kind: input, shape index: {}]
  %s1 = inlined_call_operand.vmem [shape: bf16[9,32,32], index: 1, kind: input, shape index: {}]
  %s2 = inlined_call_operand.vmem [shape: f32[1,32], index: 2, kind: input, shape index: {}]
  %s3 = inlined_call_operand.vmem [shape: f32[288,1], index: 3, kind: input, shape index: {}]
  %s4 = inlined_call_operand.vmem [shape: f32[2,288,32], index: 4, kind: output, shape index: {0}]
  %s5 = inlined_call_operand.vmem [shape: f32[2,1,32], index: 5, kind: output, shape index: {1}]
  %s6 = inlined_call_operand.vmem [shape: f32[2,1,32], index: 6, kind: output, shape index: {2}]
  %7 = xla_tuple %s4, %s5, %s6
  %s8 = sld [smem:[#allocation0]]
  $region65: #{conv_unit_forward.6} parent=0
    _
  %s10 = ssub.s32 1, %s8
  %s11 = scalar_select 0, %s10, %s8
  loop: start=0, step=1, limit=4
  $region2: #{conv_unit_forward.6} parent=0 // loop_pre_header
    _
  $region3: #{conv_unit_forward.6} parent=0 // loop_header
    %s13 = sphi 0, %s17
    %p14 = scmp.ge.s32.totalorder %s13, 4
    %s20 = sphi 0, %s32
    %s21 = sphi 0, %s28
    %s22 = sphi 0, %s20
    %s23 = sphi 0, %s21
    %s24 = sphi 0, %s22
    %s25 = sphi 0, %s23
    %s35 = sphi 0, %s37
    %s38 = sphi 0, %s35
    %s39 = sphi 0, %s38
    %s55 = sphi 0, %s39
    %s61 = sphi 0, %s63
    %s64 = sphi 0, %s61
    %s65 = sphi 0, %s64
    %s81 = sphi 0, %s65
    %s87 = sphi 0, %s89
    %s90 = sphi 0, %s87
    %s91 = sphi 0, %s90
    %s107 = sphi 0, %s91
    %s111 = sphi 0, %s111
    %s113 = sphi 0, %s111
    %s114 = sphi 0, %s113
    %s128 = sphi 0, %s114
    %s136 = sphi 0, %s138
    %s139 = sphi 0, %s136
    %s140 = sphi 0, %s139
    %s156 = sphi 0, %s140
    %s164 = sphi 0, %s166
    %s167 = sphi 0, %s164
    %s168 = sphi 0, %s167
    %s184 = sphi 0, %s168
    %s192 = sphi 0, %s194
    %s195 = sphi 0, %s192
    %s196 = sphi 0, %s195
    %s212 = sphi 0, %s196
  $region4: #{conv_unit_forward.6} parent=0 // loop_header_branch
    %16 = sbr.rel (%p14) target = $region8
  $region5: #{conv_unit_forward.6} parent=0 // loop_body
    %s18 = ssub.s32 %s13, 1
    %s19 = ssub.s32 %s13, 2
    %s26 = sadd.s32 1, %s21
    %p27 = scmp.ge.s32.totalorder %s26, 1
    %s28 = scalar_select %p27, 0, %s26
    %s29 = sadd.s32 1, %s20
    %s30 = scalar_select %p27, %s29, %s20
    %p31 = scmp.ge.s32.totalorder %s30, 2
    %s32 = scalar_select %p31, 0, %s30
    %s33 = ssub.s32 %s20, %s32
    %p34 = scmp.eq.s32.totalorder %s33, 0
    %s36 = sadd.s32 %s35, 1
    %s37 = scalar_select %p34, %s35, %s36
    %p40 = pneg %p34
    %p41 = scmp.eq.s32.totalorder %s13, 1
    %p42 = por %p40, %p41
    %p43 = scmp.ne.s32.totalorder %s35, %s38
    %p44 = scmp.eq.s32.totalorder %s13, 0
    %p45 = por %p43, %p44
    %p46 = scmp.ne.s32.totalorder %s35, %s38
    %p47 = scmp.eq.s32.totalorder %s18, 1
    %p48 = por %p46, %p47
    %p49 = scmp.ne.s32.totalorder %s38, %s39
    %p50 = scmp.eq.s32.totalorder %s18, 0
    %p51 = por %p49, %p50
    %p52 = scmp.ne.s32.totalorder %s38, %s39
    %p53 = scmp.eq.s32.totalorder %s19, 1
    %p54 = por %p52, %p53
    %p56 = scmp.ne.s32.totalorder %s39, %s55
    %p57 = scmp.eq.s32.totalorder %s19, 0
    %p58 = por %p56, %p57
    %s59 = ssub.s32 %s21, %s28
    %p60 = scmp.eq.s32.totalorder %s59, 0
    %s62 = sadd.s32 %s61, 1
    %s63 = scalar_select %p60, %s61, %s62
    %p66 = pneg %p60
    %p67 = scmp.eq.s32.totalorder %s13, 1
    %p68 = por %p66, %p67
    %p69 = scmp.ne.s32.totalorder %s61, %s64
    %p70 = scmp.eq.s32.totalorder %s13, 0
    %p71 = por %p69, %p70
    %p72 = scmp.ne.s32.totalorder %s61, %s64
    %p73 = scmp.eq.s32.totalorder %s18, 1
    %p74 = por %p72, %p73
    %p75 = scmp.ne.s32.totalorder %s64, %s65
    %p76 = scmp.eq.s32.totalorder %s18, 0
    %p77 = por %p75, %p76
    %p78 = scmp.ne.s32.totalorder %s64, %s65
    %p79 = scmp.eq.s32.totalorder %s19, 1
    %p80 = por %p78, %p79
    %p82 = scmp.ne.s32.totalorder %s65, %s81
    %p83 = scmp.eq.s32.totalorder %s19, 0
    %p84 = por %p82, %p83
    %s85 = ssub.s32 %s21, %s28
    %p86 = scmp.eq.s32.totalorder %s85, 0
    %s88 = sadd.s32 %s87, 1
    %s89 = scalar_select %p86, %s87, %s88
    %p92 = pneg %p86
    %p93 = scmp.eq.s32.totalorder %s13, 1
    %p94 = por %p92, %p93
    %p95 = scmp.ne.s32.totalorder %s87, %s90
    %p96 = scmp.eq.s32.totalorder %s13, 0
    %p97 = por %p95, %p96
    %p98 = scmp.ne.s32.totalorder %s87, %s90
    %p99 = scmp.eq.s32.totalorder %s18, 1
    %p100 = por %p98, %p99
    %p101 = scmp.ne.s32.totalorder %s90, %s91
    %p102 = scmp.eq.s32.totalorder %s18, 0
    %p103 = por %p101, %p102
    %p104 = scmp.ne.s32.totalorder %s90, %s91
    %p105 = scmp.eq.s32.totalorder %s19, 1
    %p106 = por %p104, %p105
    %p108 = scmp.ne.s32.totalorder %s91, %s107
    %p109 = scmp.eq.s32.totalorder %s19, 0
    %p110 = por %p108, %p109
    %s112 = sadd.s32 %s111, 1
    %p115 = scmp.eq.s32.totalorder %s13, 1
    %p116 = scmp.ne.s32.totalorder %s111, %s113
    %p117 = scmp.eq.s32.totalorder %s13, 0
    %p118 = por %p116, %p117
    %p119 = scmp.ne.s32.totalorder %s111, %s113
    %p120 = scmp.eq.s32.totalorder %s18, 1
    %p121 = por %p119, %p120
    %p122 = scmp.ne.s32.totalorder %s113, %s114
    %p123 = scmp.eq.s32.totalorder %s18, 0
    %p124 = por %p122, %p123
    %p125 = scmp.ne.s32.totalorder %s113, %s114
    %p126 = scmp.eq.s32.totalorder %s19, 1
    %p127 = por %p125, %p126
    %p129 = scmp.ne.s32.totalorder %s114, %s128
    %p130 = scmp.eq.s32.totalorder %s19, 0
    %p131 = por %p129, %p130
    %s132 = ssub.s32 %s20, %s32
    %s133 = ssub.s32 %s21, %s28
    %s134 = sor.u32 %s132, %s133
    %p135 = scmp.eq.s32.totalorder %s134, 0
    %s137 = sadd.s32 %s136, 1
    %s138 = scalar_select %p135, %s136, %s137
    %p141 = pneg %p135
    %p142 = scmp.eq.s32.totalorder %s13, 1
    %p143 = por %p141, %p142
    %p144 = scmp.ne.s32.totalorder %s136, %s139
    %p145 = scmp.eq.s32.totalorder %s13, 0
    %p146 = por %p144, %p145
    %p147 = scmp.ne.s32.totalorder %s136, %s139
    %p148 = scmp.eq.s32.totalorder %s18, 1
    %p149 = por %p147, %p148
    %p150 = scmp.ne.s32.totalorder %s139, %s140
    %p151 = scmp.eq.s32.totalorder %s18, 0
    %p152 = por %p150, %p151
    %p153 = scmp.ne.s32.totalorder %s139, %s140
    %p154 = scmp.eq.s32.totalorder %s19, 1
    %p155 = por %p153, %p154
    %p157 = scmp.ne.s32.totalorder %s140, %s156
    %p158 = scmp.eq.s32.totalorder %s19, 0
    %p159 = por %p157, %p158
    %s160 = ssub.s32 %s20, %s32
    %s161 = ssub.s32 %s21, %s28
    %s162 = sor.u32 %s160, %s161
    %p163 = scmp.eq.s32.totalorder %s162, 0
    %s165 = sadd.s32 %s164, 1
    %s166 = scalar_select %p163, %s164, %s165
    %p169 = pneg %p163
    %p170 = scmp.eq.s32.totalorder %s13, 1
    %p171 = por %p169, %p170
    %p172 = scmp.ne.s32.totalorder %s164, %s167
    %p173 = scmp.eq.s32.totalorder %s13, 0
    %p174 = por %p172, %p173
    %p175 = scmp.ne.s32.totalorder %s164, %s167
    %p176 = scmp.eq.s32.totalorder %s18, 1
    %p177 = por %p175, %p176
    %p178 = scmp.ne.s32.totalorder %s167, %s168
    %p179 = scmp.eq.s32.totalorder %s18, 0
    %p180 = por %p178, %p179
    %p181 = scmp.ne.s32.totalorder %s167, %s168
    %p182 = scmp.eq.s32.totalorder %s19, 1
    %p183 = por %p181, %p182
    %p185 = scmp.ne.s32.totalorder %s168, %s184
    %p186 = scmp.eq.s32.totalorder %s19, 0
    %p187 = por %p185, %p186
    %s188 = ssub.s32 %s20, %s32
    %s189 = ssub.s32 %s21, %s28
    %s190 = sor.u32 %s188, %s189
    %p191 = scmp.eq.s32.totalorder %s190, 0
    %s193 = sadd.s32 %s192, 1
    %s194 = scalar_select %p191, %s192, %s193
    %p197 = pneg %p191
    %p198 = scmp.eq.s32.totalorder %s13, 1
    %p199 = por %p197, %p198
    %p200 = scmp.ne.s32.totalorder %s192, %s195
    %p201 = scmp.eq.s32.totalorder %s13, 0
    %p202 = por %p200, %p201
    %p203 = scmp.ne.s32.totalorder %s192, %s195
    %p204 = scmp.eq.s32.totalorder %s18, 1
    %p205 = por %p203, %p204
    %p206 = scmp.ne.s32.totalorder %s195, %s196
    %p207 = scmp.eq.s32.totalorder %s18, 0
    %p208 = por %p206, %p207
    %p209 = scmp.ne.s32.totalorder %s195, %s196
    %p210 = scmp.eq.s32.totalorder %s19, 1
    %p211 = por %p209, %p210
    %p213 = scmp.ne.s32.totalorder %s196, %s212
    %p214 = scmp.eq.s32.totalorder %s19, 0
    %p215 = por %p213, %p214
    %p216 = scmp.le.s32.totalorder 1, %s13
    %p217 = scmp.lt.s32.totalorder %s13, 3
    %p218 = pnand %p216, %p217
    %p219 = pneg %p218
    // Predicated region
    $region9: #{conv_unit_forward.6} parent=5 // pred_check
      _
    $region10: #{conv_unit_forward.6} parent=5 // pred_check_branch
      %221 = sbr.rel (%p218) target = $region12
    $region11: #{conv_unit_forward.6} parent=5 // pred_region
      %s222 = ssub.s32 %s13, 1
      // Predicated region
      $region13: #{conv_unit_forward.6} parent=11 // pred_check
        %p223 = pneg %p77
      $region14: #{conv_unit_forward.6} parent=11 // pred_check_branch
        %225 = sbr.rel (%p223) target = $region16
      $region15: #{conv_unit_forward.6} parent=11 // pred_region
        %p226 = scmp.lt.s32.totalorder %s23, 0
        %s227 = scalar_select %p226, %s23, 0
        %s228 = smul.addr %s227, 4
        %s229 = scalar_lea.vmem %s1, %s228
      $region16: #{conv_unit_forward.6} parent=11 // pred_fallthru
        _
      // Predicated region
      $region17: #{conv_unit_forward.6} parent=11 // pred_check
        %p230 = pneg %p103
      $region18: #{conv_unit_forward.6} parent=11 // pred_check_branch
        %232 = sbr.rel (%p230) target = $region20
      $region19: #{conv_unit_forward.6} parent=11 // pred_region
        %p233 = scmp.lt.s32.totalorder %s23, 0
        %s234 = scalar_select %p233, %s23, 0
        %s235 = scalar_lea.vmem %s2, %s234
      $region20: #{conv_unit_forward.6} parent=11 // pred_fallthru
        _
      // Predicated region
      $region21: #{conv_unit_forward.6} parent=11 // pred_check
        %p236 = pneg %p124
      $region22: #{conv_unit_forward.6} parent=11 // pred_check_branch
        %238 = sbr.rel (%p236) target = $region24
      $region23: #{conv_unit_forward.6} parent=11 // pred_region
        _
      $region24: #{conv_unit_forward.6} parent=11 // pred_fallthru
        _
    $region12: #{conv_unit_forward.6} parent=5 // pred_fallthru
      _
    %p239 = scmp.lt.s32.totalorder %s13, 2
    // Predicated region
    $region25: #{conv_unit_forward.6} parent=5 // pred_check
      %p240 = pneg %p239
    $region26: #{conv_unit_forward.6} parent=5 // pred_check_branch
      %242 = sbr.rel (%p240) target = $region28
    $region27: #{conv_unit_forward.6} parent=5 // pred_region
      // Predicated region
      $region29: #{conv_unit_forward.6} parent=27 // pred_check
        %p243 = pneg %p45
      $region30: #{conv_unit_forward.6} parent=27 // pred_check_branch
        %245 = sbr.rel (%p243) target = $region32
      $region31: #{conv_unit_forward.6} parent=27 // pred_region
        %p246 = scmp.lt.s32.totalorder %s20, 1
        %s247 = scalar_select %p246, %s20, 1
        %s248 = smul.addr %s247, 42
        %s249 = smul.addr %s248, 4
        %s250 = scalar_lea.vmem %s0, %s249
      $region32: #{conv_unit_forward.6} parent=27 // pred_fallthru
        _
    $region28: #{conv_unit_forward.6} parent=5 // pred_fallthru
      _
    %p251 = scmp.le.s32.totalorder 1, %s13
    %p252 = scmp.lt.s32.totalorder %s13, 3
    %p253 = pnand %p251, %p252
    %p254 = pneg %p253
    // Predicated region
    $region33: #{conv_unit_forward.6} parent=5 // pred_check
      _
    $region34: #{conv_unit_forward.6} parent=5 // pred_check_branch
      %256 = sbr.rel (%p253) target = $region36
    $region35: #{conv_unit_forward.6} parent=5 // pred_region
      %s257 = ssub.s32 %s13, 1
      %p258 = scmp.lt.s32.totalorder %s22, 1
      %s259 = scalar_select %p258, %s22, 1
      %s260 = smul.addr %s259, 42
      %s261 = smul.addr %s260, 4
      %s262 = scalar_lea.vmem %s0, %s261
      %p263 = pneg %p51
      %p264 = pneg %p48
      %p265 = scmp.lt.s32.totalorder %s23, 0
      %s266 = scalar_select %p265, %s23, 0
      %s267 = smul.addr %s266, 4
      %s268 = scalar_lea.vmem %s1, %s267
      %p269 = pneg %p77
      %p270 = pneg %p74
      %p271 = scmp.lt.s32.totalorder %s23, 0
      %s272 = scalar_select %p271, %s23, 0
      %s273 = scalar_lea.vmem %s2, %s272
      %p274 = pneg %p103
      %p275 = pneg %p100
      %p276 = pneg %p124
      %p277 = pneg %p121
      %p278 = pneg %p152
      %p279 = pneg %p149
      %p280 = scmp.lt.s32.totalorder %s22, 1
      %s281 = scalar_select %p280, %s22, 1
      %p282 = scmp.lt.s32.totalorder %s23, 0
      %s283 = scalar_select %p282, %s23, 0
      %s284 = smul.addr %s281, 36
      %s285 = sadd.s32 %s283, %s284
      %s286 = smul.addr %s285, 8
      %s287 = scalar_lea.vmem %s4, %s286
      %p288 = pneg %p180
      %p289 = pneg %p177
      %p290 = scmp.lt.s32.totalorder %s22, 1
      %s291 = scalar_select %p290, %s22, 1
      %p292 = scmp.lt.s32.totalorder %s23, 0
      %s293 = scalar_select %p292, %s23, 0
      %s294 = sadd.s32 %s293, %s291
      %s295 = scalar_lea.vmem %s5, %s294
      %p296 = pneg %p208
      %p297 = pneg %p205
      %p298 = scmp.lt.s32.totalorder %s22, 1
      %s299 = scalar_select %p298, %s22, 1
      %p300 = scmp.lt.s32.totalorder %s23, 0
      %s301 = scalar_select %p300, %s23, 0
      %s302 = sadd.s32 %s301, %s299
      %s303 = scalar_lea.vmem %s6, %s302
      %p304 = scmp.lt.s32.totalorder %s22, 1
      %s305 = scalar_select %p304, %s22, 1
      %s306 = smul.addr %s305, 42
      %s307 = smul.addr %s306, 4
      %s308 = scalar_lea.vmem %s0, %s307
      %p309 = scmp.lt.s32.totalorder %s23, 0
      %s310 = scalar_select %p309, %s23, 0
      %s311 = smul.addr %s310, 4
      %s312 = scalar_lea.vmem %s1, %s311
      %p313 = scmp.lt.s32.totalorder %s23, 0
      %s314 = scalar_select %p313, %s23, 0
      %s315 = scalar_lea.vmem %s2, %s314
      %p316 = scmp.lt.s32.totalorder %s22, 1
      %s317 = scalar_select %p316, %s22, 1
      %p318 = scmp.lt.s32.totalorder %s23, 0
      %s319 = scalar_select %p318, %s23, 0
      %s320 = smul.addr %s317, 36
      %s321 = sadd.s32 %s319, %s320
      %s322 = smul.addr %s321, 8
      %s323 = scalar_lea.vmem %s4, %s322
      %p324 = scmp.lt.s32.totalorder %s22, 1
      %s325 = scalar_select %p324, %s22, 1
      %p326 = scmp.lt.s32.totalorder %s23, 0
      %s327 = scalar_select %p326, %s23, 0
      %s328 = sadd.s32 %s327, %s325
      %s329 = scalar_lea.vmem %s5, %s328
      %p330 = scmp.lt.s32.totalorder %s22, 1
      %s331 = scalar_select %p330, %s22, 1
      %p332 = scmp.lt.s32.totalorder %s23, 0
      %s333 = scalar_select %p332, %s23, 0
      %s334 = sadd.s32 %s333, %s331
      %s335 = scalar_lea.vmem %s6, %s334
      %v337 = vld [vmem:[%s308] sm:$0xc]
      %v338 = vld [vmem:[%s308 + $0x4] sm:$0xf]
      %v339 = vld [vmem:[%s308 + $0x8] sm:$0xf]
      %v340 = vld [vmem:[%s308 + $0xc] sm:$0xf]
      %v341 = vld [vmem:[%s308 + $0x10] sm:$0xf]
      %v342 = vld [vmem:[%s308 + $0x14] sm:$0xf]
      %v343 = vld [vmem:[%s308 + $0x18] sm:$0xf]
      %v344 = vld [vmem:[%s308 + $0x1c] sm:$0xf]
      %v345 = vld [vmem:[%s308 + $0x20] sm:$0xf]
      %v346 = vld [vmem:[%s308 + $0x24] sm:$0xf]
      %v347 = vld [vmem:[%s308 + $0x28] sm:$0xf]
      %v348 = vld [vmem:[%s308 + $0x2c] sm:$0xf]
      %v349 = vld [vmem:[%s308 + $0x30] sm:$0xf]
      %v350 = vld [vmem:[%s308 + $0x34] sm:$0xf]
      %v351 = vld [vmem:[%s308 + $0x38] sm:$0xf]
      %v352 = vld [vmem:[%s308 + $0x3c] sm:$0xf]
      %v353 = vld [vmem:[%s308 + $0x40] sm:$0xf]
      %v354 = vld [vmem:[%s308 + $0x44] sm:$0xf]
      %v355 = vld [vmem:[%s308 + $0x48] sm:$0xf]
      %v356 = vld [vmem:[%s308 + $0x4c] sm:$0xf]
      %v357 = vld [vmem:[%s308 + $0x50] sm:$0xf]
      %v358 = vld [vmem:[%s308 + $0x54] sm:$0xf]
      %v359 = vld [vmem:[%s308 + $0x58] sm:$0xf]
      %v360 = vld [vmem:[%s308 + $0x5c] sm:$0xf]
      %v361 = vld [vmem:[%s308 + $0x60] sm:$0xf]
      %v362 = vld [vmem:[%s308 + $0x64] sm:$0xf]
      %v363 = vld [vmem:[%s308 + $0x68] sm:$0xf]
      %v364 = vld [vmem:[%s308 + $0x6c] sm:$0xf]
      %v365 = vld [vmem:[%s308 + $0x70] sm:$0xf]
      %v366 = vld [vmem:[%s308 + $0x74] sm:$0xf]
      %v367 = vld [vmem:[%s308 + $0x78] sm:$0xf]
      %v368 = vld [vmem:[%s308 + $0x7c] sm:$0xf]
      %v369 = vld [vmem:[%s308 + $0x80] sm:$0xf]
      %v370 = vld [vmem:[%s308 + $0x84] sm:$0xf]
      %v371 = vld [vmem:[%s308 + $0x88] sm:$0xf]
      %v372 = vld [vmem:[%s308 + $0x8c] sm:$0xf]
      %v373 = vld [vmem:[%s308 + $0x90] sm:$0x7]
      %v374 = vld [vmem:[%s312] sm:$0xf]
      %v375 = vld [vmem:[%s312 + $0x4] sm:$0xf]
      %v376 = vld [vmem:[%s312 + $0x8] sm:$0xf]
      %v377 = vld [vmem:[%s312 + $0xc] sm:$0xf]
      %v378 = vld [vmem:[%s308] sm:$0x8]
      %s379 = scalar_lea.vmem %s312, 16
      %v380 = vld [vmem:[%s379] sm:$0xf]
      %v381 = vld [vmem:[%s379 + $0x4] sm:$0xf]
      %v382 = vld [vmem:[%s379 + $0x8] sm:$0xf]
      %v383 = vld [vmem:[%s379 + $0xc] sm:$0xf]
      %v421 = vunpack.c.l.b16 %v378
      %v422 = vunpack.c.l.b16 %v338
      %v423 = vunpack.c.l.b16 %v339
      %v424 = vunpack.c.l.b16 %v340
      %v425 = vunpack.c.l.b16 %v341
      %v426 = vunpack.c.l.b16 %v342
      %v427 = vunpack.c.l.b16 %v343
      %v428 = vunpack.c.l.b16 %v344
      %v429 = vunpack.c.l.b16 %v345
      %v430 = vunpack.c.l.b16 %v346
      %v431 = vunpack.c.l.b16 %v347
      %v432 = vunpack.c.l.b16 %v348
      %v433 = vunpack.c.l.b16 %v349
      %v434 = vunpack.c.l.b16 %v350
      %v435 = vunpack.c.l.b16 %v351
      %v436 = vunpack.c.l.b16 %v352
      %v437 = vunpack.c.l.b16 %v353
      %v438 = vunpack.c.l.b16 %v354
      %v439 = vunpack.c.l.b16 %v355
      %v440 = vunpack.c.l.b16 %v356
      %v441 = vunpack.c.l.b16 %v357
      %v442 = vunpack.c.l.b16 %v358
      %v443 = vunpack.c.l.b16 %v359
      %v444 = vunpack.c.l.b16 %v360
      %v445 = vunpack.c.l.b16 %v361
      %v446 = vunpack.c.l.b16 %v362
      %v447 = vunpack.c.l.b16 %v363
      %v448 = vunpack.c.l.b16 %v364
      %v449 = vunpack.c.l.b16 %v365
      %v450 = vunpack.c.l.b16 %v366
      %v451 = vunpack.c.l.b16 %v367
      %v452 = vunpack.c.l.b16 %v368
      %v453 = vunpack.c.l.b16 %v369
      %v454 = vunpack.c.l.b16 %v370
      %v455 = vunpack.c.l.b16 %v371
      %v456 = vunpack.c.l.b16 %v372
      %v457 = vunpack.c.l.b16 %v373
      %v458 = vpack.c.b16 %v422, %v421
      %v459 = vpack.c.b16 %v424, %v423
      %v460 = vpack.c.b16 %v426, %v425
      %v461 = vpack.c.b16 %v428, %v427
      %v462 = vpack.c.b16 %v430, %v429
      %v463 = vpack.c.b16 %v432, %v431
      %v464 = vpack.c.b16 %v434, %v433
      %v465 = vpack.c.b16 %v436, %v435
      %v466 = vpack.c.b16 %v438, %v437
      %v467 = vpack.c.b16 %v440, %v439
      %v468 = vpack.c.b16 %v442, %v441
      %v469 = vpack.c.b16 %v444, %v443
      %v470 = vpack.c.b16 %v446, %v445
      %v471 = vpack.c.b16 %v448, %v447
      %v472 = vpack.c.b16 %v450, %v449
      %v473 = vpack.c.b16 %v452, %v451
      %v474 = vpack.c.b16 %v454, %v453
      %v475 = vpack.c.b16 %v456, %v455
      %v476 = vpack.c.b16 %v457, %v457
      %vm477 = vcmask 1044480
      %v478 = vrot.slane %v458, 3
      %v479 = vrot.slane %v459, 3
      %v480 = vsel %vm477, %v478, %v479
      %v481 = vrot.slane %v460, 3
      %v482 = vsel %vm477, %v479, %v481
      %v483 = vrot.slane %v461, 3
      %v484 = vsel %vm477, %v481, %v483
      %v485 = vrot.slane %v462, 3
      %v486 = vsel %vm477, %v483, %v485
      %v487 = vrot.slane %v463, 3
      %v488 = vsel %vm477, %v485, %v487
      %v489 = vrot.slane %v464, 3
      %v490 = vsel %vm477, %v487, %v489
      %v491 = vrot.slane %v465, 3
      %v492 = vsel %vm477, %v489, %v491
      %v493 = vrot.slane %v466, 3
      %v494 = vsel %vm477, %v491, %v493
      %v495 = vrot.slane %v467, 3
      %v496 = vsel %vm477, %v493, %v495
      %v497 = vrot.slane %v468, 3
      %v498 = vsel %vm477, %v495, %v497
      %v499 = vrot.slane %v469, 3
      %v500 = vsel %vm477, %v497, %v499
      %v501 = vrot.slane %v470, 3
      %v502 = vsel %vm477, %v499, %v501
      %v503 = vrot.slane %v471, 3
      %v504 = vsel %vm477, %v501, %v503
      %v505 = vrot.slane %v472, 3
      %v506 = vsel %vm477, %v503, %v505
      %v507 = vrot.slane %v473, 3
      %v508 = vsel %vm477, %v505, %v507
      %v509 = vrot.slane %v474, 3
      %v510 = vsel %vm477, %v507, %v509
      %v511 = vrot.slane %v475, 3
      %v512 = vsel %vm477, %v509, %v511
      %v513 = vrot.slane %v476, 3
      %v514 = vsel %vm477, %v511, %v513
      %v519 = vunpack.c.l.b16 %v380
      %v520 = vunpack.c.l.b16 %v381
      %v521 = vunpack.c.l.b16 %v382
      %v522 = vunpack.c.l.b16 %v383
      %v523 = vpack.c.b16 %v520, %v519
      %v524 = vpack.c.b16 %v522, %v521
      %vm527 = vcmask 261120
      %v529 = vsel %vm527, %v480, 0
      %v532 = vsel %vm527, %v482, 0
      %v535 = vsel %vm527, %v484, 0
      %v538 = vsel %vm527, %v486, 0
      %v541 = vsel %vm527, %v488, 0
      %v544 = vsel %vm527, %v490, 0
      %v547 = vsel %vm527, %v492, 0
      %v550 = vsel %vm527, %v494, 0
      %v553 = vsel %vm527, %v496, 0
      %v556 = vsel %vm527, %v498, 0
      %v559 = vsel %vm527, %v500, 0
      %v562 = vsel %vm527, %v502, 0
      %v565 = vsel %vm527, %v504, 0
      %v568 = vsel %vm527, %v506, 0
      %v571 = vsel %vm527, %v508, 0
      %v574 = vsel %vm527, %v510, 0
      %v577 = vsel %vm527, %v512, 0
      %v580 = vsel %vm527, %v514, 0
      %582 = vmatprep.subr.bf16.mxu0 0
      %583 = vmatpush1.bf16.msra.mxu0 %v523
      %584 = vmatprep.subr.bf16.mxu0 0
      %585 = vmatpush1.bf16.msra.mxu0 %v524
      %586 = vmatprep.subr.bf16.mxu0 0
      %587 = vmatpush1.bf16.msra.mxu0 0
      %588 = vmatprep.subr.bf16.mxu0 0
      %589 = vmatpush1.bf16.msra.mxu0 0
      %590 = vmatprep.subr.bf16.mxu0 0
      %591 = vmatpush1.bf16.msra.mxu0 0
      %592 = vmatprep.subr.bf16.mxu0 0
      %593 = vmatpush1.bf16.msra.mxu0 0
      %594 = vmatprep.subr.bf16.mxu0 0
      %595 = vmatpush1.bf16.msra.mxu0 0
      %596 = vmatprep.subr.bf16.mxu0 0
      %597 = vmatpush1.bf16.msra.mxu0 0
      %598 = vmatprep.subr.bf16.mxu0 0
      %599 = vmatpush1.bf16.msra.mxu0 0
      %600 = vmatprep.subr.bf16.mxu0 0
      %601 = vmatpush1.bf16.msra.mxu0 0
      %602 = vmatprep.subr.bf16.mxu0 0
      %603 = vmatpush1.bf16.msra.mxu0 0
      %604 = vmatprep.subr.bf16.mxu0 0
      %605 = vmatpush1.bf16.msra.mxu0 0
      %606 = vmatprep.subr.bf16.mxu0 0
      %607 = vmatpush1.bf16.msra.mxu0 0
      %608 = vmatprep.subr.bf16.mxu0 0
      %609 = vmatpush1.bf16.msra.mxu0 0
      %610 = vmatprep.subr.bf16.mxu0 0
      %611 = vmatpush1.bf16.msra.mxu0 0
      %612 = vmatprep.subr.bf16.mxu0 0
      %613 = vmatpush1.bf16.msra.mxu0 0
      %614 = vmatprep.mubr.bf16.mxu0 0
      %615 = vmatmul.mubr.bf16.gmra.mrb[0].mxu0 %v529
      %v616 = vpop.f32.mrb[0].mxu0
      %v617 = vadd.f32 0.0, %v616
      %v618 = vpop.f32.mrb[0].mxu0
      %v619 = vpop.f32.mrb[0].mxu0
      %v620 = vadd.f32 0.0, %v619
      %v621 = vpop.f32.mrb[0].mxu0
      %622 = vmatprep.mubr.bf16.mxu0 0
      %623 = vmatmul.mubr.bf16.gmra.mrb[0].mxu0 %v532
      %v624 = vpop.f32.mrb[0].mxu0
      %v625 = vadd.f32 0.0, %v624
      %v626 = vpop.f32.mrb[0].mxu0
      %v627 = vpop.f32.mrb[0].mxu0
      %v628 = vadd.f32 0.0, %v627
      %v629 = vpop.f32.mrb[0].mxu0
      %630 = vmatprep.mubr.bf16.mxu0 0
      %631 = vmatmul.mubr.bf16.gmra.mrb[0].mxu0 %v535
      %v632 = vpop.f32.mrb[0].mxu0
      %v633 = vadd.f32 0.0, %v632
      %v634 = vpop.f32.mrb[0].mxu0
      %v635 = vpop.f32.mrb[0].mxu0
      %v636 = vadd.f32 0.0, %v635
      %v637 = vpop.f32.mrb[0].mxu0
      %638 = vmatprep.mubr.bf16.mxu0 0
      %639 = vmatmul.mubr.bf16.gmra.mrb[0].mxu0 %v538
      %v640 = vpop.f32.mrb[0].mxu0
      %v641 = vadd.f32 0.0, %v640
      %v642 = vpop.f32.mrb[0].mxu0
      %v643 = vpop.f32.mrb[0].mxu0
      %v644 = vadd.f32 0.0, %v643
      %v645 = vpop.f32.mrb[0].mxu0
      %646 = vmatprep.mubr.bf16.mxu0 0
      %647 = vmatmul.mubr.bf16.gmra.mrb[0].mxu0 %v541
      %v648 = vpop.f32.mrb[0].mxu0
      %v649 = vadd.f32 0.0, %v648
      %v650 = vpop.f32.mrb[0].mxu0
      %v651 = vpop.f32.mrb[0].mxu0
      %v652 = vadd.f32 0.0, %v651
      %v653 = vpop.f32.mrb[0].mxu0
      %654 = vmatprep.mubr.bf16.mxu0 0
      %655 = vmatmul.mubr.bf16.gmra.mrb[0].mxu0 %v544
      %v656 = vpop.f32.mrb[0].mxu0
      %v657 = vadd.f32 0.0, %v656
      %v658 = vpop.f32.mrb[0].mxu0
      %v659 = vpop.f32.mrb[0].mxu0
      %v660 = vadd.f32 0.0, %v659
      %v661 = vpop.f32.mrb[0].mxu0
      %662 = vmatprep.mubr.bf16.mxu0 0
      %663 = vmatmul.mubr.bf16.gmra.mrb[0].mxu0 %v547
      %v664 = vpop.f32.mrb[0].mxu0
      %v665 = vadd.f32 0.0, %v664
      %v666 = vpop.f32.mrb[0].mxu0
      %v667 = vpop.f32.mrb[0].mxu0
      %v668 = vadd.f32 0.0, %v667
      %v669 = vpop.f32.mrb[0].mxu0
      %670 = vmatprep.mubr.bf16.mxu0 0
      %671 = vmatmul.mubr.bf16.gmra.mrb[0].mxu0 %v550
      %v672 = vpop.f32.mrb[0].mxu0
      %v673 = vadd.f32 0.0, %v672
      %v674 = vpop.f32.mrb[0].mxu0
      %v675 = vpop.f32.mrb[0].mxu0
      %v676 = vadd.f32 0.0, %v675
      %v677 = vpop.f32.mrb[0].mxu0
      %678 = vmatprep.mubr.bf16.mxu0 0
      %679 = vmatmul.mubr.bf16.gmra.mrb[0].mxu0 %v553
      %v680 = vpop.f32.mrb[0].mxu0
      %v681 = vadd.f32 0.0, %v680
      %v682 = vpop.f32.mrb[0].mxu0
      %v683 = vpop.f32.mrb[0].mxu0
      %v684 = vadd.f32 0.0, %v683
      %v685 = vpop.f32.mrb[0].mxu0
      %686 = vmatprep.mubr.bf16.mxu0 0
      %687 = vmatmul.mubr.bf16.gmra.mrb[0].mxu0 %v556
      %v688 = vpop.f32.mrb[0].mxu0
      %v689 = vadd.f32 0.0, %v688
      %v690 = vpop.f32.mrb[0].mxu0
      %v691 = vpop.f32.mrb[0].mxu0
      %v692 = vadd.f32 0.0, %v691
      %v693 = vpop.f32.mrb[0].mxu0
      %694 = vmatprep.mubr.bf16.mxu0 0
      %695 = vmatmul.mubr.bf16.gmra.mrb[0].mxu0 %v559
      %v696 = vpop.f32.mrb[0].mxu0
      %v697 = vadd.f32 0.0, %v696
      %v698 = vpop.f32.mrb[0].mxu0
      %v699 = vpop.f32.mrb[0].mxu0
      %v700 = vadd.f32 0.0, %v699
      %v701 = vpop.f32.mrb[0].mxu0
      %702 = vmatprep.mubr.bf16.mxu0 0
      %703 = vmatmul.mubr.bf16.gmra.mrb[0].mxu0 %v562
      %v704 = vpop.f32.mrb[0].mxu0
      %v705 = vadd.f32 0.0, %v704
      %v706 = vpop.f32.mrb[0].mxu0
      %v707 = vpop.f32.mrb[0].mxu0
      %v708 = vadd.f32 0.0, %v707
      %v709 = vpop.f32.mrb[0].mxu0
      %710 = vmatprep.mubr.bf16.mxu0 0
      %711 = vmatmul.mubr.bf16.gmra.mrb[0].mxu0 %v565
      %v712 = vpop.f32.mrb[0].mxu0
      %v713 = vadd.f32 0.0, %v712
      %v714 = vpop.f32.mrb[0].mxu0
      %v715 = vpop.f32.mrb[0].mxu0
      %v716 = vadd.f32 0.0, %v715
      %v717 = vpop.f32.mrb[0].mxu0
      %718 = vmatprep.mubr.bf16.mxu0 0
      %719 = vmatmul.mubr.bf16.gmra.mrb[0].mxu0 %v568
      %v720 = vpop.f32.mrb[0].mxu0
      %v721 = vadd.f32 0.0, %v720
      %v722 = vpop.f32.mrb[0].mxu0
      %v723 = vpop.f32.mrb[0].mxu0
      %v724 = vadd.f32 0.0, %v723
      %v725 = vpop.f32.mrb[0].mxu0
      %726 = vmatprep.mubr.bf16.mxu0 0
      %727 = vmatmul.mubr.bf16.gmra.mrb[0].mxu0 %v571
      %v728 = vpop.f32.mrb[0].mxu0
      %v729 = vadd.f32 0.0, %v728
      %v730 = vpop.f32.mrb[0].mxu0
      %v731 = vpop.f32.mrb[0].mxu0
      %v732 = vadd.f32 0.0, %v731
      %v733 = vpop.f32.mrb[0].mxu0
      %734 = vmatprep.mubr.bf16.mxu0 0
      %735 = vmatmul.mubr.bf16.gmra.mrb[0].mxu0 %v574
      %v736 = vpop.f32.mrb[0].mxu0
      %v737 = vadd.f32 0.0, %v736
      %v738 = vpop.f32.mrb[0].mxu0
      %v739 = vpop.f32.mrb[0].mxu0
      %v740 = vadd.f32 0.0, %v739
      %v741 = vpop.f32.mrb[0].mxu0
      %742 = vmatprep.mubr.bf16.mxu0 0
      %743 = vmatmul.mubr.bf16.gmra.mrb[0].mxu0 %v577
      %v744 = vpop.f32.mrb[0].mxu0
      %v745 = vadd.f32 0.0, %v744
      %v746 = vpop.f32.mrb[0].mxu0
      %v747 = vpop.f32.mrb[0].mxu0
      %v748 = vadd.f32 0.0, %v747
      %v749 = vpop.f32.mrb[0].mxu0
      %750 = vmatprep.mubr.bf16.mxu0 0
      %751 = vmatmul.mubr.bf16.gmra.mrb[0].mxu0 %v580
      %v752 = vpop.f32.mrb[0].mxu0
      %v753 = vadd.f32 0.0, %v752
      %v754 = vpop.f32.mrb[0].mxu0
      %v755 = vpop.f32.mrb[0].mxu0
      %v756 = vadd.f32 0.0, %v755
      %v757 = vpop.f32.mrb[0].mxu0
      %758 = vdwg.mxu0
      %v760 = vunpack.c.l.b16 %v337
      %v761 = vpack.c.b16 %v422, %v760
      %vm762 = vsmask.f32 5376
      %v764 = vshrl.u32 %v761, 16
      %v766 = vrot.slane %v764, 2
      %v767 = vshll.u32 %v761, 16
      %v769 = vrot.slane %v767, 3
      %v770 = vor.u32 %v766, %v769
      %v772 = vshrl.u32 %v459, 16
      %v774 = vrot.slane %v772, 2
      %v775 = vshll.u32 %v459, 16
      %v777 = vrot.slane %v775, 3
      %v778 = vor.u32 %v774, %v777
      %v779 = vsel %vm762, %v770, %v778
      %v781 = vshrl.u32 %v460, 16
      %v783 = vrot.slane %v781, 2
      %v784 = vshll.u32 %v460, 16
      %v786 = vrot.slane %v784, 3
      %v787 = vor.u32 %v783, %v786
      %v788 = vsel %vm762, %v778, %v787
      %v790 = vshrl.u32 %v461, 16
      %v792 = vrot.slane %v790, 2
      %v793 = vshll.u32 %v461, 16
      %v795 = vrot.slane %v793, 3
      %v796 = vor.u32 %v792, %v795
      %v797 = vsel %vm762, %v787, %v796
      %v799 = vshrl.u32 %v462, 16
      %v801 = vrot.slane %v799, 2
      %v802 = vshll.u32 %v462, 16
      %v804 = vrot.slane %v802, 3
      %v805 = vor.u32 %v801, %v804
      %v806 = vsel %vm762, %v796, %v805
      %v808 = vshrl.u32 %v463, 16
      %v810 = vrot.slane %v808, 2
      %v811 = vshll.u32 %v463, 16
      %v813 = vrot.slane %v811, 3
      %v814 = vor.u32 %v810, %v813
      %v815 = vsel %vm762, %v805, %v814
      %v817 = vshrl.u32 %v464, 16
      %v819 = vrot.slane %v817, 2
      %v820 = vshll.u32 %v464, 16
      %v822 = vrot.slane %v820, 3
      %v823 = vor.u32 %v819, %v822
      %v824 = vsel %vm762, %v814, %v823
      %v826 = vshrl.u32 %v465, 16
      %v828 = vrot.slane %v826, 2
      %v829 = vshll.u32 %v465, 16
      %v831 = vrot.slane %v829, 3
      %v832 = vor.u32 %v828, %v831
      %v833 = vsel %vm762, %v823, %v832
      %v835 = vshrl.u32 %v466, 16
      %v837 = vrot.slane %v835, 2
      %v838 = vshll.u32 %v466, 16
      %v840 = vrot.slane %v838, 3
      %v841 = vor.u32 %v837, %v840
      %v842 = vsel %vm762, %v832, %v841
      %v844 = vshrl.u32 %v467, 16
      %v846 = vrot.slane %v844, 2
      %v847 = vshll.u32 %v467, 16
      %v849 = vrot.slane %v847, 3
      %v850 = vor.u32 %v846, %v849
      %v851 = vsel %vm762, %v841, %v850
      %v853 = vshrl.u32 %v468, 16
      %v855 = vrot.slane %v853, 2
      %v856 = vshll.u32 %v468, 16
      %v858 = vrot.slane %v856, 3
      %v859 = vor.u32 %v855, %v858
      %v860 = vsel %vm762, %v850, %v859
      %v862 = vshrl.u32 %v469, 16
      %v864 = vrot.slane %v862, 2
      %v865 = vshll.u32 %v469, 16
      %v867 = vrot.slane %v865, 3
      %v868 = vor.u32 %v864, %v867
      %v869 = vsel %vm762, %v859, %v868
      %v871 = vshrl.u32 %v470, 16
      %v873 = vrot.slane %v871, 2
      %v874 = vshll.u32 %v470, 16
      %v876 = vrot.slane %v874, 3
      %v877 = vor.u32 %v873, %v876
      %v878 = vsel %vm762, %v868, %v877
      %v880 = vshrl.u32 %v471, 16
      %v882 = vrot.slane %v880, 2
      %v883 = vshll.u32 %v471, 16
      %v885 = vrot.slane %v883, 3
      %v886 = vor.u32 %v882, %v885
      %v887 = vsel %vm762, %v877, %v886
      %v889 = vshrl.u32 %v472, 16
      %v891 = vrot.slane %v889, 2
      %v892 = vshll.u32 %v472, 16
      %v894 = vrot.slane %v892, 3
      %v895 = vor.u32 %v891, %v894
      %v896 = vsel %vm762, %v886, %v895
      %v898 = vshrl.u32 %v473, 16
      %v900 = vrot.slane %v898, 2
      %v901 = vshll.u32 %v473, 16
      %v903 = vrot.slane %v901, 3
      %v904 = vor.u32 %v900, %v903
      %v905 = vsel %vm762, %v895, %v904
      %v907 = vshrl.u32 %v474, 16
      %v909 = vrot.slane %v907, 2
      %v910 = vshll.u32 %v474, 16
      %v912 = vrot.slane %v910, 3
      %v913 = vor.u32 %v909, %v912
      %v914 = vsel %vm762, %v904, %v913
      %v916 = vshrl.u32 %v475, 16
      %v918 = vrot.slane %v916, 2
      %v919 = vshll.u32 %v475, 16
      %v921 = vrot.slane %v919, 3
      %v922 = vor.u32 %v918, %v921
      %v923 = vsel %vm762, %v913, %v922
      %v925 = vshrl.u32 %v476, 16
      %v927 = vrot.slane %v925, 2
      %v928 = vshll.u32 %v476, 16
      %v930 = vrot.slane %v928, 3
      %v931 = vor.u32 %v927, %v930
      %v932 = vsel %vm762, %v922, %v931
      %v937 = vunpack.c.l.b16 %v374
      %v938 = vunpack.c.l.b16 %v375
      %v939 = vunpack.c.l.b16 %v376
      %v940 = vunpack.c.l.b16 %v377
      %v941 = vpack.c.b16 %v938, %v937
      %v942 = vpack.c.b16 %v940, %v939
      %v946 = vsel %vm527, %v779, 0
      %v949 = vsel %vm527, %v788, 0
      %v952 = vsel %vm527, %v797, 0
      %v955 = vsel %vm527, %v806, 0
      %v958 = vsel %vm527, %v815, 0
      %v961 = vsel %vm527, %v824, 0
      %v964 = vsel %vm527, %v833, 0
      %v967 = vsel %vm527, %v842, 0
      %v970 = vsel %vm527, %v851, 0
      %v973 = vsel %vm527, %v860, 0
      %v976 = vsel %vm527, %v869, 0
      %v979 = vsel %vm527, %v878, 0
      %v982 = vsel %vm527, %v887, 0
      %v985 = vsel %vm527, %v896, 0
      %v988 = vsel %vm527, %v905, 0
      %v991 = vsel %vm527, %v914, 0
      %v994 = vsel %vm527, %v923, 0
      %v997 = vsel %vm527, %v932, 0
      %999 = vmatprep.subr.bf16.mxu0 0
      %1000 = vmatpush1.bf16.msra.mxu0 %v941
      %1001 = vmatprep.subr.bf16.mxu0 0
      %1002 = vmatpush1.bf16.msra.mxu0 %v942
      %1003 = vmatprep.subr.bf16.mxu0 0
      %1004 = vmatpush1.bf16.msra.mxu0 0
      %1005 = vmatprep.subr.bf16.mxu0 0
      %1006 = vmatpush1.bf16.msra.mxu0 0
      %1007 = vmatprep.subr.bf16.mxu0 0
      %1008 = vmatpush1.bf16.msra.mxu0 0
      %1009 = vmatprep.subr.bf16.mxu0 0
      %1010 = vmatpush1.bf16.msra.mxu0 0
      %1011 = vmatprep.subr.bf16.mxu0 0
      %1012 = vmatpush1.bf16.msra.mxu0 0
      %1013 = vmatprep.subr.bf16.mxu0 0
      %1014 = vmatpush1.bf16.msra.mxu0 0
      %1015 = vmatprep.subr.bf16.mxu0 0
      %1016 = vmatpush1.bf16.msra.mxu0 0
      %1017 = vmatprep.subr.bf16.mxu0 0
      %1018 = vmatpush1.bf16.msra.mxu0 0
      %1019 = vmatprep.subr.bf16.mxu0 0
      %1020 = vmatpush1.bf16.msra.mxu0 0
      %1021 = vmatprep.subr.bf16.mxu0 0
      %1022 = vmatpush1.bf16.msra.mxu0 0
      %1023 = vmatprep.subr.bf16.mxu0 0
      %1024 = vmatpush1.bf16.msra.mxu0 0
      %1025 = vmatprep.subr.bf16.mxu0 0
      %1026 = vmatpush1.bf16.msra.mxu0 0
      %1027 = vmatprep.subr.bf16.mxu0 0
      %1028 = vmatpush1.bf16.msra.mxu0 0
      %1029 = vmatprep.subr.bf16.mxu0 0
      %1030 = vmatpush1.bf16.msra.mxu0 0
      %1031 = vmatprep.mubr.bf16.mxu0 0
      %1032 = vmatmul.mubr.bf16.gmra.mrb[0].mxu0 %v946
      %v1033 = vpop.f32.mrb[0].mxu0
      %v1034 = vadd.f32 %v617, %v1033
      %v1035 = vpop.f32.mrb[0].mxu0
      %v1036 = vpop.f32.mrb[0].mxu0
      %v1037 = vadd.f32 %v620, %v1036
      %v1038 = vpop.f32.mrb[0].mxu0
      %1039 = vmatprep.mubr.bf16.mxu0 0
      %1040 = vmatmul.mubr.bf16.gmra.mrb[0].mxu0 %v949
      %v1041 = vpop.f32.mrb[0].mxu0
      %v1042 = vadd.f32 %v625, %v1041
      %v1043 = vpop.f32.mrb[0].mxu0
      %v1044 = vpop.f32.mrb[0].mxu0
      %v1045 = vadd.f32 %v628, %v1044
      %v1046 = vpop.f32.mrb[0].mxu0
      %1047 = vmatprep.mubr.bf16.mxu0 0
      %1048 = vmatmul.mubr.bf16.gmra.mrb[0].mxu0 %v952
      %v1049 = vpop.f32.mrb[0].mxu0
      %v1050 = vadd.f32 %v633, %v1049
      %v1051 = vpop.f32.mrb[0].mxu0
      %v1052 = vpop.f32.mrb[0].mxu0
      %v1053 = vadd.f32 %v636, %v1052
      %v1054 = vpop.f32.mrb[0].mxu0
      %1055 = vmatprep.mubr.bf16.mxu0 0
      %1056 = vmatmul.mubr.bf16.gmra.mrb[0].mxu0 %v955
      %v1057 = vpop.f32.mrb[0].mxu0
      %v1058 = vadd.f32 %v641, %v1057
      %v1059 = vpop.f32.mrb[0].mxu0
      %v1060 = vpop.f32.mrb[0].mxu0
      %v1061 = vadd.f32 %v644, %v1060
      %v1062 = vpop.f32.mrb[0].mxu0
      %1063 = vmatprep.mubr.bf16.mxu0 0
      %1064 = vmatmul.mubr.bf16.gmra.mrb[0].mxu0 %v958
      %v1065 = vpop.f32.mrb[0].mxu0
      %v1066 = vadd.f32 %v649, %v1065
      %v1067 = vpop.f32.mrb[0].mxu0
      %v1068 = vpop.f32.mrb[0].mxu0
      %v1069 = vadd.f32 %v652, %v1068
      %v1070 = vpop.f32.mrb[0].mxu0
      %1071 = vmatprep.mubr.bf16.mxu0 0
      %1072 = vmatmul.mubr.bf16.gmra.mrb[0].mxu0 %v961
      %v1073 = vpop.f32.mrb[0].mxu0
      %v1074 = vadd.f32 %v657, %v1073
      %v1075 = vpop.f32.mrb[0].mxu0
      %v1076 = vpop.f32.mrb[0].mxu0
      %v1077 = vadd.f32 %v660, %v1076
      %v1078 = vpop.f32.mrb[0].mxu0
      %1079 = vmatprep.mubr.bf16.mxu0 0
      %1080 = vmatmul.mubr.bf16.gmra.mrb[0].mxu0 %v964
      %v1081 = vpop.f32.mrb[0].mxu0
      %v1082 = vadd.f32 %v665, %v1081
      %v1083 = vpop.f32.mrb[0].mxu0
      %v1084 = vpop.f32.mrb[0].mxu0
      %v1085 = vadd.f32 %v668, %v1084
      %v1086 = vpop.f32.mrb[0].mxu0
      %1087 = vmatprep.mubr.bf16.mxu0 0
      %1088 = vmatmul.mubr.bf16.gmra.mrb[0].mxu0 %v967
      %v1089 = vpop.f32.mrb[0].mxu0
      %v1090 = vadd.f32 %v673, %v1089
      %v1091 = vpop.f32.mrb[0].mxu0
      %v1092 = vpop.f32.mrb[0].mxu0
      %v1093 = vadd.f32 %v676, %v1092
      %v1094 = vpop.f32.mrb[0].mxu0
      %1095 = vmatprep.mubr.bf16.mxu0 0
      %1096 = vmatmul.mubr.bf16.gmra.mrb[0].mxu0 %v970
      %v1097 = vpop.f32.mrb[0].mxu0
      %v1098 = vadd.f32 %v681, %v1097
      %v1099 = vpop.f32.mrb[0].mxu0
      %v1100 = vpop.f32.mrb[0].mxu0
      %v1101 = vadd.f32 %v684, %v1100
      %v1102 = vpop.f32.mrb[0].mxu0
      %1103 = vmatprep.mubr.bf16.mxu0 0
      %1104 = vmatmul.mubr.bf16.gmra.mrb[0].mxu0 %v973
      %v1105 = vpop.f32.mrb[0].mxu0
      %v1106 = vadd.f32 %v689, %v1105
      %v1107 = vpop.f32.mrb[0].mxu0
      %v1108 = vpop.f32.mrb[0].mxu0
      %v1109 = vadd.f32 %v692, %v1108
      %v1110 = vpop.f32.mrb[0].mxu0
      %1111 = vmatprep.mubr.bf16.mxu0 0
      %1112 = vmatmul.mubr.bf16.gmra.mrb[0].mxu0 %v976
      %v1113 = vpop.f32.mrb[0].mxu0
      %v1114 = vadd.f32 %v697, %v1113
      %v1115 = vpop.f32.mrb[0].mxu0
      %v1116 = vpop.f32.mrb[0].mxu0
      %v1117 = vadd.f32 %v700, %v1116
      %v1118 = vpop.f32.mrb[0].mxu0
      %1119 = vmatprep.mubr.bf16.mxu0 0
      %1120 = vmatmul.mubr.bf16.gmra.mrb[0].mxu0 %v979
      %v1121 = vpop.f32.mrb[0].mxu0
      %v1122 = vadd.f32 %v705, %v1121
      %v1123 = vpop.f32.mrb[0].mxu0
      %v1124 = vpop.f32.mrb[0].mxu0
      %v1125 = vadd.f32 %v708, %v1124
      %v1126 = vpop.f32.mrb[0].mxu0
      %1127 = vmatprep.mubr.bf16.mxu0 0
      %1128 = vmatmul.mubr.bf16.gmra.mrb[0].mxu0 %v982
      %v1129 = vpop.f32.mrb[0].mxu0
      %v1130 = vadd.f32 %v713, %v1129
      %v1131 = vpop.f32.mrb[0].mxu0
      %v1132 = vpop.f32.mrb[0].mxu0
      %v1133 = vadd.f32 %v716, %v1132
      %v1134 = vpop.f32.mrb[0].mxu0
      %1135 = vmatprep.mubr.bf16.mxu0 0
      %1136 = vmatmul.mubr.bf16.gmra.mrb[0].mxu0 %v985
      %v1137 = vpop.f32.mrb[0].mxu0
      %v1138 = vadd.f32 %v721, %v1137
      %v1139 = vpop.f32.mrb[0].mxu0
      %v1140 = vpop.f32.mrb[0].mxu0
      %v1141 = vadd.f32 %v724, %v1140
      %v1142 = vpop.f32.mrb[0].mxu0
      %1143 = vmatprep.mubr.bf16.mxu0 0
      %1144 = vmatmul.mubr.bf16.gmra.mrb[0].mxu0 %v988
      %v1145 = vpop.f32.mrb[0].mxu0
      %v1146 = vadd.f32 %v729, %v1145
      %v1147 = vpop.f32.mrb[0].mxu0
      %v1148 = vpop.f32.mrb[0].mxu0
      %v1149 = vadd.f32 %v732, %v1148
      %v1150 = vpop.f32.mrb[0].mxu0
      %1151 = vmatprep.mubr.bf16.mxu0 0
      %1152 = vmatmul.mubr.bf16.gmra.mrb[0].mxu0 %v991
      %v1153 = vpop.f32.mrb[0].mxu0
      %v1154 = vadd.f32 %v737, %v1153
      %v1155 = vpop.f32.mrb[0].mxu0
      %v1156 = vpop.f32.mrb[0].mxu0
      %v1157 = vadd.f32 %v740, %v1156
      %v1158 = vpop.f32.mrb[0].mxu0
      %1159 = vmatprep.mubr.bf16.mxu0 0
      %1160 = vmatmul.mubr.bf16.gmra.mrb[0].mxu0 %v994
      %v1161 = vpop.f32.mrb[0].mxu0
      %v1162 = vadd.f32 %v745, %v1161
      %v1163 = vpop.f32.mrb[0].mxu0
      %v1164 = vpop.f32.mrb[0].mxu0
      %v1165 = vadd.f32 %v748, %v1164
      %v1166 = vpop.f32.mrb[0].mxu0
      %1167 = vmatprep.mubr.bf16.mxu0 0
      %1168 = vmatmul.mubr.bf16.gmra.mrb[0].mxu0 %v997
      %v1169 = vpop.f32.mrb[0].mxu0
      %v1170 = vadd.f32 %v753, %v1169
      %v1171 = vpop.f32.mrb[0].mxu0
      %v1172 = vpop.f32.mrb[0].mxu0
      %v1173 = vadd.f32 %v756, %v1172
      %v1174 = vpop.f32.mrb[0].mxu0
      %1175 = vdwg.mxu0
      %v1176 = vld [vmem:[%s308 + $0x90] sm:$0xf]
      %s1177 = scalar_lea.vmem %s312, 32
      %v1178 = vld [vmem:[%s1177] sm:$0xf]
      %v1179 = vld [vmem:[%s1177 + $0x4] sm:$0xf]
      %v1180 = vld [vmem:[%s1177 + $0x8] sm:$0xf]
      %v1181 = vld [vmem:[%s1177 + $0xc] sm:$0xf]
      %v1183 = vunpack.c.l.b16 %v1176
      %v1184 = vpack.c.b16 %v1183, %v1183
      %vm1185 = vsmask.f32 4352
      %v1187 = vshrl.u32 %v458, 16
      %v1189 = vrot.slane %v1187, 3
      %v1190 = vshll.u32 %v458, 16
      %v1192 = vrot.slane %v1190, 4
      %v1193 = vor.u32 %v1189, %v1192
      %v1194 = vrot.slane %v772, 3
      %v1195 = vrot.slane %v775, 4
      %v1196 = vor.u32 %v1194, %v1195
      %v1197 = vsel %vm1185, %v1193, %v1196
      %v1198 = vrot.slane %v781, 3
      %v1199 = vrot.slane %v784, 4
      %v1200 = vor.u32 %v1198, %v1199
      %v1201 = vsel %vm1185, %v1196, %v1200
      %v1202 = vrot.slane %v790, 3
      %v1203 = vrot.slane %v793, 4
      %v1204 = vor.u32 %v1202, %v1203
      %v1205 = vsel %vm1185, %v1200, %v1204
      %v1206 = vrot.slane %v799, 3
      %v1207 = vrot.slane %v802, 4
      %v1208 = vor.u32 %v1206, %v1207
      %v1209 = vsel %vm1185, %v1204, %v1208
      %v1210 = vrot.slane %v808, 3
      %v1211 = vrot.slane %v811, 4
      %v1212 = vor.u32 %v1210, %v1211
      %v1213 = vsel %vm1185, %v1208, %v1212
      %v1214 = vrot.slane %v817, 3
      %v1215 = vrot.slane %v820, 4
      %v1216 = vor.u32 %v1214, %v1215
      %v1217 = vsel %vm1185, %v1212, %v1216
      %v1218 = vrot.slane %v826, 3
      %v1219 = vrot.slane %v829, 4
      %v1220 = vor.u32 %v1218, %v1219
      %v1221 = vsel %vm1185, %v1216, %v1220
      %v1222 = vrot.slane %v835, 3
      %v1223 = vrot.slane %v838, 4
      %v1224 = vor.u32 %v1222, %v1223
      %v1225 = vsel %vm1185, %v1220, %v1224
      %v1226 = vrot.slane %v844, 3
      %v1227 = vrot.slane %v847, 4
      %v1228 = vor.u32 %v1226, %v1227
      %v1229 = vsel %vm1185, %v1224, %v1228
      %v1230 = vrot.slane %v853, 3
      %v1231 = vrot.slane %v856, 4
      %v1232 = vor.u32 %v1230, %v1231
      %v1233 = vsel %vm1185, %v1228, %v1232
      %v1234 = vrot.slane %v862, 3
      %v1235 = vrot.slane %v865, 4
      %v1236 = vor.u32 %v1234, %v1235
      %v1237 = vsel %vm1185, %v1232, %v1236
      %v1238 = vrot.slane %v871, 3
      %v1239 = vrot.slane %v874, 4
      %v1240 = vor.u32 %v1238, %v1239
      %v1241 = vsel %vm1185, %v1236, %v1240
      %v1242 = vrot.slane %v880, 3
      %v1243 = vrot.slane %v883, 4
      %v1244 = vor.u32 %v1242, %v1243
      %v1245 = vsel %vm1185, %v1240, %v1244
      %v1246 = vrot.slane %v889, 3
      %v1247 = vrot.slane %v892, 4
      %v1248 = vor.u32 %v1246, %v1247
      %v1249 = vsel %vm1185, %v1244, %v1248
      %v1250 = vrot.slane %v898, 3
      %v1251 = vrot.slane %v901, 4
      %v1252 = vor.u32 %v1250, %v1251
      %v1253 = vsel %vm1185, %v1248, %v1252
      %v1254 = vrot.slane %v907, 3
      %v1255 = vrot.slane %v910, 4
      %v1256 = vor.u32 %v1254, %v1255
      %v1257 = vsel %vm1185, %v1252, %v1256
      %v1258 = vrot.slane %v916, 3
      %v1259 = vrot.slane %v919, 4
      %v1260 = vor.u32 %v1258, %v1259
      %v1261 = vsel %vm1185, %v1256, %v1260
      %v1263 = vshrl.u32 %v1184, 16
      %v1265 = vrot.slane %v1263, 3
      %v1266 = vshll.u32 %v1184, 16
      %v1268 = vrot.slane %v1266, 4
      %v1269 = vor.u32 %v1265, %v1268
      %v1270 = vsel %vm1185, %v1260, %v1269
      %v1275 = vunpack.c.l.b16 %v1178
      %v1276 = vunpack.c.l.b16 %v1179
      %v1277 = vunpack.c.l.b16 %v1180
      %v1278 = vunpack.c.l.b16 %v1181
      %v1279 = vpack.c.b16 %v1276, %v1275
      %v1280 = vpack.c.b16 %v1278, %v1277
      %v1284 = vsel %vm527, %v1197, 0
      %v1287 = vsel %vm527, %v1201, 0
      %v1290 = vsel %vm527, %v1205, 0
      %v1293 = vsel %vm527, %v1209, 0
      %v1296 = vsel %vm527, %v1213, 0
      %v1299 = vsel %vm527, %v1217, 0
      %v1302 = vsel %vm527, %v1221, 0
      %v1305 = vsel %vm527, %v1225, 0
      %v1308 = vsel %vm527, %v1229, 0
      %v1311 = vsel %vm527, %v1233, 0
      %v1314 = vsel %vm527, %v1237, 0
      %v1317 = vsel %vm527, %v1241, 0
      %v1320 = vsel %vm527, %v1245, 0
      %v1323 = vsel %vm527, %v1249, 0
      %v1326 = vsel %vm527, %v1253, 0
      %v1329 = vsel %vm527, %v1257, 0
      %v1332 = vsel %vm527, %v1261, 0
      %v1335 = vsel %vm527, %v1270, 0
      %1337 = vmatprep.subr.bf16.mxu0 0
      %1338 = vmatpush1.bf16.msra.mxu0 %v1279
      %1339 = vmatprep.subr.bf16.mxu0 0
      %1340 = vmatpush1.bf16.msra.mxu0 %v1280
      %1341 = vmatprep.subr.bf16.mxu0 0
      %1342 = vmatpush1.bf16.msra.mxu0 0
      %1343 = vmatprep.subr.bf16.mxu0 0
      %1344 = vmatpush1.bf16.msra.mxu0 0
      %1345 = vmatprep.subr.bf16.mxu0 0
      %1346 = vmatpush1.bf16.msra.mxu0 0
      %1347 = vmatprep.subr.bf16.mxu0 0
      %1348 = vmatpush1.bf16.msra.mxu0 0
      %1349 = vmatprep.subr.bf16.mxu0 0
      %1350 = vmatpush1.bf16.msra.mxu0 0
      %1351 = vmatprep.subr.bf16.mxu0 0
      %1352 = vmatpush1.bf16.msra.mxu0 0
      %1353 = vmatprep.subr.bf16.mxu0 0
      %1354 = vmatpush1.bf16.msra.mxu0 0
      %1355 = vmatprep.subr.bf16.mxu0 0
      %1356 = vmatpush1.bf16.msra.mxu0 0
      %1357 = vmatprep.subr.bf16.mxu0 0
      %1358 = vmatpush1.bf16.msra.mxu0 0
      %1359 = vmatprep.subr.bf16.mxu0 0
      %1360 = vmatpush1.bf16.msra.mxu0 0
      %1361 = vmatprep.subr.bf16.mxu0 0
      %1362 = vmatpush1.bf16.msra.mxu0 0
      %1363 = vmatprep.subr.bf16.mxu0 0
      %1364 = vmatpush1.bf16.msra.mxu0 0
      %1365 = vmatprep.subr.bf16.mxu0 0
      %1366 = vmatpush1.bf16.msra.mxu0 0
      %1367 = vmatprep.subr.bf16.mxu0 0
      %1368 = vmatpush1.bf16.msra.mxu0 0
      %1369 = vmatprep.mubr.bf16.mxu0 0
      %1370 = vmatmul.mubr.bf16.gmra.mrb[0].mxu0 %v1284
      %v1371 = vpop.f32.mrb[0].mxu0
      %v1372 = vadd.f32 0.0, %v1371
      %v1373 = vpop.f32.mrb[0].mxu0
      %v1374 = vpop.f32.mrb[0].mxu0
      %v1375 = vadd.f32 0.0, %v1374
      %v1376 = vpop.f32.mrb[0].mxu0
      %1377 = vmatprep.mubr.bf16.mxu0 0
      %1378 = vmatmul.mubr.bf16.gmra.mrb[0].mxu0 %v1287
      %v1379 = vpop.f32.mrb[0].mxu0
      %v1380 = vadd.f32 0.0, %v1379
      %v1381 = vpop.f32.mrb[0].mxu0
      %v1382 = vpop.f32.mrb[0].mxu0
      %v1383 = vadd.f32 0.0, %v1382
      %v1384 = vpop.f32.mrb[0].mxu0
      %1385 = vmatprep.mubr.bf16.mxu0 0
      %1386 = vmatmul.mubr.bf16.gmra.mrb[0].mxu0 %v1290
      %v1387 = vpop.f32.mrb[0].mxu0
      %v1388 = vadd.f32 0.0, %v1387
      %v1389 = vpop.f32.mrb[0].mxu0
      %v1390 = vpop.f32.mrb[0].mxu0
      %v1391 = vadd.f32 0.0, %v1390
      %v1392 = vpop.f32.mrb[0].mxu0
      %1393 = vmatprep.mubr.bf16.mxu0 0
      %1394 = vmatmul.mubr.bf16.gmra.mrb[0].mxu0 %v1293
      %v1395 = vpop.f32.mrb[0].mxu0
      %v1396 = vadd.f32 0.0, %v1395
      %v1397 = vpop.f32.mrb[0].mxu0
      %v1398 = vpop.f32.mrb[0].mxu0
      %v1399 = vadd.f32 0.0, %v1398
      %v1400 = vpop.f32.mrb[0].mxu0
      %1401 = vmatprep.mubr.bf16.mxu0 0
      %1402 = vmatmul.mubr.bf16.gmra.mrb[0].mxu0 %v1296
      %v1403 = vpop.f32.mrb[0].mxu0
      %v1404 = vadd.f32 0.0, %v1403
      %v1405 = vpop.f32.mrb[0].mxu0
      %v1406 = vpop.f32.mrb[0].mxu0
      %v1407 = vadd.f32 0.0, %v1406
      %v1408 = vpop.f32.mrb[0].mxu0
      %1409 = vmatprep.mubr.bf16.mxu0 0
      %1410 = vmatmul.mubr.bf16.gmra.mrb[0].mxu0 %v1299
      %v1411 = vpop.f32.mrb[0].mxu0
      %v1412 = vadd.f32 0.0, %v1411
      %v1413 = vpop.f32.mrb[0].mxu0
      %v1414 = vpop.f32.mrb[0].mxu0
      %v1415 = vadd.f32 0.0, %v1414
      %v1416 = vpop.f32.mrb[0].mxu0
      %1417 = vmatprep.mubr.bf16.mxu0 0
      %1418 = vmatmul.mubr.bf16.gmra.mrb[0].mxu0 %v1302
      %v1419 = vpop.f32.mrb[0].mxu0
      %v1420 = vadd.f32 0.0, %v1419
      %v1421 = vpop.f32.mrb[0].mxu0
      %v1422 = vpop.f32.mrb[0].mxu0
      %v1423 = vadd.f32 0.0, %v1422
      %v1424 = vpop.f32.mrb[0].mxu0
      %1425 = vmatprep.mubr.bf16.mxu0 0
      %1426 = vmatmul.mubr.bf16.gmra.mrb[0].mxu0 %v1305
      %v1427 = vpop.f32.mrb[0].mxu0
      %v1428 = vadd.f32 0.0, %v1427
      %v1429 = vpop.f32.mrb[0].mxu0
      %v1430 = vpop.f32.mrb[0].mxu0
      %v1431 = vadd.f32 0.0, %v1430
      %v1432 = vpop.f32.mrb[0].mxu0
      %1433 = vmatprep.mubr.bf16.mxu0 0
      %1434 = vmatmul.mubr.bf16.gmra.mrb[0].mxu0 %v1308
      %v1435 = vpop.f32.mrb[0].mxu0
      %v1436 = vadd.f32 0.0, %v1435
      %v1437 = vpop.f32.mrb[0].mxu0
      %v1438 = vpop.f32.mrb[0].mxu0
      %v1439 = vadd.f32 0.0, %v1438
      %v1440 = vpop.f32.mrb[0].mxu0
      %1441 = vmatprep.mubr.bf16.mxu0 0
      %1442 = vmatmul.mubr.bf16.gmra.mrb[0].mxu0 %v1311
      %v1443 = vpop.f32.mrb[0].mxu0
      %v1444 = vadd.f32 0.0, %v1443
      %v1445 = vpop.f32.mrb[0].mxu0
      %v1446 = vpop.f32.mrb[0].mxu0
      %v1447 = vadd.f32 0.0, %v1446
      %v1448 = vpop.f32.mrb[0].mxu0
      %1449 = vmatprep.mubr.bf16.mxu0 0
      %1450 = vmatmul.mubr.bf16.gmra.mrb[0].mxu0 %v1314
      %v1451 = vpop.f32.mrb[0].mxu0
      %v1452 = vadd.f32 0.0, %v1451
      %v1453 = vpop.f32.mrb[0].mxu0
      %v1454 = vpop.f32.mrb[0].mxu0
      %v1455 = vadd.f32 0.0, %v1454
      %v1456 = vpop.f32.mrb[0].mxu0
      %1457 = vmatprep.mubr.bf16.mxu0 0
      %1458 = vmatmul.mubr.bf16.gmra.mrb[0].mxu0 %v1317
      %v1459 = vpop.f32.mrb[0].mxu0
      %v1460 = vadd.f32 0.0, %v1459
      %v1461 = vpop.f32.mrb[0].mxu0
      %v1462 = vpop.f32.mrb[0].mxu0
      %v1463 = vadd.f32 0.0, %v1462
      %v1464 = vpop.f32.mrb[0].mxu0
      %1465 = vmatprep.mubr.bf16.mxu0 0
      %1466 = vmatmul.mubr.bf16.gmra.mrb[0].mxu0 %v1320
      %v1467 = vpop.f32.mrb[0].mxu0
      %v1468 = vadd.f32 0.0, %v1467
      %v1469 = vpop.f32.mrb[0].mxu0
      %v1470 = vpop.f32.mrb[0].mxu0
      %v1471 = vadd.f32 0.0, %v1470
      %v1472 = vpop.f32.mrb[0].mxu0
      %1473 = vmatprep.mubr.bf16.mxu0 0
      %1474 = vmatmul.mubr.bf16.gmra.mrb[0].mxu0 %v1323
      %v1475 = vpop.f32.mrb[0].mxu0
      %v1476 = vadd.f32 0.0, %v1475
      %v1477 = vpop.f32.mrb[0].mxu0
      %v1478 = vpop.f32.mrb[0].mxu0
      %v1479 = vadd.f32 0.0, %v1478
      %v1480 = vpop.f32.mrb[0].mxu0
      %1481 = vmatprep.mubr.bf16.mxu0 0
      %1482 = vmatmul.mubr.bf16.gmra.mrb[0].mxu0 %v1326
      %v1483 = vpop.f32.mrb[0].mxu0
      %v1484 = vadd.f32 0.0, %v1483
      %v1485 = vpop.f32.mrb[0].mxu0
      %v1486 = vpop.f32.mrb[0].mxu0
      %v1487 = vadd.f32 0.0, %v1486
      %v1488 = vpop.f32.mrb[0].mxu0
      %1489 = vmatprep.mubr.bf16.mxu0 0
      %1490 = vmatmul.mubr.bf16.gmra.mrb[0].mxu0 %v1329
      %v1491 = vpop.f32.mrb[0].mxu0
      %v1492 = vadd.f32 0.0, %v1491
      %v1493 = vpop.f32.mrb[0].mxu0
      %v1494 = vpop.f32.mrb[0].mxu0
      %v1495 = vadd.f32 0.0, %v1494
      %v1496 = vpop.f32.mrb[0].mxu0
      %1497 = vmatprep.mubr.bf16.mxu0 0
      %1498 = vmatmul.mubr.bf16.gmra.mrb[0].mxu0 %v1332
      %v1499 = vpop.f32.mrb[0].mxu0
      %v1500 = vadd.f32 0.0, %v1499
      %v1501 = vpop.f32.mrb[0].mxu0
      %v1502 = vpop.f32.mrb[0].mxu0
      %v1503 = vadd.f32 0.0, %v1502
      %v1504 = vpop.f32.mrb[0].mxu0
      %1505 = vmatprep.mubr.bf16.mxu0 0
      %1506 = vmatmul.mubr.bf16.gmra.mrb[0].mxu0 %v1335
      %v1507 = vpop.f32.mrb[0].mxu0
      %v1508 = vadd.f32 0.0, %v1507
      %v1509 = vpop.f32.mrb[0].mxu0
      %v1510 = vpop.f32.mrb[0].mxu0
      %v1511 = vadd.f32 0.0, %v1510
      %v1512 = vpop.f32.mrb[0].mxu0
      %1513 = vdwg.mxu0
      %v1514 = vadd.f32 %v1034, %v1372
      %v1515 = vadd.f32 %v1037, %v1375
      %v1516 = vadd.f32 %v1042, %v1380
      %v1517 = vadd.f32 %v1045, %v1383
      %v1518 = vadd.f32 %v1050, %v1388
      %v1519 = vadd.f32 %v1053, %v1391
      %v1520 = vadd.f32 %v1058, %v1396
      %v1521 = vadd.f32 %v1061, %v1399
      %v1522 = vadd.f32 %v1066, %v1404
      %v1523 = vadd.f32 %v1069, %v1407
      %v1524 = vadd.f32 %v1074, %v1412
      %v1525 = vadd.f32 %v1077, %v1415
      %v1526 = vadd.f32 %v1082, %v1420
      %v1527 = vadd.f32 %v1085, %v1423
      %v1528 = vadd.f32 %v1090, %v1428
      %v1529 = vadd.f32 %v1093, %v1431
      %v1530 = vadd.f32 %v1098, %v1436
      %v1531 = vadd.f32 %v1101, %v1439
      %v1532 = vadd.f32 %v1106, %v1444
      %v1533 = vadd.f32 %v1109, %v1447
      %v1534 = vadd.f32 %v1114, %v1452
      %v1535 = vadd.f32 %v1117, %v1455
      %v1536 = vadd.f32 %v1122, %v1460
      %v1537 = vadd.f32 %v1125, %v1463
      %v1538 = vadd.f32 %v1130, %v1468
      %v1539 = vadd.f32 %v1133, %v1471
      %v1540 = vadd.f32 %v1138, %v1476
      %v1541 = vadd.f32 %v1141, %v1479
      %v1542 = vadd.f32 %v1146, %v1484
      %v1543 = vadd.f32 %v1149, %v1487
      %v1544 = vadd.f32 %v1154, %v1492
      %v1545 = vadd.f32 %v1157, %v1495
      %v1546 = vadd.f32 %v1162, %v1500
      %v1547 = vadd.f32 %v1165, %v1503
      %v1548 = vadd.f32 %v1170, %v1508
      %v1549 = vadd.f32 %v1173, %v1511
      %v1550 = vld [vmem:[%s308 + $0x8] sm:$0x8]
      %v1551 = vld [vmem:[%s308 + $0xc] sm:$0xf]
      %v1552 = vld [vmem:[%s308 + $0x10] sm:$0xf]
      %v1553 = vld [vmem:[%s308 + $0x14] sm:$0xf]
      %v1554 = vld [vmem:[%s308 + $0x18] sm:$0xf]
      %v1555 = vld [vmem:[%s308 + $0x1c] sm:$0xf]
      %v1556 = vld [vmem:[%s308 + $0x20] sm:$0xf]
      %v1557 = vld [vmem:[%s308 + $0x24] sm:$0xf]
      %v1558 = vld [vmem:[%s308 + $0x28] sm:$0xf]
      %v1559 = vld [vmem:[%s308 + $0x2c] sm:$0xf]
      %v1560 = vld [vmem:[%s308 + $0x30] sm:$0xf]
      %v1561 = vld [vmem:[%s308 + $0x34] sm:$0xf]
      %v1562 = vld [vmem:[%s308 + $0x38] sm:$0xf]
      %v1563 = vld [vmem:[%s308 + $0x3c] sm:$0xf]
      %v1564 = vld [vmem:[%s308 + $0x40] sm:$0xf]
      %v1565 = vld [vmem:[%s308 + $0x44] sm:$0xf]
      %v1566 = vld [vmem:[%s308 + $0x48] sm:$0xf]
      %v1567 = vld [vmem:[%s308 + $0x4c] sm:$0xf]
      %v1568 = vld [vmem:[%s308 + $0x50] sm:$0xf]
      %v1569 = vld [vmem:[%s308 + $0x54] sm:$0xf]
      %v1570 = vld [vmem:[%s308 + $0x58] sm:$0xf]
      %v1571 = vld [vmem:[%s308 + $0x5c] sm:$0xf]
      %v1572 = vld [vmem:[%s308 + $0x60] sm:$0xf]
      %v1573 = vld [vmem:[%s308 + $0x64] sm:$0xf]
      %v1574 = vld [vmem:[%s308 + $0x68] sm:$0xf]
      %v1575 = vld [vmem:[%s308 + $0x6c] sm:$0xf]
      %v1576 = vld [vmem:[%s308 + $0x70] sm:$0xf]
      %v1577 = vld [vmem:[%s308 + $0x74] sm:$0xf]
      %v1578 = vld [vmem:[%s308 + $0x78] sm:$0xf]
      %v1579 = vld [vmem:[%s308 + $0x7c] sm:$0xf]
      %v1580 = vld [vmem:[%s308 + $0x80] sm:$0xf]
      %v1581 = vld [vmem:[%s308 + $0x84] sm:$0xf]
      %v1582 = vld [vmem:[%s308 + $0x88] sm:$0xf]
      %v1583 = vld [vmem:[%s308 + $0x8c] sm:$0xf]
      %v1584 = vld [vmem:[%s308 + $0x90] sm:$0xf]
      %v1585 = vld [vmem:[%s308 + $0x94] sm:$0xf]
      %v1586 = vld [vmem:[%s308 + $0x98] sm:$0xf]
      %s1587 = scalar_lea.vmem %s312, 48
      %v1588 = vld [vmem:[%s1587] sm:$0xf]
      %v1589 = vld [vmem:[%s1587 + $0x4] sm:$0xf]
      %v1590 = vld [vmem:[%s1587 + $0x8] sm:$0xf]
      %v1591 = vld [vmem:[%s1587 + $0xc] sm:$0xf]
      %v1629 = vunpack.c.l.b16 %v1550
      %v1630 = vunpack.c.l.b16 %v1551
      %v1631 = vunpack.c.l.b16 %v1552
      %v1632 = vunpack.c.l.b16 %v1553
      %v1633 = vunpack.c.l.b16 %v1554
      %v1634 = vunpack.c.l.b16 %v1555
      %v1635 = vunpack.c.l.b16 %v1556
      %v1636 = vunpack.c.l.b16 %v1557
      %v1637 = vunpack.c.l.b16 %v1558
      %v1638 = vunpack.c.l.b16 %v1559
      %v1639 = vunpack.c.l.b16 %v1560
      %v1640 = vunpack.c.l.b16 %v1561
      %v1641 = vunpack.c.l.b16 %v1562
      %v1642 = vunpack.c.l.b16 %v1563
      %v1643 = vunpack.c.l.b16 %v1564
      %v1644 = vunpack.c.l.b16 %v1565
      %v1645 = vunpack.c.l.b16 %v1566
      %v1646 = vunpack.c.l.b16 %v1567
      %v1647 = vunpack.c.l.b16 %v1568
      %v1648 = vunpack.c.l.b16 %v1569
      %v1649 = vunpack.c.l.b16 %v1570
      %v1650 = vunpack.c.l.b16 %v1571
      %v1651 = vunpack.c.l.b16 %v1572
      %v1652 = vunpack.c.l.b16 %v1573
      %v1653 = vunpack.c.l.b16 %v1574
      %v1654 = vunpack.c.l.b16 %v1575
      %v1655 = vunpack.c.l.b16 %v1576
      %v1656 = vunpack.c.l.b16 %v1577
      %v1657 = vunpack.c.l.b16 %v1578
      %v1658 = vunpack.c.l.b16 %v1579
      %v1659 = vunpack.c.l.b16 %v1580
      %v1660 = vunpack.c.l.b16 %v1581
      %v1661 = vunpack.c.l.b16 %v1582
      %v1662 = vunpack.c.l.b16 %v1583
      %v1663 = vunpack.c.l.b16 %v1584
      %v1664 = vunpack.c.l.b16 %v1585
      %v1665 = vunpack.c.l.b16 %v1586
      %v1666 = vpack.c.b16 %v1630, %v1629
      %v1667 = vpack.c.b16 %v1632, %v1631
      %v1668 = vpack.c.b16 %v1634, %v1633
      %v1669 = vpack.c.b16 %v1636, %v1635
      %v1670 = vpack.c.b16 %v1638, %v1637
      %v1671 = vpack.c.b16 %v1640, %v1639
      %v1672 = vpack.c.b16 %v1642, %v1641
      %v1673 = vpack.c.b16 %v1644, %v1643
      %v1674 = vpack.c.b16 %v1646, %v1645
      %v1675 = vpack.c.b16 %v1648, %v1647
      %v1676 = vpack.c.b16 %v1650, %v1649
      %v1677 = vpack.c.b16 %v1652, %v1651
      %v1678 = vpack.c.b16 %v1654, %v1653
      %v1679 = vpack.c.b16 %v1656, %v1655
      %v1680 = vpack.c.b16 %v1658, %v1657
      %v1681 = vpack.c.b16 %v1660, %v1659
      %v1682 = vpack.c.b16 %v1662, %v1661
      %v1683 = vpack.c.b16 %v1664, %v1663
      %v1684 = vpack.c.b16 %v1665, %v1665
      %v1686 = vshrl.u32 %v1666, 16
      %v1688 = vrot.slane %v1686, 3
      %v1689 = vshll.u32 %v1666, 16
      %v1691 = vrot.slane %v1689, 4
      %v1692 = vor.u32 %v1688, %v1691
      %v1694 = vshrl.u32 %v1667, 16
      %v1696 = vrot.slane %v1694, 3
      %v1697 = vshll.u32 %v1667, 16
      %v1699 = vrot.slane %v1697, 4
      %v1700 = vor.u32 %v1696, %v1699
      %v1701 = vsel %vm1185, %v1692, %v1700
      %v1703 = vshrl.u32 %v1668, 16
      %v1705 = vrot.slane %v1703, 3
      %v1706 = vshll.u32 %v1668, 16
      %v1708 = vrot.slane %v1706, 4
      %v1709 = vor.u32 %v1705, %v1708
      %v1710 = vsel %vm1185, %v1700, %v1709
      %v1712 = vshrl.u32 %v1669, 16
      %v1714 = vrot.slane %v1712, 3
      %v1715 = vshll.u32 %v1669, 16
      %v1717 = vrot.slane %v1715, 4
      %v1718 = vor.u32 %v1714, %v1717
      %v1719 = vsel %vm1185, %v1709, %v1718
      %v1721 = vshrl.u32 %v1670, 16
      %v1723 = vrot.slane %v1721, 3
      %v1724 = vshll.u32 %v1670, 16
      %v1726 = vrot.slane %v1724, 4
      %v1727 = vor.u32 %v1723, %v1726
      %v1728 = vsel %vm1185, %v1718, %v1727
      %v1730 = vshrl.u32 %v1671, 16
      %v1732 = vrot.slane %v1730, 3
      %v1733 = vshll.u32 %v1671, 16
      %v1735 = vrot.slane %v1733, 4
      %v1736 = vor.u32 %v1732, %v1735
      %v1737 = vsel %vm1185, %v1727, %v1736
      %v1739 = vshrl.u32 %v1672, 16
      %v1741 = vrot.slane %v1739, 3
      %v1742 = vshll.u32 %v1672, 16
      %v1744 = vrot.slane %v1742, 4
      %v1745 = vor.u32 %v1741, %v1744
      %v1746 = vsel %vm1185, %v1736, %v1745
      %v1748 = vshrl.u32 %v1673, 16
      %v1750 = vrot.slane %v1748, 3
      %v1751 = vshll.u32 %v1673, 16
      %v1753 = vrot.slane %v1751, 4
      %v1754 = vor.u32 %v1750, %v1753
      %v1755 = vsel %vm1185, %v1745, %v1754
      %v1757 = vshrl.u32 %v1674, 16
      %v1759 = vrot.slane %v1757, 3
      %v1760 = vshll.u32 %v1674, 16
      %v1762 = vrot.slane %v1760, 4
      %v1763 = vor.u32 %v1759, %v1762
      %v1764 = vsel %vm1185, %v1754, %v1763
      %v1766 = vshrl.u32 %v1675, 16
      %v1768 = vrot.slane %v1766, 3
      %v1769 = vshll.u32 %v1675, 16
      %v1771 = vrot.slane %v1769, 4
      %v1772 = vor.u32 %v1768, %v1771
      %v1773 = vsel %vm1185, %v1763, %v1772
      %v1775 = vshrl.u32 %v1676, 16
      %v1777 = vrot.slane %v1775, 3
      %v1778 = vshll.u32 %v1676, 16
      %v1780 = vrot.slane %v1778, 4
      %v1781 = vor.u32 %v1777, %v1780
      %v1782 = vsel %vm1185, %v1772, %v1781
      %v1784 = vshrl.u32 %v1677, 16
      %v1786 = vrot.slane %v1784, 3
      %v1787 = vshll.u32 %v1677, 16
      %v1789 = vrot.slane %v1787, 4
      %v1790 = vor.u32 %v1786, %v1789
      %v1791 = vsel %vm1185, %v1781, %v1790
      %v1793 = vshrl.u32 %v1678, 16
      %v1795 = vrot.slane %v1793, 3
      %v1796 = vshll.u32 %v1678, 16
      %v1798 = vrot.slane %v1796, 4
      %v1799 = vor.u32 %v1795, %v1798
      %v1800 = vsel %vm1185, %v1790, %v1799
      %v1802 = vshrl.u32 %v1679, 16
      %v1804 = vrot.slane %v1802, 3
      %v1805 = vshll.u32 %v1679, 16
      %v1807 = vrot.slane %v1805, 4
      %v1808 = vor.u32 %v1804, %v1807
      %v1809 = vsel %vm1185, %v1799, %v1808
      %v1811 = vshrl.u32 %v1680, 16
      %v1813 = vrot.slane %v1811, 3
      %v1814 = vshll.u32 %v1680, 16
      %v1816 = vrot.slane %v1814, 4
      %v1817 = vor.u32 %v1813, %v1816
      %v1818 = vsel %vm1185, %v1808, %v1817
      %v1820 = vshrl.u32 %v1681, 16
      %v1822 = vrot.slane %v1820, 3
      %v1823 = vshll.u32 %v1681, 16
      %v1825 = vrot.slane %v1823, 4
      %v1826 = vor.u32 %v1822, %v1825
      %v1827 = vsel %vm1185, %v1817, %v1826
      %v1829 = vshrl.u32 %v1682, 16
      %v1831 = vrot.slane %v1829, 3
      %v1832 = vshll.u32 %v1682, 16
      %v1834 = vrot.slane %v1832, 4
      %v1835 = vor.u32 %v1831, %v1834
      %v1836 = vsel %vm1185, %v1826, %v1835
      %v1838 = vshrl.u32 %v1683, 16
      %v1840 = vrot.slane %v1838, 3
      %v1841 = vshll.u32 %v1683, 16
      %v1843 = vrot.slane %v1841, 4
      %v1844 = vor.u32 %v1840, %v1843
      %v1845 = vsel %vm1185, %v1835, %v1844
      %v1847 = vshrl.u32 %v1684, 16
      %v1849 = vrot.slane %v1847, 3
      %v1850 = vshll.u32 %v1684, 16
      %v1852 = vrot.slane %v1850, 4
      %v1853 = vor.u32 %v1849, %v1852
      %v1854 = vsel %vm1185, %v1844, %v1853
      %v1859 = vunpack.c.l.b16 %v1588
      %v1860 = vunpack.c.l.b16 %v1589
      %v1861 = vunpack.c.l.b16 %v1590
      %v1862 = vunpack.c.l.b16 %v1591
      %v1863 = vpack.c.b16 %v1860, %v1859
      %v1864 = vpack.c.b16 %v1862, %v1861
      %v1868 = vsel %vm527, %v1701, 0
      %v1871 = vsel %vm527, %v1710, 0
      %v1874 = vsel %vm527, %v1719, 0
      %v1877 = vsel %vm527, %v1728, 0
      %v1880 = vsel %vm527, %v1737, 0
      %v1883 = vsel %vm527, %v1746, 0
      %v1886 = vsel %vm527, %v1755, 0
      %v1889 = vsel %vm527, %v1764, 0
      %v1892 = vsel %vm527, %v1773, 0
      %v1895 = vsel %vm527, %v1782, 0
      %v1898 = vsel %vm527, %v1791, 0
      %v1901 = vsel %vm527, %v1800, 0
      %v1904 = vsel %vm527, %v1809, 0
      %v1907 = vsel %vm527, %v1818, 0
      %v1910 = vsel %vm527, %v1827, 0
      %v1913 = vsel %vm527, %v1836, 0
      %v1916 = vsel %vm527, %v1845, 0
      %v1919 = vsel %vm527, %v1854, 0
      %1921 = vmatprep.subr.bf16.mxu0 0
      %1922 = vmatpush1.bf16.msra.mxu0 %v1863
      %1923 = vmatprep.subr.bf16.mxu0 0
      %1924 = vmatpush1.bf16.msra.mxu0 %v1864
      %1925 = vmatprep.subr.bf16.mxu0 0
      %1926 = vmatpush1.bf16.msra.mxu0 0
      %1927 = vmatprep.subr.bf16.mxu0 0
      %1928 = vmatpush1.bf16.msra.mxu0 0
      %1929 = vmatprep.subr.bf16.mxu0 0
      %1930 = vmatpush1.bf16.msra.mxu0 0
      %1931 = vmatprep.subr.bf16.mxu0 0
      %1932 = vmatpush1.bf16.msra.mxu0 0
      %1933 = vmatprep.subr.bf16.mxu0 0
      %1934 = vmatpush1.bf16.msra.mxu0 0
      %1935 = vmatprep.subr.bf16.mxu0 0
      %1936 = vmatpush1.bf16.msra.mxu0 0
      %1937 = vmatprep.subr.bf16.mxu0 0
      %1938 = vmatpush1.bf16.msra.mxu0 0
      %1939 = vmatprep.subr.bf16.mxu0 0
      %1940 = vmatpush1.bf16.msra.mxu0 0
      %1941 = vmatprep.subr.bf16.mxu0 0
      %1942 = vmatpush1.bf16.msra.mxu0 0
      %1943 = vmatprep.subr.bf16.mxu0 0
      %1944 = vmatpush1.bf16.msra.mxu0 0
      %1945 = vmatprep.subr.bf16.mxu0 0
      %1946 = vmatpush1.bf16.msra.mxu0 0
      %1947 = vmatprep.subr.bf16.mxu0 0
      %1948 = vmatpush1.bf16.msra.mxu0 0
      %1949 = vmatprep.subr.bf16.mxu0 0
      %1950 = vmatpush1.bf16.msra.mxu0 0
      %1951 = vmatprep.subr.bf16.mxu0 0
      %1952 = vmatpush1.bf16.msra.mxu0 0
      %1953 = vmatprep.mubr.bf16.mxu0 0
      %1954 = vmatmul.mubr.bf16.gmra.mrb[0].mxu0 %v1868
      %v1955 = vpop.f32.mrb[0].mxu0
      %v1956 = vadd.f32 0.0, %v1955
      %v1957 = vpop.f32.mrb[0].mxu0
      %v1958 = vpop.f32.mrb[0].mxu0
      %v1959 = vadd.f32 0.0, %v1958
      %v1960 = vpop.f32.mrb[0].mxu0
      %1961 = vmatprep.mubr.bf16.mxu0 0
      %1962 = vmatmul.mubr.bf16.gmra.mrb[0].mxu0 %v1871
      %v1963 = vpop.f32.mrb[0].mxu0
      %v1964 = vadd.f32 0.0, %v1963
      %v1965 = vpop.f32.mrb[0].mxu0
      %v1966 = vpop.f32.mrb[0].mxu0
      %v1967 = vadd.f32 0.0, %v1966
      %v1968 = vpop.f32.mrb[0].mxu0
      %1969 = vmatprep.mubr.bf16.mxu0 0
      %1970 = vmatmul.mubr.bf16.gmra.mrb[0].mxu0 %v1874
      %v1971 = vpop.f32.mrb[0].mxu0
      %v1972 = vadd.f32 0.0, %v1971
      %v1973 = vpop.f32.mrb[0].mxu0
      %v1974 = vpop.f32.mrb[0].mxu0
      %v1975 = vadd.f32 0.0, %v1974
      %v1976 = vpop.f32.mrb[0].mxu0
      %1977 = vmatprep.mubr.bf16.mxu0 0
      %1978 = vmatmul.mubr.bf16.gmra.mrb[0].mxu0 %v1877
      %v1979 = vpop.f32.mrb[0].mxu0
      %v1980 = vadd.f32 0.0, %v1979
      %v1981 = vpop.f32.mrb[0].mxu0
      %v1982 = vpop.f32.mrb[0].mxu0
      %v1983 = vadd.f32 0.0, %v1982
      %v1984 = vpop.f32.mrb[0].mxu0
      %1985 = vmatprep.mubr.bf16.mxu0 0
      %1986 = vmatmul.mubr.bf16.gmra.mrb[0].mxu0 %v1880
      %v1987 = vpop.f32.mrb[0].mxu0
      %v1988 = vadd.f32 0.0, %v1987
      %v1989 = vpop.f32.mrb[0].mxu0
      %v1990 = vpop.f32.mrb[0].mxu0
      %v1991 = vadd.f32 0.0, %v1990
      %v1992 = vpop.f32.mrb[0].mxu0
      %1993 = vmatprep.mubr.bf16.mxu0 0
      %1994 = vmatmul.mubr.bf16.gmra.mrb[0].mxu0 %v1883
      %v1995 = vpop.f32.mrb[0].mxu0
      %v1996 = vadd.f32 0.0, %v1995
      %v1997 = vpop.f32.mrb[0].mxu0
      %v1998 = vpop.f32.mrb[0].mxu0
      %v1999 = vadd.f32 0.0, %v1998
      %v2000 = vpop.f32.mrb[0].mxu0
      %2001 = vmatprep.mubr.bf16.mxu0 0
      %2002 = vmatmul.mubr.bf16.gmra.mrb[0].mxu0 %v1886
      %v2003 = vpop.f32.mrb[0].mxu0
      %v2004 = vadd.f32 0.0, %v2003
      %v2005 = vpop.f32.mrb[0].mxu0
      %v2006 = vpop.f32.mrb[0].mxu0
      %v2007 = vadd.f32 0.0, %v2006
      %v2008 = vpop.f32.mrb[0].mxu0
      %2009 = vmatprep.mubr.bf16.mxu0 0
      %2010 = vmatmul.mubr.bf16.gmra.mrb[0].mxu0 %v1889
      %v2011 = vpop.f32.mrb[0].mxu0
      %v2012 = vadd.f32 0.0, %v2011
      %v2013 = vpop.f32.mrb[0].mxu0
      %v2014 = vpop.f32.mrb[0].mxu0
      %v2015 = vadd.f32 0.0, %v2014
      %v2016 = vpop.f32.mrb[0].mxu0
      %2017 = vmatprep.mubr.bf16.mxu0 0
      %2018 = vmatmul.mubr.bf16.gmra.mrb[0].mxu0 %v1892
      %v2019 = vpop.f32.mrb[0].mxu0
      %v2020 = vadd.f32 0.0, %v2019
      %v2021 = vpop.f32.mrb[0].mxu0
      %v2022 = vpop.f32.mrb[0].mxu0
      %v2023 = vadd.f32 0.0, %v2022
      %v2024 = vpop.f32.mrb[0].mxu0
      %2025 = vmatprep.mubr.bf16.mxu0 0
      %2026 = vmatmul.mubr.bf16.gmra.mrb[0].mxu0 %v1895
      %v2027 = vpop.f32.mrb[0].mxu0
      %v2028 = vadd.f32 0.0, %v2027
      %v2029 = vpop.f32.mrb[0].mxu0
      %v2030 = vpop.f32.mrb[0].mxu0
      %v2031 = vadd.f32 0.0, %v2030
      %v2032 = vpop.f32.mrb[0].mxu0
      %2033 = vmatprep.mubr.bf16.mxu0 0
      %2034 = vmatmul.mubr.bf16.gmra.mrb[0].mxu0 %v1898
      %v2035 = vpop.f32.mrb[0].mxu0
      %v2036 = vadd.f32 0.0, %v2035
      %v2037 = vpop.f32.mrb[0].mxu0
      %v2038 = vpop.f32.mrb[0].mxu0
      %v2039 = vadd.f32 0.0, %v2038
      %v2040 = vpop.f32.mrb[0].mxu0
      %2041 = vmatprep.mubr.bf16.mxu0 0
      %2042 = vmatmul.mubr.bf16.gmra.mrb[0].mxu0 %v1901
      %v2043 = vpop.f32.mrb[0].mxu0
      %v2044 = vadd.f32 0.0, %v2043
      %v2045 = vpop.f32.mrb[0].mxu0
      %v2046 = vpop.f32.mrb[0].mxu0
      %v2047 = vadd.f32 0.0, %v2046
      %v2048 = vpop.f32.mrb[0].mxu0
      %2049 = vmatprep.mubr.bf16.mxu0 0
      %2050 = vmatmul.mubr.bf16.gmra.mrb[0].mxu0 %v1904
      %v2051 = vpop.f32.mrb[0].mxu0
      %v2052 = vadd.f32 0.0, %v2051
      %v2053 = vpop.f32.mrb[0].mxu0
      %v2054 = vpop.f32.mrb[0].mxu0
      %v2055 = vadd.f32 0.0, %v2054
      %v2056 = vpop.f32.mrb[0].mxu0
      %2057 = vmatprep.mubr.bf16.mxu0 0
      %2058 = vmatmul.mubr.bf16.gmra.mrb[0].mxu0 %v1907
      %v2059 = vpop.f32.mrb[0].mxu0
      %v2060 = vadd.f32 0.0, %v2059
      %v2061 = vpop.f32.mrb[0].mxu0
      %v2062 = vpop.f32.mrb[0].mxu0
      %v2063 = vadd.f32 0.0, %v2062
      %v2064 = vpop.f32.mrb[0].mxu0
      %2065 = vmatprep.mubr.bf16.mxu0 0
      %2066 = vmatmul.mubr.bf16.gmra.mrb[0].mxu0 %v1910
      %v2067 = vpop.f32.mrb[0].mxu0
      %v2068 = vadd.f32 0.0, %v2067
      %v2069 = vpop.f32.mrb[0].mxu0
      %v2070 = vpop.f32.mrb[0].mxu0
      %v2071 = vadd.f32 0.0, %v2070
      %v2072 = vpop.f32.mrb[0].mxu0
      %2073 = vmatprep.mubr.bf16.mxu0 0
      %2074 = vmatmul.mubr.bf16.gmra.mrb[0].mxu0 %v1913
      %v2075 = vpop.f32.mrb[0].mxu0
      %v2076 = vadd.f32 0.0, %v2075
      %v2077 = vpop.f32.mrb[0].mxu0
      %v2078 = vpop.f32.mrb[0].mxu0
      %v2079 = vadd.f32 0.0, %v2078
      %v2080 = vpop.f32.mrb[0].mxu0
      %2081 = vmatprep.mubr.bf16.mxu0 0
      %2082 = vmatmul.mubr.bf16.gmra.mrb[0].mxu0 %v1916
      %v2083 = vpop.f32.mrb[0].mxu0
      %v2084 = vadd.f32 0.0, %v2083
      %v2085 = vpop.f32.mrb[0].mxu0
      %v2086 = vpop.f32.mrb[0].mxu0
      %v2087 = vadd.f32 0.0, %v2086
      %v2088 = vpop.f32.mrb[0].mxu0
      %2089 = vmatprep.mubr.bf16.mxu0 0
      %2090 = vmatmul.mubr.bf16.gmra.mrb[0].mxu0 %v1919
      %v2091 = vpop.f32.mrb[0].mxu0
      %v2092 = vadd.f32 0.0, %v2091
      %v2093 = vpop.f32.mrb[0].mxu0
      %v2094 = vpop.f32.mrb[0].mxu0
      %v2095 = vadd.f32 0.0, %v2094
      %v2096 = vpop.f32.mrb[0].mxu0
      %2097 = vdwg.mxu0
      %v2098 = vadd.f32 %v1514, %v1956
      %v2099 = vadd.f32 %v1515, %v1959
      %v2100 = vadd.f32 %v1516, %v1964
      %v2101 = vadd.f32 %v1517, %v1967
      %v2102 = vadd.f32 %v1518, %v1972
      %v2103 = vadd.f32 %v1519, %v1975
      %v2104 = vadd.f32 %v1520, %v1980
      %v2105 = vadd.f32 %v1521, %v1983
      %v2106 = vadd.f32 %v1522, %v1988
      %v2107 = vadd.f32 %v1523, %v1991
      %v2108 = vadd.f32 %v1524, %v1996
      %v2109 = vadd.f32 %v1525, %v1999
      %v2110 = vadd.f32 %v1526, %v2004
      %v2111 = vadd.f32 %v1527, %v2007
      %v2112 = vadd.f32 %v1528, %v2012
      %v2113 = vadd.f32 %v1529, %v2015
      %v2114 = vadd.f32 %v1530, %v2020
      %v2115 = vadd.f32 %v1531, %v2023
      %v2116 = vadd.f32 %v1532, %v2028
      %v2117 = vadd.f32 %v1533, %v2031
      %v2118 = vadd.f32 %v1534, %v2036
      %v2119 = vadd.f32 %v1535, %v2039
      %v2120 = vadd.f32 %v1536, %v2044
      %v2121 = vadd.f32 %v1537, %v2047
      %v2122 = vadd.f32 %v1538, %v2052
      %v2123 = vadd.f32 %v1539, %v2055
      %v2124 = vadd.f32 %v1540, %v2060
      %v2125 = vadd.f32 %v1541, %v2063
      %v2126 = vadd.f32 %v1542, %v2068
      %v2127 = vadd.f32 %v1543, %v2071
      %v2128 = vadd.f32 %v1544, %v2076
      %v2129 = vadd.f32 %v1545, %v2079
      %v2130 = vadd.f32 %v1546, %v2084
      %v2131 = vadd.f32 %v1547, %v2087
      %v2132 = vadd.f32 %v1548, %v2092
      %v2133 = vadd.f32 %v1549, %v2095
      %s2134 = scalar_lea.vmem %s312, 64
      %v2135 = vld [vmem:[%s2134] sm:$0xf]
      %v2136 = vld [vmem:[%s2134 + $0x4] sm:$0xf]
      %v2137 = vld [vmem:[%s2134 + $0x8] sm:$0xf]
      %v2138 = vld [vmem:[%s2134 + $0xc] sm:$0xf]
      %v2139 = vpack.c.b16 %v1631, %v1630
      %v2140 = vpack.c.b16 %v1633, %v1632
      %v2141 = vpack.c.b16 %v1635, %v1634
      %v2142 = vpack.c.b16 %v1637, %v1636
      %v2143 = vpack.c.b16 %v1639, %v1638
      %v2144 = vpack.c.b16 %v1641, %v1640
      %v2145 = vpack.c.b16 %v1643, %v1642
      %v2146 = vpack.c.b16 %v1645, %v1644
      %v2147 = vpack.c.b16 %v1647, %v1646
      %v2148 = vpack.c.b16 %v1649, %v1648
      %v2149 = vpack.c.b16 %v1651, %v1650
      %v2150 = vpack.c.b16 %v1653, %v1652
      %v2151 = vpack.c.b16 %v1655, %v1654
      %v2152 = vpack.c.b16 %v1657, %v1656
      %v2153 = vpack.c.b16 %v1659, %v1658
      %v2154 = vpack.c.b16 %v1661, %v1660
      %v2155 = vpack.c.b16 %v1663, %v1662
      %v2156 = vpack.c.b16 %v1665, %v1664
      %v2161 = vunpack.c.l.b16 %v2135
      %v2162 = vunpack.c.l.b16 %v2136
      %v2163 = vunpack.c.l.b16 %v2137
      %v2164 = vunpack.c.l.b16 %v2138
      %v2165 = vpack.c.b16 %v2162, %v2161
      %v2166 = vpack.c.b16 %v2164, %v2163
      %v2170 = vsel %vm527, %v2139, 0
      %v2173 = vsel %vm527, %v2140, 0
      %v2176 = vsel %vm527, %v2141, 0
      %v2179 = vsel %vm527, %v2142, 0
      %v2182 = vsel %vm527, %v2143, 0
      %v2185 = vsel %vm527, %v2144, 0
      %v2188 = vsel %vm527, %v2145, 0
      %v2191 = vsel %vm527, %v2146, 0
      %v2194 = vsel %vm527, %v2147, 0
      %v2197 = vsel %vm527, %v2148, 0
      %v2200 = vsel %vm527, %v2149, 0
      %v2203 = vsel %vm527, %v2150, 0
      %v2206 = vsel %vm527, %v2151, 0
      %v2209 = vsel %vm527, %v2152, 0
      %v2212 = vsel %vm527, %v2153, 0
      %v2215 = vsel %vm527, %v2154, 0
      %v2218 = vsel %vm527, %v2155, 0
      %v2221 = vsel %vm527, %v2156, 0
      %2223 = vmatprep.subr.bf16.mxu0 0
      %2224 = vmatpush1.bf16.msra.mxu0 %v2165
      %2225 = vmatprep.subr.bf16.mxu0 0
      %2226 = vmatpush1.bf16.msra.mxu0 %v2166
      %2227 = vmatprep.subr.bf16.mxu0 0
      %2228 = vmatpush1.bf16.msra.mxu0 0
      %2229 = vmatprep.subr.bf16.mxu0 0
      %2230 = vmatpush1.bf16.msra.mxu0 0
      %2231 = vmatprep.subr.bf16.mxu0 0
      %2232 = vmatpush1.bf16.msra.mxu0 0
      %2233 = vmatprep.subr.bf16.mxu0 0
      %2234 = vmatpush1.bf16.msra.mxu0 0
      %2235 = vmatprep.subr.bf16.mxu0 0
      %2236 = vmatpush1.bf16.msra.mxu0 0
      %2237 = vmatprep.subr.bf16.mxu0 0
      %2238 = vmatpush1.bf16.msra.mxu0 0
      %2239 = vmatprep.subr.bf16.mxu0 0
      %2240 = vmatpush1.bf16.msra.mxu0 0
      %2241 = vmatprep.subr.bf16.mxu0 0
      %2242 = vmatpush1.bf16.msra.mxu0 0
      %2243 = vmatprep.subr.bf16.mxu0 0
      %2244 = vmatpush1.bf16.msra.mxu0 0
      %2245 = vmatprep.subr.bf16.mxu0 0
      %2246 = vmatpush1.bf16.msra.mxu0 0
      %2247 = vmatprep.subr.bf16.mxu0 0
      %2248 = vmatpush1.bf16.msra.mxu0 0
      %2249 = vmatprep.subr.bf16.mxu0 0
      %2250 = vmatpush1.bf16.msra.mxu0 0
      %2251 = vmatprep.subr.bf16.mxu0 0
      %2252 = vmatpush1.bf16.msra.mxu0 0
      %2253 = vmatprep.subr.bf16.mxu0 0
      %2254 = vmatpush1.bf16.msra.mxu0 0
      %2255 = vmatprep.mubr.bf16.mxu0 0
      %2256 = vmatmul.mubr.bf16.gmra.mrb[0].mxu0 %v2170
      %v2257 = vpop.f32.mrb[0].mxu0
      %v2258 = vadd.f32 0.0, %v2257
      %v2259 = vpop.f32.mrb[0].mxu0
      %v2260 = vpop.f32.mrb[0].mxu0
      %v2261 = vadd.f32 0.0, %v2260
      %v2262 = vpop.f32.mrb[0].mxu0
      %2263 = vmatprep.mubr.bf16.mxu0 0
      %2264 = vmatmul.mubr.bf16.gmra.mrb[0].mxu0 %v2173
      %v2265 = vpop.f32.mrb[0].mxu0
      %v2266 = vadd.f32 0.0, %v2265
      %v2267 = vpop.f32.mrb[0].mxu0
      %v2268 = vpop.f32.mrb[0].mxu0
      %v2269 = vadd.f32 0.0, %v2268
      %v2270 = vpop.f32.mrb[0].mxu0
      %2271 = vmatprep.mubr.bf16.mxu0 0
      %2272 = vmatmul.mubr.bf16.gmra.mrb[0].mxu0 %v2176
      %v2273 = vpop.f32.mrb[0].mxu0
      %v2274 = vadd.f32 0.0, %v2273
      %v2275 = vpop.f32.mrb[0].mxu0
      %v2276 = vpop.f32.mrb[0].mxu0
      %v2277 = vadd.f32 0.0, %v2276
      %v2278 = vpop.f32.mrb[0].mxu0
      %2279 = vmatprep.mubr.bf16.mxu0 0
      %2280 = vmatmul.mubr.bf16.gmra.mrb[0].mxu0 %v2179
      %v2281 = vpop.f32.mrb[0].mxu0
      %v2282 = vadd.f32 0.0, %v2281
      %v2283 = vpop.f32.mrb[0].mxu0
      %v2284 = vpop.f32.mrb[0].mxu0
      %v2285 = vadd.f32 0.0, %v2284
      %v2286 = vpop.f32.mrb[0].mxu0
      %2287 = vmatprep.mubr.bf16.mxu0 0
      %2288 = vmatmul.mubr.bf16.gmra.mrb[0].mxu0 %v2182
      %v2289 = vpop.f32.mrb[0].mxu0
      %v2290 = vadd.f32 0.0, %v2289
      %v2291 = vpop.f32.mrb[0].mxu0
      %v2292 = vpop.f32.mrb[0].mxu0
      %v2293 = vadd.f32 0.0, %v2292
      %v2294 = vpop.f32.mrb[0].mxu0
      %2295 = vmatprep.mubr.bf16.mxu0 0
      %2296 = vmatmul.mubr.bf16.gmra.mrb[0].mxu0 %v2185
      %v2297 = vpop.f32.mrb[0].mxu0
      %v2298 = vadd.f32 0.0, %v2297
      %v2299 = vpop.f32.mrb[0].mxu0
      %v2300 = vpop.f32.mrb[0].mxu0
      %v2301 = vadd.f32 0.0, %v2300
      %v2302 = vpop.f32.mrb[0].mxu0
      %2303 = vmatprep.mubr.bf16.mxu0 0
      %2304 = vmatmul.mubr.bf16.gmra.mrb[0].mxu0 %v2188
      %v2305 = vpop.f32.mrb[0].mxu0
      %v2306 = vadd.f32 0.0, %v2305
      %v2307 = vpop.f32.mrb[0].mxu0
      %v2308 = vpop.f32.mrb[0].mxu0
      %v2309 = vadd.f32 0.0, %v2308
      %v2310 = vpop.f32.mrb[0].mxu0
      %2311 = vmatprep.mubr.bf16.mxu0 0
      %2312 = vmatmul.mubr.bf16.gmra.mrb[0].mxu0 %v2191
      %v2313 = vpop.f32.mrb[0].mxu0
      %v2314 = vadd.f32 0.0, %v2313
      %v2315 = vpop.f32.mrb[0].mxu0
      %v2316 = vpop.f32.mrb[0].mxu0
      %v2317 = vadd.f32 0.0, %v2316
      %v2318 = vpop.f32.mrb[0].mxu0
      %2319 = vmatprep.mubr.bf16.mxu0 0
      %2320 = vmatmul.mubr.bf16.gmra.mrb[0].mxu0 %v2194
      %v2321 = vpop.f32.mrb[0].mxu0
      %v2322 = vadd.f32 0.0, %v2321
      %v2323 = vpop.f32.mrb[0].mxu0
      %v2324 = vpop.f32.mrb[0].mxu0
      %v2325 = vadd.f32 0.0, %v2324
      %v2326 = vpop.f32.mrb[0].mxu0
      %2327 = vmatprep.mubr.bf16.mxu0 0
      %2328 = vmatmul.mubr.bf16.gmra.mrb[0].mxu0 %v2197
      %v2329 = vpop.f32.mrb[0].mxu0
      %v2330 = vadd.f32 0.0, %v2329
      %v2331 = vpop.f32.mrb[0].mxu0
      %v2332 = vpop.f32.mrb[0].mxu0
      %v2333 = vadd.f32 0.0, %v2332
      %v2334 = vpop.f32.mrb[0].mxu0
      %2335 = vmatprep.mubr.bf16.mxu0 0
      %2336 = vmatmul.mubr.bf16.gmra.mrb[0].mxu0 %v2200
      %v2337 = vpop.f32.mrb[0].mxu0
      %v2338 = vadd.f32 0.0, %v2337
      %v2339 = vpop.f32.mrb[0].mxu0
      %v2340 = vpop.f32.mrb[0].mxu0
      %v2341 = vadd.f32 0.0, %v2340
      %v2342 = vpop.f32.mrb[0].mxu0
      %2343 = vmatprep.mubr.bf16.mxu0 0
      %2344 = vmatmul.mubr.bf16.gmra.mrb[0].mxu0 %v2203
      %v2345 = vpop.f32.mrb[0].mxu0
      %v2346 = vadd.f32 0.0, %v2345
      %v2347 = vpop.f32.mrb[0].mxu0
      %v2348 = vpop.f32.mrb[0].mxu0
      %v2349 = vadd.f32 0.0, %v2348
      %v2350 = vpop.f32.mrb[0].mxu0
      %2351 = vmatprep.mubr.bf16.mxu0 0
      %2352 = vmatmul.mubr.bf16.gmra.mrb[0].mxu0 %v2206
      %v2353 = vpop.f32.mrb[0].mxu0
      %v2354 = vadd.f32 0.0, %v2353
      %v2355 = vpop.f32.mrb[0].mxu0
      %v2356 = vpop.f32.mrb[0].mxu0
      %v2357 = vadd.f32 0.0, %v2356
      %v2358 = vpop.f32.mrb[0].mxu0
      %2359 = vmatprep.mubr.bf16.mxu0 0
      %2360 = vmatmul.mubr.bf16.gmra.mrb[0].mxu0 %v2209
      %v2361 = vpop.f32.mrb[0].mxu0
      %v2362 = vadd.f32 0.0, %v2361
      %v2363 = vpop.f32.mrb[0].mxu0
      %v2364 = vpop.f32.mrb[0].mxu0
      %v2365 = vadd.f32 0.0, %v2364
      %v2366 = vpop.f32.mrb[0].mxu0
      %2367 = vmatprep.mubr.bf16.mxu0 0
      %2368 = vmatmul.mubr.bf16.gmra.mrb[0].mxu0 %v2212
      %v2369 = vpop.f32.mrb[0].mxu0
      %v2370 = vadd.f32 0.0, %v2369
      %v2371 = vpop.f32.mrb[0].mxu0
      %v2372 = vpop.f32.mrb[0].mxu0
      %v2373 = vadd.f32 0.0, %v2372
      %v2374 = vpop.f32.mrb[0].mxu0
      %2375 = vmatprep.mubr.bf16.mxu0 0
      %2376 = vmatmul.mubr.bf16.gmra.mrb[0].mxu0 %v2215
      %v2377 = vpop.f32.mrb[0].mxu0
      %v2378 = vadd.f32 0.0, %v2377
      %v2379 = vpop.f32.mrb[0].mxu0
      %v2380 = vpop.f32.mrb[0].mxu0
      %v2381 = vadd.f32 0.0, %v2380
      %v2382 = vpop.f32.mrb[0].mxu0
      %2383 = vmatprep.mubr.bf16.mxu0 0
      %2384 = vmatmul.mubr.bf16.gmra.mrb[0].mxu0 %v2218
      %v2385 = vpop.f32.mrb[0].mxu0
      %v2386 = vadd.f32 0.0, %v2385
      %v2387 = vpop.f32.mrb[0].mxu0
      %v2388 = vpop.f32.mrb[0].mxu0
      %v2389 = vadd.f32 0.0, %v2388
      %v2390 = vpop.f32.mrb[0].mxu0
      %2391 = vmatprep.mubr.bf16.mxu0 0
      %2392 = vmatmul.mubr.bf16.gmra.mrb[0].mxu0 %v2221
      %v2393 = vpop.f32.mrb[0].mxu0
      %v2394 = vadd.f32 0.0, %v2393
      %v2395 = vpop.f32.mrb[0].mxu0
      %v2396 = vpop.f32.mrb[0].mxu0
      %v2397 = vadd.f32 0.0, %v2396
      %v2398 = vpop.f32.mrb[0].mxu0
      %2399 = vdwg.mxu0
      %v2400 = vadd.f32 %v2098, %v2258
      %v2401 = vadd.f32 %v2099, %v2261
      %v2402 = vadd.f32 %v2100, %v2266
      %v2403 = vadd.f32 %v2101, %v2269
      %v2404 = vadd.f32 %v2102, %v2274
      %v2405 = vadd.f32 %v2103, %v2277
      %v2406 = vadd.f32 %v2104, %v2282
      %v2407 = vadd.f32 %v2105, %v2285
      %v2408 = vadd.f32 %v2106, %v2290
      %v2409 = vadd.f32 %v2107, %v2293
      %v2410 = vadd.f32 %v2108, %v2298
      %v2411 = vadd.f32 %v2109, %v2301
      %v2412 = vadd.f32 %v2110, %v2306
      %v2413 = vadd.f32 %v2111, %v2309
      %v2414 = vadd.f32 %v2112, %v2314
      %v2415 = vadd.f32 %v2113, %v2317
      %v2416 = vadd.f32 %v2114, %v2322
      %v2417 = vadd.f32 %v2115, %v2325
      %v2418 = vadd.f32 %v2116, %v2330
      %v2419 = vadd.f32 %v2117, %v2333
      %v2420 = vadd.f32 %v2118, %v2338
      %v2421 = vadd.f32 %v2119, %v2341
      %v2422 = vadd.f32 %v2120, %v2346
      %v2423 = vadd.f32 %v2121, %v2349
      %v2424 = vadd.f32 %v2122, %v2354
      %v2425 = vadd.f32 %v2123, %v2357
      %v2426 = vadd.f32 %v2124, %v2362
      %v2427 = vadd.f32 %v2125, %v2365
      %v2428 = vadd.f32 %v2126, %v2370
      %v2429 = vadd.f32 %v2127, %v2373
      %v2430 = vadd.f32 %v2128, %v2378
      %v2431 = vadd.f32 %v2129, %v2381
      %v2432 = vadd.f32 %v2130, %v2386
      %v2433 = vadd.f32 %v2131, %v2389
      %v2434 = vadd.f32 %v2132, %v2394
      %v2435 = vadd.f32 %v2133, %v2397
      %v2436 = vld [vmem:[%s308 + $0xc] sm:$0xf]
      %v2437 = vld [vmem:[%s308 + $0x10] sm:$0xf]
      %v2438 = vld [vmem:[%s308 + $0x14] sm:$0xf]
      %v2439 = vld [vmem:[%s308 + $0x18] sm:$0xf]
      %v2440 = vld [vmem:[%s308 + $0x1c] sm:$0xf]
      %v2441 = vld [vmem:[%s308 + $0x20] sm:$0xf]
      %v2442 = vld [vmem:[%s308 + $0x24] sm:$0xf]
      %v2443 = vld [vmem:[%s308 + $0x28] sm:$0xf]
      %v2444 = vld [vmem:[%s308 + $0x2c] sm:$0xf]
      %v2445 = vld [vmem:[%s308 + $0x30] sm:$0xf]
      %v2446 = vld [vmem:[%s308 + $0x34] sm:$0xf]
      %v2447 = vld [vmem:[%s308 + $0x38] sm:$0xf]
      %v2448 = vld [vmem:[%s308 + $0x3c] sm:$0xf]
      %v2449 = vld [vmem:[%s308 + $0x40] sm:$0xf]
      %v2450 = vld [vmem:[%s308 + $0x44] sm:$0xf]
      %v2451 = vld [vmem:[%s308 + $0x48] sm:$0xf]
      %v2452 = vld [vmem:[%s308 + $0x4c] sm:$0xf]
      %v2453 = vld [vmem:[%s308 + $0x50] sm:$0xf]
      %v2454 = vld [vmem:[%s308 + $0x54] sm:$0xf]
      %v2455 = vld [vmem:[%s308 + $0x58] sm:$0xf]
      %v2456 = vld [vmem:[%s308 + $0x5c] sm:$0xf]
      %v2457 = vld [vmem:[%s308 + $0x60] sm:$0xf]
      %v2458 = vld [vmem:[%s308 + $0x64] sm:$0xf]
      %v2459 = vld [vmem:[%s308 + $0x68] sm:$0xf]
      %v2460 = vld [vmem:[%s308 + $0x6c] sm:$0xf]
      %v2461 = vld [vmem:[%s308 + $0x70] sm:$0xf]
      %v2462 = vld [vmem:[%s308 + $0x74] sm:$0xf]
      %v2463 = vld [vmem:[%s308 + $0x78] sm:$0xf]
      %v2464 = vld [vmem:[%s308 + $0x7c] sm:$0xf]
      %v2465 = vld [vmem:[%s308 + $0x80] sm:$0xf]
      %v2466 = vld [vmem:[%s308 + $0x84] sm:$0xf]
      %v2467 = vld [vmem:[%s308 + $0x88] sm:$0xf]
      %v2468 = vld [vmem:[%s308 + $0x8c] sm:$0xf]
      %v2469 = vld [vmem:[%s308 + $0x90] sm:$0xf]
      %v2470 = vld [vmem:[%s308 + $0x94] sm:$0xf]
      %v2471 = vld [vmem:[%s308 + $0x98] sm:$0xf]
      %v2472 = vld [vmem:[%s308 + $0x9c] sm:$0x1]
      %s2473 = scalar_lea.vmem %s312, 80
      %v2474 = vld [vmem:[%s2473] sm:$0xf]
      %v2475 = vld [vmem:[%s2473 + $0x4] sm:$0xf]
      %v2476 = vld [vmem:[%s2473 + $0x8] sm:$0xf]
      %v2477 = vld [vmem:[%s2473 + $0xc] sm:$0xf]
      %v2515 = vunpack.c.l.b16 %v2436
      %v2516 = vunpack.c.l.b16 %v2437
      %v2517 = vunpack.c.l.b16 %v2438
      %v2518 = vunpack.c.l.b16 %v2439
      %v2519 = vunpack.c.l.b16 %v2440
      %v2520 = vunpack.c.l.b16 %v2441
      %v2521 = vunpack.c.l.b16 %v2442
      %v2522 = vunpack.c.l.b16 %v2443
      %v2523 = vunpack.c.l.b16 %v2444
      %v2524 = vunpack.c.l.b16 %v2445
      %v2525 = vunpack.c.l.b16 %v2446
      %v2526 = vunpack.c.l.b16 %v2447
      %v2527 = vunpack.c.l.b16 %v2448
      %v2528 = vunpack.c.l.b16 %v2449
      %v2529 = vunpack.c.l.b16 %v2450
      %v2530 = vunpack.c.l.b16 %v2451
      %v2531 = vunpack.c.l.b16 %v2452
      %v2532 = vunpack.c.l.b16 %v2453
      %v2533 = vunpack.c.l.b16 %v2454
      %v2534 = vunpack.c.l.b16 %v2455
      %v2535 = vunpack.c.l.b16 %v2456
      %v2536 = vunpack.c.l.b16 %v2457
      %v2537 = vunpack.c.l.b16 %v2458
      %v2538 = vunpack.c.l.b16 %v2459
      %v2539 = vunpack.c.l.b16 %v2460
      %v2540 = vunpack.c.l.b16 %v2461
      %v2541 = vunpack.c.l.b16 %v2462
      %v2542 = vunpack.c.l.b16 %v2463
      %v2543 = vunpack.c.l.b16 %v2464
      %v2544 = vunpack.c.l.b16 %v2465
      %v2545 = vunpack.c.l.b16 %v2466
      %v2546 = vunpack.c.l.b16 %v2467
      %v2547 = vunpack.c.l.b16 %v2468
      %v2548 = vunpack.c.l.b16 %v2469
      %v2549 = vunpack.c.l.b16 %v2470
      %v2550 = vunpack.c.l.b16 %v2471
      %v2551 = vunpack.c.l.b16 %v2472
      %v2552 = vpack.c.b16 %v2516, %v2515
      %v2553 = vpack.c.b16 %v2518, %v2517
      %v2554 = vpack.c.b16 %v2520, %v2519
      %v2555 = vpack.c.b16 %v2522, %v2521
      %v2556 = vpack.c.b16 %v2524, %v2523
      %v2557 = vpack.c.b16 %v2526, %v2525
      %v2558 = vpack.c.b16 %v2528, %v2527
      %v2559 = vpack.c.b16 %v2530, %v2529
      %v2560 = vpack.c.b16 %v2532, %v2531
      %v2561 = vpack.c.b16 %v2534, %v2533
      %v2562 = vpack.c.b16 %v2536, %v2535
      %v2563 = vpack.c.b16 %v2538, %v2537
      %v2564 = vpack.c.b16 %v2540, %v2539
      %v2565 = vpack.c.b16 %v2542, %v2541
      %v2566 = vpack.c.b16 %v2544, %v2543
      %v2567 = vpack.c.b16 %v2546, %v2545
      %v2568 = vpack.c.b16 %v2548, %v2547
      %v2569 = vpack.c.b16 %v2550, %v2549
      %v2570 = vpack.c.b16 %v2551, %v2551
      %vm2571 = vsmask.f32 7424
      %v2573 = vshrl.u32 %v2552, 16
      %v2575 = vshll.u32 %v2552, 16
      %v2577 = vrot.slane %v2575, 1
      %v2578 = vor.u32 %v2573, %v2577
      %v2580 = vshll.u32 %v2553, 16
      %v2582 = vrot.slane %v2580, 1
      %v2583 = vsel %vm2571, %v2578, %v2582
      %v2584 = vshrl.u32 %v2553, 16
      %v2586 = vor.u32 %v2584, %v2582
      %v2588 = vshll.u32 %v2554, 16
      %v2590 = vrot.slane %v2588, 1
      %v2591 = vsel %vm2571, %v2586, %v2590
      %v2592 = vshrl.u32 %v2554, 16
      %v2594 = vor.u32 %v2592, %v2590
      %v2596 = vshll.u32 %v2555, 16
      %v2598 = vrot.slane %v2596, 1
      %v2599 = vsel %vm2571, %v2594, %v2598
      %v2600 = vshrl.u32 %v2555, 16
      %v2602 = vor.u32 %v2600, %v2598
      %v2604 = vshll.u32 %v2556, 16
      %v2606 = vrot.slane %v2604, 1
      %v2607 = vsel %vm2571, %v2602, %v2606
      %v2608 = vshrl.u32 %v2556, 16
      %v2610 = vor.u32 %v2608, %v2606
      %v2612 = vshll.u32 %v2557, 16
      %v2614 = vrot.slane %v2612, 1
      %v2615 = vsel %vm2571, %v2610, %v2614
      %v2616 = vshrl.u32 %v2557, 16
      %v2618 = vor.u32 %v2616, %v2614
      %v2620 = vshll.u32 %v2558, 16
      %v2622 = vrot.slane %v2620, 1
      %v2623 = vsel %vm2571, %v2618, %v2622
      %v2624 = vshrl.u32 %v2558, 16
      %v2626 = vor.u32 %v2624, %v2622
      %v2628 = vshll.u32 %v2559, 16
      %v2630 = vrot.slane %v2628, 1
      %v2631 = vsel %vm2571, %v2626, %v2630
      %v2632 = vshrl.u32 %v2559, 16
      %v2634 = vor.u32 %v2632, %v2630
      %v2636 = vshll.u32 %v2560, 16
      %v2638 = vrot.slane %v2636, 1
      %v2639 = vsel %vm2571, %v2634, %v2638
      %v2640 = vshrl.u32 %v2560, 16
      %v2642 = vor.u32 %v2640, %v2638
      %v2644 = vshll.u32 %v2561, 16
      %v2646 = vrot.slane %v2644, 1
      %v2647 = vsel %vm2571, %v2642, %v2646
      %v2648 = vshrl.u32 %v2561, 16
      %v2650 = vor.u32 %v2648, %v2646
      %v2652 = vshll.u32 %v2562, 16
      %v2654 = vrot.slane %v2652, 1
      %v2655 = vsel %vm2571, %v2650, %v2654
      %v2656 = vshrl.u32 %v2562, 16
      %v2658 = vor.u32 %v2656, %v2654
      %v2660 = vshll.u32 %v2563, 16
      %v2662 = vrot.slane %v2660, 1
      %v2663 = vsel %vm2571, %v2658, %v2662
      %v2664 = vshrl.u32 %v2563, 16
      %v2666 = vor.u32 %v2664, %v2662
      %v2668 = vshll.u32 %v2564, 16
      %v2670 = vrot.slane %v2668, 1
      %v2671 = vsel %vm2571, %v2666, %v2670
      %v2672 = vshrl.u32 %v2564, 16
      %v2674 = vor.u32 %v2672, %v2670
      %v2676 = vshll.u32 %v2565, 16
      %v2678 = vrot.slane %v2676, 1
      %v2679 = vsel %vm2571, %v2674, %v2678
      %v2680 = vshrl.u32 %v2565, 16
      %v2682 = vor.u32 %v2680, %v2678
      %v2684 = vshll.u32 %v2566, 16
      %v2686 = vrot.slane %v2684, 1
      %v2687 = vsel %vm2571, %v2682, %v2686
      %v2688 = vshrl.u32 %v2566, 16
      %v2690 = vor.u32 %v2688, %v2686
      %v2692 = vshll.u32 %v2567, 16
      %v2694 = vrot.slane %v2692, 1
      %v2695 = vsel %vm2571, %v2690, %v2694
      %v2696 = vshrl.u32 %v2567, 16
      %v2698 = vor.u32 %v2696, %v2694
      %v2700 = vshll.u32 %v2568, 16
      %v2702 = vrot.slane %v2700, 1
      %v2703 = vsel %vm2571, %v2698, %v2702
      %v2704 = vshrl.u32 %v2568, 16
      %v2706 = vor.u32 %v2704, %v2702
      %v2708 = vshll.u32 %v2569, 16
      %v2710 = vrot.slane %v2708, 1
      %v2711 = vsel %vm2571, %v2706, %v2710
      %v2712 = vshrl.u32 %v2569, 16
      %v2714 = vor.u32 %v2712, %v2710
      %v2716 = vshll.u32 %v2570, 16
      %v2718 = vrot.slane %v2716, 1
      %v2719 = vsel %vm2571, %v2714, %v2718
      %v2724 = vunpack.c.l.b16 %v2474
      %v2725 = vunpack.c.l.b16 %v2475
      %v2726 = vunpack.c.l.b16 %v2476
      %v2727 = vunpack.c.l.b16 %v2477
      %v2728 = vpack.c.b16 %v2725, %v2724
      %v2729 = vpack.c.b16 %v2727, %v2726
      %v2733 = vsel %vm527, %v2583, 0
      %v2736 = vsel %vm527, %v2591, 0
      %v2739 = vsel %vm527, %v2599, 0
      %v2742 = vsel %vm527, %v2607, 0
      %v2745 = vsel %vm527, %v2615, 0
      %v2748 = vsel %vm527, %v2623, 0
      %v2751 = vsel %vm527, %v2631, 0
      %v2754 = vsel %vm527, %v2639, 0
      %v2757 = vsel %vm527, %v2647, 0
      %v2760 = vsel %vm527, %v2655, 0
      %v2763 = vsel %vm527, %v2663, 0
      %v2766 = vsel %vm527, %v2671, 0
      %v2769 = vsel %vm527, %v2679, 0
      %v2772 = vsel %vm527, %v2687, 0
      %v2775 = vsel %vm527, %v2695, 0
      %v2778 = vsel %vm527, %v2703, 0
      %v2781 = vsel %vm527, %v2711, 0
      %v2784 = vsel %vm527, %v2719, 0
      %2786 = vmatprep.subr.bf16.mxu0 0
      %2787 = vmatpush1.bf16.msra.mxu0 %v2728
      %2788 = vmatprep.subr.bf16.mxu0 0
      %2789 = vmatpush1.bf16.msra.mxu0 %v2729
      %2790 = vmatprep.subr.bf16.mxu0 0
      %2791 = vmatpush1.bf16.msra.mxu0 0
      %2792 = vmatprep.subr.bf16.mxu0 0
      %2793 = vmatpush1.bf16.msra.mxu0 0
      %2794 = vmatprep.subr.bf16.mxu0 0
      %2795 = vmatpush1.bf16.msra.mxu0 0
      %2796 = vmatprep.subr.bf16.mxu0 0
      %2797 = vmatpush1.bf16.msra.mxu0 0
      %2798 = vmatprep.subr.bf16.mxu0 0
      %2799 = vmatpush1.bf16.msra.mxu0 0
      %2800 = vmatprep.subr.bf16.mxu0 0
      %2801 = vmatpush1.bf16.msra.mxu0 0
      %2802 = vmatprep.subr.bf16.mxu0 0
      %2803 = vmatpush1.bf16.msra.mxu0 0
      %2804 = vmatprep.subr.bf16.mxu0 0
      %2805 = vmatpush1.bf16.msra.mxu0 0
      %2806 = vmatprep.subr.bf16.mxu0 0
      %2807 = vmatpush1.bf16.msra.mxu0 0
      %2808 = vmatprep.subr.bf16.mxu0 0
      %2809 = vmatpush1.bf16.msra.mxu0 0
      %2810 = vmatprep.subr.bf16.mxu0 0
      %2811 = vmatpush1.bf16.msra.mxu0 0
      %2812 = vmatprep.subr.bf16.mxu0 0
      %2813 = vmatpush1.bf16.msra.mxu0 0
      %2814 = vmatprep.subr.bf16.mxu0 0
      %2815 = vmatpush1.bf16.msra.mxu0 0
      %2816 = vmatprep.subr.bf16.mxu0 0
      %2817 = vmatpush1.bf16.msra.mxu0 0
      %2818 = vmatprep.mubr.bf16.mxu0 0
      %2819 = vmatmul.mubr.bf16.gmra.mrb[0].mxu0 %v2733
      %v2820 = vpop.f32.mrb[0].mxu0
      %v2821 = vadd.f32 0.0, %v2820
      %v2822 = vpop.f32.mrb[0].mxu0
      %v2823 = vpop.f32.mrb[0].mxu0
      %v2824 = vadd.f32 0.0, %v2823
      %v2825 = vpop.f32.mrb[0].mxu0
      %2826 = vmatprep.mubr.bf16.mxu0 0
      %2827 = vmatmul.mubr.bf16.gmra.mrb[0].mxu0 %v2736
      %v2828 = vpop.f32.mrb[0].mxu0
      %v2829 = vadd.f32 0.0, %v2828
      %v2830 = vpop.f32.mrb[0].mxu0
      %v2831 = vpop.f32.mrb[0].mxu0
      %v2832 = vadd.f32 0.0, %v2831
      %v2833 = vpop.f32.mrb[0].mxu0
      %2834 = vmatprep.mubr.bf16.mxu0 0
      %2835 = vmatmul.mubr.bf16.gmra.mrb[0].mxu0 %v2739
      %v2836 = vpop.f32.mrb[0].mxu0
      %v2837 = vadd.f32 0.0, %v2836
      %v2838 = vpop.f32.mrb[0].mxu0
      %v2839 = vpop.f32.mrb[0].mxu0
      %v2840 = vadd.f32 0.0, %v2839
      %v2841 = vpop.f32.mrb[0].mxu0
      %2842 = vmatprep.mubr.bf16.mxu0 0
      %2843 = vmatmul.mubr.bf16.gmra.mrb[0].mxu0 %v2742
      %v2844 = vpop.f32.mrb[0].mxu0
      %v2845 = vadd.f32 0.0, %v2844
      %v2846 = vpop.f32.mrb[0].mxu0
      %v2847 = vpop.f32.mrb[0].mxu0
      %v2848 = vadd.f32 0.0, %v2847
      %v2849 = vpop.f32.mrb[0].mxu0
      %2850 = vmatprep.mubr.bf16.mxu0 0
      %2851 = vmatmul.mubr.bf16.gmra.mrb[0].mxu0 %v2745
      %v2852 = vpop.f32.mrb[0].mxu0
      %v2853 = vadd.f32 0.0, %v2852
      %v2854 = vpop.f32.mrb[0].mxu0
      %v2855 = vpop.f32.mrb[0].mxu0
      %v2856 = vadd.f32 0.0, %v2855
      %v2857 = vpop.f32.mrb[0].mxu0
      %2858 = vmatprep.mubr.bf16.mxu0 0
      %2859 = vmatmul.mubr.bf16.gmra.mrb[0].mxu0 %v2748
      %v2860 = vpop.f32.mrb[0].mxu0
      %v2861 = vadd.f32 0.0, %v2860
      %v2862 = vpop.f32.mrb[0].mxu0
      %v2863 = vpop.f32.mrb[0].mxu0
      %v2864 = vadd.f32 0.0, %v2863
      %v2865 = vpop.f32.mrb[0].mxu0
      %2866 = vmatprep.mubr.bf16.mxu0 0
      %2867 = vmatmul.mubr.bf16.gmra.mrb[0].mxu0 %v2751
      %v2868 = vpop.f32.mrb[0].mxu0
      %v2869 = vadd.f32 0.0, %v2868
      %v2870 = vpop.f32.mrb[0].mxu0
      %v2871 = vpop.f32.mrb[0].mxu0
      %v2872 = vadd.f32 0.0, %v2871
      %v2873 = vpop.f32.mrb[0].mxu0
      %2874 = vmatprep.mubr.bf16.mxu0 0
      %2875 = vmatmul.mubr.bf16.gmra.mrb[0].mxu0 %v2754
      %v2876 = vpop.f32.mrb[0].mxu0
      %v2877 = vadd.f32 0.0, %v2876
      %v2878 = vpop.f32.mrb[0].mxu0
      %v2879 = vpop.f32.mrb[0].mxu0
      %v2880 = vadd.f32 0.0, %v2879
      %v2881 = vpop.f32.mrb[0].mxu0
      %2882 = vmatprep.mubr.bf16.mxu0 0
      %2883 = vmatmul.mubr.bf16.gmra.mrb[0].mxu0 %v2757
      %v2884 = vpop.f32.mrb[0].mxu0
      %v2885 = vadd.f32 0.0, %v2884
      %v2886 = vpop.f32.mrb[0].mxu0
      %v2887 = vpop.f32.mrb[0].mxu0
      %v2888 = vadd.f32 0.0, %v2887
      %v2889 = vpop.f32.mrb[0].mxu0
      %2890 = vmatprep.mubr.bf16.mxu0 0
      %2891 = vmatmul.mubr.bf16.gmra.mrb[0].mxu0 %v2760
      %v2892 = vpop.f32.mrb[0].mxu0
      %v2893 = vadd.f32 0.0, %v2892
      %v2894 = vpop.f32.mrb[0].mxu0
      %v2895 = vpop.f32.mrb[0].mxu0
      %v2896 = vadd.f32 0.0, %v2895
      %v2897 = vpop.f32.mrb[0].mxu0
      %2898 = vmatprep.mubr.bf16.mxu0 0
      %2899 = vmatmul.mubr.bf16.gmra.mrb[0].mxu0 %v2763
      %v2900 = vpop.f32.mrb[0].mxu0
      %v2901 = vadd.f32 0.0, %v2900
      %v2902 = vpop.f32.mrb[0].mxu0
      %v2903 = vpop.f32.mrb[0].mxu0
      %v2904 = vadd.f32 0.0, %v2903
      %v2905 = vpop.f32.mrb[0].mxu0
      %2906 = vmatprep.mubr.bf16.mxu0 0
      %2907 = vmatmul.mubr.bf16.gmra.mrb[0].mxu0 %v2766
      %v2908 = vpop.f32.mrb[0].mxu0
      %v2909 = vadd.f32 0.0, %v2908
      %v2910 = vpop.f32.mrb[0].mxu0
      %v2911 = vpop.f32.mrb[0].mxu0
      %v2912 = vadd.f32 0.0, %v2911
      %v2913 = vpop.f32.mrb[0].mxu0
      %2914 = vmatprep.mubr.bf16.mxu0 0
      %2915 = vmatmul.mubr.bf16.gmra.mrb[0].mxu0 %v2769
      %v2916 = vpop.f32.mrb[0].mxu0
      %v2917 = vadd.f32 0.0, %v2916
      %v2918 = vpop.f32.mrb[0].mxu0
      %v2919 = vpop.f32.mrb[0].mxu0
      %v2920 = vadd.f32 0.0, %v2919
      %v2921 = vpop.f32.mrb[0].mxu0
      %2922 = vmatprep.mubr.bf16.mxu0 0
      %2923 = vmatmul.mubr.bf16.gmra.mrb[0].mxu0 %v2772
      %v2924 = vpop.f32.mrb[0].mxu0
      %v2925 = vadd.f32 0.0, %v2924
      %v2926 = vpop.f32.mrb[0].mxu0
      %v2927 = vpop.f32.mrb[0].mxu0
      %v2928 = vadd.f32 0.0, %v2927
      %v2929 = vpop.f32.mrb[0].mxu0
      %2930 = vmatprep.mubr.bf16.mxu0 0
      %2931 = vmatmul.mubr.bf16.gmra.mrb[0].mxu0 %v2775
      %v2932 = vpop.f32.mrb[0].mxu0
      %v2933 = vadd.f32 0.0, %v2932
      %v2934 = vpop.f32.mrb[0].mxu0
      %v2935 = vpop.f32.mrb[0].mxu0
      %v2936 = vadd.f32 0.0, %v2935
      %v2937 = vpop.f32.mrb[0].mxu0
      %2938 = vmatprep.mubr.bf16.mxu0 0
      %2939 = vmatmul.mubr.bf16.gmra.mrb[0].mxu0 %v2778
      %v2940 = vpop.f32.mrb[0].mxu0
      %v2941 = vadd.f32 0.0, %v2940
      %v2942 = vpop.f32.mrb[0].mxu0
      %v2943 = vpop.f32.mrb[0].mxu0
      %v2944 = vadd.f32 0.0, %v2943
      %v2945 = vpop.f32.mrb[0].mxu0
      %2946 = vmatprep.mubr.bf16.mxu0 0
      %2947 = vmatmul.mubr.bf16.gmra.mrb[0].mxu0 %v2781
      %v2948 = vpop.f32.mrb[0].mxu0
      %v2949 = vadd.f32 0.0, %v2948
      %v2950 = vpop.f32.mrb[0].mxu0
      %v2951 = vpop.f32.mrb[0].mxu0
      %v2952 = vadd.f32 0.0, %v2951
      %v2953 = vpop.f32.mrb[0].mxu0
      %2954 = vmatprep.mubr.bf16.mxu0 0
      %2955 = vmatmul.mubr.bf16.gmra.mrb[0].mxu0 %v2784
      %v2956 = vpop.f32.mrb[0].mxu0
      %v2957 = vadd.f32 0.0, %v2956
      %v2958 = vpop.f32.mrb[0].mxu0
      %v2959 = vpop.f32.mrb[0].mxu0
      %v2960 = vadd.f32 0.0, %v2959
      %v2961 = vpop.f32.mrb[0].mxu0
      %2962 = vdwg.mxu0
      %v2963 = vadd.f32 %v2400, %v2821
      %v2964 = vadd.f32 %v2401, %v2824
      %v2965 = vadd.f32 %v2402, %v2829
      %v2966 = vadd.f32 %v2403, %v2832
      %v2967 = vadd.f32 %v2404, %v2837
      %v2968 = vadd.f32 %v2405, %v2840
      %v2969 = vadd.f32 %v2406, %v2845
      %v2970 = vadd.f32 %v2407, %v2848
      %v2971 = vadd.f32 %v2408, %v2853
      %v2972 = vadd.f32 %v2409, %v2856
      %v2973 = vadd.f32 %v2410, %v2861
      %v2974 = vadd.f32 %v2411, %v2864
      %v2975 = vadd.f32 %v2412, %v2869
      %v2976 = vadd.f32 %v2413, %v2872
      %v2977 = vadd.f32 %v2414, %v2877
      %v2978 = vadd.f32 %v2415, %v2880
      %v2979 = vadd.f32 %v2416, %v2885
      %v2980 = vadd.f32 %v2417, %v2888
      %v2981 = vadd.f32 %v2418, %v2893
      %v2982 = vadd.f32 %v2419, %v2896
      %v2983 = vadd.f32 %v2420, %v2901
      %v2984 = vadd.f32 %v2421, %v2904
      %v2985 = vadd.f32 %v2422, %v2909
      %v2986 = vadd.f32 %v2423, %v2912
      %v2987 = vadd.f32 %v2424, %v2917
      %v2988 = vadd.f32 %v2425, %v2920
      %v2989 = vadd.f32 %v2426, %v2925
      %v2990 = vadd.f32 %v2427, %v2928
      %v2991 = vadd.f32 %v2428, %v2933
      %v2992 = vadd.f32 %v2429, %v2936
      %v2993 = vadd.f32 %v2430, %v2941
      %v2994 = vadd.f32 %v2431, %v2944
      %v2995 = vadd.f32 %v2432, %v2949
      %v2996 = vadd.f32 %v2433, %v2952
      %v2997 = vadd.f32 %v2434, %v2957
      %v2998 = vadd.f32 %v2435, %v2960
      %v2999 = vld [vmem:[%s308 + $0x14] sm:$0xf]
      %v3000 = vld [vmem:[%s308 + $0x18] sm:$0xf]
      %v3001 = vld [vmem:[%s308 + $0x1c] sm:$0xf]
      %v3002 = vld [vmem:[%s308 + $0x20] sm:$0xf]
      %v3003 = vld [vmem:[%s308 + $0x24] sm:$0xf]
      %v3004 = vld [vmem:[%s308 + $0x28] sm:$0xf]
      %v3005 = vld [vmem:[%s308 + $0x2c] sm:$0xf]
      %v3006 = vld [vmem:[%s308 + $0x30] sm:$0xf]
      %v3007 = vld [vmem:[%s308 + $0x34] sm:$0xf]
      %v3008 = vld [vmem:[%s308 + $0x38] sm:$0xf]
      %v3009 = vld [vmem:[%s308 + $0x3c] sm:$0xf]
      %v3010 = vld [vmem:[%s308 + $0x40] sm:$0xf]
      %v3011 = vld [vmem:[%s308 + $0x44] sm:$0xf]
      %v3012 = vld [vmem:[%s308 + $0x48] sm:$0xf]
      %v3013 = vld [vmem:[%s308 + $0x4c] sm:$0xf]
      %v3014 = vld [vmem:[%s308 + $0x50] sm:$0xf]
      %v3015 = vld [vmem:[%s308 + $0x54] sm:$0xf]
      %v3016 = vld [vmem:[%s308 + $0x58] sm:$0xf]
      %v3017 = vld [vmem:[%s308 + $0x5c] sm:$0xf]
      %v3018 = vld [vmem:[%s308 + $0x60] sm:$0xf]
      %v3019 = vld [vmem:[%s308 + $0x64] sm:$0xf]
      %v3020 = vld [vmem:[%s308 + $0x68] sm:$0xf]
      %v3021 = vld [vmem:[%s308 + $0x6c] sm:$0xf]
      %v3022 = vld [vmem:[%s308 + $0x70] sm:$0xf]
      %v3023 = vld [vmem:[%s308 + $0x74] sm:$0xf]
      %v3024 = vld [vmem:[%s308 + $0x78] sm:$0xf]
      %v3025 = vld [vmem:[%s308 + $0x7c] sm:$0xf]
      %v3026 = vld [vmem:[%s308 + $0x80] sm:$0xf]
      %v3027 = vld [vmem:[%s308 + $0x84] sm:$0xf]
      %v3028 = vld [vmem:[%s308 + $0x88] sm:$0xf]
      %v3029 = vld [vmem:[%s308 + $0x8c] sm:$0xf]
      %v3030 = vld [vmem:[%s308 + $0x90] sm:$0xf]
      %v3031 = vld [vmem:[%s308 + $0x94] sm:$0xf]
      %v3032 = vld [vmem:[%s308 + $0x98] sm:$0xf]
      %v3033 = vld [vmem:[%s308 + $0x9c] sm:$0xf]
      %v3034 = vld [vmem:[%s308 + $0xa0] sm:$0xf]
      %v3035 = vld [vmem:[%s308 + $0xa4] sm:$0x1]
      %s3036 = scalar_lea.vmem %s312, 96
      %v3037 = vld [vmem:[%s3036] sm:$0xf]
      %v3038 = vld [vmem:[%s3036 + $0x4] sm:$0xf]
      %v3039 = vld [vmem:[%s3036 + $0x8] sm:$0xf]
      %v3040 = vld [vmem:[%s3036 + $0xc] sm:$0xf]
      %v3078 = vunpack.c.l.b16 %v2999
      %v3079 = vunpack.c.l.b16 %v3000
      %v3080 = vunpack.c.l.b16 %v3001
      %v3081 = vunpack.c.l.b16 %v3002
      %v3082 = vunpack.c.l.b16 %v3003
      %v3083 = vunpack.c.l.b16 %v3004
      %v3084 = vunpack.c.l.b16 %v3005
      %v3085 = vunpack.c.l.b16 %v3006
      %v3086 = vunpack.c.l.b16 %v3007
      %v3087 = vunpack.c.l.b16 %v3008
      %v3088 = vunpack.c.l.b16 %v3009
      %v3089 = vunpack.c.l.b16 %v3010
      %v3090 = vunpack.c.l.b16 %v3011
      %v3091 = vunpack.c.l.b16 %v3012
      %v3092 = vunpack.c.l.b16 %v3013
      %v3093 = vunpack.c.l.b16 %v3014
      %v3094 = vunpack.c.l.b16 %v3015
      %v3095 = vunpack.c.l.b16 %v3016
      %v3096 = vunpack.c.l.b16 %v3017
      %v3097 = vunpack.c.l.b16 %v3018
      %v3098 = vunpack.c.l.b16 %v3019
      %v3099 = vunpack.c.l.b16 %v3020
      %v3100 = vunpack.c.l.b16 %v3021
      %v3101 = vunpack.c.l.b16 %v3022
      %v3102 = vunpack.c.l.b16 %v3023
      %v3103 = vunpack.c.l.b16 %v3024
      %v3104 = vunpack.c.l.b16 %v3025
      %v3105 = vunpack.c.l.b16 %v3026
      %v3106 = vunpack.c.l.b16 %v3027
      %v3107 = vunpack.c.l.b16 %v3028
      %v3108 = vunpack.c.l.b16 %v3029
      %v3109 = vunpack.c.l.b16 %v3030
      %v3110 = vunpack.c.l.b16 %v3031
      %v3111 = vunpack.c.l.b16 %v3032
      %v3112 = vunpack.c.l.b16 %v3033
      %v3113 = vunpack.c.l.b16 %v3034
      %v3114 = vunpack.c.l.b16 %v3035
      %v3115 = vpack.c.b16 %v3079, %v3078
      %v3116 = vpack.c.b16 %v3081, %v3080
      %v3117 = vpack.c.b16 %v3083, %v3082
      %v3118 = vpack.c.b16 %v3085, %v3084
      %v3119 = vpack.c.b16 %v3087, %v3086
      %v3120 = vpack.c.b16 %v3089, %v3088
      %v3121 = vpack.c.b16 %v3091, %v3090
      %v3122 = vpack.c.b16 %v3093, %v3092
      %v3123 = vpack.c.b16 %v3095, %v3094
      %v3124 = vpack.c.b16 %v3097, %v3096
      %v3125 = vpack.c.b16 %v3099, %v3098
      %v3126 = vpack.c.b16 %v3101, %v3100
      %v3127 = vpack.c.b16 %v3103, %v3102
      %v3128 = vpack.c.b16 %v3105, %v3104
      %v3129 = vpack.c.b16 %v3107, %v3106
      %v3130 = vpack.c.b16 %v3109, %v3108
      %v3131 = vpack.c.b16 %v3111, %v3110
      %v3132 = vpack.c.b16 %v3113, %v3112
      %v3133 = vpack.c.b16 %v3114, %v3114
      %v3135 = vshrl.u32 %v3115, 16
      %v3137 = vshll.u32 %v3115, 16
      %v3139 = vrot.slane %v3137, 1
      %v3140 = vor.u32 %v3135, %v3139
      %v3142 = vshll.u32 %v3116, 16
      %v3144 = vrot.slane %v3142, 1
      %v3145 = vsel %vm2571, %v3140, %v3144
      %v3146 = vshrl.u32 %v3116, 16
      %v3148 = vor.u32 %v3146, %v3144
      %v3150 = vshll.u32 %v3117, 16
      %v3152 = vrot.slane %v3150, 1
      %v3153 = vsel %vm2571, %v3148, %v3152
      %v3154 = vshrl.u32 %v3117, 16
      %v3156 = vor.u32 %v3154, %v3152
      %v3158 = vshll.u32 %v3118, 16
      %v3160 = vrot.slane %v3158, 1
      %v3161 = vsel %vm2571, %v3156, %v3160
      %v3162 = vshrl.u32 %v3118, 16
      %v3164 = vor.u32 %v3162, %v3160
      %v3166 = vshll.u32 %v3119, 16
      %v3168 = vrot.slane %v3166, 1
      %v3169 = vsel %vm2571, %v3164, %v3168
      %v3170 = vshrl.u32 %v3119, 16
      %v3172 = vor.u32 %v3170, %v3168
      %v3174 = vshll.u32 %v3120, 16
      %v3176 = vrot.slane %v3174, 1
      %v3177 = vsel %vm2571, %v3172, %v3176
      %v3178 = vshrl.u32 %v3120, 16
      %v3180 = vor.u32 %v3178, %v3176
      %v3182 = vshll.u32 %v3121, 16
      %v3184 = vrot.slane %v3182, 1
      %v3185 = vsel %vm2571, %v3180, %v3184
      %v3186 = vshrl.u32 %v3121, 16
      %v3188 = vor.u32 %v3186, %v3184
      %v3190 = vshll.u32 %v3122, 16
      %v3192 = vrot.slane %v3190, 1
      %v3193 = vsel %vm2571, %v3188, %v3192
      %v3194 = vshrl.u32 %v3122, 16
      %v3196 = vor.u32 %v3194, %v3192
      %v3198 = vshll.u32 %v3123, 16
      %v3200 = vrot.slane %v3198, 1
      %v3201 = vsel %vm2571, %v3196, %v3200
      %v3202 = vshrl.u32 %v3123, 16
      %v3204 = vor.u32 %v3202, %v3200
      %v3206 = vshll.u32 %v3124, 16
      %v3208 = vrot.slane %v3206, 1
      %v3209 = vsel %vm2571, %v3204, %v3208
      %v3210 = vshrl.u32 %v3124, 16
      %v3212 = vor.u32 %v3210, %v3208
      %v3214 = vshll.u32 %v3125, 16
      %v3216 = vrot.slane %v3214, 1
      %v3217 = vsel %vm2571, %v3212, %v3216
      %v3218 = vshrl.u32 %v3125, 16
      %v3220 = vor.u32 %v3218, %v3216
      %v3222 = vshll.u32 %v3126, 16
      %v3224 = vrot.slane %v3222, 1
      %v3225 = vsel %vm2571, %v3220, %v3224
      %v3226 = vshrl.u32 %v3126, 16
      %v3228 = vor.u32 %v3226, %v3224
      %v3230 = vshll.u32 %v3127, 16
      %v3232 = vrot.slane %v3230, 1
      %v3233 = vsel %vm2571, %v3228, %v3232
      %v3234 = vshrl.u32 %v3127, 16
      %v3236 = vor.u32 %v3234, %v3232
      %v3238 = vshll.u32 %v3128, 16
      %v3240 = vrot.slane %v3238, 1
      %v3241 = vsel %vm2571, %v3236, %v3240
      %v3242 = vshrl.u32 %v3128, 16
      %v3244 = vor.u32 %v3242, %v3240
      %v3246 = vshll.u32 %v3129, 16
      %v3248 = vrot.slane %v3246, 1
      %v3249 = vsel %vm2571, %v3244, %v3248
      %v3250 = vshrl.u32 %v3129, 16
      %v3252 = vor.u32 %v3250, %v3248
      %v3254 = vshll.u32 %v3130, 16
      %v3256 = vrot.slane %v3254, 1
      %v3257 = vsel %vm2571, %v3252, %v3256
      %v3258 = vshrl.u32 %v3130, 16
      %v3260 = vor.u32 %v3258, %v3256
      %v3262 = vshll.u32 %v3131, 16
      %v3264 = vrot.slane %v3262, 1
      %v3265 = vsel %vm2571, %v3260, %v3264
      %v3266 = vshrl.u32 %v3131, 16
      %v3268 = vor.u32 %v3266, %v3264
      %v3270 = vshll.u32 %v3132, 16
      %v3272 = vrot.slane %v3270, 1
      %v3273 = vsel %vm2571, %v3268, %v3272
      %v3274 = vshrl.u32 %v3132, 16
      %v3276 = vor.u32 %v3274, %v3272
      %v3278 = vshll.u32 %v3133, 16
      %v3280 = vrot.slane %v3278, 1
      %v3281 = vsel %vm2571, %v3276, %v3280
      %v3286 = vunpack.c.l.b16 %v3037
      %v3287 = vunpack.c.l.b16 %v3038
      %v3288 = vunpack.c.l.b16 %v3039
      %v3289 = vunpack.c.l.b16 %v3040
      %v3290 = vpack.c.b16 %v3287, %v3286
      %v3291 = vpack.c.b16 %v3289, %v3288
      %v3295 = vsel %vm527, %v3145, 0
      %v3298 = vsel %vm527, %v3153, 0
      %v3301 = vsel %vm527, %v3161, 0
      %v3304 = vsel %vm527, %v3169, 0
      %v3307 = vsel %vm527, %v3177, 0
      %v3310 = vsel %vm527, %v3185, 0
      %v3313 = vsel %vm527, %v3193, 0
      %v3316 = vsel %vm527, %v3201, 0
      %v3319 = vsel %vm527, %v3209, 0
      %v3322 = vsel %vm527, %v3217, 0
      %v3325 = vsel %vm527, %v3225, 0
      %v3328 = vsel %vm527, %v3233, 0
      %v3331 = vsel %vm527, %v3241, 0
      %v3334 = vsel %vm527, %v3249, 0
      %v3337 = vsel %vm527, %v3257, 0
      %v3340 = vsel %vm527, %v3265, 0
      %v3343 = vsel %vm527, %v3273, 0
      %v3346 = vsel %vm527, %v3281, 0
      %3348 = vmatprep.subr.bf16.mxu0 0
      %3349 = vmatpush1.bf16.msra.mxu0 %v3290
      %3350 = vmatprep.subr.bf16.mxu0 0
      %3351 = vmatpush1.bf16.msra.mxu0 %v3291
      %3352 = vmatprep.subr.bf16.mxu0 0
      %3353 = vmatpush1.bf16.msra.mxu0 0
      %3354 = vmatprep.subr.bf16.mxu0 0
      %3355 = vmatpush1.bf16.msra.mxu0 0
      %3356 = vmatprep.subr.bf16.mxu0 0
      %3357 = vmatpush1.bf16.msra.mxu0 0
      %3358 = vmatprep.subr.bf16.mxu0 0
      %3359 = vmatpush1.bf16.msra.mxu0 0
      %3360 = vmatprep.subr.bf16.mxu0 0
      %3361 = vmatpush1.bf16.msra.mxu0 0
      %3362 = vmatprep.subr.bf16.mxu0 0
      %3363 = vmatpush1.bf16.msra.mxu0 0
      %3364 = vmatprep.subr.bf16.mxu0 0
      %3365 = vmatpush1.bf16.msra.mxu0 0
      %3366 = vmatprep.subr.bf16.mxu0 0
      %3367 = vmatpush1.bf16.msra.mxu0 0
      %3368 = vmatprep.subr.bf16.mxu0 0
      %3369 = vmatpush1.bf16.msra.mxu0 0
      %3370 = vmatprep.subr.bf16.mxu0 0
      %3371 = vmatpush1.bf16.msra.mxu0 0
      %3372 = vmatprep.subr.bf16.mxu0 0
      %3373 = vmatpush1.bf16.msra.mxu0 0
      %3374 = vmatprep.subr.bf16.mxu0 0
      %3375 = vmatpush1.bf16.msra.mxu0 0
      %3376 = vmatprep.subr.bf16.mxu0 0
      %3377 = vmatpush1.bf16.msra.mxu0 0
      %3378 = vmatprep.subr.bf16.mxu0 0
      %3379 = vmatpush1.bf16.msra.mxu0 0
      %3380 = vmatprep.mubr.bf16.mxu0 0
      %3381 = vmatmul.mubr.bf16.gmra.mrb[0].mxu0 %v3295
      %v3382 = vpop.f32.mrb[0].mxu0
      %v3383 = vadd.f32 0.0, %v3382
      %v3384 = vpop.f32.mrb[0].mxu0
      %v3385 = vpop.f32.mrb[0].mxu0
      %v3386 = vadd.f32 0.0, %v3385
      %v3387 = vpop.f32.mrb[0].mxu0
      %3388 = vmatprep.mubr.bf16.mxu0 0
      %3389 = vmatmul.mubr.bf16.gmra.mrb[0].mxu0 %v3298
      %v3390 = vpop.f32.mrb[0].mxu0
      %v3391 = vadd.f32 0.0, %v3390
      %v3392 = vpop.f32.mrb[0].mxu0
      %v3393 = vpop.f32.mrb[0].mxu0
      %v3394 = vadd.f32 0.0, %v3393
      %v3395 = vpop.f32.mrb[0].mxu0
      %3396 = vmatprep.mubr.bf16.mxu0 0
      %3397 = vmatmul.mubr.bf16.gmra.mrb[0].mxu0 %v3301
      %v3398 = vpop.f32.mrb[0].mxu0
      %v3399 = vadd.f32 0.0, %v3398
      %v3400 = vpop.f32.mrb[0].mxu0
      %v3401 = vpop.f32.mrb[0].mxu0
      %v3402 = vadd.f32 0.0, %v3401
      %v3403 = vpop.f32.mrb[0].mxu0
      %3404 = vmatprep.mubr.bf16.mxu0 0
      %3405 = vmatmul.mubr.bf16.gmra.mrb[0].mxu0 %v3304
      %v3406 = vpop.f32.mrb[0].mxu0
      %v3407 = vadd.f32 0.0, %v3406
      %v3408 = vpop.f32.mrb[0].mxu0
      %v3409 = vpop.f32.mrb[0].mxu0
      %v3410 = vadd.f32 0.0, %v3409
      %v3411 = vpop.f32.mrb[0].mxu0
      %3412 = vmatprep.mubr.bf16.mxu0 0
      %3413 = vmatmul.mubr.bf16.gmra.mrb[0].mxu0 %v3307
      %v3414 = vpop.f32.mrb[0].mxu0
      %v3415 = vadd.f32 0.0, %v3414
      %v3416 = vpop.f32.mrb[0].mxu0
      %v3417 = vpop.f32.mrb[0].mxu0
      %v3418 = vadd.f32 0.0, %v3417
      %v3419 = vpop.f32.mrb[0].mxu0
      %3420 = vmatprep.mubr.bf16.mxu0 0
      %3421 = vmatmul.mubr.bf16.gmra.mrb[0].mxu0 %v3310
      %v3422 = vpop.f32.mrb[0].mxu0
      %v3423 = vadd.f32 0.0, %v3422
      %v3424 = vpop.f32.mrb[0].mxu0
      %v3425 = vpop.f32.mrb[0].mxu0
      %v3426 = vadd.f32 0.0, %v3425
      %v3427 = vpop.f32.mrb[0].mxu0
      %3428 = vmatprep.mubr.bf16.mxu0 0
      %3429 = vmatmul.mubr.bf16.gmra.mrb[0].mxu0 %v3313
      %v3430 = vpop.f32.mrb[0].mxu0
      %v3431 = vadd.f32 0.0, %v3430
      %v3432 = vpop.f32.mrb[0].mxu0
      %v3433 = vpop.f32.mrb[0].mxu0
      %v3434 = vadd.f32 0.0, %v3433
      %v3435 = vpop.f32.mrb[0].mxu0
      %3436 = vmatprep.mubr.bf16.mxu0 0
      %3437 = vmatmul.mubr.bf16.gmra.mrb[0].mxu0 %v3316
      %v3438 = vpop.f32.mrb[0].mxu0
      %v3439 = vadd.f32 0.0, %v3438
      %v3440 = vpop.f32.mrb[0].mxu0
      %v3441 = vpop.f32.mrb[0].mxu0
      %v3442 = vadd.f32 0.0, %v3441
      %v3443 = vpop.f32.mrb[0].mxu0
      %3444 = vmatprep.mubr.bf16.mxu0 0
      %3445 = vmatmul.mubr.bf16.gmra.mrb[0].mxu0 %v3319
      %v3446 = vpop.f32.mrb[0].mxu0
      %v3447 = vadd.f32 0.0, %v3446
      %v3448 = vpop.f32.mrb[0].mxu0
      %v3449 = vpop.f32.mrb[0].mxu0
      %v3450 = vadd.f32 0.0, %v3449
      %v3451 = vpop.f32.mrb[0].mxu0
      %3452 = vmatprep.mubr.bf16.mxu0 0
      %3453 = vmatmul.mubr.bf16.gmra.mrb[0].mxu0 %v3322
      %v3454 = vpop.f32.mrb[0].mxu0
      %v3455 = vadd.f32 0.0, %v3454
      %v3456 = vpop.f32.mrb[0].mxu0
      %v3457 = vpop.f32.mrb[0].mxu0
      %v3458 = vadd.f32 0.0, %v3457
      %v3459 = vpop.f32.mrb[0].mxu0
      %3460 = vmatprep.mubr.bf16.mxu0 0
      %3461 = vmatmul.mubr.bf16.gmra.mrb[0].mxu0 %v3325
      %v3462 = vpop.f32.mrb[0].mxu0
      %v3463 = vadd.f32 0.0, %v3462
      %v3464 = vpop.f32.mrb[0].mxu0
      %v3465 = vpop.f32.mrb[0].mxu0
      %v3466 = vadd.f32 0.0, %v3465
      %v3467 = vpop.f32.mrb[0].mxu0
      %3468 = vmatprep.mubr.bf16.mxu0 0
      %3469 = vmatmul.mubr.bf16.gmra.mrb[0].mxu0 %v3328
      %v3470 = vpop.f32.mrb[0].mxu0
      %v3471 = vadd.f32 0.0, %v3470
      %v3472 = vpop.f32.mrb[0].mxu0
      %v3473 = vpop.f32.mrb[0].mxu0
      %v3474 = vadd.f32 0.0, %v3473
      %v3475 = vpop.f32.mrb[0].mxu0
      %3476 = vmatprep.mubr.bf16.mxu0 0
      %3477 = vmatmul.mubr.bf16.gmra.mrb[0].mxu0 %v3331
      %v3478 = vpop.f32.mrb[0].mxu0
      %v3479 = vadd.f32 0.0, %v3478
      %v3480 = vpop.f32.mrb[0].mxu0
      %v3481 = vpop.f32.mrb[0].mxu0
      %v3482 = vadd.f32 0.0, %v3481
      %v3483 = vpop.f32.mrb[0].mxu0
      %3484 = vmatprep.mubr.bf16.mxu0 0
      %3485 = vmatmul.mubr.bf16.gmra.mrb[0].mxu0 %v3334
      %v3486 = vpop.f32.mrb[0].mxu0
      %v3487 = vadd.f32 0.0, %v3486
      %v3488 = vpop.f32.mrb[0].mxu0
      %v3489 = vpop.f32.mrb[0].mxu0
      %v3490 = vadd.f32 0.0, %v3489
      %v3491 = vpop.f32.mrb[0].mxu0
      %3492 = vmatprep.mubr.bf16.mxu0 0
      %3493 = vmatmul.mubr.bf16.gmra.mrb[0].mxu0 %v3337
      %v3494 = vpop.f32.mrb[0].mxu0
      %v3495 = vadd.f32 0.0, %v3494
      %v3496 = vpop.f32.mrb[0].mxu0
      %v3497 = vpop.f32.mrb[0].mxu0
      %v3498 = vadd.f32 0.0, %v3497
      %v3499 = vpop.f32.mrb[0].mxu0
      %3500 = vmatprep.mubr.bf16.mxu0 0
      %3501 = vmatmul.mubr.bf16.gmra.mrb[0].mxu0 %v3340
      %v3502 = vpop.f32.mrb[0].mxu0
      %v3503 = vadd.f32 0.0, %v3502
      %v3504 = vpop.f32.mrb[0].mxu0
      %v3505 = vpop.f32.mrb[0].mxu0
      %v3506 = vadd.f32 0.0, %v3505
      %v3507 = vpop.f32.mrb[0].mxu0
      %3508 = vmatprep.mubr.bf16.mxu0 0
      %3509 = vmatmul.mubr.bf16.gmra.mrb[0].mxu0 %v3343
      %v3510 = vpop.f32.mrb[0].mxu0
      %v3511 = vadd.f32 0.0, %v3510
      %v3512 = vpop.f32.mrb[0].mxu0
      %v3513 = vpop.f32.mrb[0].mxu0
      %v3514 = vadd.f32 0.0, %v3513
      %v3515 = vpop.f32.mrb[0].mxu0
      %3516 = vmatprep.mubr.bf16.mxu0 0
      %3517 = vmatmul.mubr.bf16.gmra.mrb[0].mxu0 %v3346
      %v3518 = vpop.f32.mrb[0].mxu0
      %v3519 = vadd.f32 0.0, %v3518
      %v3520 = vpop.f32.mrb[0].mxu0
      %v3521 = vpop.f32.mrb[0].mxu0
      %v3522 = vadd.f32 0.0, %v3521
      %v3523 = vpop.f32.mrb[0].mxu0
      %3524 = vdwg.mxu0
      %v3525 = vadd.f32 %v2963, %v3383
      %v3526 = vadd.f32 %v2964, %v3386
      %v3527 = vadd.f32 %v2965, %v3391
      %v3528 = vadd.f32 %v2966, %v3394
      %v3529 = vadd.f32 %v2967, %v3399
      %v3530 = vadd.f32 %v2968, %v3402
      %v3531 = vadd.f32 %v2969, %v3407
      %v3532 = vadd.f32 %v2970, %v3410
      %v3533 = vadd.f32 %v2971, %v3415
      %v3534 = vadd.f32 %v2972, %v3418
      %v3535 = vadd.f32 %v2973, %v3423
      %v3536 = vadd.f32 %v2974, %v3426
      %v3537 = vadd.f32 %v2975, %v3431
      %v3538 = vadd.f32 %v2976, %v3434
      %v3539 = vadd.f32 %v2977, %v3439
      %v3540 = vadd.f32 %v2978, %v3442
      %v3541 = vadd.f32 %v2979, %v3447
      %v3542 = vadd.f32 %v2980, %v3450
      %v3543 = vadd.f32 %v2981, %v3455
      %v3544 = vadd.f32 %v2982, %v3458
      %v3545 = vadd.f32 %v2983, %v3463
      %v3546 = vadd.f32 %v2984, %v3466
      %v3547 = vadd.f32 %v2985, %v3471
      %v3548 = vadd.f32 %v2986, %v3474
      %v3549 = vadd.f32 %v2987, %v3479
      %v3550 = vadd.f32 %v2988, %v3482
      %v3551 = vadd.f32 %v2989, %v3487
      %v3552 = vadd.f32 %v2990, %v3490
      %v3553 = vadd.f32 %v2991, %v3495
      %v3554 = vadd.f32 %v2992, %v3498
      %v3555 = vadd.f32 %v2993, %v3503
      %v3556 = vadd.f32 %v2994, %v3506
      %v3557 = vadd.f32 %v2995, %v3511
      %v3558 = vadd.f32 %v2996, %v3514
      %v3559 = vadd.f32 %v2997, %v3519
      %v3560 = vadd.f32 %v2998, %v3522
      %v3561 = vld [vmem:[%s308 + $0x14] sm:$0xe]
      %s3562 = scalar_lea.vmem %s312, 112
      %v3563 = vld [vmem:[%s3562] sm:$0xf]
      %v3564 = vld [vmem:[%s3562 + $0x4] sm:$0xf]
      %v3565 = vld [vmem:[%s3562 + $0x8] sm:$0xf]
      %v3566 = vld [vmem:[%s3562 + $0xc] sm:$0xf]
      %v3568 = vunpack.c.l.b16 %v3561
      %v3569 = vpack.c.b16 %v3079, %v3568
      %vm3570 = vcmask 1046528
      %v3571 = vrot.slane %v3569, 1
      %v3572 = vrot.slane %v3116, 1
      %v3573 = vsel %vm3570, %v3571, %v3572
      %v3574 = vrot.slane %v3117, 1
      %v3575 = vsel %vm3570, %v3572, %v3574
      %v3576 = vrot.slane %v3118, 1
      %v3577 = vsel %vm3570, %v3574, %v3576
      %v3578 = vrot.slane %v3119, 1
      %v3579 = vsel %vm3570, %v3576, %v3578
      %v3580 = vrot.slane %v3120, 1
      %v3581 = vsel %vm3570, %v3578, %v3580
      %v3582 = vrot.slane %v3121, 1
      %v3583 = vsel %vm3570, %v3580, %v3582
      %v3584 = vrot.slane %v3122, 1
      %v3585 = vsel %vm3570, %v3582, %v3584
      %v3586 = vrot.slane %v3123, 1
      %v3587 = vsel %vm3570, %v3584, %v3586
      %v3588 = vrot.slane %v3124, 1
      %v3589 = vsel %vm3570, %v3586, %v3588
      %v3590 = vrot.slane %v3125, 1
      %v3591 = vsel %vm3570, %v3588, %v3590
      %v3592 = vrot.slane %v3126, 1
      %v3593 = vsel %vm3570, %v3590, %v3592
      %v3594 = vrot.slane %v3127, 1
      %v3595 = vsel %vm3570, %v3592, %v3594
      %v3596 = vrot.slane %v3128, 1
      %v3597 = vsel %vm3570, %v3594, %v3596
      %v3598 = vrot.slane %v3129, 1
      %v3599 = vsel %vm3570, %v3596, %v3598
      %v3600 = vrot.slane %v3130, 1
      %v3601 = vsel %vm3570, %v3598, %v3600
      %v3602 = vrot.slane %v3131, 1
      %v3603 = vsel %vm3570, %v3600, %v3602
      %v3604 = vrot.slane %v3132, 1
      %v3605 = vsel %vm3570, %v3602, %v3604
      %v3606 = vrot.slane %v3133, 1
      %v3607 = vsel %vm3570, %v3604, %v3606
      %v3612 = vunpack.c.l.b16 %v3563
      %v3613 = vunpack.c.l.b16 %v3564
      %v3614 = vunpack.c.l.b16 %v3565
      %v3615 = vunpack.c.l.b16 %v3566
      %v3616 = vpack.c.b16 %v3613, %v3612
      %v3617 = vpack.c.b16 %v3615, %v3614
      %v3621 = vsel %vm527, %v3573, 0
      %v3624 = vsel %vm527, %v3575, 0
      %v3627 = vsel %vm527, %v3577, 0
      %v3630 = vsel %vm527, %v3579, 0
      %v3633 = vsel %vm527, %v3581, 0
      %v3636 = vsel %vm527, %v3583, 0
      %v3639 = vsel %vm527, %v3585, 0
      %v3642 = vsel %vm527, %v3587, 0
      %v3645 = vsel %vm527, %v3589, 0
      %v3648 = vsel %vm527, %v3591, 0
      %v3651 = vsel %vm527, %v3593, 0
      %v3654 = vsel %vm527, %v3595, 0
      %v3657 = vsel %vm527, %v3597, 0
      %v3660 = vsel %vm527, %v3599, 0
      %v3663 = vsel %vm527, %v3601, 0
      %v3666 = vsel %vm527, %v3603, 0
      %v3669 = vsel %vm527, %v3605, 0
      %v3672 = vsel %vm527, %v3607, 0
      %3674 = vmatprep.subr.bf16.mxu0 0
      %3675 = vmatpush1.bf16.msra.mxu0 %v3616
      %3676 = vmatprep.subr.bf16.mxu0 0
      %3677 = vmatpush1.bf16.msra.mxu0 %v3617
      %3678 = vmatprep.subr.bf16.mxu0 0
      %3679 = vmatpush1.bf16.msra.mxu0 0
      %3680 = vmatprep.subr.bf16.mxu0 0
      %3681 = vmatpush1.bf16.msra.mxu0 0
      %3682 = vmatprep.subr.bf16.mxu0 0
      %3683 = vmatpush1.bf16.msra.mxu0 0
      %3684 = vmatprep.subr.bf16.mxu0 0
      %3685 = vmatpush1.bf16.msra.mxu0 0
      %3686 = vmatprep.subr.bf16.mxu0 0
      %3687 = vmatpush1.bf16.msra.mxu0 0
      %3688 = vmatprep.subr.bf16.mxu0 0
      %3689 = vmatpush1.bf16.msra.mxu0 0
      %3690 = vmatprep.subr.bf16.mxu0 0
      %3691 = vmatpush1.bf16.msra.mxu0 0
      %3692 = vmatprep.subr.bf16.mxu0 0
      %3693 = vmatpush1.bf16.msra.mxu0 0
      %3694 = vmatprep.subr.bf16.mxu0 0
      %3695 = vmatpush1.bf16.msra.mxu0 0
      %3696 = vmatprep.subr.bf16.mxu0 0
      %3697 = vmatpush1.bf16.msra.mxu0 0
      %3698 = vmatprep.subr.bf16.mxu0 0
      %3699 = vmatpush1.bf16.msra.mxu0 0
      %3700 = vmatprep.subr.bf16.mxu0 0
      %3701 = vmatpush1.bf16.msra.mxu0 0
      %3702 = vmatprep.subr.bf16.mxu0 0
      %3703 = vmatpush1.bf16.msra.mxu0 0
      %3704 = vmatprep.subr.bf16.mxu0 0
      %3705 = vmatpush1.bf16.msra.mxu0 0
      %3706 = vmatprep.mubr.bf16.mxu0 0
      %3707 = vmatmul.mubr.bf16.gmra.mrb[0].mxu0 %v3621
      %v3708 = vpop.f32.mrb[0].mxu0
      %v3709 = vadd.f32 0.0, %v3708
      %v3710 = vpop.f32.mrb[0].mxu0
      %v3711 = vpop.f32.mrb[0].mxu0
      %v3712 = vadd.f32 0.0, %v3711
      %v3713 = vpop.f32.mrb[0].mxu0
      %3714 = vmatprep.mubr.bf16.mxu0 0
      %3715 = vmatmul.mubr.bf16.gmra.mrb[0].mxu0 %v3624
      %v3716 = vpop.f32.mrb[0].mxu0
      %v3717 = vadd.f32 0.0, %v3716
      %v3718 = vpop.f32.mrb[0].mxu0
      %v3719 = vpop.f32.mrb[0].mxu0
      %v3720 = vadd.f32 0.0, %v3719
      %v3721 = vpop.f32.mrb[0].mxu0
      %3722 = vmatprep.mubr.bf16.mxu0 0
      %3723 = vmatmul.mubr.bf16.gmra.mrb[0].mxu0 %v3627
      %v3724 = vpop.f32.mrb[0].mxu0
      %v3725 = vadd.f32 0.0, %v3724
      %v3726 = vpop.f32.mrb[0].mxu0
      %v3727 = vpop.f32.mrb[0].mxu0
      %v3728 = vadd.f32 0.0, %v3727
      %v3729 = vpop.f32.mrb[0].mxu0
      %3730 = vmatprep.mubr.bf16.mxu0 0
      %3731 = vmatmul.mubr.bf16.gmra.mrb[0].mxu0 %v3630
      %v3732 = vpop.f32.mrb[0].mxu0
      %v3733 = vadd.f32 0.0, %v3732
      %v3734 = vpop.f32.mrb[0].mxu0
      %v3735 = vpop.f32.mrb[0].mxu0
      %v3736 = vadd.f32 0.0, %v3735
      %v3737 = vpop.f32.mrb[0].mxu0
      %3738 = vmatprep.mubr.bf16.mxu0 0
      %3739 = vmatmul.mubr.bf16.gmra.mrb[0].mxu0 %v3633
      %v3740 = vpop.f32.mrb[0].mxu0
      %v3741 = vadd.f32 0.0, %v3740
      %v3742 = vpop.f32.mrb[0].mxu0
      %v3743 = vpop.f32.mrb[0].mxu0
      %v3744 = vadd.f32 0.0, %v3743
      %v3745 = vpop.f32.mrb[0].mxu0
      %3746 = vmatprep.mubr.bf16.mxu0 0
      %3747 = vmatmul.mubr.bf16.gmra.mrb[0].mxu0 %v3636
      %v3748 = vpop.f32.mrb[0].mxu0
      %v3749 = vadd.f32 0.0, %v3748
      %v3750 = vpop.f32.mrb[0].mxu0
      %v3751 = vpop.f32.mrb[0].mxu0
      %v3752 = vadd.f32 0.0, %v3751
      %v3753 = vpop.f32.mrb[0].mxu0
      %3754 = vmatprep.mubr.bf16.mxu0 0
      %3755 = vmatmul.mubr.bf16.gmra.mrb[0].mxu0 %v3639
      %v3756 = vpop.f32.mrb[0].mxu0
      %v3757 = vadd.f32 0.0, %v3756
      %v3758 = vpop.f32.mrb[0].mxu0
      %v3759 = vpop.f32.mrb[0].mxu0
      %v3760 = vadd.f32 0.0, %v3759
      %v3761 = vpop.f32.mrb[0].mxu0
      %3762 = vmatprep.mubr.bf16.mxu0 0
      %3763 = vmatmul.mubr.bf16.gmra.mrb[0].mxu0 %v3642
      %v3764 = vpop.f32.mrb[0].mxu0
      %v3765 = vadd.f32 0.0, %v3764
      %v3766 = vpop.f32.mrb[0].mxu0
      %v3767 = vpop.f32.mrb[0].mxu0
      %v3768 = vadd.f32 0.0, %v3767
      %v3769 = vpop.f32.mrb[0].mxu0
      %3770 = vmatprep.mubr.bf16.mxu0 0
      %3771 = vmatmul.mubr.bf16.gmra.mrb[0].mxu0 %v3645
      %v3772 = vpop.f32.mrb[0].mxu0
      %v3773 = vadd.f32 0.0, %v3772
      %v3774 = vpop.f32.mrb[0].mxu0
      %v3775 = vpop.f32.mrb[0].mxu0
      %v3776 = vadd.f32 0.0, %v3775
      %v3777 = vpop.f32.mrb[0].mxu0
      %3778 = vmatprep.mubr.bf16.mxu0 0
      %3779 = vmatmul.mubr.bf16.gmra.mrb[0].mxu0 %v3648
      %v3780 = vpop.f32.mrb[0].mxu0
      %v3781 = vadd.f32 0.0, %v3780
      %v3782 = vpop.f32.mrb[0].mxu0
      %v3783 = vpop.f32.mrb[0].mxu0
      %v3784 = vadd.f32 0.0, %v3783
      %v3785 = vpop.f32.mrb[0].mxu0
      %3786 = vmatprep.mubr.bf16.mxu0 0
      %3787 = vmatmul.mubr.bf16.gmra.mrb[0].mxu0 %v3651
      %v3788 = vpop.f32.mrb[0].mxu0
      %v3789 = vadd.f32 0.0, %v3788
      %v3790 = vpop.f32.mrb[0].mxu0
      %v3791 = vpop.f32.mrb[0].mxu0
      %v3792 = vadd.f32 0.0, %v3791
      %v3793 = vpop.f32.mrb[0].mxu0
      %3794 = vmatprep.mubr.bf16.mxu0 0
      %3795 = vmatmul.mubr.bf16.gmra.mrb[0].mxu0 %v3654
      %v3796 = vpop.f32.mrb[0].mxu0
      %v3797 = vadd.f32 0.0, %v3796
      %v3798 = vpop.f32.mrb[0].mxu0
      %v3799 = vpop.f32.mrb[0].mxu0
      %v3800 = vadd.f32 0.0, %v3799
      %v3801 = vpop.f32.mrb[0].mxu0
      %3802 = vmatprep.mubr.bf16.mxu0 0
      %3803 = vmatmul.mubr.bf16.gmra.mrb[0].mxu0 %v3657
      %v3804 = vpop.f32.mrb[0].mxu0
      %v3805 = vadd.f32 0.0, %v3804
      %v3806 = vpop.f32.mrb[0].mxu0
      %v3807 = vpop.f32.mrb[0].mxu0
      %v3808 = vadd.f32 0.0, %v3807
      %v3809 = vpop.f32.mrb[0].mxu0
      %3810 = vmatprep.mubr.bf16.mxu0 0
      %3811 = vmatmul.mubr.bf16.gmra.mrb[0].mxu0 %v3660
      %v3812 = vpop.f32.mrb[0].mxu0
      %v3813 = vadd.f32 0.0, %v3812
      %v3814 = vpop.f32.mrb[0].mxu0
      %v3815 = vpop.f32.mrb[0].mxu0
      %v3816 = vadd.f32 0.0, %v3815
      %v3817 = vpop.f32.mrb[0].mxu0
      %3818 = vmatprep.mubr.bf16.mxu0 0
      %3819 = vmatmul.mubr.bf16.gmra.mrb[0].mxu0 %v3663
      %v3820 = vpop.f32.mrb[0].mxu0
      %v3821 = vadd.f32 0.0, %v3820
      %v3822 = vpop.f32.mrb[0].mxu0
      %v3823 = vpop.f32.mrb[0].mxu0
      %v3824 = vadd.f32 0.0, %v3823
      %v3825 = vpop.f32.mrb[0].mxu0
      %3826 = vmatprep.mubr.bf16.mxu0 0
      %3827 = vmatmul.mubr.bf16.gmra.mrb[0].mxu0 %v3666
      %v3828 = vpop.f32.mrb[0].mxu0
      %v3829 = vadd.f32 0.0, %v3828
      %v3830 = vpop.f32.mrb[0].mxu0
      %v3831 = vpop.f32.mrb[0].mxu0
      %v3832 = vadd.f32 0.0, %v3831
      %v3833 = vpop.f32.mrb[0].mxu0
      %3834 = vmatprep.mubr.bf16.mxu0 0
      %3835 = vmatmul.mubr.bf16.gmra.mrb[0].mxu0 %v3669
      %v3836 = vpop.f32.mrb[0].mxu0
      %v3837 = vadd.f32 0.0, %v3836
      %v3838 = vpop.f32.mrb[0].mxu0
      %v3839 = vpop.f32.mrb[0].mxu0
      %v3840 = vadd.f32 0.0, %v3839
      %v3841 = vpop.f32.mrb[0].mxu0
      %3842 = vmatprep.mubr.bf16.mxu0 0
      %3843 = vmatmul.mubr.bf16.gmra.mrb[0].mxu0 %v3672
      %v3844 = vpop.f32.mrb[0].mxu0
      %v3845 = vadd.f32 0.0, %v3844
      %v3846 = vpop.f32.mrb[0].mxu0
      %v3847 = vpop.f32.mrb[0].mxu0
      %v3848 = vadd.f32 0.0, %v3847
      %v3849 = vpop.f32.mrb[0].mxu0
      %3850 = vdwg.mxu0
      %v3851 = vadd.f32 %v3525, %v3709
      %v3852 = vadd.f32 %v3526, %v3712
      %v3853 = vadd.f32 %v3527, %v3717
      %v3854 = vadd.f32 %v3528, %v3720
      %v3855 = vadd.f32 %v3529, %v3725
      %v3856 = vadd.f32 %v3530, %v3728
      %v3857 = vadd.f32 %v3531, %v3733
      %v3858 = vadd.f32 %v3532, %v3736
      %v3859 = vadd.f32 %v3533, %v3741
      %v3860 = vadd.f32 %v3534, %v3744
      %v3861 = vadd.f32 %v3535, %v3749
      %v3862 = vadd.f32 %v3536, %v3752
      %v3863 = vadd.f32 %v3537, %v3757
      %v3864 = vadd.f32 %v3538, %v3760
      %v3865 = vadd.f32 %v3539, %v3765
      %v3866 = vadd.f32 %v3540, %v3768
      %v3867 = vadd.f32 %v3541, %v3773
      %v3868 = vadd.f32 %v3542, %v3776
      %v3869 = vadd.f32 %v3543, %v3781
      %v3870 = vadd.f32 %v3544, %v3784
      %v3871 = vadd.f32 %v3545, %v3789
      %v3872 = vadd.f32 %v3546, %v3792
      %v3873 = vadd.f32 %v3547, %v3797
      %v3874 = vadd.f32 %v3548, %v3800
      %v3875 = vadd.f32 %v3549, %v3805
      %v3876 = vadd.f32 %v3550, %v3808
      %v3877 = vadd.f32 %v3551, %v3813
      %v3878 = vadd.f32 %v3552, %v3816
      %v3879 = vadd.f32 %v3553, %v3821
      %v3880 = vadd.f32 %v3554, %v3824
      %v3881 = vadd.f32 %v3555, %v3829
      %v3882 = vadd.f32 %v3556, %v3832
      %v3883 = vadd.f32 %v3557, %v3837
      %v3884 = vadd.f32 %v3558, %v3840
      %v3885 = vadd.f32 %v3559, %v3845
      %v3886 = vadd.f32 %v3560, %v3848
      %v3887 = vld [vmem:[%s308 + $0xa4] sm:$0x3]
      %s3888 = scalar_lea.vmem %s312, 128
      %v3889 = vld [vmem:[%s3888] sm:$0xf]
      %v3890 = vld [vmem:[%s3888 + $0x4] sm:$0xf]
      %v3891 = vld [vmem:[%s3888 + $0x8] sm:$0xf]
      %v3892 = vld [vmem:[%s3888 + $0xc] sm:$0xf]
      %v3894 = vunpack.c.l.b16 %v3887
      %v3895 = vpack.c.b16 %v3894, %v3894
      %vm3896 = vsmask.f32 6400
      %v3898 = vshrl.u32 %v3569, 16
      %v3900 = vrot.slane %v3898, 1
      %v3901 = vshll.u32 %v3569, 16
      %v3903 = vrot.slane %v3901, 2
      %v3904 = vor.u32 %v3900, %v3903
      %v3905 = vrot.slane %v3146, 1
      %v3906 = vrot.slane %v3142, 2
      %v3907 = vor.u32 %v3905, %v3906
      %v3908 = vsel %vm3896, %v3904, %v3907
      %v3909 = vrot.slane %v3154, 1
      %v3910 = vrot.slane %v3150, 2
      %v3911 = vor.u32 %v3909, %v3910
      %v3912 = vsel %vm3896, %v3907, %v3911
      %v3913 = vrot.slane %v3162, 1
      %v3914 = vrot.slane %v3158, 2
      %v3915 = vor.u32 %v3913, %v3914
      %v3916 = vsel %vm3896, %v3911, %v3915
      %v3917 = vrot.slane %v3170, 1
      %v3918 = vrot.slane %v3166, 2
      %v3919 = vor.u32 %v3917, %v3918
      %v3920 = vsel %vm3896, %v3915, %v3919
      %v3921 = vrot.slane %v3178, 1
      %v3922 = vrot.slane %v3174, 2
      %v3923 = vor.u32 %v3921, %v3922
      %v3924 = vsel %vm3896, %v3919, %v3923
      %v3925 = vrot.slane %v3186, 1
      %v3926 = vrot.slane %v3182, 2
      %v3927 = vor.u32 %v3925, %v3926
      %v3928 = vsel %vm3896, %v3923, %v3927
      %v3929 = vrot.slane %v3194, 1
      %v3930 = vrot.slane %v3190, 2
      %v3931 = vor.u32 %v3929, %v3930
      %v3932 = vsel %vm3896, %v3927, %v3931
      %v3933 = vrot.slane %v3202, 1
      %v3934 = vrot.slane %v3198, 2
      %v3935 = vor.u32 %v3933, %v3934
      %v3936 = vsel %vm3896, %v3931, %v3935
      %v3937 = vrot.slane %v3210, 1
      %v3938 = vrot.slane %v3206, 2
      %v3939 = vor.u32 %v3937, %v3938
      %v3940 = vsel %vm3896, %v3935, %v3939
      %v3941 = vrot.slane %v3218, 1
      %v3942 = vrot.slane %v3214, 2
      %v3943 = vor.u32 %v3941, %v3942
      %v3944 = vsel %vm3896, %v3939, %v3943
      %v3945 = vrot.slane %v3226, 1
      %v3946 = vrot.slane %v3222, 2
      %v3947 = vor.u32 %v3945, %v3946
      %v3948 = vsel %vm3896, %v3943, %v3947
      %v3949 = vrot.slane %v3234, 1
      %v3950 = vrot.slane %v3230, 2
      %v3951 = vor.u32 %v3949, %v3950
      %v3952 = vsel %vm3896, %v3947, %v3951
      %v3953 = vrot.slane %v3242, 1
      %v3954 = vrot.slane %v3238, 2
      %v3955 = vor.u32 %v3953, %v3954
      %v3956 = vsel %vm3896, %v3951, %v3955
      %v3957 = vrot.slane %v3250, 1
      %v3958 = vrot.slane %v3246, 2
      %v3959 = vor.u32 %v3957, %v3958
      %v3960 = vsel %vm3896, %v3955, %v3959
      %v3961 = vrot.slane %v3258, 1
      %v3962 = vrot.slane %v3254, 2
      %v3963 = vor.u32 %v3961, %v3962
      %v3964 = vsel %vm3896, %v3959, %v3963
      %v3965 = vrot.slane %v3266, 1
      %v3966 = vrot.slane %v3262, 2
      %v3967 = vor.u32 %v3965, %v3966
      %v3968 = vsel %vm3896, %v3963, %v3967
      %v3969 = vrot.slane %v3274, 1
      %v3970 = vrot.slane %v3270, 2
      %v3971 = vor.u32 %v3969, %v3970
      %v3972 = vsel %vm3896, %v3967, %v3971
      %v3974 = vshrl.u32 %v3895, 16
      %v3976 = vrot.slane %v3974, 1
      %v3977 = vshll.u32 %v3895, 16
      %v3979 = vrot.slane %v3977, 2
      %v3980 = vor.u32 %v3976, %v3979
      %v3981 = vsel %vm3896, %v3971, %v3980
      %v3986 = vunpack.c.l.b16 %v3889
      %v3987 = vunpack.c.l.b16 %v3890
      %v3988 = vunpack.c.l.b16 %v3891
      %v3989 = vunpack.c.l.b16 %v3892
      %v3990 = vpack.c.b16 %v3987, %v3986
      %v3991 = vpack.c.b16 %v3989, %v3988
      %v3995 = vsel %vm527, %v3908, 0
      %v3998 = vsel %vm527, %v3912, 0
      %v4001 = vsel %vm527, %v3916, 0
      %v4004 = vsel %vm527, %v3920, 0
      %v4007 = vsel %vm527, %v3924, 0
      %v4010 = vsel %vm527, %v3928, 0
      %v4013 = vsel %vm527, %v3932, 0
      %v4016 = vsel %vm527, %v3936, 0
      %v4019 = vsel %vm527, %v3940, 0
      %v4022 = vsel %vm527, %v3944, 0
      %v4025 = vsel %vm527, %v3948, 0
      %v4028 = vsel %vm527, %v3952, 0
      %v4031 = vsel %vm527, %v3956, 0
      %v4034 = vsel %vm527, %v3960, 0
      %v4037 = vsel %vm527, %v3964, 0
      %v4040 = vsel %vm527, %v3968, 0
      %v4043 = vsel %vm527, %v3972, 0
      %v4046 = vsel %vm527, %v3981, 0
      %4048 = vmatprep.subr.bf16.mxu0 0
      %4049 = vmatpush1.bf16.msra.mxu0 %v3990
      %4050 = vmatprep.subr.bf16.mxu0 0
      %4051 = vmatpush1.bf16.msra.mxu0 %v3991
      %4052 = vmatprep.subr.bf16.mxu0 0
      %4053 = vmatpush1.bf16.msra.mxu0 0
      %4054 = vmatprep.subr.bf16.mxu0 0
      %4055 = vmatpush1.bf16.msra.mxu0 0
      %4056 = vmatprep.subr.bf16.mxu0 0
      %4057 = vmatpush1.bf16.msra.mxu0 0
      %4058 = vmatprep.subr.bf16.mxu0 0
      %4059 = vmatpush1.bf16.msra.mxu0 0
      %4060 = vmatprep.subr.bf16.mxu0 0
      %4061 = vmatpush1.bf16.msra.mxu0 0
      %4062 = vmatprep.subr.bf16.mxu0 0
      %4063 = vmatpush1.bf16.msra.mxu0 0
      %4064 = vmatprep.subr.bf16.mxu0 0
      %4065 = vmatpush1.bf16.msra.mxu0 0
      %4066 = vmatprep.subr.bf16.mxu0 0
      %4067 = vmatpush1.bf16.msra.mxu0 0
      %4068 = vmatprep.subr.bf16.mxu0 0
      %4069 = vmatpush1.bf16.msra.mxu0 0
      %4070 = vmatprep.subr.bf16.mxu0 0
      %4071 = vmatpush1.bf16.msra.mxu0 0
      %4072 = vmatprep.subr.bf16.mxu0 0
      %4073 = vmatpush1.bf16.msra.mxu0 0
      %4074 = vmatprep.subr.bf16.mxu0 0
      %4075 = vmatpush1.bf16.msra.mxu0 0
      %4076 = vmatprep.subr.bf16.mxu0 0
      %4077 = vmatpush1.bf16.msra.mxu0 0
      %4078 = vmatprep.subr.bf16.mxu0 0
      %4079 = vmatpush1.bf16.msra.mxu0 0
      %4080 = vmatprep.mubr.bf16.mxu0 0
      %4081 = vmatmul.mubr.bf16.gmra.mrb[0].mxu0 %v3995
      %v4082 = vpop.f32.mrb[0].mxu0
      %v4083 = vadd.f32 0.0, %v4082
      %v4084 = vpop.f32.mrb[0].mxu0
      %v4085 = vpop.f32.mrb[0].mxu0
      %v4086 = vadd.f32 0.0, %v4085
      %v4087 = vpop.f32.mrb[0].mxu0
      %4088 = vmatprep.mubr.bf16.mxu0 0
      %4089 = vmatmul.mubr.bf16.gmra.mrb[0].mxu0 %v3998
      %v4090 = vpop.f32.mrb[0].mxu0
      %v4091 = vadd.f32 0.0, %v4090
      %v4092 = vpop.f32.mrb[0].mxu0
      %v4093 = vpop.f32.mrb[0].mxu0
      %v4094 = vadd.f32 0.0, %v4093
      %v4095 = vpop.f32.mrb[0].mxu0
      %4096 = vmatprep.mubr.bf16.mxu0 0
      %4097 = vmatmul.mubr.bf16.gmra.mrb[0].mxu0 %v4001
      %v4098 = vpop.f32.mrb[0].mxu0
      %v4099 = vadd.f32 0.0, %v4098
      %v4100 = vpop.f32.mrb[0].mxu0
      %v4101 = vpop.f32.mrb[0].mxu0
      %v4102 = vadd.f32 0.0, %v4101
      %v4103 = vpop.f32.mrb[0].mxu0
      %4104 = vmatprep.mubr.bf16.mxu0 0
      %4105 = vmatmul.mubr.bf16.gmra.mrb[0].mxu0 %v4004
      %v4106 = vpop.f32.mrb[0].mxu0
      %v4107 = vadd.f32 0.0, %v4106
      %v4108 = vpop.f32.mrb[0].mxu0
      %v4109 = vpop.f32.mrb[0].mxu0
      %v4110 = vadd.f32 0.0, %v4109
      %v4111 = vpop.f32.mrb[0].mxu0
      %4112 = vmatprep.mubr.bf16.mxu0 0
      %4113 = vmatmul.mubr.bf16.gmra.mrb[0].mxu0 %v4007
      %v4114 = vpop.f32.mrb[0].mxu0
      %v4115 = vadd.f32 0.0, %v4114
      %v4116 = vpop.f32.mrb[0].mxu0
      %v4117 = vpop.f32.mrb[0].mxu0
      %v4118 = vadd.f32 0.0, %v4117
      %v4119 = vpop.f32.mrb[0].mxu0
      %4120 = vmatprep.mubr.bf16.mxu0 0
      %4121 = vmatmul.mubr.bf16.gmra.mrb[0].mxu0 %v4010
      %v4122 = vpop.f32.mrb[0].mxu0
      %v4123 = vadd.f32 0.0, %v4122
      %v4124 = vpop.f32.mrb[0].mxu0
      %v4125 = vpop.f32.mrb[0].mxu0
      %v4126 = vadd.f32 0.0, %v4125
      %v4127 = vpop.f32.mrb[0].mxu0
      %4128 = vmatprep.mubr.bf16.mxu0 0
      %4129 = vmatmul.mubr.bf16.gmra.mrb[0].mxu0 %v4013
      %v4130 = vpop.f32.mrb[0].mxu0
      %v4131 = vadd.f32 0.0, %v4130
      %v4132 = vpop.f32.mrb[0].mxu0
      %v4133 = vpop.f32.mrb[0].mxu0
      %v4134 = vadd.f32 0.0, %v4133
      %v4135 = vpop.f32.mrb[0].mxu0
      %4136 = vmatprep.mubr.bf16.mxu0 0
      %4137 = vmatmul.mubr.bf16.gmra.mrb[0].mxu0 %v4016
      %v4138 = vpop.f32.mrb[0].mxu0
      %v4139 = vadd.f32 0.0, %v4138
      %v4140 = vpop.f32.mrb[0].mxu0
      %v4141 = vpop.f32.mrb[0].mxu0
      %v4142 = vadd.f32 0.0, %v4141
      %v4143 = vpop.f32.mrb[0].mxu0
      %4144 = vmatprep.mubr.bf16.mxu0 0
      %4145 = vmatmul.mubr.bf16.gmra.mrb[0].mxu0 %v4019
      %v4146 = vpop.f32.mrb[0].mxu0
      %v4147 = vadd.f32 0.0, %v4146
      %v4148 = vpop.f32.mrb[0].mxu0
      %v4149 = vpop.f32.mrb[0].mxu0
      %v4150 = vadd.f32 0.0, %v4149
      %v4151 = vpop.f32.mrb[0].mxu0
      %4152 = vmatprep.mubr.bf16.mxu0 0
      %4153 = vmatmul.mubr.bf16.gmra.mrb[0].mxu0 %v4022
      %v4154 = vpop.f32.mrb[0].mxu0
      %v4155 = vadd.f32 0.0, %v4154
      %v4156 = vpop.f32.mrb[0].mxu0
      %v4157 = vpop.f32.mrb[0].mxu0
      %v4158 = vadd.f32 0.0, %v4157
      %v4159 = vpop.f32.mrb[0].mxu0
      %4160 = vmatprep.mubr.bf16.mxu0 0
      %4161 = vmatmul.mubr.bf16.gmra.mrb[0].mxu0 %v4025
      %v4162 = vpop.f32.mrb[0].mxu0
      %v4163 = vadd.f32 0.0, %v4162
      %v4164 = vpop.f32.mrb[0].mxu0
      %v4165 = vpop.f32.mrb[0].mxu0
      %v4166 = vadd.f32 0.0, %v4165
      %v4167 = vpop.f32.mrb[0].mxu0
      %4168 = vmatprep.mubr.bf16.mxu0 0
      %4169 = vmatmul.mubr.bf16.gmra.mrb[0].mxu0 %v4028
      %v4170 = vpop.f32.mrb[0].mxu0
      %v4171 = vadd.f32 0.0, %v4170
      %v4172 = vpop.f32.mrb[0].mxu0
      %v4173 = vpop.f32.mrb[0].mxu0
      %v4174 = vadd.f32 0.0, %v4173
      %v4175 = vpop.f32.mrb[0].mxu0
      %4176 = vmatprep.mubr.bf16.mxu0 0
      %4177 = vmatmul.mubr.bf16.gmra.mrb[0].mxu0 %v4031
      %v4178 = vpop.f32.mrb[0].mxu0
      %v4179 = vadd.f32 0.0, %v4178
      %v4180 = vpop.f32.mrb[0].mxu0
      %v4181 = vpop.f32.mrb[0].mxu0
      %v4182 = vadd.f32 0.0, %v4181
      %v4183 = vpop.f32.mrb[0].mxu0
      %4184 = vmatprep.mubr.bf16.mxu0 0
      %4185 = vmatmul.mubr.bf16.gmra.mrb[0].mxu0 %v4034
      %v4186 = vpop.f32.mrb[0].mxu0
      %v4187 = vadd.f32 0.0, %v4186
      %v4188 = vpop.f32.mrb[0].mxu0
      %v4189 = vpop.f32.mrb[0].mxu0
      %v4190 = vadd.f32 0.0, %v4189
      %v4191 = vpop.f32.mrb[0].mxu0
      %4192 = vmatprep.mubr.bf16.mxu0 0
      %4193 = vmatmul.mubr.bf16.gmra.mrb[0].mxu0 %v4037
      %v4194 = vpop.f32.mrb[0].mxu0
      %v4195 = vadd.f32 0.0, %v4194
      %v4196 = vpop.f32.mrb[0].mxu0
      %v4197 = vpop.f32.mrb[0].mxu0
      %v4198 = vadd.f32 0.0, %v4197
      %v4199 = vpop.f32.mrb[0].mxu0
      %4200 = vmatprep.mubr.bf16.mxu0 0
      %4201 = vmatmul.mubr.bf16.gmra.mrb[0].mxu0 %v4040
      %v4202 = vpop.f32.mrb[0].mxu0
      %v4203 = vadd.f32 0.0, %v4202
      %v4204 = vpop.f32.mrb[0].mxu0
      %v4205 = vpop.f32.mrb[0].mxu0
      %v4206 = vadd.f32 0.0, %v4205
      %v4207 = vpop.f32.mrb[0].mxu0
      %4208 = vmatprep.mubr.bf16.mxu0 0
      %4209 = vmatmul.mubr.bf16.gmra.mrb[0].mxu0 %v4043
      %v4210 = vpop.f32.mrb[0].mxu0
      %v4211 = vadd.f32 0.0, %v4210
      %v4212 = vpop.f32.mrb[0].mxu0
      %v4213 = vpop.f32.mrb[0].mxu0
      %v4214 = vadd.f32 0.0, %v4213
      %v4215 = vpop.f32.mrb[0].mxu0
      %4216 = vmatprep.mubr.bf16.mxu0 0
      %4217 = vmatmul.mubr.bf16.gmra.mrb[0].mxu0 %v4046
      %v4218 = vpop.f32.mrb[0].mxu0
      %v4219 = vadd.f32 0.0, %v4218
      %v4220 = vpop.f32.mrb[0].mxu0
      %v4221 = vpop.f32.mrb[0].mxu0
      %v4222 = vadd.f32 0.0, %v4221
      %v4223 = vpop.f32.mrb[0].mxu0
      %4224 = vdwg.mxu0
      %v4225 = vadd.f32 %v3851, %v4083
      %v4226 = vadd.f32 %v3852, %v4086
      %v4227 = vadd.f32 %v3853, %v4091
      %v4228 = vadd.f32 %v3854, %v4094
      %v4229 = vadd.f32 %v3855, %v4099
      %v4230 = vadd.f32 %v3856, %v4102
      %v4231 = vadd.f32 %v3857, %v4107
      %v4232 = vadd.f32 %v3858, %v4110
      %v4233 = vadd.f32 %v3859, %v4115
      %v4234 = vadd.f32 %v3860, %v4118
      %v4235 = vadd.f32 %v3861, %v4123
      %v4236 = vadd.f32 %v3862, %v4126
      %v4237 = vadd.f32 %v3863, %v4131
      %v4238 = vadd.f32 %v3864, %v4134
      %v4239 = vadd.f32 %v3865, %v4139
      %v4240 = vadd.f32 %v3866, %v4142
      %v4241 = vadd.f32 %v3867, %v4147
      %v4242 = vadd.f32 %v3868, %v4150
      %v4243 = vadd.f32 %v3869, %v4155
      %v4244 = vadd.f32 %v3870, %v4158
      %v4245 = vadd.f32 %v3871, %v4163
      %v4246 = vadd.f32 %v3872, %v4166
      %v4247 = vadd.f32 %v3873, %v4171
      %v4248 = vadd.f32 %v3874, %v4174
      %v4249 = vadd.f32 %v3875, %v4179
      %v4250 = vadd.f32 %v3876, %v4182
      %v4251 = vadd.f32 %v3877, %v4187
      %v4252 = vadd.f32 %v3878, %v4190
      %v4253 = vadd.f32 %v3879, %v4195
      %v4254 = vadd.f32 %v3880, %v4198
      %v4255 = vadd.f32 %v3881, %v4203
      %v4256 = vadd.f32 %v3882, %v4206
      %v4257 = vadd.f32 %v3883, %v4211
      %v4258 = vadd.f32 %v3884, %v4214
      %v4259 = vadd.f32 %v3885, %v4219
      %v4260 = vadd.f32 %v3886, %v4222
      %v4261 = vld [vmem:[%s315] sm:$0x1]
      %v4263 = vlaneseq
      %v4264 = vshrl.u32 %v4263, 7
      %v4265 = vsub.s32 0, %v4264
      %v4266 = vrot.slane %v4261, %v4265
      %v4268 = vadd.f32 %v4225, %v4266
      %v4269 = vadd.f32 %v4226, %v4266
      %v4270 = vadd.f32 %v4227, %v4266
      %v4271 = vadd.f32 %v4228, %v4266
      %v4272 = vadd.f32 %v4229, %v4266
      %v4273 = vadd.f32 %v4230, %v4266
      %v4274 = vadd.f32 %v4231, %v4266
      %v4275 = vadd.f32 %v4232, %v4266
      %v4276 = vadd.f32 %v4233, %v4266
      %v4277 = vadd.f32 %v4234, %v4266
      %v4278 = vadd.f32 %v4235, %v4266
      %v4279 = vadd.f32 %v4236, %v4266
      %v4280 = vadd.f32 %v4237, %v4266
      %v4281 = vadd.f32 %v4238, %v4266
      %v4282 = vadd.f32 %v4239, %v4266
      %v4283 = vadd.f32 %v4240, %v4266
      %v4284 = vadd.f32 %v4241, %v4266
      %v4285 = vadd.f32 %v4242, %v4266
      %v4286 = vadd.f32 %v4243, %v4266
      %v4287 = vadd.f32 %v4244, %v4266
      %v4288 = vadd.f32 %v4245, %v4266
      %v4289 = vadd.f32 %v4246, %v4266
      %v4290 = vadd.f32 %v4247, %v4266
      %v4291 = vadd.f32 %v4248, %v4266
      %v4292 = vadd.f32 %v4249, %v4266
      %v4293 = vadd.f32 %v4250, %v4266
      %v4294 = vadd.f32 %v4251, %v4266
      %v4295 = vadd.f32 %v4252, %v4266
      %v4296 = vadd.f32 %v4253, %v4266
      %v4297 = vadd.f32 %v4254, %v4266
      %v4298 = vadd.f32 %v4255, %v4266
      %v4299 = vadd.f32 %v4256, %v4266
      %v4300 = vadd.f32 %v4257, %v4266
      %v4301 = vadd.f32 %v4258, %v4266
      %v4302 = vadd.f32 %v4259, %v4266
      %v4303 = vadd.f32 %v4260, %v4266
      %4304 = vst.msk [vmem:[%s323] sm:$0xff] %vm527, %v4268
      %4305 = vst.msk [vmem:[%s323 + $0x8] sm:$0xff] %vm527, %v4269
      %4306 = vst.msk [vmem:[%s323 + $0x10] sm:$0xff] %vm527, %v4270
      %4307 = vst.msk [vmem:[%s323 + $0x18] sm:$0xff] %vm527, %v4271
      %4308 = vst.msk [vmem:[%s323 + $0x20] sm:$0xff] %vm527, %v4272
      %4309 = vst.msk [vmem:[%s323 + $0x28] sm:$0xff] %vm527, %v4273
      %4310 = vst.msk [vmem:[%s323 + $0x30] sm:$0xff] %vm527, %v4274
      %4311 = vst.msk [vmem:[%s323 + $0x38] sm:$0xff] %vm527, %v4275
      %4312 = vst.msk [vmem:[%s323 + $0x40] sm:$0xff] %vm527, %v4276
      %4313 = vst.msk [vmem:[%s323 + $0x48] sm:$0xff] %vm527, %v4277
      %4314 = vst.msk [vmem:[%s323 + $0x50] sm:$0xff] %vm527, %v4278
      %4315 = vst.msk [vmem:[%s323 + $0x58] sm:$0xff] %vm527, %v4279
      %4316 = vst.msk [vmem:[%s323 + $0x60] sm:$0xff] %vm527, %v4280
      %4317 = vst.msk [vmem:[%s323 + $0x68] sm:$0xff] %vm527, %v4281
      %4318 = vst.msk [vmem:[%s323 + $0x70] sm:$0xff] %vm527, %v4282
      %4319 = vst.msk [vmem:[%s323 + $0x78] sm:$0xff] %vm527, %v4283
      %4320 = vst.msk [vmem:[%s323 + $0x80] sm:$0xff] %vm527, %v4284
      %4321 = vst.msk [vmem:[%s323 + $0x88] sm:$0xff] %vm527, %v4285
      %4322 = vst.msk [vmem:[%s323 + $0x90] sm:$0xff] %vm527, %v4286
      %4323 = vst.msk [vmem:[%s323 + $0x98] sm:$0xff] %vm527, %v4287
      %4324 = vst.msk [vmem:[%s323 + $0xa0] sm:$0xff] %vm527, %v4288
      %4325 = vst.msk [vmem:[%s323 + $0xa8] sm:$0xff] %vm527, %v4289
      %4326 = vst.msk [vmem:[%s323 + $0xb0] sm:$0xff] %vm527, %v4290
      %4327 = vst.msk [vmem:[%s323 + $0xb8] sm:$0xff] %vm527, %v4291
      %4328 = vst.msk [vmem:[%s323 + $0xc0] sm:$0xff] %vm527, %v4292
      %4329 = vst.msk [vmem:[%s323 + $0xc8] sm:$0xff] %vm527, %v4293
      %4330 = vst.msk [vmem:[%s323 + $0xd0] sm:$0xff] %vm527, %v4294
      %4331 = vst.msk [vmem:[%s323 + $0xd8] sm:$0xff] %vm527, %v4295
      %4332 = vst.msk [vmem:[%s323 + $0xe0] sm:$0xff] %vm527, %v4296
      %4333 = vst.msk [vmem:[%s323 + $0xe8] sm:$0xff] %vm527, %v4297
      %4334 = vst.msk [vmem:[%s323 + $0xf0] sm:$0xff] %vm527, %v4298
      %4335 = vst.msk [vmem:[%s323 + $0xf8] sm:$0xff] %vm527, %v4299
      %4336 = vst.msk [vmem:[%s323 + $0x100] sm:$0xff] %vm527, %v4300
      %4337 = vst.msk [vmem:[%s323 + $0x108] sm:$0xff] %vm527, %v4301
      %4338 = vst.msk [vmem:[%s323 + $0x110] sm:$0xff] %vm527, %v4302
      %4339 = vst.msk [vmem:[%s323 + $0x118] sm:$0xff] %vm527, %v4303
      %v4340 = vld [vmem:[%s3] sm:$0xff]
      %v4341 = vld [vmem:[%s3 + $0x8] sm:$0xff]
      %v4342 = vld [vmem:[%s3 + $0x10] sm:$0xff]
      %v4343 = vld [vmem:[%s3 + $0x18] sm:$0xff]
      %v4344 = vld [vmem:[%s3 + $0x20] sm:$0xff]
      %v4345 = vld [vmem:[%s3 + $0x28] sm:$0xff]
      %v4346 = vld [vmem:[%s3 + $0x30] sm:$0xff]
      %v4347 = vld [vmem:[%s3 + $0x38] sm:$0xff]
      %v4348 = vld [vmem:[%s3 + $0x40] sm:$0xff]
      %v4349 = vld [vmem:[%s3 + $0x48] sm:$0xff]
      %v4350 = vld [vmem:[%s3 + $0x50] sm:$0xff]
      %v4351 = vld [vmem:[%s3 + $0x58] sm:$0xff]
      %v4352 = vld [vmem:[%s3 + $0x60] sm:$0xff]
      %v4353 = vld [vmem:[%s3 + $0x68] sm:$0xff]
      %v4354 = vld [vmem:[%s3 + $0x70] sm:$0xff]
      %v4355 = vld [vmem:[%s3 + $0x78] sm:$0xff]
      %v4356 = vld [vmem:[%s3 + $0x80] sm:$0xff]
      %v4357 = vld [vmem:[%s3 + $0x88] sm:$0xff]
      %v4358 = vld [vmem:[%s3 + $0x90] sm:$0xff]
      %v4359 = vld [vmem:[%s3 + $0x98] sm:$0xff]
      %v4360 = vld [vmem:[%s3 + $0xa0] sm:$0xff]
      %v4361 = vld [vmem:[%s3 + $0xa8] sm:$0xff]
      %v4362 = vld [vmem:[%s3 + $0xb0] sm:$0xff]
      %v4363 = vld [vmem:[%s3 + $0xb8] sm:$0xff]
      %v4364 = vld [vmem:[%s3 + $0xc0] sm:$0xff]
      %v4365 = vld [vmem:[%s3 + $0xc8] sm:$0xff]
      %v4366 = vld [vmem:[%s3 + $0xd0] sm:$0xff]
      %v4367 = vld [vmem:[%s3 + $0xd8] sm:$0xff]
      %v4368 = vld [vmem:[%s3 + $0xe0] sm:$0xff]
      %v4369 = vld [vmem:[%s3 + $0xe8] sm:$0xff]
      %v4370 = vld [vmem:[%s3 + $0xf0] sm:$0xff]
      %v4371 = vld [vmem:[%s3 + $0xf8] sm:$0xff]
      %v4372 = vld [vmem:[%s3 + $0x100] sm:$0xff]
      %v4373 = vld [vmem:[%s3 + $0x108] sm:$0xff]
      %v4374 = vld [vmem:[%s3 + $0x110] sm:$0xff]
      %v4375 = vld [vmem:[%s3 + $0x118] sm:$0xff]
      %4377 = vset.pattern.permute.xlu0 0
      %4378 = vperm.xlu0 %4377, %v4340
      %v4379 = vpop.permute.xlu0 %4378
      %4382 = vset.pattern.permute.xlu0 0
      %4383 = vperm.xlu0 %4382, %v4341
      %v4384 = vpop.permute.xlu0 %4383
      %4387 = vset.pattern.permute.xlu0 0
      %4388 = vperm.xlu0 %4387, %v4342
      %v4389 = vpop.permute.xlu0 %4388
      %4392 = vset.pattern.permute.xlu0 0
      %4393 = vperm.xlu0 %4392, %v4343
      %v4394 = vpop.permute.xlu0 %4393
      %4397 = vset.pattern.permute.xlu0 0
      %4398 = vperm.xlu0 %4397, %v4344
      %v4399 = vpop.permute.xlu0 %4398
      %4402 = vset.pattern.permute.xlu0 0
      %4403 = vperm.xlu0 %4402, %v4345
      %v4404 = vpop.permute.xlu0 %4403
      %4407 = vset.pattern.permute.xlu0 0
      %4408 = vperm.xlu0 %4407, %v4346
      %v4409 = vpop.permute.xlu0 %4408
      %4412 = vset.pattern.permute.xlu0 0
      %4413 = vperm.xlu0 %4412, %v4347
      %v4414 = vpop.permute.xlu0 %4413
      %4417 = vset.pattern.permute.xlu0 0
      %4418 = vperm.xlu0 %4417, %v4348
      %v4419 = vpop.permute.xlu0 %4418
      %4422 = vset.pattern.permute.xlu0 0
      %4423 = vperm.xlu0 %4422, %v4349
      %v4424 = vpop.permute.xlu0 %4423
      %4427 = vset.pattern.permute.xlu0 0
      %4428 = vperm.xlu0 %4427, %v4350
      %v4429 = vpop.permute.xlu0 %4428
      %4432 = vset.pattern.permute.xlu0 0
      %4433 = vperm.xlu0 %4432, %v4351
      %v4434 = vpop.permute.xlu0 %4433
      %4437 = vset.pattern.permute.xlu0 0
      %4438 = vperm.xlu0 %4437, %v4352
      %v4439 = vpop.permute.xlu0 %4438
      %4442 = vset.pattern.permute.xlu0 0
      %4443 = vperm.xlu0 %4442, %v4353
      %v4444 = vpop.permute.xlu0 %4443
      %4447 = vset.pattern.permute.xlu0 0
      %4448 = vperm.xlu0 %4447, %v4354
      %v4449 = vpop.permute.xlu0 %4448
      %4452 = vset.pattern.permute.xlu0 0
      %4453 = vperm.xlu0 %4452, %v4355
      %v4454 = vpop.permute.xlu0 %4453
      %4457 = vset.pattern.permute.xlu0 0
      %4458 = vperm.xlu0 %4457, %v4356
      %v4459 = vpop.permute.xlu0 %4458
      %4462 = vset.pattern.permute.xlu0 0
      %4463 = vperm.xlu0 %4462, %v4357
      %v4464 = vpop.permute.xlu0 %4463
      %4467 = vset.pattern.permute.xlu0 0
      %4468 = vperm.xlu0 %4467, %v4358
      %v4469 = vpop.permute.xlu0 %4468
      %4472 = vset.pattern.permute.xlu0 0
      %4473 = vperm.xlu0 %4472, %v4359
      %v4474 = vpop.permute.xlu0 %4473
      %4477 = vset.pattern.permute.xlu0 0
      %4478 = vperm.xlu0 %4477, %v4360
      %v4479 = vpop.permute.xlu0 %4478
      %4482 = vset.pattern.permute.xlu0 0
      %4483 = vperm.xlu0 %4482, %v4361
      %v4484 = vpop.permute.xlu0 %4483
      %4487 = vset.pattern.permute.xlu0 0
      %4488 = vperm.xlu0 %4487, %v4362
      %v4489 = vpop.permute.xlu0 %4488
      %4492 = vset.pattern.permute.xlu0 0
      %4493 = vperm.xlu0 %4492, %v4363
      %v4494 = vpop.permute.xlu0 %4493
      %4497 = vset.pattern.permute.xlu0 0
      %4498 = vperm.xlu0 %4497, %v4364
      %v4499 = vpop.permute.xlu0 %4498
      %4502 = vset.pattern.permute.xlu0 0
      %4503 = vperm.xlu0 %4502, %v4365
      %v4504 = vpop.permute.xlu0 %4503
      %4507 = vset.pattern.permute.xlu0 0
      %4508 = vperm.xlu0 %4507, %v4366
      %v4509 = vpop.permute.xlu0 %4508
      %4512 = vset.pattern.permute.xlu0 0
      %4513 = vperm.xlu0 %4512, %v4367
      %v4514 = vpop.permute.xlu0 %4513
      %4517 = vset.pattern.permute.xlu0 0
      %4518 = vperm.xlu0 %4517, %v4368
      %v4519 = vpop.permute.xlu0 %4518
      %4522 = vset.pattern.permute.xlu0 0
      %4523 = vperm.xlu0 %4522, %v4369
      %v4524 = vpop.permute.xlu0 %4523
      %4527 = vset.pattern.permute.xlu0 0
      %4528 = vperm.xlu0 %4527, %v4370
      %v4529 = vpop.permute.xlu0 %4528
      %4532 = vset.pattern.permute.xlu0 0
      %4533 = vperm.xlu0 %4532, %v4371
      %v4534 = vpop.permute.xlu0 %4533
      %4537 = vset.pattern.permute.xlu0 0
      %4538 = vperm.xlu0 %4537, %v4372
      %v4539 = vpop.permute.xlu0 %4538
      %4542 = vset.pattern.permute.xlu0 0
      %4543 = vperm.xlu0 %4542, %v4373
      %v4544 = vpop.permute.xlu0 %4543
      %4547 = vset.pattern.permute.xlu0 0
      %4548 = vperm.xlu0 %4547, %v4374
      %v4549 = vpop.permute.xlu0 %4548
      %4552 = vset.pattern.permute.xlu0 0
      %4553 = vperm.xlu0 %4552, %v4375
      %v4554 = vpop.permute.xlu0 %4553
      %v4556 = vmul.f32 %v4268, %v4379
      %v4557 = vmul.f32 %v4269, %v4384
      %v4558 = vmul.f32 %v4270, %v4389
      %v4559 = vmul.f32 %v4271, %v4394
      %v4560 = vmul.f32 %v4272, %v4399
      %v4561 = vmul.f32 %v4273, %v4404
      %v4562 = vmul.f32 %v4274, %v4409
      %v4563 = vmul.f32 %v4275, %v4414
      %v4564 = vmul.f32 %v4276, %v4419
      %v4565 = vmul.f32 %v4277, %v4424
      %v4566 = vmul.f32 %v4278, %v4429
      %v4567 = vmul.f32 %v4279, %v4434
      %v4568 = vmul.f32 %v4280, %v4439
      %v4569 = vmul.f32 %v4281, %v4444
      %v4570 = vmul.f32 %v4282, %v4449
      %v4571 = vmul.f32 %v4283, %v4454
      %v4572 = vmul.f32 %v4284, %v4459
      %v4573 = vmul.f32 %v4285, %v4464
      %v4574 = vmul.f32 %v4286, %v4469
      %v4575 = vmul.f32 %v4287, %v4474
      %v4576 = vmul.f32 %v4288, %v4479
      %v4577 = vmul.f32 %v4289, %v4484
      %v4578 = vmul.f32 %v4290, %v4489
      %v4579 = vmul.f32 %v4291, %v4494
      %v4580 = vmul.f32 %v4292, %v4499
      %v4581 = vmul.f32 %v4293, %v4504
      %v4582 = vmul.f32 %v4294, %v4509
      %v4583 = vmul.f32 %v4295, %v4514
      %v4584 = vmul.f32 %v4296, %v4519
      %v4585 = vmul.f32 %v4297, %v4524
      %v4586 = vmul.f32 %v4298, %v4529
      %v4587 = vmul.f32 %v4299, %v4534
      %v4588 = vmul.f32 %v4300, %v4539
      %v4589 = vmul.f32 %v4301, %v4544
      %v4590 = vmul.f32 %v4302, %v4549
      %v4591 = vmul.f32 %v4303, %v4554
      %v4592 = vsel %vm527, %v4556, 0.0
      %v4593 = vsel %vm527, %v4557, 0.0
      %v4594 = vadd.f32 %v4592, %v4593
      %v4595 = vsel %vm527, %v4558, 0.0
      %v4596 = vadd.f32 %v4594, %v4595
      %v4597 = vsel %vm527, %v4559, 0.0
      %v4598 = vadd.f32 %v4596, %v4597
      %v4599 = vsel %vm527, %v4560, 0.0
      %v4600 = vadd.f32 %v4598, %v4599
      %v4601 = vsel %vm527, %v4561, 0.0
      %v4602 = vadd.f32 %v4600, %v4601
      %v4603 = vsel %vm527, %v4562, 0.0
      %v4604 = vadd.f32 %v4602, %v4603
      %v4605 = vsel %vm527, %v4563, 0.0
      %v4606 = vadd.f32 %v4604, %v4605
      %v4607 = vsel %vm527, %v4564, 0.0
      %v4608 = vadd.f32 %v4606, %v4607
      %v4609 = vsel %vm527, %v4565, 0.0
      %v4610 = vadd.f32 %v4608, %v4609
      %v4611 = vsel %vm527, %v4566, 0.0
      %v4612 = vadd.f32 %v4610, %v4611
      %v4613 = vsel %vm527, %v4567, 0.0
      %v4614 = vadd.f32 %v4612, %v4613
      %v4615 = vsel %vm527, %v4568, 0.0
      %v4616 = vadd.f32 %v4614, %v4615
      %v4617 = vsel %vm527, %v4569, 0.0
      %v4618 = vadd.f32 %v4616, %v4617
      %v4619 = vsel %vm527, %v4570, 0.0
      %v4620 = vadd.f32 %v4618, %v4619
      %v4621 = vsel %vm527, %v4571, 0.0
      %v4622 = vadd.f32 %v4620, %v4621
      %v4623 = vsel %vm527, %v4572, 0.0
      %v4624 = vadd.f32 %v4622, %v4623
      %v4625 = vsel %vm527, %v4573, 0.0
      %v4626 = vadd.f32 %v4624, %v4625
      %v4627 = vsel %vm527, %v4574, 0.0
      %v4628 = vadd.f32 %v4626, %v4627
      %v4629 = vsel %vm527, %v4575, 0.0
      %v4630 = vadd.f32 %v4628, %v4629
      %v4631 = vsel %vm527, %v4576, 0.0
      %v4632 = vadd.f32 %v4630, %v4631
      %v4633 = vsel %vm527, %v4577, 0.0
      %v4634 = vadd.f32 %v4632, %v4633
      %v4635 = vsel %vm527, %v4578, 0.0
      %v4636 = vadd.f32 %v4634, %v4635
      %v4637 = vsel %vm527, %v4579, 0.0
      %v4638 = vadd.f32 %v4636, %v4637
      %v4639 = vsel %vm527, %v4580, 0.0
      %v4640 = vadd.f32 %v4638, %v4639
      %v4641 = vsel %vm527, %v4581, 0.0
      %v4642 = vadd.f32 %v4640, %v4641
      %v4643 = vsel %vm527, %v4582, 0.0
      %v4644 = vadd.f32 %v4642, %v4643
      %v4645 = vsel %vm527, %v4583, 0.0
      %v4646 = vadd.f32 %v4644, %v4645
      %v4647 = vsel %vm527, %v4584, 0.0
      %v4648 = vadd.f32 %v4646, %v4647
      %v4649 = vsel %vm527, %v4585, 0.0
      %v4650 = vadd.f32 %v4648, %v4649
      %v4651 = vsel %vm527, %v4586, 0.0
      %v4652 = vadd.f32 %v4650, %v4651
      %v4653 = vsel %vm527, %v4587, 0.0
      %v4654 = vadd.f32 %v4652, %v4653
      %v4655 = vsel %vm527, %v4588, 0.0
      %v4656 = vadd.f32 %v4654, %v4655
      %v4657 = vsel %vm527, %v4589, 0.0
      %v4658 = vadd.f32 %v4656, %v4657
      %v4659 = vsel %vm527, %v4590, 0.0
      %v4660 = vadd.f32 %v4658, %v4659
      %v4661 = vsel %vm527, %v4591, 0.0
      %v4662 = vadd.f32 %v4660, %v4661
      %v4663 = vrot.slane %v4662, 4
      %v4664 = vadd.f32 %v4662, %v4663
      %v4665 = vrot.slane %v4664, 2
      %v4666 = vadd.f32 %v4664, %v4665
      %v4667 = vrot.slane %v4666, 1
      %v4668 = vadd.f32 %v4666, %v4667
      %vm4669 = vcmask 253952
      %4670 = vst.msk [vmem:[%s329] sm:$0x1] %vm4669, %v4668
      %v4671 = vmul.f32 %v4556, %v4268
      %v4672 = vmul.f32 %v4557, %v4269
      %v4673 = vmul.f32 %v4558, %v4270
      %v4674 = vmul.f32 %v4559, %v4271
      %v4675 = vmul.f32 %v4560, %v4272
      %v4676 = vmul.f32 %v4561, %v4273
      %v4677 = vmul.f32 %v4562, %v4274
      %v4678 = vmul.f32 %v4563, %v4275
      %v4679 = vmul.f32 %v4564, %v4276
      %v4680 = vmul.f32 %v4565, %v4277
      %v4681 = vmul.f32 %v4566, %v4278
      %v4682 = vmul.f32 %v4567, %v4279
      %v4683 = vmul.f32 %v4568, %v4280
      %v4684 = vmul.f32 %v4569, %v4281
      %v4685 = vmul.f32 %v4570, %v4282
      %v4686 = vmul.f32 %v4571, %v4283
      %v4687 = vmul.f32 %v4572, %v4284
      %v4688 = vmul.f32 %v4573, %v4285
      %v4689 = vmul.f32 %v4574, %v4286
      %v4690 = vmul.f32 %v4575, %v4287
      %v4691 = vmul.f32 %v4576, %v4288
      %v4692 = vmul.f32 %v4577, %v4289
      %v4693 = vmul.f32 %v4578, %v4290
      %v4694 = vmul.f32 %v4579, %v4291
      %v4695 = vmul.f32 %v4580, %v4292
      %v4696 = vmul.f32 %v4581, %v4293
      %v4697 = vmul.f32 %v4582, %v4294
      %v4698 = vmul.f32 %v4583, %v4295
      %v4699 = vmul.f32 %v4584, %v4296
      %v4700 = vmul.f32 %v4585, %v4297
      %v4701 = vmul.f32 %v4586, %v4298
      %v4702 = vmul.f32 %v4587, %v4299
      %v4703 = vmul.f32 %v4588, %v4300
      %v4704 = vmul.f32 %v4589, %v4301
      %v4705 = vmul.f32 %v4590, %v4302
      %v4706 = vmul.f32 %v4591, %v4303
      %v4707 = vsel %vm527, %v4671, 0.0
      %v4708 = vsel %vm527, %v4672, 0.0
      %v4709 = vadd.f32 %v4707, %v4708
      %v4710 = vsel %vm527, %v4673, 0.0
      %v4711 = vadd.f32 %v4709, %v4710
      %v4712 = vsel %vm527, %v4674, 0.0
      %v4713 = vadd.f32 %v4711, %v4712
      %v4714 = vsel %vm527, %v4675, 0.0
      %v4715 = vadd.f32 %v4713, %v4714
      %v4716 = vsel %vm527, %v4676, 0.0
      %v4717 = vadd.f32 %v4715, %v4716
      %v4718 = vsel %vm527, %v4677, 0.0
      %v4719 = vadd.f32 %v4717, %v4718
      %v4720 = vsel %vm527, %v4678, 0.0
      %v4721 = vadd.f32 %v4719, %v4720
      %v4722 = vsel %vm527, %v4679, 0.0
      %v4723 = vadd.f32 %v4721, %v4722
      %v4724 = vsel %vm527, %v4680, 0.0
      %v4725 = vadd.f32 %v4723, %v4724
      %v4726 = vsel %vm527, %v4681, 0.0
      %v4727 = vadd.f32 %v4725, %v4726
      %v4728 = vsel %vm527, %v4682, 0.0
      %v4729 = vadd.f32 %v4727, %v4728
      %v4730 = vsel %vm527, %v4683, 0.0
      %v4731 = vadd.f32 %v4729, %v4730
      %v4732 = vsel %vm527, %v4684, 0.0
      %v4733 = vadd.f32 %v4731, %v4732
      %v4734 = vsel %vm527, %v4685, 0.0
      %v4735 = vadd.f32 %v4733, %v4734
      %v4736 = vsel %vm527, %v4686, 0.0
      %v4737 = vadd.f32 %v4735, %v4736
      %v4738 = vsel %vm527, %v4687, 0.0
      %v4739 = vadd.f32 %v4737, %v4738
      %v4740 = vsel %vm527, %v4688, 0.0
      %v4741 = vadd.f32 %v4739, %v4740
      %v4742 = vsel %vm527, %v4689, 0.0
      %v4743 = vadd.f32 %v4741, %v4742
      %v4744 = vsel %vm527, %v4690, 0.0
      %v4745 = vadd.f32 %v4743, %v4744
      %v4746 = vsel %vm527, %v4691, 0.0
      %v4747 = vadd.f32 %v4745, %v4746
      %v4748 = vsel %vm527, %v4692, 0.0
      %v4749 = vadd.f32 %v4747, %v4748
      %v4750 = vsel %vm527, %v4693, 0.0
      %v4751 = vadd.f32 %v4749, %v4750
      %v4752 = vsel %vm527, %v4694, 0.0
      %v4753 = vadd.f32 %v4751, %v4752
      %v4754 = vsel %vm527, %v4695, 0.0
      %v4755 = vadd.f32 %v4753, %v4754
      %v4756 = vsel %vm527, %v4696, 0.0
      %v4757 = vadd.f32 %v4755, %v4756
      %v4758 = vsel %vm527, %v4697, 0.0
      %v4759 = vadd.f32 %v4757, %v4758
      %v4760 = vsel %vm527, %v4698, 0.0
      %v4761 = vadd.f32 %v4759, %v4760
      %v4762 = vsel %vm527, %v4699, 0.0
      %v4763 = vadd.f32 %v4761, %v4762
      %v4764 = vsel %vm527, %v4700, 0.0
      %v4765 = vadd.f32 %v4763, %v4764
      %v4766 = vsel %vm527, %v4701, 0.0
      %v4767 = vadd.f32 %v4765, %v4766
      %v4768 = vsel %vm527, %v4702, 0.0
      %v4769 = vadd.f32 %v4767, %v4768
      %v4770 = vsel %vm527, %v4703, 0.0
      %v4771 = vadd.f32 %v4769, %v4770
      %v4772 = vsel %vm527, %v4704, 0.0
      %v4773 = vadd.f32 %v4771, %v4772
      %v4774 = vsel %vm527, %v4705, 0.0
      %v4775 = vadd.f32 %v4773, %v4774
      %v4776 = vsel %vm527, %v4706, 0.0
      %v4777 = vadd.f32 %v4775, %v4776
      %v4778 = vrot.slane %v4777, 4
      %v4779 = vadd.f32 %v4777, %v4778
      %v4780 = vrot.slane %v4779, 2
      %v4781 = vadd.f32 %v4779, %v4780
      %v4782 = vrot.slane %v4781, 1
      %v4783 = vadd.f32 %v4781, %v4782
      %4784 = vst.msk [vmem:[%s335] sm:$0x1] %vm4669, %v4783
      %p4785 = scmp.lt.s32.totalorder %s22, 1
      %s4786 = scalar_select %p4785, %s22, 1
      %p4787 = scmp.lt.s32.totalorder %s23, 0
      %s4788 = scalar_select %p4787, %s23, 0
      %s4789 = smul.addr %s4786, 36
      %s4790 = sadd.s32 %s4788, %s4789
      %s4791 = smul.addr %s4790, 8
      %s4792 = scalar_lea.vmem %s4, %s4791
      %p4793 = scmp.lt.s32.totalorder %s22, 1
      %s4794 = scalar_select %p4793, %s22, 1
      %p4795 = scmp.lt.s32.totalorder %s23, 0
      %s4796 = scalar_select %p4795, %s23, 0
      %s4797 = sadd.s32 %s4796, %s4794
      %s4798 = scalar_lea.vmem %s5, %s4797
      %p4799 = scmp.lt.s32.totalorder %s22, 1
      %s4800 = scalar_select %p4799, %s22, 1
      %p4801 = scmp.lt.s32.totalorder %s23, 0
      %s4802 = scalar_select %p4801, %s23, 0
      %s4803 = sadd.s32 %s4802, %s4800
      %s4804 = scalar_lea.vmem %s6, %s4803
      // Predicated region
      $region37: #{conv_unit_forward.6} parent=35 // pred_check
        %p4805 = pneg %p149
      $region38: #{conv_unit_forward.6} parent=35 // pred_check_branch
        %4807 = sbr.rel (%p4805) target = $region40
      $region39: #{conv_unit_forward.6} parent=35 // pred_region
        _
      $region40: #{conv_unit_forward.6} parent=35 // pred_fallthru
        _
      // Predicated region
      $region41: #{conv_unit_forward.6} parent=35 // pred_check
        %p4808 = pneg %p177
      $region42: #{conv_unit_forward.6} parent=35 // pred_check_branch
        %4810 = sbr.rel (%p4808) target = $region44
      $region43: #{conv_unit_forward.6} parent=35 // pred_region
        _
      $region44: #{conv_unit_forward.6} parent=35 // pred_fallthru
        _
      // Predicated region
      $region45: #{conv_unit_forward.6} parent=35 // pred_check
        %p4811 = pneg %p205
      $region46: #{conv_unit_forward.6} parent=35 // pred_check_branch
        %4813 = sbr.rel (%p4811) target = $region48
      $region47: #{conv_unit_forward.6} parent=35 // pred_region
        _
      $region48: #{conv_unit_forward.6} parent=35 // pred_fallthru
        _
    $region36: #{conv_unit_forward.6} parent=5 // pred_fallthru
      _
    %p4814 = scmp.le.s32.totalorder 2, %s13
    // Predicated region
    $region49: #{conv_unit_forward.6} parent=5 // pred_check
      %p4815 = pneg %p4814
    $region50: #{conv_unit_forward.6} parent=5 // pred_check_branch
      %4817 = sbr.rel (%p4815) target = $region52
    $region51: #{conv_unit_forward.6} parent=5 // pred_region
      %s4818 = ssub.s32 %s13, 2
      // Predicated region
      $region53: #{conv_unit_forward.6} parent=51 // pred_check
        %p4819 = pneg %p155
      $region54: #{conv_unit_forward.6} parent=51 // pred_check_branch
        %4821 = sbr.rel (%p4819) target = $region56
      $region55: #{conv_unit_forward.6} parent=51 // pred_region
        %p4822 = scmp.lt.s32.totalorder %s24, 1
        %s4823 = scalar_select %p4822, %s24, 1
        %p4824 = scmp.lt.s32.totalorder %s25, 0
        %s4825 = scalar_select %p4824, %s25, 0
        %s4826 = smul.addr %s4823, 36
        %s4827 = sadd.s32 %s4825, %s4826
        %s4828 = smul.addr %s4827, 8
        %s4829 = scalar_lea.vmem %s4, %s4828
      $region56: #{conv_unit_forward.6} parent=51 // pred_fallthru
        _
      // Predicated region
      $region57: #{conv_unit_forward.6} parent=51 // pred_check
        %p4830 = pneg %p183
      $region58: #{conv_unit_forward.6} parent=51 // pred_check_branch
        %4832 = sbr.rel (%p4830) target = $region60
      $region59: #{conv_unit_forward.6} parent=51 // pred_region
        %p4833 = scmp.lt.s32.totalorder %s24, 1
        %s4834 = scalar_select %p4833, %s24, 1
        %p4835 = scmp.lt.s32.totalorder %s25, 0
        %s4836 = scalar_select %p4835, %s25, 0
        %s4837 = sadd.s32 %s4836, %s4834
        %s4838 = scalar_lea.vmem %s5, %s4837
      $region60: #{conv_unit_forward.6} parent=51 // pred_fallthru
        _
      // Predicated region
      $region61: #{conv_unit_forward.6} parent=51 // pred_check
        %p4839 = pneg %p211
      $region62: #{conv_unit_forward.6} parent=51 // pred_check_branch
        %4841 = sbr.rel (%p4839) target = $region64
      $region63: #{conv_unit_forward.6} parent=51 // pred_region
        %p4842 = scmp.lt.s32.totalorder %s24, 1
        %s4843 = scalar_select %p4842, %s24, 1
        %p4844 = scmp.lt.s32.totalorder %s25, 0
        %s4845 = scalar_select %p4844, %s25, 0
        %s4846 = sadd.s32 %s4845, %s4843
        %s4847 = scalar_lea.vmem %s6, %s4846
      $region64: #{conv_unit_forward.6} parent=51 // pred_fallthru
        _
    $region52: #{conv_unit_forward.6} parent=5 // pred_fallthru
      _
  $region6: #{conv_unit_forward.6} parent=0 // loop_footer
    %s17 = sadd.s32 1, %s13
  $region7: #{conv_unit_forward.6} parent=0 // loop_footer_branch
    %12 = sbr.rel target = $region3
  $region8: #{conv_unit_forward.6} parent=0 // loop_exit
    _

</llo_original>
